<compile_context>
chip_gen: v6e
topology: v6e:2x2x1
jax: 0.10.0
libtpu: 0.0.40
codegen_flags: <defaults>
</compile_context>

<pallas_src>
import numpy as np

import jax
import jax.numpy as jnp
from jax.experimental import pallas as pl
from jax.experimental.pallas import tpu as pltpu


# ----------------------------- model config -----------------------------
B = 2            # batch
C_IN = 4         # input channels
D, H, W = 8, 16, 16
KSZ = 3          # conv kernel size (cubic), padding=1, stride=1
DIM_FEATS = 32   # backbone feature dim (conv out channels)
NUM_CLASSES = 2  # fc out features

DP, HP, WP = D + 2, H + 2, W + 2      # zero-padded spatial extents
S_TOTAL = D * H * W                   # 2048 spatial positions
K_LANES = WP * C_IN                   # 72  (ww, c) contraction lanes
N_LANES = W * DIM_FEATS               # 512 (w, f) output lanes


# ------------------------------ Pallas kernel ------------------------------
def make_net3d_kernel(bb):
    """Build the kernel for `bb` batch elements per grid step.

    x_ref:     (bb, DP, HP, WP*Cin)  bf16 padded, channels-fastest input
    wband_ref: (9, WP*Cin, W*F)      bf16 banded conv weights, one per (kd,kh)
    bias_ref:  (1, W*F)              f32  conv bias tiled over w
    wfcT_ref:  (NUM_CLASSES, W*F)    f32  fc weight (already / S_TOTAL), tiled
    bfc_ref:   (1, NUM_CLASSES)      f32
    out_ref:   (bb, NUM_CLASSES)     f32
    acc_ref:   (bb*D*H, W*F)         f32  VMEM scratch accumulator
    """
    m_per_b = D * H                              # 128 rows per batch element

    def kernel(x_ref, wband_ref, bias_ref, wfcT_ref, bfc_ref, out_ref,
               acc_ref):
        # ---- conv: 9 banded matmuls, M fused over (batch, depth, height) ----
        for i in range(KSZ * KSZ):               # static unroll, 9 planes
            kd, kh = divmod(i, KSZ)
            # Shifted slab(s): (D, H, WP*Cin) -> (D*H, WP*Cin), bf16.
            slabs = [x_ref[b, kd:kd + D, kh:kh + H, :].reshape(m_per_b, K_LANES)
                     for b in range(bb)]
            lhs = slabs[0] if bb == 1 else jnp.concatenate(slabs, axis=0)
            # Banded matmul folds the kw shift + Cin contraction:
            # (M, 72) @ (72, 512) on the MXU, f32 accumulation.
            prod = jnp.dot(lhs, wband_ref[i],
                           preferred_element_type=jnp.float32)
            if i == 0:
                acc_ref[...] = prod              # overwrite stale scratch
            else:
                acc_ref[...] += prod             # single-target acc chain

        # ---- bias + ReLU once over the fused (M, 512) activation ----
        acc_ref[...] = jnp.maximum(acc_ref[...] + bias_ref[...], 0.0)

        # ---- global-average-pool + fc head (VPU + XLU, no tiny MXU op) ----
        # wfcT already carries the 1/S_TOTAL pooling scale; dropout == id.
        for b in range(bb):
            rs = jnp.sum(acc_ref[b * m_per_b:(b + 1) * m_per_b, :],
                         axis=0, keepdims=True)                  # (1, 512)
            for c in range(NUM_CLASSES):
                val = jnp.sum(rs * wfcT_ref[c:c + 1, :],
                              axis=1, keepdims=True) + bfc_ref[:, c:c + 1]
                out_ref[b:b + 1, c:c + 1] = val.astype(out_ref.dtype)

    return kernel


def pick_batch_block():
    """bb=1 (grid over batch) on dual-TensorCore chips so the two cores split
    the batch; otherwise fold the whole batch into one grid step (M=256)."""
    try:
        kind = jax.devices()[0].device_kind.lower()
    except Exception:  # pragma: no cover - defensive only
        kind = ""
    return 1 if "v7" in kind else B


def net3d_forward(x_pc, w_band, bias_row, wfcT, b_fc_row, *, batch_block=None):
    """x_pc: (B, DP, HP, WP*Cin) bf16 -> logits (B, NUM_CLASSES) f32."""
    bb = pick_batch_block() if batch_block is None else batch_block
    return pl.pallas_call(
        make_net3d_kernel(bb),
        out_shape=jax.ShapeDtypeStruct((B, NUM_CLASSES), jnp.float32),
        grid_spec=pltpu.PrefetchScalarGridSpec(
            num_scalar_prefetch=0,
            grid=(B // bb,),
            in_specs=[
                pl.BlockSpec((bb, DP, HP, K_LANES), lambda g: (g, 0, 0, 0)),
                # Constant index_map -> banded weights DMA'd once per call.
                pl.BlockSpec((KSZ * KSZ, K_LANES, N_LANES),
                             lambda g: (0, 0, 0)),
                pl.BlockSpec((1, N_LANES), lambda g: (0, 0)),
                pl.BlockSpec((NUM_CLASSES, N_LANES), lambda g: (0, 0)),
                pl.BlockSpec((1, NUM_CLASSES), lambda g: (0, 0)),
            ],
            out_specs=pl.BlockSpec((bb, NUM_CLASSES), lambda g: (g, 0)),
            scratch_shapes=[pltpu.VMEM((bb * D * H, N_LANES), jnp.float32)],
        ),
        compiler_params=pltpu.CompilerParams(
            dimension_semantics=("parallel",)),
    )(x_pc, w_band, bias_row, wfcT, b_fc_row)


# ------------------------------ host-side glue ------------------------------
def prepare_input(x):
    """NCDHW (B, Cin, D, H, W) f32 -> padded channels-fastest bf16
    (B, DP, HP, WP*Cin).  Pad + transpose + cast of the ~64 KB raw tensor."""
    xp = jnp.pad(x, ((0, 0), (0, 0), (1, 1), (1, 1), (1, 1)))
    xp = jnp.transpose(xp, (0, 2, 3, 4, 1))           # (B, DP, HP, WP, Cin)
    return xp.reshape(B, DP, HP, K_LANES).astype(jnp.bfloat16)


def prepare_weights(w_conv5d, b_conv, w_fc, b_fc):
    """One-time weight-layout transform (model-load time, not per forward).

    wband[kd*3+kh, ww*Cin + c, w*F + f] = w_conv5d[f, c, kd, kh, ww - w]
    for 0 <= ww - w < KSZ, else 0."""
    w_np = np.asarray(w_conv5d, np.float32)           # (F, Cin, 3, 3, 3)
    wband = np.zeros((KSZ * KSZ, K_LANES, N_LANES), np.float32)
    for kd in range(KSZ):
        for kh in range(KSZ):
            for kw in range(KSZ):
                blk = w_np[:, :, kd, kh, kw].T        # (Cin, F)
                for w in range(W):
                    ww = w + kw
                    wband[kd * KSZ + kh,
                          ww * C_IN:(ww + 1) * C_IN,
                          w * DIM_FEATS:(w + 1) * DIM_FEATS] = blk
    wband = jnp.asarray(wband).astype(jnp.bfloat16)   # halve the weight stream

    bias_row = jnp.tile(b_conv.reshape(1, DIM_FEATS), (1, W))        # (1, 512)
    # fc weight tiled over w, pooling scale folded in, stored transposed so
    # the in-kernel fc is a lane-wise multiply + reduce: (C, 512).
    wfcT = (jnp.tile(w_fc, (W, 1)) / jnp.float32(S_TOTAL)).T
    b_fc_row = b_fc.reshape(1, NUM_CLASSES)
    return wband, bias_row, wfcT, b_fc_row


def init_params(key):
    k1, k2, k3, k4 = jax.random.split(key, 4)
    # torch Conv3d weight layout: (F, Cin, kD, kH, kW)
    w_conv5d = jax.random.normal(k1, (DIM_FEATS, C_IN, KSZ, KSZ, KSZ),
                                 jnp.float32) * 0.05
    b_conv = jax.random.normal(k2, (DIM_FEATS,), jnp.float32) * 0.05
    w_fc = jax.random.normal(k3, (DIM_FEATS, NUM_CLASSES), jnp.float32) * 0.05
    b_fc = jax.random.normal(k4, (NUM_CLASSES,), jnp.float32) * 0.05
    return w_conv5d, b_conv, w_fc, b_fc


def reference(x, w_conv5d, b_conv, w_fc, b_fc):
    """Pure f32 reference: Conv3d(k=3, p=1) + bias + ReLU + GAP + Linear."""
    xp = jnp.pad(x, ((0, 0), (0, 0), (1, 1), (1, 1), (1, 1)))
    y = jnp.zeros((B, DIM_FEATS, D, H, W), jnp.float32)
    for kd in range(KSZ):
        for kh in range(KSZ):
            for kw in range(KSZ):
                patch = xp[:, :, kd:kd + D, kh:kh + H, kw:kw + W]
                y = y + jnp.einsum('bcdhw,fc->bfdhw', patch,
                                   w_conv5d[:, :, kd, kh, kw])
    y = jnp.maximum(y + b_conv.reshape(1, DIM_FEATS, 1, 1, 1), 0.0)
    feat = jnp.mean(y, axis=(2, 3, 4))                 # (B, F)
    return feat @ w_fc + b_fc.reshape(1, NUM_CLASSES)  # (B, C)


if __name__ == "__main__":
    key = jax.random.PRNGKey(0)
    kx, kp = jax.random.split(key)
    x = jax.random.normal(kx, (B, C_IN, D, H, W), jnp.float32)  # NCDHW input

    w_conv5d, b_conv, w_fc, b_fc = init_params(kp)
    wband, bias_row, wfcT, b_fc_row = prepare_weights(
        w_conv5d, b_conv, w_fc, b_fc)
    x_pc = prepare_input(x)

    logits = net3d_forward(x_pc, wband, bias_row, wfcT, b_fc_row)
    logits = jax.block_until_ready(logits)

    ref = reference(x, w_conv5d, b_conv, w_fc, b_fc)
    assert logits.shape == (B, NUM_CLASSES)
    # bf16 conv operands with f32 accumulation -> loosened tolerance.
    assert jnp.allclose(logits, ref, atol=2e-2, rtol=2e-2), (logits, ref)
    print("KERNEL_OK")
</pallas_src>

<mosaic_0001>
module attributes {stable_mosaic.version = 11 : i64} {
  func.func @kernel(%arg0: i32, %arg1: memref<2x10x18x72xbf16, #tpu.memory_space<vmem>>, %arg2: memref<9x72x512xbf16, #tpu.memory_space<vmem>>, %arg3: memref<1x512xf32, #tpu.memory_space<vmem>>, %arg4: memref<2x512xf32, #tpu.memory_space<vmem>>, %arg5: memref<1x2xf32, #tpu.memory_space<vmem>>, %arg6: memref<2x2xf32, #tpu.memory_space<vmem>>, %arg7: memref<256x512xf32, #tpu.memory_space<vmem>>) attributes {dimension_semantics = [#tpu.dimension_semantics<parallel>], iteration_bounds = array<i64: 1>, scalar_prefetch = 0 : i64, scratch_operands = 1 : i64, tpu.core_type = #tpu.core_type<tc>, window_params = [{transform_indices = @transform_0, window_bounds = array<i64: 2, 10, 18, 72>}, {pipeline_mode = #tpu.pipeline_mode<synchronous>, transform_indices = @transform_1, window_bounds = array<i64: 9, 72, 512>}, {pipeline_mode = #tpu.pipeline_mode<synchronous>, transform_indices = @transform_2, window_bounds = array<i64: 1, 512>}, {pipeline_mode = #tpu.pipeline_mode<synchronous>, transform_indices = @transform_3, window_bounds = array<i64: 2, 512>}, {pipeline_mode = #tpu.pipeline_mode<synchronous>, transform_indices = @transform_4, window_bounds = array<i64: 1, 2>}, {transform_indices = @transform_5, window_bounds = array<i64: 2, 2>}]} {
    %c0 = arith.constant 0 : index
    %c0_0 = arith.constant 0 : index
    %c0_1 = arith.constant 0 : index
    %c0_2 = arith.constant 0 : index
    %0 = vector.load %arg1[%c0, %c0_0, %c0_1, %c0_2] : memref<2x10x18x72xbf16, #tpu.memory_space<vmem>>, vector<1x8x16x72xbf16>
    %1 = vector.shape_cast %0 : vector<1x8x16x72xbf16> to vector<8x16x72xbf16>
    %2 = vector.shape_cast %1 : vector<8x16x72xbf16> to vector<128x72xbf16>
    %c1 = arith.constant 1 : index
    %c0_3 = arith.constant 0 : index
    %c0_4 = arith.constant 0 : index
    %c0_5 = arith.constant 0 : index
    %3 = vector.load %arg1[%c1, %c0_3, %c0_4, %c0_5] : memref<2x10x18x72xbf16, #tpu.memory_space<vmem>>, vector<1x8x16x72xbf16>
    %4 = vector.shape_cast %3 : vector<1x8x16x72xbf16> to vector<8x16x72xbf16>
    %5 = vector.shape_cast %4 : vector<8x16x72xbf16> to vector<128x72xbf16>
    %6 = tpu.concatenate %2, %5 in 0 : vector<128x72xbf16>, vector<128x72xbf16> -> vector<256x72xbf16>
    %c0_6 = arith.constant 0 : index
    %c0_7 = arith.constant 0 : index
    %c0_8 = arith.constant 0 : index
    %7 = vector.load %arg2[%c0_6, %c0_7, %c0_8] : memref<9x72x512xbf16, #tpu.memory_space<vmem>>, vector<1x72x512xbf16>
    %8 = vector.shape_cast %7 : vector<1x72x512xbf16> to vector<72x512xbf16>
    %cst = arith.constant dense<0.000000e+00> : vector<256x512xf32>
    %9 = tpu.matmul %6, %8, %cst {dimension_numbers = #tpu.dot_dimension_numbers<[1], [0], [0], [1], [0, 0, 1, 1], [], []>} : vector<256x72xbf16>, vector<72x512xbf16>, vector<256x512xf32> -> vector<256x512xf32>
    %c0_9 = arith.constant 0 : index
    %c0_10 = arith.constant 0 : index
    %10 = vector.load %arg7[%c0_9, %c0_10] : memref<256x512xf32, #tpu.memory_space<vmem>>, vector<256x512xf32>
    tpu.vector_store %arg7[%c0_9, %c0_10], %9 {strides = array<i32>} : memref<256x512xf32, #tpu.memory_space<vmem>>, vector<256x512xf32>,
    %c0_11 = arith.constant 0 : index
    %c0_12 = arith.constant 0 : index
    %c1_13 = arith.constant 1 : index
    %c0_14 = arith.constant 0 : index
    %11 = vector.load %arg1[%c0_11, %c0_12, %c1_13, %c0_14] : memref<2x10x18x72xbf16, #tpu.memory_space<vmem>>, vector<1x8x16x72xbf16>
    %12 = vector.shape_cast %11 : vector<1x8x16x72xbf16> to vector<8x16x72xbf16>
    %13 = vector.shape_cast %12 : vector<8x16x72xbf16> to vector<128x72xbf16>
    %c1_15 = arith.constant 1 : index
    %c0_16 = arith.constant 0 : index
    %c1_17 = arith.constant 1 : index
    %c0_18 = arith.constant 0 : index
    %14 = vector.load %arg1[%c1_15, %c0_16, %c1_17, %c0_18] : memref<2x10x18x72xbf16, #tpu.memory_space<vmem>>, vector<1x8x16x72xbf16>
    %15 = vector.shape_cast %14 : vector<1x8x16x72xbf16> to vector<8x16x72xbf16>
    %16 = vector.shape_cast %15 : vector<8x16x72xbf16> to vector<128x72xbf16>
    %17 = tpu.concatenate %13, %16 in 0 : vector<128x72xbf16>, vector<128x72xbf16> -> vector<256x72xbf16>
    %c1_19 = arith.constant 1 : index
    %c0_20 = arith.constant 0 : index
    %c0_21 = arith.constant 0 : index
    %18 = vector.load %arg2[%c1_19, %c0_20, %c0_21] : memref<9x72x512xbf16, #tpu.memory_space<vmem>>, vector<1x72x512xbf16>
    %19 = vector.shape_cast %18 : vector<1x72x512xbf16> to vector<72x512xbf16>
    %cst_22 = arith.constant dense<0.000000e+00> : vector<256x512xf32>
    %20 = tpu.matmul %17, %19, %cst_22 {dimension_numbers = #tpu.dot_dimension_numbers<[1], [0], [0], [1], [0, 0, 1, 1], [], []>} : vector<256x72xbf16>, vector<72x512xbf16>, vector<256x512xf32> -> vector<256x512xf32>
    %c0_23 = arith.constant 0 : index
    %c0_24 = arith.constant 0 : index
    %21 = vector.load %arg7[%c0_23, %c0_24] : memref<256x512xf32, #tpu.memory_space<vmem>>, vector<256x512xf32>
    %22 = arith.addf %21, %20 : vector<256x512xf32>
    %c0_25 = arith.constant 0 : index
    %c0_26 = arith.constant 0 : index
    %23 = vector.load %arg7[%c0_25, %c0_26] : memref<256x512xf32, #tpu.memory_space<vmem>>, vector<256x512xf32>
    tpu.vector_store %arg7[%c0_25, %c0_26], %22 {strides = array<i32>} : memref<256x512xf32, #tpu.memory_space<vmem>>, vector<256x512xf32>,
    %c0_27 = arith.constant 0 : index
    %c0_28 = arith.constant 0 : index
    %c2 = arith.constant 2 : index
    %c0_29 = arith.constant 0 : index
    %24 = vector.load %arg1[%c0_27, %c0_28, %c2, %c0_29] : memref<2x10x18x72xbf16, #tpu.memory_space<vmem>>, vector<1x8x16x72xbf16>
    %25 = vector.shape_cast %24 : vector<1x8x16x72xbf16> to vector<8x16x72xbf16>
    %26 = vector.shape_cast %25 : vector<8x16x72xbf16> to vector<128x72xbf16>
    %c1_30 = arith.constant 1 : index
    %c0_31 = arith.constant 0 : index
    %c2_32 = arith.constant 2 : index
    %c0_33 = arith.constant 0 : index
    %27 = vector.load %arg1[%c1_30, %c0_31, %c2_32, %c0_33] : memref<2x10x18x72xbf16, #tpu.memory_space<vmem>>, vector<1x8x16x72xbf16>
    %28 = vector.shape_cast %27 : vector<1x8x16x72xbf16> to vector<8x16x72xbf16>
    %29 = vector.shape_cast %28 : vector<8x16x72xbf16> to vector<128x72xbf16>
    %30 = tpu.concatenate %26, %29 in 0 : vector<128x72xbf16>, vector<128x72xbf16> -> vector<256x72xbf16>
    %c2_34 = arith.constant 2 : index
    %c0_35 = arith.constant 0 : index
    %c0_36 = arith.constant 0 : index
    %31 = vector.load %arg2[%c2_34, %c0_35, %c0_36] : memref<9x72x512xbf16, #tpu.memory_space<vmem>>, vector<1x72x512xbf16>
    %32 = vector.shape_cast %31 : vector<1x72x512xbf16> to vector<72x512xbf16>
    %cst_37 = arith.constant dense<0.000000e+00> : vector<256x512xf32>
    %33 = tpu.matmul %30, %32, %cst_37 {dimension_numbers = #tpu.dot_dimension_numbers<[1], [0], [0], [1], [0, 0, 1, 1], [], []>} : vector<256x72xbf16>, vector<72x512xbf16>, vector<256x512xf32> -> vector<256x512xf32>
    %c0_38 = arith.constant 0 : index
    %c0_39 = arith.constant 0 : index
    %34 = vector.load %arg7[%c0_38, %c0_39] : memref<256x512xf32, #tpu.memory_space<vmem>>, vector<256x512xf32>
    %35 = arith.addf %34, %33 : vector<256x512xf32>
    %c0_40 = arith.constant 0 : index
    %c0_41 = arith.constant 0 : index
    %36 = vector.load %arg7[%c0_40, %c0_41] : memref<256x512xf32, #tpu.memory_space<vmem>>, vector<256x512xf32>
    tpu.vector_store %arg7[%c0_40, %c0_41], %35 {strides = array<i32>} : memref<256x512xf32, #tpu.memory_space<vmem>>, vector<256x512xf32>,
    %c0_42 = arith.constant 0 : index
    %c1_43 = arith.constant 1 : index
    %c0_44 = arith.constant 0 : index
    %c0_45 = arith.constant 0 : index
    %37 = vector.load %arg1[%c0_42, %c1_43, %c0_44, %c0_45] : memref<2x10x18x72xbf16, #tpu.memory_space<vmem>>, vector<1x8x16x72xbf16>
    %38 = vector.shape_cast %37 : vector<1x8x16x72xbf16> to vector<8x16x72xbf16>
    %39 = vector.shape_cast %38 : vector<8x16x72xbf16> to vector<128x72xbf16>
    %c1_46 = arith.constant 1 : index
    %c1_47 = arith.constant 1 : index
    %c0_48 = arith.constant 0 : index
    %c0_49 = arith.constant 0 : index
    %40 = vector.load %arg1[%c1_46, %c1_47, %c0_48, %c0_49] : memref<2x10x18x72xbf16, #tpu.memory_space<vmem>>, vector<1x8x16x72xbf16>
    %41 = vector.shape_cast %40 : vector<1x8x16x72xbf16> to vector<8x16x72xbf16>
    %42 = vector.shape_cast %41 : vector<8x16x72xbf16> to vector<128x72xbf16>
    %43 = tpu.concatenate %39, %42 in 0 : vector<128x72xbf16>, vector<128x72xbf16> -> vector<256x72xbf16>
    %c3 = arith.constant 3 : index
    %c0_50 = arith.constant 0 : index
    %c0_51 = arith.constant 0 : index
    %44 = vector.load %arg2[%c3, %c0_50, %c0_51] : memref<9x72x512xbf16, #tpu.memory_space<vmem>>, vector<1x72x512xbf16>
    %45 = vector.shape_cast %44 : vector<1x72x512xbf16> to vector<72x512xbf16>
    %cst_52 = arith.constant dense<0.000000e+00> : vector<256x512xf32>
    %46 = tpu.matmul %43, %45, %cst_52 {dimension_numbers = #tpu.dot_dimension_numbers<[1], [0], [0], [1], [0, 0, 1, 1], [], []>} : vector<256x72xbf16>, vector<72x512xbf16>, vector<256x512xf32> -> vector<256x512xf32>
    %c0_53 = arith.constant 0 : index
    %c0_54 = arith.constant 0 : index
    %47 = vector.load %arg7[%c0_53, %c0_54] : memref<256x512xf32, #tpu.memory_space<vmem>>, vector<256x512xf32>
    %48 = arith.addf %47, %46 : vector<256x512xf32>
    %c0_55 = arith.constant 0 : index
    %c0_56 = arith.constant 0 : index
    %49 = vector.load %arg7[%c0_55, %c0_56] : memref<256x512xf32, #tpu.memory_space<vmem>>, vector<256x512xf32>
    tpu.vector_store %arg7[%c0_55, %c0_56], %48 {strides = array<i32>} : memref<256x512xf32, #tpu.memory_space<vmem>>, vector<256x512xf32>,
    %c0_57 = arith.constant 0 : index
    %c1_58 = arith.constant 1 : index
    %c1_59 = arith.constant 1 : index
    %c0_60 = arith.constant 0 : index
    %50 = vector.load %arg1[%c0_57, %c1_58, %c1_59, %c0_60] : memref<2x10x18x72xbf16, #tpu.memory_space<vmem>>, vector<1x8x16x72xbf16>
    %51 = vector.shape_cast %50 : vector<1x8x16x72xbf16> to vector<8x16x72xbf16>
    %52 = vector.shape_cast %51 : vector<8x16x72xbf16> to vector<128x72xbf16>
    %c1_61 = arith.constant 1 : index
    %c1_62 = arith.constant 1 : index
    %c1_63 = arith.constant 1 : index
    %c0_64 = arith.constant 0 : index
    %53 = vector.load %arg1[%c1_61, %c1_62, %c1_63, %c0_64] : memref<2x10x18x72xbf16, #tpu.memory_space<vmem>>, vector<1x8x16x72xbf16>
    %54 = vector.shape_cast %53 : vector<1x8x16x72xbf16> to vector<8x16x72xbf16>
    %55 = vector.shape_cast %54 : vector<8x16x72xbf16> to vector<128x72xbf16>
    %56 = tpu.concatenate %52, %55 in 0 : vector<128x72xbf16>, vector<128x72xbf16> -> vector<256x72xbf16>
    %c4 = arith.constant 4 : index
    %c0_65 = arith.constant 0 : index
    %c0_66 = arith.constant 0 : index
    %57 = vector.load %arg2[%c4, %c0_65, %c0_66] : memref<9x72x512xbf16, #tpu.memory_space<vmem>>, vector<1x72x512xbf16>
    %58 = vector.shape_cast %57 : vector<1x72x512xbf16> to vector<72x512xbf16>
    %cst_67 = arith.constant dense<0.000000e+00> : vector<256x512xf32>
    %59 = tpu.matmul %56, %58, %cst_67 {dimension_numbers = #tpu.dot_dimension_numbers<[1], [0], [0], [1], [0, 0, 1, 1], [], []>} : vector<256x72xbf16>, vector<72x512xbf16>, vector<256x512xf32> -> vector<256x512xf32>
    %c0_68 = arith.constant 0 : index
    %c0_69 = arith.constant 0 : index
    %60 = vector.load %arg7[%c0_68, %c0_69] : memref<256x512xf32, #tpu.memory_space<vmem>>, vector<256x512xf32>
    %61 = arith.addf %60, %59 : vector<256x512xf32>
    %c0_70 = arith.constant 0 : index
    %c0_71 = arith.constant 0 : index
    %62 = vector.load %arg7[%c0_70, %c0_71] : memref<256x512xf32, #tpu.memory_space<vmem>>, vector<256x512xf32>
    tpu.vector_store %arg7[%c0_70, %c0_71], %61 {strides = array<i32>} : memref<256x512xf32, #tpu.memory_space<vmem>>, vector<256x512xf32>,
    %c0_72 = arith.constant 0 : index
    %c1_73 = arith.constant 1 : index
    %c2_74 = arith.constant 2 : index
    %c0_75 = arith.constant 0 : index
    %63 = vector.load %arg1[%c0_72, %c1_73, %c2_74, %c0_75] : memref<2x10x18x72xbf16, #tpu.memory_space<vmem>>, vector<1x8x16x72xbf16>
    %64 = vector.shape_cast %63 : vector<1x8x16x72xbf16> to vector<8x16x72xbf16>
    %65 = vector.shape_cast %64 : vector<8x16x72xbf16> to vector<128x72xbf16>
    %c1_76 = arith.constant 1 : index
    %c1_77 = arith.constant 1 : index
    %c2_78 = arith.constant 2 : index
    %c0_79 = arith.constant 0 : index
    %66 = vector.load %arg1[%c1_76, %c1_77, %c2_78, %c0_79] : memref<2x10x18x72xbf16, #tpu.memory_space<vmem>>, vector<1x8x16x72xbf16>
    %67 = vector.shape_cast %66 : vector<1x8x16x72xbf16> to vector<8x16x72xbf16>
    %68 = vector.shape_cast %67 : vector<8x16x72xbf16> to vector<128x72xbf16>
    %69 = tpu.concatenate %65, %68 in 0 : vector<128x72xbf16>, vector<128x72xbf16> -> vector<256x72xbf16>
    %c5 = arith.constant 5 : index
    %c0_80 = arith.constant 0 : index
    %c0_81 = arith.constant 0 : index
    %70 = vector.load %arg2[%c5, %c0_80, %c0_81] : memref<9x72x512xbf16, #tpu.memory_space<vmem>>, vector<1x72x512xbf16>
    %71 = vector.shape_cast %70 : vector<1x72x512xbf16> to vector<72x512xbf16>
    %cst_82 = arith.constant dense<0.000000e+00> : vector<256x512xf32>
    %72 = tpu.matmul %69, %71, %cst_82 {dimension_numbers = #tpu.dot_dimension_numbers<[1], [0], [0], [1], [0, 0, 1, 1], [], []>} : vector<256x72xbf16>, vector<72x512xbf16>, vector<256x512xf32> -> vector<256x512xf32>
    %c0_83 = arith.constant 0 : index
    %c0_84 = arith.constant 0 : index
    %73 = vector.load %arg7[%c0_83, %c0_84] : memref<256x512xf32, #tpu.memory_space<vmem>>, vector<256x512xf32>
    %74 = arith.addf %73, %72 : vector<256x512xf32>
    %c0_85 = arith.constant 0 : index
    %c0_86 = arith.constant 0 : index
    %75 = vector.load %arg7[%c0_85, %c0_86] : memref<256x512xf32, #tpu.memory_space<vmem>>, vector<256x512xf32>
    tpu.vector_store %arg7[%c0_85, %c0_86], %74 {strides = array<i32>} : memref<256x512xf32, #tpu.memory_space<vmem>>, vector<256x512xf32>,
    %c0_87 = arith.constant 0 : index
    %c2_88 = arith.constant 2 : index
    %c0_89 = arith.constant 0 : index
    %c0_90 = arith.constant 0 : index
    %76 = vector.load %arg1[%c0_87, %c2_88, %c0_89, %c0_90] : memref<2x10x18x72xbf16, #tpu.memory_space<vmem>>, vector<1x8x16x72xbf16>
    %77 = vector.shape_cast %76 : vector<1x8x16x72xbf16> to vector<8x16x72xbf16>
    %78 = vector.shape_cast %77 : vector<8x16x72xbf16> to vector<128x72xbf16>
    %c1_91 = arith.constant 1 : index
    %c2_92 = arith.constant 2 : index
    %c0_93 = arith.constant 0 : index
    %c0_94 = arith.constant 0 : index
    %79 = vector.load %arg1[%c1_91, %c2_92, %c0_93, %c0_94] : memref<2x10x18x72xbf16, #tpu.memory_space<vmem>>, vector<1x8x16x72xbf16>
    %80 = vector.shape_cast %79 : vector<1x8x16x72xbf16> to vector<8x16x72xbf16>
    %81 = vector.shape_cast %80 : vector<8x16x72xbf16> to vector<128x72xbf16>
    %82 = tpu.concatenate %78, %81 in 0 : vector<128x72xbf16>, vector<128x72xbf16> -> vector<256x72xbf16>
    %c6 = arith.constant 6 : index
    %c0_95 = arith.constant 0 : index
    %c0_96 = arith.constant 0 : index
    %83 = vector.load %arg2[%c6, %c0_95, %c0_96] : memref<9x72x512xbf16, #tpu.memory_space<vmem>>, vector<1x72x512xbf16>
    %84 = vector.shape_cast %83 : vector<1x72x512xbf16> to vector<72x512xbf16>
    %cst_97 = arith.constant dense<0.000000e+00> : vector<256x512xf32>
    %85 = tpu.matmul %82, %84, %cst_97 {dimension_numbers = #tpu.dot_dimension_numbers<[1], [0], [0], [1], [0, 0, 1, 1], [], []>} : vector<256x72xbf16>, vector<72x512xbf16>, vector<256x512xf32> -> vector<256x512xf32>
    %c0_98 = arith.constant 0 : index
    %c0_99 = arith.constant 0 : index
    %86 = vector.load %arg7[%c0_98, %c0_99] : memref<256x512xf32, #tpu.memory_space<vmem>>, vector<256x512xf32>
    %87 = arith.addf %86, %85 : vector<256x512xf32>
    %c0_100 = arith.constant 0 : index
    %c0_101 = arith.constant 0 : index
    %88 = vector.load %arg7[%c0_100, %c0_101] : memref<256x512xf32, #tpu.memory_space<vmem>>, vector<256x512xf32>
    tpu.vector_store %arg7[%c0_100, %c0_101], %87 {strides = array<i32>} : memref<256x512xf32, #tpu.memory_space<vmem>>, vector<256x512xf32>,
    %c0_102 = arith.constant 0 : index
    %c2_103 = arith.constant 2 : index
    %c1_104 = arith.constant 1 : index
    %c0_105 = arith.constant 0 : index
    %89 = vector.load %arg1[%c0_102, %c2_103, %c1_104, %c0_105] : memref<2x10x18x72xbf16, #tpu.memory_space<vmem>>, vector<1x8x16x72xbf16>
    %90 = vector.shape_cast %89 : vector<1x8x16x72xbf16> to vector<8x16x72xbf16>
    %91 = vector.shape_cast %90 : vector<8x16x72xbf16> to vector<128x72xbf16>
    %c1_106 = arith.constant 1 : index
    %c2_107 = arith.constant 2 : index
    %c1_108 = arith.constant 1 : index
    %c0_109 = arith.constant 0 : index
    %92 = vector.load %arg1[%c1_106, %c2_107, %c1_108, %c0_109] : memref<2x10x18x72xbf16, #tpu.memory_space<vmem>>, vector<1x8x16x72xbf16>
    %93 = vector.shape_cast %92 : vector<1x8x16x72xbf16> to vector<8x16x72xbf16>
    %94 = vector.shape_cast %93 : vector<8x16x72xbf16> to vector<128x72xbf16>
    %95 = tpu.concatenate %91, %94 in 0 : vector<128x72xbf16>, vector<128x72xbf16> -> vector<256x72xbf16>
    %c7 = arith.constant 7 : index
    %c0_110 = arith.constant 0 : index
    %c0_111 = arith.constant 0 : index
    %96 = vector.load %arg2[%c7, %c0_110, %c0_111] : memref<9x72x512xbf16, #tpu.memory_space<vmem>>, vector<1x72x512xbf16>
    %97 = vector.shape_cast %96 : vector<1x72x512xbf16> to vector<72x512xbf16>
    %cst_112 = arith.constant dense<0.000000e+00> : vector<256x512xf32>
    %98 = tpu.matmul %95, %97, %cst_112 {dimension_numbers = #tpu.dot_dimension_numbers<[1], [0], [0], [1], [0, 0, 1, 1], [], []>} : vector<256x72xbf16>, vector<72x512xbf16>, vector<256x512xf32> -> vector<256x512xf32>
    %c0_113 = arith.constant 0 : index
    %c0_114 = arith.constant 0 : index
    %99 = vector.load %arg7[%c0_113, %c0_114] : memref<256x512xf32, #tpu.memory_space<vmem>>, vector<256x512xf32>
    %100 = arith.addf %99, %98 : vector<256x512xf32>
    %c0_115 = arith.constant 0 : index
    %c0_116 = arith.constant 0 : index
    %101 = vector.load %arg7[%c0_115, %c0_116] : memref<256x512xf32, #tpu.memory_space<vmem>>, vector<256x512xf32>
    tpu.vector_store %arg7[%c0_115, %c0_116], %100 {strides = array<i32>} : memref<256x512xf32, #tpu.memory_space<vmem>>, vector<256x512xf32>,
    %c0_117 = arith.constant 0 : index
    %c2_118 = arith.constant 2 : index
    %c2_119 = arith.constant 2 : index
    %c0_120 = arith.constant 0 : index
    %102 = vector.load %arg1[%c0_117, %c2_118, %c2_119, %c0_120] : memref<2x10x18x72xbf16, #tpu.memory_space<vmem>>, vector<1x8x16x72xbf16>
    %103 = vector.shape_cast %102 : vector<1x8x16x72xbf16> to vector<8x16x72xbf16>
    %104 = vector.shape_cast %103 : vector<8x16x72xbf16> to vector<128x72xbf16>
    %c1_121 = arith.constant 1 : index
    %c2_122 = arith.constant 2 : index
    %c2_123 = arith.constant 2 : index
    %c0_124 = arith.constant 0 : index
    %105 = vector.load %arg1[%c1_121, %c2_122, %c2_123, %c0_124] : memref<2x10x18x72xbf16, #tpu.memory_space<vmem>>, vector<1x8x16x72xbf16>
    %106 = vector.shape_cast %105 : vector<1x8x16x72xbf16> to vector<8x16x72xbf16>
    %107 = vector.shape_cast %106 : vector<8x16x72xbf16> to vector<128x72xbf16>
    %108 = tpu.concatenate %104, %107 in 0 : vector<128x72xbf16>, vector<128x72xbf16> -> vector<256x72xbf16>
    %c8 = arith.constant 8 : index
    %c0_125 = arith.constant 0 : index
    %c0_126 = arith.constant 0 : index
    %109 = vector.load %arg2[%c8, %c0_125, %c0_126] : memref<9x72x512xbf16, #tpu.memory_space<vmem>>, vector<1x72x512xbf16>
    %110 = vector.shape_cast %109 : vector<1x72x512xbf16> to vector<72x512xbf16>
    %cst_127 = arith.constant dense<0.000000e+00> : vector<256x512xf32>
    %111 = tpu.matmul %108, %110, %cst_127 {dimension_numbers = #tpu.dot_dimension_numbers<[1], [0], [0], [1], [0, 0, 1, 1], [], []>} : vector<256x72xbf16>, vector<72x512xbf16>, vector<256x512xf32> -> vector<256x512xf32>
    %c0_128 = arith.constant 0 : index
    %c0_129 = arith.constant 0 : index
    %112 = vector.load %arg7[%c0_128, %c0_129] : memref<256x512xf32, #tpu.memory_space<vmem>>, vector<256x512xf32>
    %113 = arith.addf %112, %111 : vector<256x512xf32>
    %c0_130 = arith.constant 0 : index
    %c0_131 = arith.constant 0 : index
    %114 = vector.load %arg7[%c0_130, %c0_131] : memref<256x512xf32, #tpu.memory_space<vmem>>, vector<256x512xf32>
    tpu.vector_store %arg7[%c0_130, %c0_131], %113 {strides = array<i32>} : memref<256x512xf32, #tpu.memory_space<vmem>>, vector<256x512xf32>,
    %c0_132 = arith.constant 0 : index
    %c0_133 = arith.constant 0 : index
    %115 = vector.load %arg7[%c0_132, %c0_133] : memref<256x512xf32, #tpu.memory_space<vmem>>, vector<256x512xf32>
    %c0_134 = arith.constant 0 : index
    %c0_135 = arith.constant 0 : index
    %116 = vector.load %arg3[%c0_134, %c0_135] : memref<1x512xf32, #tpu.memory_space<vmem>>, vector<1x512xf32>
    %117 = vector.broadcast %116 : vector<1x512xf32> to vector<256x512xf32>
    %118 = arith.addf %115, %117 : vector<256x512xf32>
    %cst_136 = arith.constant 0.000000e+00 : f32
    %119 = vector.broadcast %cst_136 : f32 to vector<256x512xf32>
    %120 = arith.maximumf %118, %119 : vector<256x512xf32>
    %c0_137 = arith.constant 0 : index
    %c0_138 = arith.constant 0 : index
    %121 = vector.load %arg7[%c0_137, %c0_138] : memref<256x512xf32, #tpu.memory_space<vmem>>, vector<256x512xf32>
    tpu.vector_store %arg7[%c0_137, %c0_138], %120 {strides = array<i32>} : memref<256x512xf32, #tpu.memory_space<vmem>>, vector<256x512xf32>,
    %c0_139 = arith.constant 0 : index
    %c0_140 = arith.constant 0 : index
    %122 = vector.load %arg7[%c0_139, %c0_140] : memref<256x512xf32, #tpu.memory_space<vmem>>, vector<128x512xf32>
    %cst_141 = arith.constant dense<0.000000e+00> : vector<512xf32>
    %123 = vector.multi_reduction <add>, %122, %cst_141 [0] : vector<128x512xf32> to vector<512xf32>
    %124 = vector.shape_cast %123 : vector<512xf32> to vector<1x512xf32>
    %c0_142 = arith.constant 0 : index
    %c0_143 = arith.constant 0 : index
    %125 = vector.load %arg4[%c0_142, %c0_143] : memref<2x512xf32, #tpu.memory_space<vmem>>, vector<1x512xf32>
    %126 = arith.mulf %124, %125 : vector<1x512xf32>
    %cst_144 = arith.constant dense<0.000000e+00> : vector<1xf32>
    %127 = vector.multi_reduction <add>, %126, %cst_144 [1] : vector<1x512xf32> to vector<1xf32>
    %128 = vector.shape_cast %127 : vector<1xf32> to vector<1x1xf32>
    %c0_145 = arith.constant 0 : index
    %c0_146 = arith.constant 0 : index
    %129 = vector.load %arg5[%c0_145, %c0_146] : memref<1x2xf32, #tpu.memory_space<vmem>>, vector<1x1xf32>
    %130 = arith.addf %128, %129 : vector<1x1xf32>
    %c0_147 = arith.constant 0 : index
    %c0_148 = arith.constant 0 : index
    %131 = vector.load %arg6[%c0_147, %c0_148] : memref<2x2xf32, #tpu.memory_space<vmem>>, vector<1x1xf32>
    tpu.vector_store %arg6[%c0_147, %c0_148], %130 {strides = array<i32>} : memref<2x2xf32, #tpu.memory_space<vmem>>, vector<1x1xf32>,
    %c1_149 = arith.constant 1 : index
    %c0_150 = arith.constant 0 : index
    %132 = vector.load %arg4[%c1_149, %c0_150] : memref<2x512xf32, #tpu.memory_space<vmem>>, vector<1x512xf32>
    %133 = arith.mulf %124, %132 : vector<1x512xf32>
    %cst_151 = arith.constant dense<0.000000e+00> : vector<1xf32>
    %134 = vector.multi_reduction <add>, %133, %cst_151 [1] : vector<1x512xf32> to vector<1xf32>
    %135 = vector.shape_cast %134 : vector<1xf32> to vector<1x1xf32>
    %c0_152 = arith.constant 0 : index
    %c1_153 = arith.constant 1 : index
    %136 = vector.load %arg5[%c0_152, %c1_153] : memref<1x2xf32, #tpu.memory_space<vmem>>, vector<1x1xf32>
    %137 = arith.addf %135, %136 : vector<1x1xf32>
    %c0_154 = arith.constant 0 : index
    %c1_155 = arith.constant 1 : index
    %138 = vector.load %arg6[%c0_154, %c1_155] : memref<2x2xf32, #tpu.memory_space<vmem>>, vector<1x1xf32>
    tpu.vector_store %arg6[%c0_154, %c1_155], %137 {strides = array<i32>} : memref<2x2xf32, #tpu.memory_space<vmem>>, vector<1x1xf32>,
    %c128 = arith.constant 128 : index
    %c0_156 = arith.constant 0 : index
    %139 = vector.load %arg7[%c128, %c0_156] : memref<256x512xf32, #tpu.memory_space<vmem>>, vector<128x512xf32>
    %cst_157 = arith.constant dense<0.000000e+00> : vector<512xf32>
    %140 = vector.multi_reduction <add>, %139, %cst_157 [0] : vector<128x512xf32> to vector<512xf32>
    %141 = vector.shape_cast %140 : vector<512xf32> to vector<1x512xf32>
    %c0_158 = arith.constant 0 : index
    %c0_159 = arith.constant 0 : index
    %142 = vector.load %arg4[%c0_158, %c0_159] : memref<2x512xf32, #tpu.memory_space<vmem>>, vector<1x512xf32>
    %143 = arith.mulf %141, %142 : vector<1x512xf32>
    %cst_160 = arith.constant dense<0.000000e+00> : vector<1xf32>
    %144 = vector.multi_reduction <add>, %143, %cst_160 [1] : vector<1x512xf32> to vector<1xf32>
    %145 = vector.shape_cast %144 : vector<1xf32> to vector<1x1xf32>
    %c0_161 = arith.constant 0 : index
    %c0_162 = arith.constant 0 : index
    %146 = vector.load %arg5[%c0_161, %c0_162] : memref<1x2xf32, #tpu.memory_space<vmem>>, vector<1x1xf32>
    %147 = arith.addf %145, %146 : vector<1x1xf32>
    %c1_163 = arith.constant 1 : index
    %c0_164 = arith.constant 0 : index
    %148 = vector.load %arg6[%c1_163, %c0_164] : memref<2x2xf32, #tpu.memory_space<vmem>>, vector<1x1xf32>
    tpu.vector_store %arg6[%c1_163, %c0_164], %147 {strides = array<i32>} : memref<2x2xf32, #tpu.memory_space<vmem>>, vector<1x1xf32>,
    %c1_165 = arith.constant 1 : index
    %c0_166 = arith.constant 0 : index
    %149 = vector.load %arg4[%c1_165, %c0_166] : memref<2x512xf32, #tpu.memory_space<vmem>>, vector<1x512xf32>
    %150 = arith.mulf %141, %149 : vector<1x512xf32>
    %cst_167 = arith.constant dense<0.000000e+00> : vector<1xf32>
    %151 = vector.multi_reduction <add>, %150, %cst_167 [1] : vector<1x512xf32> to vector<1xf32>
    %152 = vector.shape_cast %151 : vector<1xf32> to vector<1x1xf32>
    %c0_168 = arith.constant 0 : index
    %c1_169 = arith.constant 1 : index
    %153 = vector.load %arg5[%c0_168, %c1_169] : memref<1x2xf32, #tpu.memory_space<vmem>>, vector<1x1xf32>
    %154 = arith.addf %152, %153 : vector<1x1xf32>
    %c1_170 = arith.constant 1 : index
    %c1_171 = arith.constant 1 : index
    %155 = vector.load %arg6[%c1_170, %c1_171] : memref<2x2xf32, #tpu.memory_space<vmem>>, vector<1x1xf32>
    tpu.vector_store %arg6[%c1_170, %c1_171], %154 {strides = array<i32>} : memref<2x2xf32, #tpu.memory_space<vmem>>, vector<1x1xf32>,
    return
  }
  func.func @transform_0(%arg0: i32) -> (i32, i32, i32, i32) {
    %c0_i32 = arith.constant 0 : i32
    %c0_i32_0 = arith.constant 0 : i32
    %c0_i32_1 = arith.constant 0 : i32
    %c0_i32_2 = arith.constant 0 : i32
    return %arg0, %c0_i32, %c0_i32_0, %c0_i32_1 : i32, i32, i32, i32
  }
  func.func @transform_1(%arg0: i32) -> (i32, i32, i32) {
    %c0_i32 = arith.constant 0 : i32
    %c0_i32_0 = arith.constant 0 : i32
    %c0_i32_1 = arith.constant 0 : i32
    %c0_i32_2 = arith.constant 0 : i32
    return %c0_i32, %c0_i32_0, %c0_i32_1 : i32, i32, i32
  }
  func.func @transform_2(%arg0: i32) -> (i32, i32) {
    %c0_i32 = arith.constant 0 : i32
    %c0_i32_0 = arith.constant 0 : i32
    %c0_i32_1 = arith.constant 0 : i32
    return %c0_i32, %c0_i32_0 : i32, i32
  }
  func.func @transform_3(%arg0: i32) -> (i32, i32) {
    %c0_i32 = arith.constant 0 : i32
    %c0_i32_0 = arith.constant 0 : i32
    %c0_i32_1 = arith.constant 0 : i32
    return %c0_i32, %c0_i32_0 : i32, i32
  }
  func.func @transform_4(%arg0: i32) -> (i32, i32) {
    %c0_i32 = arith.constant 0 : i32
    %c0_i32_0 = arith.constant 0 : i32
    %c0_i32_1 = arith.constant 0 : i32
    return %c0_i32, %c0_i32_0 : i32, i32
  }
  func.func @transform_5(%arg0: i32) -> (i32, i32) {
    %c0_i32 = arith.constant 0 : i32
    %c0_i32_0 = arith.constant 0 : i32
    return %arg0, %c0_i32 : i32, i32
  }
}

</mosaic_0001>

<llo_original>
// kernel: tpu_custom_call.1
$region0: #{tpu_custom_call.1}
  #allocation0 [shape = 'u32[]', space=smem, size = 0x4, offset = 0x4, fixed_abs, tag = 'smem constant byte address 0x4 - core index']
  #allocation1 [shape = 'u32[144,128]{1,0:T(1,128)}', space=vmem, size = 0x12000, scoped, tag = 'internal scratch']
  #allocation2 [shape = 'f32[256,512]{1,0:T(8,128)}', space=vmem, size = 0x80000, scoped, tag = 'scratch operand']
  %s0 = inlined_call_operand.vmem [shape: bf16[2,10,18,72], index: 0, kind: input, shape index: {}]
  %s1 = inlined_call_operand.hbm [shape: bf16[9,72,512], index: 1, kind: input, shape index: {}]
  %s2 = inlined_call_operand.vmem [shape: f32[1,512], index: 2, kind: input, shape index: {}]
  %s3 = inlined_call_operand.vmem [shape: f32[2,512], index: 3, kind: input, shape index: {}]
  %s4 = inlined_call_operand.vmem [shape: f32[1,2], index: 4, kind: input, shape index: {}]
  %s5 = inlined_call_operand.hbm [shape: f32[2,2], index: 5, kind: output, shape index: {}]
  %s6 = sld [smem:[#allocation0]]
  $region34: #{tpu_custom_call.1} parent=0
    _
  %s8 = ssub.s32 1, %s6
  %s9 = scalar_select 0, %s8, %s6
  $region1: #{tpu_custom_call.1} parent=0
    #allocation3 [shape = 'u8[663552]{0}', space=vmem, size = 0xa2000, scoped, tag = 'input window, operand 1, single buffered']
    #allocation4 [shape = 's32[1]{0}', space=sflag, size = 0x4, scoped, tag = 'scoped memory for tpu_custom_call.1']
    #allocation5 [shape = 's32[1]{0}', space=sflag, size = 0x4, scoped, tag = 'scoped memory for tpu_custom_call.1']
    #allocation6 [shape = 'u8[1024]{0}', space=vmem, size = 0x400, scoped, tag = 'output window, operand 0, single buffered']
    %10 = vsyncpa [#allocation4], 0
    %11 = vsyncpa [#allocation5], 0
    // Predicated region
    $region2: #{tpu_custom_call.1} parent=1 // pred_check
      _
    $region3: #{tpu_custom_call.1} parent=1 // pred_check_branch
      %13 = sbr.rel (0) target = $region5
    $region4: #{tpu_custom_call.1} parent=1 // pred_region
      _
    $region5: #{tpu_custom_call.1} parent=1 // pred_fallthru
      _
    // Predicated region
    $region6: #{tpu_custom_call.1} parent=1 // pred_check
      _
    $region7: #{tpu_custom_call.1} parent=1 // pred_check_branch
      %15 = sbr.rel (0) target = $region9
    $region8: #{tpu_custom_call.1} parent=1 // pred_region
      %s17 = ssub.s32 20736, 20736
      %18 = vsyncadd [#allocation4], %s17
      %s19 = sshll.u32 [#allocation3], 4
      %s20 = int_to_ptr.vmem [resolvable:$true] %s19
      %25 = dma.hbm_to_vmem [thread:$0]  %s1, 20736, %s20, [#allocation4], 256, 256, 16
    $region9: #{tpu_custom_call.1} parent=1 // pred_fallthru
      _
    // Predicated region
    $region10: #{tpu_custom_call.1} parent=1 // pred_check
      _
    $region11: #{tpu_custom_call.1} parent=1 // pred_check_branch
      %27 = sbr.rel (0) target = $region13
    $region12: #{tpu_custom_call.1} parent=1 // pred_region
      _
    $region13: #{tpu_custom_call.1} parent=1 // pred_fallthru
      _
    // Predicated region
    $region14: #{tpu_custom_call.1} parent=1 // pred_check
      _
    $region15: #{tpu_custom_call.1} parent=1 // pred_check_branch
      %29 = sbr.rel (0) target = $region17
    $region16: #{tpu_custom_call.1} parent=1 // pred_region
      _
    $region17: #{tpu_custom_call.1} parent=1 // pred_fallthru
      _
    // Predicated region
    $region18: #{tpu_custom_call.1} parent=1 // pred_check
      _
    $region19: #{tpu_custom_call.1} parent=1 // pred_check_branch
      %31 = sbr.rel (0) target = $region21
    $region20: #{tpu_custom_call.1} parent=1 // pred_region
      _
    $region21: #{tpu_custom_call.1} parent=1 // pred_fallthru
      _
    // Predicated region
    $region22: #{tpu_custom_call.1} parent=1 // pred_check
      _
    $region23: #{tpu_custom_call.1} parent=1 // pred_check_branch
      %33 = sbr.rel (0) target = $region25
    $region24: #{tpu_custom_call.1} parent=1 // pred_region
      %34 = dma.done [#allocation4], 20736
    $region25: #{tpu_custom_call.1} parent=1 // pred_fallthru
      _
    %v36 = vld [vmem:[%s0] sm:$0xf]
    %v37 = vld [vmem:[%s0 + $0x4] sm:$0xf]
    %v38 = vld [vmem:[%s0 + $0xc] sm:$0xf]
    %v39 = vld [vmem:[%s0 + $0x10] sm:$0xf]
    %v40 = vld [vmem:[%s0 + $0x18] sm:$0xf]
    %v41 = vld [vmem:[%s0 + $0x1c] sm:$0xf]
    %v42 = vld [vmem:[%s0 + $0x24] sm:$0xf]
    %v43 = vld [vmem:[%s0 + $0x28] sm:$0xf]
    %v44 = vld [vmem:[%s0 + $0x30] sm:$0xf]
    %v45 = vld [vmem:[%s0 + $0x34] sm:$0xf]
    %v46 = vld [vmem:[%s0 + $0x3c] sm:$0xf]
    %v47 = vld [vmem:[%s0 + $0x40] sm:$0xf]
    %v48 = vld [vmem:[%s0 + $0x48] sm:$0xf]
    %v49 = vld [vmem:[%s0 + $0x4c] sm:$0xf]
    %v50 = vld [vmem:[%s0 + $0x54] sm:$0xf]
    %v51 = vld [vmem:[%s0 + $0x58] sm:$0xf]
    %s52 = scalar_lea.vmem %s0, 120
    %v53 = vld [vmem:[%s52] sm:$0xf]
    %v54 = vld [vmem:[%s52 + $0x4] sm:$0xf]
    %v55 = vld [vmem:[%s52 + $0xc] sm:$0xf]
    %v56 = vld [vmem:[%s52 + $0x10] sm:$0xf]
    %v57 = vld [vmem:[%s52 + $0x18] sm:$0xf]
    %v58 = vld [vmem:[%s52 + $0x1c] sm:$0xf]
    %v59 = vld [vmem:[%s52 + $0x24] sm:$0xf]
    %v60 = vld [vmem:[%s52 + $0x28] sm:$0xf]
    %v61 = vld [vmem:[%s52 + $0x30] sm:$0xf]
    %v62 = vld [vmem:[%s52 + $0x34] sm:$0xf]
    %v63 = vld [vmem:[%s52 + $0x3c] sm:$0xf]
    %v64 = vld [vmem:[%s52 + $0x40] sm:$0xf]
    %v65 = vld [vmem:[%s52 + $0x48] sm:$0xf]
    %v66 = vld [vmem:[%s52 + $0x4c] sm:$0xf]
    %v67 = vld [vmem:[%s52 + $0x54] sm:$0xf]
    %v68 = vld [vmem:[%s52 + $0x58] sm:$0xf]
    %v85 = vunpack.c.l.b16 %v36
    %v86 = vunpack.c.l.b16 %v37
    %v87 = vunpack.c.l.b16 %v38
    %v88 = vunpack.c.l.b16 %v39
    %v89 = vunpack.c.l.b16 %v40
    %v90 = vunpack.c.l.b16 %v41
    %v91 = vunpack.c.l.b16 %v42
    %v92 = vunpack.c.l.b16 %v43
    %v93 = vunpack.c.l.b16 %v44
    %v94 = vunpack.c.l.b16 %v45
    %v95 = vunpack.c.l.b16 %v46
    %v96 = vunpack.c.l.b16 %v47
    %v97 = vunpack.c.l.b16 %v48
    %v98 = vunpack.c.l.b16 %v49
    %v99 = vunpack.c.l.b16 %v50
    %v100 = vunpack.c.l.b16 %v51
    %v101 = vpack.c.b16 %v86, %v85
    %v102 = vpack.c.b16 %v88, %v87
    %v103 = vpack.c.b16 %v90, %v89
    %v104 = vpack.c.b16 %v92, %v91
    %v105 = vpack.c.b16 %v94, %v93
    %v106 = vpack.c.b16 %v96, %v95
    %v107 = vpack.c.b16 %v98, %v97
    %v108 = vpack.c.b16 %v100, %v99
    %v125 = vunpack.c.l.b16 %v53
    %v126 = vunpack.c.l.b16 %v54
    %v127 = vunpack.c.l.b16 %v55
    %v128 = vunpack.c.l.b16 %v56
    %v129 = vunpack.c.l.b16 %v57
    %v130 = vunpack.c.l.b16 %v58
    %v131 = vunpack.c.l.b16 %v59
    %v132 = vunpack.c.l.b16 %v60
    %v133 = vunpack.c.l.b16 %v61
    %v134 = vunpack.c.l.b16 %v62
    %v135 = vunpack.c.l.b16 %v63
    %v136 = vunpack.c.l.b16 %v64
    %v137 = vunpack.c.l.b16 %v65
    %v138 = vunpack.c.l.b16 %v66
    %v139 = vunpack.c.l.b16 %v67
    %v140 = vunpack.c.l.b16 %v68
    %v141 = vpack.c.b16 %v126, %v125
    %v142 = vpack.c.b16 %v128, %v127
    %v143 = vpack.c.b16 %v130, %v129
    %v144 = vpack.c.b16 %v132, %v131
    %v145 = vpack.c.b16 %v134, %v133
    %v146 = vpack.c.b16 %v136, %v135
    %v147 = vpack.c.b16 %v138, %v137
    %v148 = vpack.c.b16 %v140, %v139
    %v149 = vld [vmem:[#allocation3] sm:$0xff]
    %v150 = vld [vmem:[#allocation3 + $0x8] sm:$0xff]
    %v151 = vld [vmem:[#allocation3 + $0x10] sm:$0xff]
    %v152 = vld [vmem:[#allocation3 + $0x18] sm:$0xff]
    %v153 = vld [vmem:[#allocation3 + $0x20] sm:$0xff]
    %v154 = vld [vmem:[#allocation3 + $0x28] sm:$0xff]
    %v155 = vld [vmem:[#allocation3 + $0x30] sm:$0xff]
    %v156 = vld [vmem:[#allocation3 + $0x38] sm:$0xff]
    %v157 = vld [vmem:[#allocation3 + $0x40] sm:$0xff]
    %v158 = vld [vmem:[#allocation3 + $0x48] sm:$0xff]
    %v159 = vld [vmem:[#allocation3 + $0x50] sm:$0xff]
    %v160 = vld [vmem:[#allocation3 + $0x58] sm:$0xff]
    %v161 = vld [vmem:[#allocation3 + $0x60] sm:$0xff]
    %v162 = vld [vmem:[#allocation3 + $0x68] sm:$0xff]
    %v163 = vld [vmem:[#allocation3 + $0x70] sm:$0xff]
    %v164 = vld [vmem:[#allocation3 + $0x78] sm:$0xff]
    %v165 = vld [vmem:[#allocation3 + $0x80] sm:$0xff]
    %v166 = vld [vmem:[#allocation3 + $0x88] sm:$0xff]
    %v185 = vunpack.c.l.b16 %v149
    %v186 = vunpack.c.h.b16 %v149
    %v187 = vunpack.c.l.b16 %v150
    %v188 = vunpack.c.h.b16 %v150
    %v189 = vunpack.c.l.b16 %v151
    %v190 = vunpack.c.h.b16 %v151
    %v191 = vunpack.c.l.b16 %v152
    %v192 = vunpack.c.h.b16 %v152
    %v193 = vunpack.c.l.b16 %v153
    %v194 = vunpack.c.h.b16 %v153
    %v195 = vunpack.c.l.b16 %v154
    %v196 = vunpack.c.h.b16 %v154
    %v197 = vunpack.c.l.b16 %v155
    %v198 = vunpack.c.h.b16 %v155
    %v199 = vunpack.c.l.b16 %v156
    %v200 = vunpack.c.h.b16 %v156
    %v201 = vunpack.c.l.b16 %v157
    %v202 = vunpack.c.h.b16 %v157
    %v203 = vunpack.c.l.b16 %v158
    %v204 = vunpack.c.h.b16 %v158
    %v205 = vunpack.c.l.b16 %v159
    %v206 = vunpack.c.h.b16 %v159
    %v207 = vunpack.c.l.b16 %v160
    %v208 = vunpack.c.h.b16 %v160
    %v209 = vunpack.c.l.b16 %v161
    %v210 = vunpack.c.h.b16 %v161
    %v211 = vunpack.c.l.b16 %v162
    %v212 = vunpack.c.h.b16 %v162
    %v213 = vunpack.c.l.b16 %v163
    %v214 = vunpack.c.h.b16 %v163
    %v215 = vunpack.c.l.b16 %v164
    %v216 = vunpack.c.h.b16 %v164
    %v217 = vunpack.c.l.b16 %v165
    %v218 = vunpack.c.h.b16 %v165
    %v219 = vunpack.c.l.b16 %v166
    %v220 = vunpack.c.h.b16 %v166
    %v221 = vpack.c.b16 %v189, %v185
    %v222 = vpack.c.b16 %v190, %v186
    %v223 = vpack.c.b16 %v191, %v187
    %v224 = vpack.c.b16 %v192, %v188
    %v225 = vpack.c.b16 %v197, %v193
    %v226 = vpack.c.b16 %v198, %v194
    %v227 = vpack.c.b16 %v199, %v195
    %v228 = vpack.c.b16 %v200, %v196
    %v229 = vpack.c.b16 %v205, %v201
    %v230 = vpack.c.b16 %v206, %v202
    %v231 = vpack.c.b16 %v207, %v203
    %v232 = vpack.c.b16 %v208, %v204
    %v233 = vpack.c.b16 %v213, %v209
    %v234 = vpack.c.b16 %v214, %v210
    %v235 = vpack.c.b16 %v215, %v211
    %v236 = vpack.c.b16 %v216, %v212
    %v237 = vpack.c.b16 %v217, %v217
    %v238 = vpack.c.b16 %v218, %v218
    %v239 = vpack.c.b16 %v219, %v219
    %v240 = vpack.c.b16 %v220, %v220
    %vm257 = vcmask 588800
    %v259 = vsel %vm257, %v101, 0
    %v262 = vsel %vm257, %v102, 0
    %v265 = vsel %vm257, %v103, 0
    %v268 = vsel %vm257, %v104, 0
    %v271 = vsel %vm257, %v105, 0
    %v274 = vsel %vm257, %v106, 0
    %v277 = vsel %vm257, %v107, 0
    %v280 = vsel %vm257, %v108, 0
    %v283 = vsel %vm257, %v141, 0
    %v286 = vsel %vm257, %v142, 0
    %v289 = vsel %vm257, %v143, 0
    %v292 = vsel %vm257, %v144, 0
    %v295 = vsel %vm257, %v145, 0
    %v298 = vsel %vm257, %v146, 0
    %v301 = vsel %vm257, %v147, 0
    %v304 = vsel %vm257, %v148, 0
    %vm306 = vcmask 1043456
    %v308 = vsel %vm306, %v237, 0
    %v311 = vsel %vm306, %v238, 0
    %v314 = vsel %vm306, %v239, 0
    %v317 = vsel %vm306, %v240, 0
    %319 = vmatprep.subr.bf16.mxu0 0
    %320 = vmatpush1.bf16.msra.mxu0 0
    %321 = vmatprep.subr.bf16.mxu0 0
    %322 = vmatpush1.bf16.msra.mxu0 0
    %323 = vmatprep.subr.bf16.mxu0 0
    %324 = vmatpush1.bf16.msra.mxu0 0
    %325 = vmatprep.subr.bf16.mxu0 %v311
    %326 = vmatpush1.bf16.msra.mxu0 %v308
    %327 = vmatprep.subr.bf16.mxu0 %v234
    %328 = vmatpush1.bf16.msra.mxu0 %v233
    %329 = vmatprep.subr.bf16.mxu0 %v230
    %330 = vmatpush1.bf16.msra.mxu0 %v229
    %331 = vmatprep.subr.bf16.mxu0 %v226
    %332 = vmatpush1.bf16.msra.mxu0 %v225
    %333 = vmatprep.subr.bf16.mxu0 %v222
    %334 = vmatpush1.bf16.msra.mxu0 %v221
    %335 = vmatprep.subr.bf16.mxu0 0
    %336 = vmatpush2.bf16.msra.mxu0 0
    %337 = vmatprep.subr.bf16.mxu0 0
    %338 = vmatpush2.bf16.msra.mxu0 0
    %339 = vmatprep.subr.bf16.mxu0 0
    %340 = vmatpush2.bf16.msra.mxu0 0
    %341 = vmatprep.subr.bf16.mxu0 0
    %342 = vmatpush2.bf16.msra.mxu0 0
    %343 = vmatprep.subr.bf16.mxu0 0
    %344 = vmatpush2.bf16.msra.mxu0 0
    %345 = vmatprep.subr.bf16.mxu0 0
    %346 = vmatpush2.bf16.msra.mxu0 0
    %347 = vmatprep.subr.bf16.mxu0 0
    %348 = vmatpush2.bf16.msra.mxu0 0
    %349 = vmatprep.subr.bf16.mxu0 0
    %350 = vmatpush2.bf16.msra.mxu0 0
    %351 = vmatprep.mubr.bf16.mxu0 0
    %352 = vmatmul.mubr.bf16.gmra.mxu0 %v259
    %v353 = vpop.f32.mrf.mxu0
    %v354 = vadd.f32 0.0, %v353
    %v355 = vpop.f32.mrf.mxu0
    %v356 = vadd.f32 0.0, %v355
    %v357 = vpop.f32.mrf.mxu0
    %v358 = vadd.f32 0.0, %v357
    %v359 = vpop.f32.mrf.mxu0
    %v360 = vadd.f32 0.0, %v359
    %361 = vmatprep.mubr.bf16.mxu0 0
    %362 = vmatmul.mubr.bf16.gmra.mxu0 %v262
    %v363 = vpop.f32.mrf.mxu0
    %v364 = vadd.f32 0.0, %v363
    %v365 = vpop.f32.mrf.mxu0
    %v366 = vadd.f32 0.0, %v365
    %v367 = vpop.f32.mrf.mxu0
    %v368 = vadd.f32 0.0, %v367
    %v369 = vpop.f32.mrf.mxu0
    %v370 = vadd.f32 0.0, %v369
    %371 = vmatprep.mubr.bf16.mxu0 0
    %372 = vmatmul.mubr.bf16.gmra.mxu0 %v265
    %v373 = vpop.f32.mrf.mxu0
    %v374 = vadd.f32 0.0, %v373
    %v375 = vpop.f32.mrf.mxu0
    %v376 = vadd.f32 0.0, %v375
    %v377 = vpop.f32.mrf.mxu0
    %v378 = vadd.f32 0.0, %v377
    %v379 = vpop.f32.mrf.mxu0
    %v380 = vadd.f32 0.0, %v379
    %381 = vmatprep.mubr.bf16.mxu0 0
    %382 = vmatmul.mubr.bf16.gmra.mxu0 %v268
    %v383 = vpop.f32.mrf.mxu0
    %v384 = vadd.f32 0.0, %v383
    %v385 = vpop.f32.mrf.mxu0
    %v386 = vadd.f32 0.0, %v385
    %v387 = vpop.f32.mrf.mxu0
    %v388 = vadd.f32 0.0, %v387
    %v389 = vpop.f32.mrf.mxu0
    %v390 = vadd.f32 0.0, %v389
    %391 = vmatprep.mubr.bf16.mxu0 0
    %392 = vmatmul.mubr.bf16.gmra.mxu0 %v271
    %v393 = vpop.f32.mrf.mxu0
    %v394 = vadd.f32 0.0, %v393
    %v395 = vpop.f32.mrf.mxu0
    %v396 = vadd.f32 0.0, %v395
    %v397 = vpop.f32.mrf.mxu0
    %v398 = vadd.f32 0.0, %v397
    %v399 = vpop.f32.mrf.mxu0
    %v400 = vadd.f32 0.0, %v399
    %401 = vmatprep.mubr.bf16.mxu0 0
    %402 = vmatmul.mubr.bf16.gmra.mxu0 %v274
    %v403 = vpop.f32.mrf.mxu0
    %v404 = vadd.f32 0.0, %v403
    %v405 = vpop.f32.mrf.mxu0
    %v406 = vadd.f32 0.0, %v405
    %v407 = vpop.f32.mrf.mxu0
    %v408 = vadd.f32 0.0, %v407
    %v409 = vpop.f32.mrf.mxu0
    %v410 = vadd.f32 0.0, %v409
    %411 = vmatprep.mubr.bf16.mxu0 0
    %412 = vmatmul.mubr.bf16.gmra.mxu0 %v277
    %v413 = vpop.f32.mrf.mxu0
    %v414 = vadd.f32 0.0, %v413
    %v415 = vpop.f32.mrf.mxu0
    %v416 = vadd.f32 0.0, %v415
    %v417 = vpop.f32.mrf.mxu0
    %v418 = vadd.f32 0.0, %v417
    %v419 = vpop.f32.mrf.mxu0
    %v420 = vadd.f32 0.0, %v419
    %421 = vmatprep.mubr.bf16.mxu0 0
    %422 = vmatmul.mubr.bf16.gmra.mxu0 %v280
    %v423 = vpop.f32.mrf.mxu0
    %v424 = vadd.f32 0.0, %v423
    %v425 = vpop.f32.mrf.mxu0
    %v426 = vadd.f32 0.0, %v425
    %v427 = vpop.f32.mrf.mxu0
    %v428 = vadd.f32 0.0, %v427
    %v429 = vpop.f32.mrf.mxu0
    %v430 = vadd.f32 0.0, %v429
    %431 = vmatprep.mubr.bf16.mxu0 0
    %432 = vmatmul.mubr.bf16.gmra.mxu0 %v283
    %v433 = vpop.f32.mrf.mxu0
    %v434 = vadd.f32 0.0, %v433
    %v435 = vpop.f32.mrf.mxu0
    %v436 = vadd.f32 0.0, %v435
    %v437 = vpop.f32.mrf.mxu0
    %v438 = vadd.f32 0.0, %v437
    %v439 = vpop.f32.mrf.mxu0
    %v440 = vadd.f32 0.0, %v439
    %441 = vmatprep.mubr.bf16.mxu0 0
    %442 = vmatmul.mubr.bf16.gmra.mxu0 %v286
    %v443 = vpop.f32.mrf.mxu0
    %v444 = vadd.f32 0.0, %v443
    %v445 = vpop.f32.mrf.mxu0
    %v446 = vadd.f32 0.0, %v445
    %v447 = vpop.f32.mrf.mxu0
    %v448 = vadd.f32 0.0, %v447
    %v449 = vpop.f32.mrf.mxu0
    %v450 = vadd.f32 0.0, %v449
    %451 = vmatprep.mubr.bf16.mxu0 0
    %452 = vmatmul.mubr.bf16.gmra.mxu0 %v289
    %v453 = vpop.f32.mrf.mxu0
    %v454 = vadd.f32 0.0, %v453
    %v455 = vpop.f32.mrf.mxu0
    %v456 = vadd.f32 0.0, %v455
    %v457 = vpop.f32.mrf.mxu0
    %v458 = vadd.f32 0.0, %v457
    %v459 = vpop.f32.mrf.mxu0
    %v460 = vadd.f32 0.0, %v459
    %461 = vmatprep.mubr.bf16.mxu0 0
    %462 = vmatmul.mubr.bf16.gmra.mxu0 %v292
    %v463 = vpop.f32.mrf.mxu0
    %v464 = vadd.f32 0.0, %v463
    %v465 = vpop.f32.mrf.mxu0
    %v466 = vadd.f32 0.0, %v465
    %v467 = vpop.f32.mrf.mxu0
    %v468 = vadd.f32 0.0, %v467
    %v469 = vpop.f32.mrf.mxu0
    %v470 = vadd.f32 0.0, %v469
    %471 = vmatprep.mubr.bf16.mxu0 0
    %472 = vmatmul.mubr.bf16.gmra.mxu0 %v295
    %v473 = vpop.f32.mrf.mxu0
    %v474 = vadd.f32 0.0, %v473
    %v475 = vpop.f32.mrf.mxu0
    %v476 = vadd.f32 0.0, %v475
    %v477 = vpop.f32.mrf.mxu0
    %v478 = vadd.f32 0.0, %v477
    %v479 = vpop.f32.mrf.mxu0
    %v480 = vadd.f32 0.0, %v479
    %481 = vmatprep.mubr.bf16.mxu0 0
    %482 = vmatmul.mubr.bf16.gmra.mxu0 %v298
    %v483 = vpop.f32.mrf.mxu0
    %v484 = vadd.f32 0.0, %v483
    %v485 = vpop.f32.mrf.mxu0
    %v486 = vadd.f32 0.0, %v485
    %v487 = vpop.f32.mrf.mxu0
    %v488 = vadd.f32 0.0, %v487
    %v489 = vpop.f32.mrf.mxu0
    %v490 = vadd.f32 0.0, %v489
    %491 = vmatprep.mubr.bf16.mxu0 0
    %492 = vmatmul.mubr.bf16.gmra.mxu0 %v301
    %v493 = vpop.f32.mrf.mxu0
    %v494 = vadd.f32 0.0, %v493
    %v495 = vpop.f32.mrf.mxu0
    %v496 = vadd.f32 0.0, %v495
    %v497 = vpop.f32.mrf.mxu0
    %v498 = vadd.f32 0.0, %v497
    %v499 = vpop.f32.mrf.mxu0
    %v500 = vadd.f32 0.0, %v499
    %501 = vmatprep.mubr.bf16.mxu0 0
    %502 = vmatmul.mubr.bf16.gmra.mxu0 %v304
    %v503 = vpop.f32.mrf.mxu0
    %v504 = vadd.f32 0.0, %v503
    %v505 = vpop.f32.mrf.mxu0
    %v506 = vadd.f32 0.0, %v505
    %v507 = vpop.f32.mrf.mxu0
    %v508 = vadd.f32 0.0, %v507
    %v509 = vpop.f32.mrf.mxu0
    %v510 = vadd.f32 0.0, %v509
    %511 = vdwg.mxu0
    %512 = vmatprep.subr.bf16.mxu0 0
    %513 = vmatpush1.bf16.msra.mxu0 0
    %514 = vmatprep.subr.bf16.mxu0 0
    %515 = vmatpush1.bf16.msra.mxu0 0
    %516 = vmatprep.subr.bf16.mxu0 0
    %517 = vmatpush1.bf16.msra.mxu0 0
    %518 = vmatprep.subr.bf16.mxu0 %v317
    %519 = vmatpush1.bf16.msra.mxu0 %v314
    %520 = vmatprep.subr.bf16.mxu0 %v236
    %521 = vmatpush1.bf16.msra.mxu0 %v235
    %522 = vmatprep.subr.bf16.mxu0 %v232
    %523 = vmatpush1.bf16.msra.mxu0 %v231
    %524 = vmatprep.subr.bf16.mxu0 %v228
    %525 = vmatpush1.bf16.msra.mxu0 %v227
    %526 = vmatprep.subr.bf16.mxu0 %v224
    %527 = vmatpush1.bf16.msra.mxu0 %v223
    %528 = vmatprep.subr.bf16.mxu0 0
    %529 = vmatpush2.bf16.msra.mxu0 0
    %530 = vmatprep.subr.bf16.mxu0 0
    %531 = vmatpush2.bf16.msra.mxu0 0
    %532 = vmatprep.subr.bf16.mxu0 0
    %533 = vmatpush2.bf16.msra.mxu0 0
    %534 = vmatprep.subr.bf16.mxu0 0
    %535 = vmatpush2.bf16.msra.mxu0 0
    %536 = vmatprep.subr.bf16.mxu0 0
    %537 = vmatpush2.bf16.msra.mxu0 0
    %538 = vmatprep.subr.bf16.mxu0 0
    %539 = vmatpush2.bf16.msra.mxu0 0
    %540 = vmatprep.subr.bf16.mxu0 0
    %541 = vmatpush2.bf16.msra.mxu0 0
    %542 = vmatprep.subr.bf16.mxu0 0
    %543 = vmatpush2.bf16.msra.mxu0 0
    %544 = vmatprep.mubr.bf16.mxu0 0
    %545 = vmatmul.mubr.bf16.gmra.mxu0 %v259
    %v546 = vpop.f32.mrf.mxu0
    %v547 = vadd.f32 0.0, %v546
    %v548 = vpop.f32.mrf.mxu0
    %v549 = vadd.f32 0.0, %v548
    %v550 = vpop.f32.mrf.mxu0
    %v551 = vadd.f32 0.0, %v550
    %v552 = vpop.f32.mrf.mxu0
    %v553 = vadd.f32 0.0, %v552
    %554 = vmatprep.mubr.bf16.mxu0 0
    %555 = vmatmul.mubr.bf16.gmra.mxu0 %v262
    %v556 = vpop.f32.mrf.mxu0
    %v557 = vadd.f32 0.0, %v556
    %v558 = vpop.f32.mrf.mxu0
    %v559 = vadd.f32 0.0, %v558
    %v560 = vpop.f32.mrf.mxu0
    %v561 = vadd.f32 0.0, %v560
    %v562 = vpop.f32.mrf.mxu0
    %v563 = vadd.f32 0.0, %v562
    %564 = vmatprep.mubr.bf16.mxu0 0
    %565 = vmatmul.mubr.bf16.gmra.mxu0 %v265
    %v566 = vpop.f32.mrf.mxu0
    %v567 = vadd.f32 0.0, %v566
    %v568 = vpop.f32.mrf.mxu0
    %v569 = vadd.f32 0.0, %v568
    %v570 = vpop.f32.mrf.mxu0
    %v571 = vadd.f32 0.0, %v570
    %v572 = vpop.f32.mrf.mxu0
    %v573 = vadd.f32 0.0, %v572
    %574 = vmatprep.mubr.bf16.mxu0 0
    %575 = vmatmul.mubr.bf16.gmra.mxu0 %v268
    %v576 = vpop.f32.mrf.mxu0
    %v577 = vadd.f32 0.0, %v576
    %v578 = vpop.f32.mrf.mxu0
    %v579 = vadd.f32 0.0, %v578
    %v580 = vpop.f32.mrf.mxu0
    %v581 = vadd.f32 0.0, %v580
    %v582 = vpop.f32.mrf.mxu0
    %v583 = vadd.f32 0.0, %v582
    %584 = vmatprep.mubr.bf16.mxu0 0
    %585 = vmatmul.mubr.bf16.gmra.mxu0 %v271
    %v586 = vpop.f32.mrf.mxu0
    %v587 = vadd.f32 0.0, %v586
    %v588 = vpop.f32.mrf.mxu0
    %v589 = vadd.f32 0.0, %v588
    %v590 = vpop.f32.mrf.mxu0
    %v591 = vadd.f32 0.0, %v590
    %v592 = vpop.f32.mrf.mxu0
    %v593 = vadd.f32 0.0, %v592
    %594 = vmatprep.mubr.bf16.mxu0 0
    %595 = vmatmul.mubr.bf16.gmra.mxu0 %v274
    %v596 = vpop.f32.mrf.mxu0
    %v597 = vadd.f32 0.0, %v596
    %v598 = vpop.f32.mrf.mxu0
    %v599 = vadd.f32 0.0, %v598
    %v600 = vpop.f32.mrf.mxu0
    %v601 = vadd.f32 0.0, %v600
    %v602 = vpop.f32.mrf.mxu0
    %v603 = vadd.f32 0.0, %v602
    %604 = vmatprep.mubr.bf16.mxu0 0
    %605 = vmatmul.mubr.bf16.gmra.mxu0 %v277
    %v606 = vpop.f32.mrf.mxu0
    %v607 = vadd.f32 0.0, %v606
    %v608 = vpop.f32.mrf.mxu0
    %v609 = vadd.f32 0.0, %v608
    %v610 = vpop.f32.mrf.mxu0
    %v611 = vadd.f32 0.0, %v610
    %v612 = vpop.f32.mrf.mxu0
    %v613 = vadd.f32 0.0, %v612
    %614 = vmatprep.mubr.bf16.mxu0 0
    %615 = vmatmul.mubr.bf16.gmra.mxu0 %v280
    %v616 = vpop.f32.mrf.mxu0
    %v617 = vadd.f32 0.0, %v616
    %v618 = vpop.f32.mrf.mxu0
    %v619 = vadd.f32 0.0, %v618
    %v620 = vpop.f32.mrf.mxu0
    %v621 = vadd.f32 0.0, %v620
    %v622 = vpop.f32.mrf.mxu0
    %v623 = vadd.f32 0.0, %v622
    %624 = vmatprep.mubr.bf16.mxu0 0
    %625 = vmatmul.mubr.bf16.gmra.mxu0 %v283
    %v626 = vpop.f32.mrf.mxu0
    %v627 = vadd.f32 0.0, %v626
    %v628 = vpop.f32.mrf.mxu0
    %v629 = vadd.f32 0.0, %v628
    %v630 = vpop.f32.mrf.mxu0
    %v631 = vadd.f32 0.0, %v630
    %v632 = vpop.f32.mrf.mxu0
    %v633 = vadd.f32 0.0, %v632
    %634 = vmatprep.mubr.bf16.mxu0 0
    %635 = vmatmul.mubr.bf16.gmra.mxu0 %v286
    %v636 = vpop.f32.mrf.mxu0
    %v637 = vadd.f32 0.0, %v636
    %v638 = vpop.f32.mrf.mxu0
    %v639 = vadd.f32 0.0, %v638
    %v640 = vpop.f32.mrf.mxu0
    %v641 = vadd.f32 0.0, %v640
    %v642 = vpop.f32.mrf.mxu0
    %v643 = vadd.f32 0.0, %v642
    %644 = vmatprep.mubr.bf16.mxu0 0
    %645 = vmatmul.mubr.bf16.gmra.mxu0 %v289
    %v646 = vpop.f32.mrf.mxu0
    %v647 = vadd.f32 0.0, %v646
    %v648 = vpop.f32.mrf.mxu0
    %v649 = vadd.f32 0.0, %v648
    %v650 = vpop.f32.mrf.mxu0
    %v651 = vadd.f32 0.0, %v650
    %v652 = vpop.f32.mrf.mxu0
    %v653 = vadd.f32 0.0, %v652
    %654 = vmatprep.mubr.bf16.mxu0 0
    %655 = vmatmul.mubr.bf16.gmra.mxu0 %v292
    %v656 = vpop.f32.mrf.mxu0
    %v657 = vadd.f32 0.0, %v656
    %v658 = vpop.f32.mrf.mxu0
    %v659 = vadd.f32 0.0, %v658
    %v660 = vpop.f32.mrf.mxu0
    %v661 = vadd.f32 0.0, %v660
    %v662 = vpop.f32.mrf.mxu0
    %v663 = vadd.f32 0.0, %v662
    %664 = vmatprep.mubr.bf16.mxu0 0
    %665 = vmatmul.mubr.bf16.gmra.mxu0 %v295
    %v666 = vpop.f32.mrf.mxu0
    %v667 = vadd.f32 0.0, %v666
    %v668 = vpop.f32.mrf.mxu0
    %v669 = vadd.f32 0.0, %v668
    %v670 = vpop.f32.mrf.mxu0
    %v671 = vadd.f32 0.0, %v670
    %v672 = vpop.f32.mrf.mxu0
    %v673 = vadd.f32 0.0, %v672
    %674 = vmatprep.mubr.bf16.mxu0 0
    %675 = vmatmul.mubr.bf16.gmra.mxu0 %v298
    %v676 = vpop.f32.mrf.mxu0
    %v677 = vadd.f32 0.0, %v676
    %v678 = vpop.f32.mrf.mxu0
    %v679 = vadd.f32 0.0, %v678
    %v680 = vpop.f32.mrf.mxu0
    %v681 = vadd.f32 0.0, %v680
    %v682 = vpop.f32.mrf.mxu0
    %v683 = vadd.f32 0.0, %v682
    %684 = vmatprep.mubr.bf16.mxu0 0
    %685 = vmatmul.mubr.bf16.gmra.mxu0 %v301
    %v686 = vpop.f32.mrf.mxu0
    %v687 = vadd.f32 0.0, %v686
    %v688 = vpop.f32.mrf.mxu0
    %v689 = vadd.f32 0.0, %v688
    %v690 = vpop.f32.mrf.mxu0
    %v691 = vadd.f32 0.0, %v690
    %v692 = vpop.f32.mrf.mxu0
    %v693 = vadd.f32 0.0, %v692
    %694 = vmatprep.mubr.bf16.mxu0 0
    %695 = vmatmul.mubr.bf16.gmra.mxu0 %v304
    %v696 = vpop.f32.mrf.mxu0
    %v697 = vadd.f32 0.0, %v696
    %v698 = vpop.f32.mrf.mxu0
    %v699 = vadd.f32 0.0, %v698
    %v700 = vpop.f32.mrf.mxu0
    %v701 = vadd.f32 0.0, %v700
    %v702 = vpop.f32.mrf.mxu0
    %v703 = vadd.f32 0.0, %v702
    %704 = vdwg.mxu0
    %705 = vst [vmem:[#allocation2] sm:$0xff] %v354
    %706 = vst [vmem:[#allocation2 + $0x8] sm:$0xff] %v356
    %707 = vst [vmem:[#allocation2 + $0x10] sm:$0xff] %v547
    %708 = vst [vmem:[#allocation2 + $0x18] sm:$0xff] %v549
    %709 = vst [vmem:[#allocation2 + $0x20] sm:$0xff] %v358
    %710 = vst [vmem:[#allocation2 + $0x28] sm:$0xff] %v360
    %711 = vst [vmem:[#allocation2 + $0x30] sm:$0xff] %v551
    %712 = vst [vmem:[#allocation2 + $0x38] sm:$0xff] %v553
    %713 = vst [vmem:[#allocation2 + $0x40] sm:$0xff] %v364
    %714 = vst [vmem:[#allocation2 + $0x48] sm:$0xff] %v366
    %715 = vst [vmem:[#allocation2 + $0x50] sm:$0xff] %v557
    %716 = vst [vmem:[#allocation2 + $0x58] sm:$0xff] %v559
    %717 = vst [vmem:[#allocation2 + $0x60] sm:$0xff] %v368
    %718 = vst [vmem:[#allocation2 + $0x68] sm:$0xff] %v370
    %719 = vst [vmem:[#allocation2 + $0x70] sm:$0xff] %v561
    %720 = vst [vmem:[#allocation2 + $0x78] sm:$0xff] %v563
    %721 = vst [vmem:[#allocation2 + $0x80] sm:$0xff] %v374
    %722 = vst [vmem:[#allocation2 + $0x88] sm:$0xff] %v376
    %723 = vst [vmem:[#allocation2 + $0x90] sm:$0xff] %v567
    %724 = vst [vmem:[#allocation2 + $0x98] sm:$0xff] %v569
    %725 = vst [vmem:[#allocation2 + $0xa0] sm:$0xff] %v378
    %726 = vst [vmem:[#allocation2 + $0xa8] sm:$0xff] %v380
    %727 = vst [vmem:[#allocation2 + $0xb0] sm:$0xff] %v571
    %728 = vst [vmem:[#allocation2 + $0xb8] sm:$0xff] %v573
    %729 = vst [vmem:[#allocation2 + $0xc0] sm:$0xff] %v384
    %730 = vst [vmem:[#allocation2 + $0xc8] sm:$0xff] %v386
    %731 = vst [vmem:[#allocation2 + $0xd0] sm:$0xff] %v577
    %732 = vst [vmem:[#allocation2 + $0xd8] sm:$0xff] %v579
    %733 = vst [vmem:[#allocation2 + $0xe0] sm:$0xff] %v388
    %734 = vst [vmem:[#allocation2 + $0xe8] sm:$0xff] %v390
    %735 = vst [vmem:[#allocation2 + $0xf0] sm:$0xff] %v581
    %736 = vst [vmem:[#allocation2 + $0xf8] sm:$0xff] %v583
    %737 = vst [vmem:[#allocation2 + $0x100] sm:$0xff] %v394
    %738 = vst [vmem:[#allocation2 + $0x108] sm:$0xff] %v396
    %739 = vst [vmem:[#allocation2 + $0x110] sm:$0xff] %v587
    %740 = vst [vmem:[#allocation2 + $0x118] sm:$0xff] %v589
    %741 = vst [vmem:[#allocation2 + $0x120] sm:$0xff] %v398
    %742 = vst [vmem:[#allocation2 + $0x128] sm:$0xff] %v400
    %743 = vst [vmem:[#allocation2 + $0x130] sm:$0xff] %v591
    %744 = vst [vmem:[#allocation2 + $0x138] sm:$0xff] %v593
    %745 = vst [vmem:[#allocation2 + $0x140] sm:$0xff] %v404
    %746 = vst [vmem:[#allocation2 + $0x148] sm:$0xff] %v406
    %747 = vst [vmem:[#allocation2 + $0x150] sm:$0xff] %v597
    %748 = vst [vmem:[#allocation2 + $0x158] sm:$0xff] %v599
    %749 = vst [vmem:[#allocation2 + $0x160] sm:$0xff] %v408
    %750 = vst [vmem:[#allocation2 + $0x168] sm:$0xff] %v410
    %751 = vst [vmem:[#allocation2 + $0x170] sm:$0xff] %v601
    %752 = vst [vmem:[#allocation2 + $0x178] sm:$0xff] %v603
    %753 = vst [vmem:[#allocation2 + $0x180] sm:$0xff] %v414
    %754 = vst [vmem:[#allocation2 + $0x188] sm:$0xff] %v416
    %755 = vst [vmem:[#allocation2 + $0x190] sm:$0xff] %v607
    %756 = vst [vmem:[#allocation2 + $0x198] sm:$0xff] %v609
    %757 = vst [vmem:[#allocation2 + $0x1a0] sm:$0xff] %v418
    %758 = vst [vmem:[#allocation2 + $0x1a8] sm:$0xff] %v420
    %759 = vst [vmem:[#allocation2 + $0x1b0] sm:$0xff] %v611
    %760 = vst [vmem:[#allocation2 + $0x1b8] sm:$0xff] %v613
    %761 = vst [vmem:[#allocation2 + $0x1c0] sm:$0xff] %v424
    %762 = vst [vmem:[#allocation2 + $0x1c8] sm:$0xff] %v426
    %763 = vst [vmem:[#allocation2 + $0x1d0] sm:$0xff] %v617
    %764 = vst [vmem:[#allocation2 + $0x1d8] sm:$0xff] %v619
    %765 = vst [vmem:[#allocation2 + $0x1e0] sm:$0xff] %v428
    %766 = vst [vmem:[#allocation2 + $0x1e8] sm:$0xff] %v430
    %767 = vst [vmem:[#allocation2 + $0x1f0] sm:$0xff] %v621
    %768 = vst [vmem:[#allocation2 + $0x1f8] sm:$0xff] %v623
    %769 = vst [vmem:[#allocation2 + $0x200] sm:$0xff] %v434
    %770 = vst [vmem:[#allocation2 + $0x208] sm:$0xff] %v436
    %771 = vst [vmem:[#allocation2 + $0x210] sm:$0xff] %v627
    %772 = vst [vmem:[#allocation2 + $0x218] sm:$0xff] %v629
    %773 = vst [vmem:[#allocation2 + $0x220] sm:$0xff] %v438
    %774 = vst [vmem:[#allocation2 + $0x228] sm:$0xff] %v440
    %775 = vst [vmem:[#allocation2 + $0x230] sm:$0xff] %v631
    %776 = vst [vmem:[#allocation2 + $0x238] sm:$0xff] %v633
    %777 = vst [vmem:[#allocation2 + $0x240] sm:$0xff] %v444
    %778 = vst [vmem:[#allocation2 + $0x248] sm:$0xff] %v446
    %779 = vst [vmem:[#allocation2 + $0x250] sm:$0xff] %v637
    %780 = vst [vmem:[#allocation2 + $0x258] sm:$0xff] %v639
    %781 = vst [vmem:[#allocation2 + $0x260] sm:$0xff] %v448
    %782 = vst [vmem:[#allocation2 + $0x268] sm:$0xff] %v450
    %783 = vst [vmem:[#allocation2 + $0x270] sm:$0xff] %v641
    %784 = vst [vmem:[#allocation2 + $0x278] sm:$0xff] %v643
    %785 = vst [vmem:[#allocation2 + $0x280] sm:$0xff] %v454
    %786 = vst [vmem:[#allocation2 + $0x288] sm:$0xff] %v456
    %787 = vst [vmem:[#allocation2 + $0x290] sm:$0xff] %v647
    %788 = vst [vmem:[#allocation2 + $0x298] sm:$0xff] %v649
    %789 = vst [vmem:[#allocation2 + $0x2a0] sm:$0xff] %v458
    %790 = vst [vmem:[#allocation2 + $0x2a8] sm:$0xff] %v460
    %791 = vst [vmem:[#allocation2 + $0x2b0] sm:$0xff] %v651
    %792 = vst [vmem:[#allocation2 + $0x2b8] sm:$0xff] %v653
    %793 = vst [vmem:[#allocation2 + $0x2c0] sm:$0xff] %v464
    %794 = vst [vmem:[#allocation2 + $0x2c8] sm:$0xff] %v466
    %795 = vst [vmem:[#allocation2 + $0x2d0] sm:$0xff] %v657
    %796 = vst [vmem:[#allocation2 + $0x2d8] sm:$0xff] %v659
    %797 = vst [vmem:[#allocation2 + $0x2e0] sm:$0xff] %v468
    %798 = vst [vmem:[#allocation2 + $0x2e8] sm:$0xff] %v470
    %799 = vst [vmem:[#allocation2 + $0x2f0] sm:$0xff] %v661
    %800 = vst [vmem:[#allocation2 + $0x2f8] sm:$0xff] %v663
    %801 = vst [vmem:[#allocation2 + $0x300] sm:$0xff] %v474
    %802 = vst [vmem:[#allocation2 + $0x308] sm:$0xff] %v476
    %803 = vst [vmem:[#allocation2 + $0x310] sm:$0xff] %v667
    %804 = vst [vmem:[#allocation2 + $0x318] sm:$0xff] %v669
    %805 = vst [vmem:[#allocation2 + $0x320] sm:$0xff] %v478
    %806 = vst [vmem:[#allocation2 + $0x328] sm:$0xff] %v480
    %807 = vst [vmem:[#allocation2 + $0x330] sm:$0xff] %v671
    %808 = vst [vmem:[#allocation2 + $0x338] sm:$0xff] %v673
    %809 = vst [vmem:[#allocation2 + $0x340] sm:$0xff] %v484
    %810 = vst [vmem:[#allocation2 + $0x348] sm:$0xff] %v486
    %811 = vst [vmem:[#allocation2 + $0x350] sm:$0xff] %v677
    %812 = vst [vmem:[#allocation2 + $0x358] sm:$0xff] %v679
    %813 = vst [vmem:[#allocation2 + $0x360] sm:$0xff] %v488
    %814 = vst [vmem:[#allocation2 + $0x368] sm:$0xff] %v490
    %815 = vst [vmem:[#allocation2 + $0x370] sm:$0xff] %v681
    %816 = vst [vmem:[#allocation2 + $0x378] sm:$0xff] %v683
    %817 = vst [vmem:[#allocation2 + $0x380] sm:$0xff] %v494
    %818 = vst [vmem:[#allocation2 + $0x388] sm:$0xff] %v496
    %819 = vst [vmem:[#allocation2 + $0x390] sm:$0xff] %v687
    %820 = vst [vmem:[#allocation2 + $0x398] sm:$0xff] %v689
    %821 = vst [vmem:[#allocation2 + $0x3a0] sm:$0xff] %v498
    %822 = vst [vmem:[#allocation2 + $0x3a8] sm:$0xff] %v500
    %823 = vst [vmem:[#allocation2 + $0x3b0] sm:$0xff] %v691
    %824 = vst [vmem:[#allocation2 + $0x3b8] sm:$0xff] %v693
    %825 = vst [vmem:[#allocation2 + $0x3c0] sm:$0xff] %v504
    %826 = vst [vmem:[#allocation2 + $0x3c8] sm:$0xff] %v506
    %827 = vst [vmem:[#allocation2 + $0x3d0] sm:$0xff] %v697
    %828 = vst [vmem:[#allocation2 + $0x3d8] sm:$0xff] %v699
    %829 = vst [vmem:[#allocation2 + $0x3e0] sm:$0xff] %v508
    %830 = vst [vmem:[#allocation2 + $0x3e8] sm:$0xff] %v510
    %831 = vst [vmem:[#allocation2 + $0x3f0] sm:$0xff] %v701
    %832 = vst [vmem:[#allocation2 + $0x3f8] sm:$0xff] %v703
    %v833 = vld [vmem:[%s0] sm:$0xf]
    %v834 = vld [vmem:[%s0 + $0x4] sm:$0xf]
    %v835 = vld [vmem:[%s0 + $0x8] sm:$0x1]
    %v836 = vld [vmem:[%s0 + $0xc] sm:$0xf]
    %v837 = vld [vmem:[%s0 + $0x10] sm:$0xf]
    %v838 = vld [vmem:[%s0 + $0x14] sm:$0x1]
    %v839 = vld [vmem:[%s0 + $0x18] sm:$0xf]
    %v840 = vld [vmem:[%s0 + $0x1c] sm:$0xf]
    %v841 = vld [vmem:[%s0 + $0x20] sm:$0x1]
    %v842 = vld [vmem:[%s0 + $0x24] sm:$0xf]
    %v843 = vld [vmem:[%s0 + $0x28] sm:$0xf]
    %v844 = vld [vmem:[%s0 + $0x2c] sm:$0x1]
    %v845 = vld [vmem:[%s0 + $0x30] sm:$0xf]
    %v846 = vld [vmem:[%s0 + $0x34] sm:$0xf]
    %v847 = vld [vmem:[%s0 + $0x38] sm:$0x1]
    %v848 = vld [vmem:[%s0 + $0x3c] sm:$0xf]
    %v849 = vld [vmem:[%s0 + $0x40] sm:$0xf]
    %v850 = vld [vmem:[%s0 + $0x44] sm:$0x1]
    %v851 = vld [vmem:[%s0 + $0x48] sm:$0xf]
    %v852 = vld [vmem:[%s0 + $0x4c] sm:$0xf]
    %v853 = vld [vmem:[%s0 + $0x50] sm:$0x1]
    %v854 = vld [vmem:[%s0 + $0x54] sm:$0xf]
    %v855 = vld [vmem:[%s0 + $0x58] sm:$0xf]
    %v856 = vld [vmem:[%s0 + $0x5c] sm:$0x1]
    %vm857 = vsmask.f32 3328
    %vm858 = vsmask.f32 7440
    %vm859 = vmor %vm857, %vm858
    %v861 = vshrl.u32 %v833, 16
    %v863 = vrot.slane %v861, 4
    %v864 = vshll.u32 %v833, 16
    %v866 = vrot.slane %v864, 5
    %v867 = vor.u32 %v863, %v866
    %v868 = vrot.slane %v867, 4
    %v870 = vshll.u32 %v834, 16
    %v872 = vrot.slane %v870, 5
    %v873 = vsel %vm859, %v868, %v872
    %v874 = vshrl.u32 %v834, 16
    %v876 = vrot.slane %v874, 4
    %v877 = vor.u32 %v876, %v872
    %v878 = vrot.slane %v877, 4
    %v880 = vshll.u32 %v835, 16
    %v882 = vrot.slane %v880, 5
    %v883 = vsel %vm859, %v878, %v882
    %v885 = vshrl.u32 %v836, 16
    %v887 = vrot.slane %v885, 4
    %v888 = vshll.u32 %v836, 16
    %v890 = vrot.slane %v888, 5
    %v891 = vor.u32 %v887, %v890
    %v892 = vrot.slane %v891, 4
    %v894 = vshll.u32 %v837, 16
    %v896 = vrot.slane %v894, 5
    %v897 = vsel %vm859, %v892, %v896
    %v898 = vshrl.u32 %v837, 16
    %v900 = vrot.slane %v898, 4
    %v901 = vor.u32 %v900, %v896
    %v902 = vrot.slane %v901, 4
    %v904 = vshll.u32 %v838, 16
    %v906 = vrot.slane %v904, 5
    %v907 = vsel %vm859, %v902, %v906
    %v909 = vshrl.u32 %v839, 16
    %v911 = vrot.slane %v909, 4
    %v912 = vshll.u32 %v839, 16
    %v914 = vrot.slane %v912, 5
    %v915 = vor.u32 %v911, %v914
    %v916 = vrot.slane %v915, 4
    %v918 = vshll.u32 %v840, 16
    %v920 = vrot.slane %v918, 5
    %v921 = vsel %vm859, %v916, %v920
    %v922 = vshrl.u32 %v840, 16
    %v924 = vrot.slane %v922, 4
    %v925 = vor.u32 %v924, %v920
    %v926 = vrot.slane %v925, 4
    %v928 = vshll.u32 %v841, 16
    %v930 = vrot.slane %v928, 5
    %v931 = vsel %vm859, %v926, %v930
    %v933 = vshrl.u32 %v842, 16
    %v935 = vrot.slane %v933, 4
    %v936 = vshll.u32 %v842, 16
    %v938 = vrot.slane %v936, 5
    %v939 = vor.u32 %v935, %v938
    %v940 = vrot.slane %v939, 4
    %v942 = vshll.u32 %v843, 16
    %v944 = vrot.slane %v942, 5
    %v945 = vsel %vm859, %v940, %v944
    %v946 = vshrl.u32 %v843, 16
    %v948 = vrot.slane %v946, 4
    %v949 = vor.u32 %v948, %v944
    %v950 = vrot.slane %v949, 4
    %v952 = vshll.u32 %v844, 16
    %v954 = vrot.slane %v952, 5
    %v955 = vsel %vm859, %v950, %v954
    %v957 = vshrl.u32 %v845, 16
    %v959 = vrot.slane %v957, 4
    %v960 = vshll.u32 %v845, 16
    %v962 = vrot.slane %v960, 5
    %v963 = vor.u32 %v959, %v962
    %v964 = vrot.slane %v963, 4
    %v966 = vshll.u32 %v846, 16
    %v968 = vrot.slane %v966, 5
    %v969 = vsel %vm859, %v964, %v968
    %v970 = vshrl.u32 %v846, 16
    %v972 = vrot.slane %v970, 4
    %v973 = vor.u32 %v972, %v968
    %v974 = vrot.slane %v973, 4
    %v976 = vshll.u32 %v847, 16
    %v978 = vrot.slane %v976, 5
    %v979 = vsel %vm859, %v974, %v978
    %v981 = vshrl.u32 %v848, 16
    %v983 = vrot.slane %v981, 4
    %v984 = vshll.u32 %v848, 16
    %v986 = vrot.slane %v984, 5
    %v987 = vor.u32 %v983, %v986
    %v988 = vrot.slane %v987, 4
    %v990 = vshll.u32 %v849, 16
    %v992 = vrot.slane %v990, 5
    %v993 = vsel %vm859, %v988, %v992
    %v994 = vshrl.u32 %v849, 16
    %v996 = vrot.slane %v994, 4
    %v997 = vor.u32 %v996, %v992
    %v998 = vrot.slane %v997, 4
    %v1000 = vshll.u32 %v850, 16
    %v1002 = vrot.slane %v1000, 5
    %v1003 = vsel %vm859, %v998, %v1002
    %v1005 = vshrl.u32 %v851, 16
    %v1007 = vrot.slane %v1005, 4
    %v1008 = vshll.u32 %v851, 16
    %v1010 = vrot.slane %v1008, 5
    %v1011 = vor.u32 %v1007, %v1010
    %v1012 = vrot.slane %v1011, 4
    %v1014 = vshll.u32 %v852, 16
    %v1016 = vrot.slane %v1014, 5
    %v1017 = vsel %vm859, %v1012, %v1016
    %v1018 = vshrl.u32 %v852, 16
    %v1020 = vrot.slane %v1018, 4
    %v1021 = vor.u32 %v1020, %v1016
    %v1022 = vrot.slane %v1021, 4
    %v1024 = vshll.u32 %v853, 16
    %v1026 = vrot.slane %v1024, 5
    %v1027 = vsel %vm859, %v1022, %v1026
    %v1029 = vshrl.u32 %v854, 16
    %v1031 = vrot.slane %v1029, 4
    %v1032 = vshll.u32 %v854, 16
    %v1034 = vrot.slane %v1032, 5
    %v1035 = vor.u32 %v1031, %v1034
    %v1036 = vrot.slane %v1035, 4
    %v1038 = vshll.u32 %v855, 16
    %v1040 = vrot.slane %v1038, 5
    %v1041 = vsel %vm859, %v1036, %v1040
    %v1042 = vshrl.u32 %v855, 16
    %v1044 = vrot.slane %v1042, 4
    %v1045 = vor.u32 %v1044, %v1040
    %v1046 = vrot.slane %v1045, 4
    %v1048 = vshll.u32 %v856, 16
    %v1050 = vrot.slane %v1048, 5
    %v1051 = vsel %vm859, %v1046, %v1050
    %v1052 = vld [vmem:[%s52] sm:$0xf]
    %v1053 = vld [vmem:[%s52 + $0x4] sm:$0xf]
    %v1054 = vld [vmem:[%s52 + $0x8] sm:$0x1]
    %v1055 = vld [vmem:[%s52 + $0xc] sm:$0xf]
    %v1056 = vld [vmem:[%s52 + $0x10] sm:$0xf]
    %v1057 = vld [vmem:[%s52 + $0x14] sm:$0x1]
    %v1058 = vld [vmem:[%s52 + $0x18] sm:$0xf]
    %v1059 = vld [vmem:[%s52 + $0x1c] sm:$0xf]
    %v1060 = vld [vmem:[%s52 + $0x20] sm:$0x1]
    %v1061 = vld [vmem:[%s52 + $0x24] sm:$0xf]
    %v1062 = vld [vmem:[%s52 + $0x28] sm:$0xf]
    %v1063 = vld [vmem:[%s52 + $0x2c] sm:$0x1]
    %v1064 = vld [vmem:[%s52 + $0x30] sm:$0xf]
    %v1065 = vld [vmem:[%s52 + $0x34] sm:$0xf]
    %v1066 = vld [vmem:[%s52 + $0x38] sm:$0x1]
    %v1067 = vld [vmem:[%s52 + $0x3c] sm:$0xf]
    %v1068 = vld [vmem:[%s52 + $0x40] sm:$0xf]
    %v1069 = vld [vmem:[%s52 + $0x44] sm:$0x1]
    %v1070 = vld [vmem:[%s52 + $0x48] sm:$0xf]
    %v1071 = vld [vmem:[%s52 + $0x4c] sm:$0xf]
    %v1072 = vld [vmem:[%s52 + $0x50] sm:$0x1]
    %v1073 = vld [vmem:[%s52 + $0x54] sm:$0xf]
    %v1074 = vld [vmem:[%s52 + $0x58] sm:$0xf]
    %v1075 = vld [vmem:[%s52 + $0x5c] sm:$0x1]
    %v1077 = vshrl.u32 %v1052, 16
    %v1079 = vrot.slane %v1077, 4
    %v1080 = vshll.u32 %v1052, 16
    %v1082 = vrot.slane %v1080, 5
    %v1083 = vor.u32 %v1079, %v1082
    %v1084 = vrot.slane %v1083, 4
    %v1086 = vshll.u32 %v1053, 16
    %v1088 = vrot.slane %v1086, 5
    %v1089 = vsel %vm859, %v1084, %v1088
    %v1090 = vshrl.u32 %v1053, 16
    %v1092 = vrot.slane %v1090, 4
    %v1093 = vor.u32 %v1092, %v1088
    %v1094 = vrot.slane %v1093, 4
    %v1096 = vshll.u32 %v1054, 16
    %v1098 = vrot.slane %v1096, 5
    %v1099 = vsel %vm859, %v1094, %v1098
    %v1101 = vshrl.u32 %v1055, 16
    %v1103 = vrot.slane %v1101, 4
    %v1104 = vshll.u32 %v1055, 16
    %v1106 = vrot.slane %v1104, 5
    %v1107 = vor.u32 %v1103, %v1106
    %v1108 = vrot.slane %v1107, 4
    %v1110 = vshll.u32 %v1056, 16
    %v1112 = vrot.slane %v1110, 5
    %v1113 = vsel %vm859, %v1108, %v1112
    %v1114 = vshrl.u32 %v1056, 16
    %v1116 = vrot.slane %v1114, 4
    %v1117 = vor.u32 %v1116, %v1112
    %v1118 = vrot.slane %v1117, 4
    %v1120 = vshll.u32 %v1057, 16
    %v1122 = vrot.slane %v1120, 5
    %v1123 = vsel %vm859, %v1118, %v1122
    %v1125 = vshrl.u32 %v1058, 16
    %v1127 = vrot.slane %v1125, 4
    %v1128 = vshll.u32 %v1058, 16
    %v1130 = vrot.slane %v1128, 5
    %v1131 = vor.u32 %v1127, %v1130
    %v1132 = vrot.slane %v1131, 4
    %v1134 = vshll.u32 %v1059, 16
    %v1136 = vrot.slane %v1134, 5
    %v1137 = vsel %vm859, %v1132, %v1136
    %v1138 = vshrl.u32 %v1059, 16
    %v1140 = vrot.slane %v1138, 4
    %v1141 = vor.u32 %v1140, %v1136
    %v1142 = vrot.slane %v1141, 4
    %v1144 = vshll.u32 %v1060, 16
    %v1146 = vrot.slane %v1144, 5
    %v1147 = vsel %vm859, %v1142, %v1146
    %v1149 = vshrl.u32 %v1061, 16
    %v1151 = vrot.slane %v1149, 4
    %v1152 = vshll.u32 %v1061, 16
    %v1154 = vrot.slane %v1152, 5
    %v1155 = vor.u32 %v1151, %v1154
    %v1156 = vrot.slane %v1155, 4
    %v1158 = vshll.u32 %v1062, 16
    %v1160 = vrot.slane %v1158, 5
    %v1161 = vsel %vm859, %v1156, %v1160
    %v1162 = vshrl.u32 %v1062, 16
    %v1164 = vrot.slane %v1162, 4
    %v1165 = vor.u32 %v1164, %v1160
    %v1166 = vrot.slane %v1165, 4
    %v1168 = vshll.u32 %v1063, 16
    %v1170 = vrot.slane %v1168, 5
    %v1171 = vsel %vm859, %v1166, %v1170
    %v1173 = vshrl.u32 %v1064, 16
    %v1175 = vrot.slane %v1173, 4
    %v1176 = vshll.u32 %v1064, 16
    %v1178 = vrot.slane %v1176, 5
    %v1179 = vor.u32 %v1175, %v1178
    %v1180 = vrot.slane %v1179, 4
    %v1182 = vshll.u32 %v1065, 16
    %v1184 = vrot.slane %v1182, 5
    %v1185 = vsel %vm859, %v1180, %v1184
    %v1186 = vshrl.u32 %v1065, 16
    %v1188 = vrot.slane %v1186, 4
    %v1189 = vor.u32 %v1188, %v1184
    %v1190 = vrot.slane %v1189, 4
    %v1192 = vshll.u32 %v1066, 16
    %v1194 = vrot.slane %v1192, 5
    %v1195 = vsel %vm859, %v1190, %v1194
    %v1197 = vshrl.u32 %v1067, 16
    %v1199 = vrot.slane %v1197, 4
    %v1200 = vshll.u32 %v1067, 16
    %v1202 = vrot.slane %v1200, 5
    %v1203 = vor.u32 %v1199, %v1202
    %v1204 = vrot.slane %v1203, 4
    %v1206 = vshll.u32 %v1068, 16
    %v1208 = vrot.slane %v1206, 5
    %v1209 = vsel %vm859, %v1204, %v1208
    %v1210 = vshrl.u32 %v1068, 16
    %v1212 = vrot.slane %v1210, 4
    %v1213 = vor.u32 %v1212, %v1208
    %v1214 = vrot.slane %v1213, 4
    %v1216 = vshll.u32 %v1069, 16
    %v1218 = vrot.slane %v1216, 5
    %v1219 = vsel %vm859, %v1214, %v1218
    %v1221 = vshrl.u32 %v1070, 16
    %v1223 = vrot.slane %v1221, 4
    %v1224 = vshll.u32 %v1070, 16
    %v1226 = vrot.slane %v1224, 5
    %v1227 = vor.u32 %v1223, %v1226
    %v1228 = vrot.slane %v1227, 4
    %v1230 = vshll.u32 %v1071, 16
    %v1232 = vrot.slane %v1230, 5
    %v1233 = vsel %vm859, %v1228, %v1232
    %v1234 = vshrl.u32 %v1071, 16
    %v1236 = vrot.slane %v1234, 4
    %v1237 = vor.u32 %v1236, %v1232
    %v1238 = vrot.slane %v1237, 4
    %v1240 = vshll.u32 %v1072, 16
    %v1242 = vrot.slane %v1240, 5
    %v1243 = vsel %vm859, %v1238, %v1242
    %v1245 = vshrl.u32 %v1073, 16
    %v1247 = vrot.slane %v1245, 4
    %v1248 = vshll.u32 %v1073, 16
    %v1250 = vrot.slane %v1248, 5
    %v1251 = vor.u32 %v1247, %v1250
    %v1252 = vrot.slane %v1251, 4
    %v1254 = vshll.u32 %v1074, 16
    %v1256 = vrot.slane %v1254, 5
    %v1257 = vsel %vm859, %v1252, %v1256
    %v1258 = vshrl.u32 %v1074, 16
    %v1260 = vrot.slane %v1258, 4
    %v1261 = vor.u32 %v1260, %v1256
    %v1262 = vrot.slane %v1261, 4
    %v1264 = vshll.u32 %v1075, 16
    %v1266 = vrot.slane %v1264, 5
    %v1267 = vsel %vm859, %v1262, %v1266
    %v1268 = vunpack.c.l.b16 %v873
    %v1269 = vunpack.c.l.b16 %v883
    %v1270 = vunpack.c.l.b16 %v897
    %v1271 = vunpack.c.l.b16 %v907
    %v1272 = vunpack.c.l.b16 %v921
    %v1273 = vunpack.c.l.b16 %v931
    %v1274 = vunpack.c.l.b16 %v945
    %v1275 = vunpack.c.l.b16 %v955
    %v1276 = vunpack.c.l.b16 %v969
    %v1277 = vunpack.c.l.b16 %v979
    %v1278 = vunpack.c.l.b16 %v993
    %v1279 = vunpack.c.l.b16 %v1003
    %v1280 = vunpack.c.l.b16 %v1017
    %v1281 = vunpack.c.l.b16 %v1027
    %v1282 = vunpack.c.l.b16 %v1041
    %v1283 = vunpack.c.l.b16 %v1051
    %v1284 = vpack.c.b16 %v1269, %v1268
    %v1285 = vpack.c.b16 %v1271, %v1270
    %v1286 = vpack.c.b16 %v1273, %v1272
    %v1287 = vpack.c.b16 %v1275, %v1274
    %v1288 = vpack.c.b16 %v1277, %v1276
    %v1289 = vpack.c.b16 %v1279, %v1278
    %v1290 = vpack.c.b16 %v1281, %v1280
    %v1291 = vpack.c.b16 %v1283, %v1282
    %v1292 = vunpack.c.l.b16 %v1089
    %v1293 = vunpack.c.l.b16 %v1099
    %v1294 = vunpack.c.l.b16 %v1113
    %v1295 = vunpack.c.l.b16 %v1123
    %v1296 = vunpack.c.l.b16 %v1137
    %v1297 = vunpack.c.l.b16 %v1147
    %v1298 = vunpack.c.l.b16 %v1161
    %v1299 = vunpack.c.l.b16 %v1171
    %v1300 = vunpack.c.l.b16 %v1185
    %v1301 = vunpack.c.l.b16 %v1195
    %v1302 = vunpack.c.l.b16 %v1209
    %v1303 = vunpack.c.l.b16 %v1219
    %v1304 = vunpack.c.l.b16 %v1233
    %v1305 = vunpack.c.l.b16 %v1243
    %v1306 = vunpack.c.l.b16 %v1257
    %v1307 = vunpack.c.l.b16 %v1267
    %v1308 = vpack.c.b16 %v1293, %v1292
    %v1309 = vpack.c.b16 %v1295, %v1294
    %v1310 = vpack.c.b16 %v1297, %v1296
    %v1311 = vpack.c.b16 %v1299, %v1298
    %v1312 = vpack.c.b16 %v1301, %v1300
    %v1313 = vpack.c.b16 %v1303, %v1302
    %v1314 = vpack.c.b16 %v1305, %v1304
    %v1315 = vpack.c.b16 %v1307, %v1306
    %s1316 = scalar_lea.vmem [#allocation3], 144
    %v1317 = vld [vmem:[%s1316] sm:$0xff]
    %v1318 = vld [vmem:[%s1316 + $0x8] sm:$0xff]
    %v1319 = vld [vmem:[%s1316 + $0x10] sm:$0xff]
    %v1320 = vld [vmem:[%s1316 + $0x18] sm:$0xff]
    %v1321 = vld [vmem:[%s1316 + $0x20] sm:$0xff]
    %v1322 = vld [vmem:[%s1316 + $0x28] sm:$0xff]
    %v1323 = vld [vmem:[%s1316 + $0x30] sm:$0xff]
    %v1324 = vld [vmem:[%s1316 + $0x38] sm:$0xff]
    %v1325 = vld [vmem:[%s1316 + $0x40] sm:$0xff]
    %v1326 = vld [vmem:[%s1316 + $0x48] sm:$0xff]
    %v1327 = vld [vmem:[%s1316 + $0x50] sm:$0xff]
    %v1328 = vld [vmem:[%s1316 + $0x58] sm:$0xff]
    %v1329 = vld [vmem:[%s1316 + $0x60] sm:$0xff]
    %v1330 = vld [vmem:[%s1316 + $0x68] sm:$0xff]
    %v1331 = vld [vmem:[%s1316 + $0x70] sm:$0xff]
    %v1332 = vld [vmem:[%s1316 + $0x78] sm:$0xff]
    %v1333 = vld [vmem:[%s1316 + $0x80] sm:$0xff]
    %v1334 = vld [vmem:[%s1316 + $0x88] sm:$0xff]
    %v1353 = vunpack.c.l.b16 %v1317
    %v1354 = vunpack.c.h.b16 %v1317
    %v1355 = vunpack.c.l.b16 %v1318
    %v1356 = vunpack.c.h.b16 %v1318
    %v1357 = vunpack.c.l.b16 %v1319
    %v1358 = vunpack.c.h.b16 %v1319
    %v1359 = vunpack.c.l.b16 %v1320
    %v1360 = vunpack.c.h.b16 %v1320
    %v1361 = vunpack.c.l.b16 %v1321
    %v1362 = vunpack.c.h.b16 %v1321
    %v1363 = vunpack.c.l.b16 %v1322
    %v1364 = vunpack.c.h.b16 %v1322
    %v1365 = vunpack.c.l.b16 %v1323
    %v1366 = vunpack.c.h.b16 %v1323
    %v1367 = vunpack.c.l.b16 %v1324
    %v1368 = vunpack.c.h.b16 %v1324
    %v1369 = vunpack.c.l.b16 %v1325
    %v1370 = vunpack.c.h.b16 %v1325
    %v1371 = vunpack.c.l.b16 %v1326
    %v1372 = vunpack.c.h.b16 %v1326
    %v1373 = vunpack.c.l.b16 %v1327
    %v1374 = vunpack.c.h.b16 %v1327
    %v1375 = vunpack.c.l.b16 %v1328
    %v1376 = vunpack.c.h.b16 %v1328
    %v1377 = vunpack.c.l.b16 %v1329
    %v1378 = vunpack.c.h.b16 %v1329
    %v1379 = vunpack.c.l.b16 %v1330
    %v1380 = vunpack.c.h.b16 %v1330
    %v1381 = vunpack.c.l.b16 %v1331
    %v1382 = vunpack.c.h.b16 %v1331
    %v1383 = vunpack.c.l.b16 %v1332
    %v1384 = vunpack.c.h.b16 %v1332
    %v1385 = vunpack.c.l.b16 %v1333
    %v1386 = vunpack.c.h.b16 %v1333
    %v1387 = vunpack.c.l.b16 %v1334
    %v1388 = vunpack.c.h.b16 %v1334
    %v1389 = vpack.c.b16 %v1357, %v1353
    %v1390 = vpack.c.b16 %v1358, %v1354
    %v1391 = vpack.c.b16 %v1359, %v1355
    %v1392 = vpack.c.b16 %v1360, %v1356
    %v1393 = vpack.c.b16 %v1365, %v1361
    %v1394 = vpack.c.b16 %v1366, %v1362
    %v1395 = vpack.c.b16 %v1367, %v1363
    %v1396 = vpack.c.b16 %v1368, %v1364
    %v1397 = vpack.c.b16 %v1373, %v1369
    %v1398 = vpack.c.b16 %v1374, %v1370
    %v1399 = vpack.c.b16 %v1375, %v1371
    %v1400 = vpack.c.b16 %v1376, %v1372
    %v1401 = vpack.c.b16 %v1381, %v1377
    %v1402 = vpack.c.b16 %v1382, %v1378
    %v1403 = vpack.c.b16 %v1383, %v1379
    %v1404 = vpack.c.b16 %v1384, %v1380
    %v1405 = vpack.c.b16 %v1385, %v1385
    %v1406 = vpack.c.b16 %v1386, %v1386
    %v1407 = vpack.c.b16 %v1387, %v1387
    %v1408 = vpack.c.b16 %v1388, %v1388
    %v1426 = vsel %vm257, %v1284, 0
    %v1429 = vsel %vm257, %v1285, 0
    %v1432 = vsel %vm257, %v1286, 0
    %v1435 = vsel %vm257, %v1287, 0
    %v1438 = vsel %vm257, %v1288, 0
    %v1441 = vsel %vm257, %v1289, 0
    %v1444 = vsel %vm257, %v1290, 0
    %v1447 = vsel %vm257, %v1291, 0
    %v1450 = vsel %vm257, %v1308, 0
    %v1453 = vsel %vm257, %v1309, 0
    %v1456 = vsel %vm257, %v1310, 0
    %v1459 = vsel %vm257, %v1311, 0
    %v1462 = vsel %vm257, %v1312, 0
    %v1465 = vsel %vm257, %v1313, 0
    %v1468 = vsel %vm257, %v1314, 0
    %v1471 = vsel %vm257, %v1315, 0
    %v1474 = vsel %vm306, %v1405, 0
    %v1477 = vsel %vm306, %v1406, 0
    %v1480 = vsel %vm306, %v1407, 0
    %v1483 = vsel %vm306, %v1408, 0
    %1485 = vmatprep.subr.bf16.mxu0 0
    %1486 = vmatpush1.bf16.msra.mxu0 0
    %1487 = vmatprep.subr.bf16.mxu0 0
    %1488 = vmatpush1.bf16.msra.mxu0 0
    %1489 = vmatprep.subr.bf16.mxu0 0
    %1490 = vmatpush1.bf16.msra.mxu0 0
    %1491 = vmatprep.subr.bf16.mxu0 %v1477
    %1492 = vmatpush1.bf16.msra.mxu0 %v1474
    %1493 = vmatprep.subr.bf16.mxu0 %v1402
    %1494 = vmatpush1.bf16.msra.mxu0 %v1401
    %1495 = vmatprep.subr.bf16.mxu0 %v1398
    %1496 = vmatpush1.bf16.msra.mxu0 %v1397
    %1497 = vmatprep.subr.bf16.mxu0 %v1394
    %1498 = vmatpush1.bf16.msra.mxu0 %v1393
    %1499 = vmatprep.subr.bf16.mxu0 %v1390
    %1500 = vmatpush1.bf16.msra.mxu0 %v1389
    %1501 = vmatprep.subr.bf16.mxu0 0
    %1502 = vmatpush2.bf16.msra.mxu0 0
    %1503 = vmatprep.subr.bf16.mxu0 0
    %1504 = vmatpush2.bf16.msra.mxu0 0
    %1505 = vmatprep.subr.bf16.mxu0 0
    %1506 = vmatpush2.bf16.msra.mxu0 0
    %1507 = vmatprep.subr.bf16.mxu0 0
    %1508 = vmatpush2.bf16.msra.mxu0 0
    %1509 = vmatprep.subr.bf16.mxu0 0
    %1510 = vmatpush2.bf16.msra.mxu0 0
    %1511 = vmatprep.subr.bf16.mxu0 0
    %1512 = vmatpush2.bf16.msra.mxu0 0
    %1513 = vmatprep.subr.bf16.mxu0 0
    %1514 = vmatpush2.bf16.msra.mxu0 0
    %1515 = vmatprep.subr.bf16.mxu0 0
    %1516 = vmatpush2.bf16.msra.mxu0 0
    %1517 = vmatprep.mubr.bf16.mxu0 0
    %1518 = vmatmul.mubr.bf16.gmra.mxu0 %v1426
    %v1519 = vpop.f32.mrf.mxu0
    %v1520 = vadd.f32 0.0, %v1519
    %v1521 = vpop.f32.mrf.mxu0
    %v1522 = vadd.f32 0.0, %v1521
    %v1523 = vpop.f32.mrf.mxu0
    %v1524 = vadd.f32 0.0, %v1523
    %v1525 = vpop.f32.mrf.mxu0
    %v1526 = vadd.f32 0.0, %v1525
    %1527 = vmatprep.mubr.bf16.mxu0 0
    %1528 = vmatmul.mubr.bf16.gmra.mxu0 %v1429
    %v1529 = vpop.f32.mrf.mxu0
    %v1530 = vadd.f32 0.0, %v1529
    %v1531 = vpop.f32.mrf.mxu0
    %v1532 = vadd.f32 0.0, %v1531
    %v1533 = vpop.f32.mrf.mxu0
    %v1534 = vadd.f32 0.0, %v1533
    %v1535 = vpop.f32.mrf.mxu0
    %v1536 = vadd.f32 0.0, %v1535
    %1537 = vmatprep.mubr.bf16.mxu0 0
    %1538 = vmatmul.mubr.bf16.gmra.mxu0 %v1432
    %v1539 = vpop.f32.mrf.mxu0
    %v1540 = vadd.f32 0.0, %v1539
    %v1541 = vpop.f32.mrf.mxu0
    %v1542 = vadd.f32 0.0, %v1541
    %v1543 = vpop.f32.mrf.mxu0
    %v1544 = vadd.f32 0.0, %v1543
    %v1545 = vpop.f32.mrf.mxu0
    %v1546 = vadd.f32 0.0, %v1545
    %1547 = vmatprep.mubr.bf16.mxu0 0
    %1548 = vmatmul.mubr.bf16.gmra.mxu0 %v1435
    %v1549 = vpop.f32.mrf.mxu0
    %v1550 = vadd.f32 0.0, %v1549
    %v1551 = vpop.f32.mrf.mxu0
    %v1552 = vadd.f32 0.0, %v1551
    %v1553 = vpop.f32.mrf.mxu0
    %v1554 = vadd.f32 0.0, %v1553
    %v1555 = vpop.f32.mrf.mxu0
    %v1556 = vadd.f32 0.0, %v1555
    %1557 = vmatprep.mubr.bf16.mxu0 0
    %1558 = vmatmul.mubr.bf16.gmra.mxu0 %v1438
    %v1559 = vpop.f32.mrf.mxu0
    %v1560 = vadd.f32 0.0, %v1559
    %v1561 = vpop.f32.mrf.mxu0
    %v1562 = vadd.f32 0.0, %v1561
    %v1563 = vpop.f32.mrf.mxu0
    %v1564 = vadd.f32 0.0, %v1563
    %v1565 = vpop.f32.mrf.mxu0
    %v1566 = vadd.f32 0.0, %v1565
    %1567 = vmatprep.mubr.bf16.mxu0 0
    %1568 = vmatmul.mubr.bf16.gmra.mxu0 %v1441
    %v1569 = vpop.f32.mrf.mxu0
    %v1570 = vadd.f32 0.0, %v1569
    %v1571 = vpop.f32.mrf.mxu0
    %v1572 = vadd.f32 0.0, %v1571
    %v1573 = vpop.f32.mrf.mxu0
    %v1574 = vadd.f32 0.0, %v1573
    %v1575 = vpop.f32.mrf.mxu0
    %v1576 = vadd.f32 0.0, %v1575
    %1577 = vmatprep.mubr.bf16.mxu0 0
    %1578 = vmatmul.mubr.bf16.gmra.mxu0 %v1444
    %v1579 = vpop.f32.mrf.mxu0
    %v1580 = vadd.f32 0.0, %v1579
    %v1581 = vpop.f32.mrf.mxu0
    %v1582 = vadd.f32 0.0, %v1581
    %v1583 = vpop.f32.mrf.mxu0
    %v1584 = vadd.f32 0.0, %v1583
    %v1585 = vpop.f32.mrf.mxu0
    %v1586 = vadd.f32 0.0, %v1585
    %1587 = vmatprep.mubr.bf16.mxu0 0
    %1588 = vmatmul.mubr.bf16.gmra.mxu0 %v1447
    %v1589 = vpop.f32.mrf.mxu0
    %v1590 = vadd.f32 0.0, %v1589
    %v1591 = vpop.f32.mrf.mxu0
    %v1592 = vadd.f32 0.0, %v1591
    %v1593 = vpop.f32.mrf.mxu0
    %v1594 = vadd.f32 0.0, %v1593
    %v1595 = vpop.f32.mrf.mxu0
    %v1596 = vadd.f32 0.0, %v1595
    %1597 = vmatprep.mubr.bf16.mxu0 0
    %1598 = vmatmul.mubr.bf16.gmra.mxu0 %v1450
    %v1599 = vpop.f32.mrf.mxu0
    %v1600 = vadd.f32 0.0, %v1599
    %v1601 = vpop.f32.mrf.mxu0
    %v1602 = vadd.f32 0.0, %v1601
    %v1603 = vpop.f32.mrf.mxu0
    %v1604 = vadd.f32 0.0, %v1603
    %v1605 = vpop.f32.mrf.mxu0
    %v1606 = vadd.f32 0.0, %v1605
    %1607 = vmatprep.mubr.bf16.mxu0 0
    %1608 = vmatmul.mubr.bf16.gmra.mxu0 %v1453
    %v1609 = vpop.f32.mrf.mxu0
    %v1610 = vadd.f32 0.0, %v1609
    %v1611 = vpop.f32.mrf.mxu0
    %v1612 = vadd.f32 0.0, %v1611
    %v1613 = vpop.f32.mrf.mxu0
    %v1614 = vadd.f32 0.0, %v1613
    %v1615 = vpop.f32.mrf.mxu0
    %v1616 = vadd.f32 0.0, %v1615
    %1617 = vmatprep.mubr.bf16.mxu0 0
    %1618 = vmatmul.mubr.bf16.gmra.mxu0 %v1456
    %v1619 = vpop.f32.mrf.mxu0
    %v1620 = vadd.f32 0.0, %v1619
    %v1621 = vpop.f32.mrf.mxu0
    %v1622 = vadd.f32 0.0, %v1621
    %v1623 = vpop.f32.mrf.mxu0
    %v1624 = vadd.f32 0.0, %v1623
    %v1625 = vpop.f32.mrf.mxu0
    %v1626 = vadd.f32 0.0, %v1625
    %1627 = vmatprep.mubr.bf16.mxu0 0
    %1628 = vmatmul.mubr.bf16.gmra.mxu0 %v1459
    %v1629 = vpop.f32.mrf.mxu0
    %v1630 = vadd.f32 0.0, %v1629
    %v1631 = vpop.f32.mrf.mxu0
    %v1632 = vadd.f32 0.0, %v1631
    %v1633 = vpop.f32.mrf.mxu0
    %v1634 = vadd.f32 0.0, %v1633
    %v1635 = vpop.f32.mrf.mxu0
    %v1636 = vadd.f32 0.0, %v1635
    %1637 = vmatprep.mubr.bf16.mxu0 0
    %1638 = vmatmul.mubr.bf16.gmra.mxu0 %v1462
    %v1639 = vpop.f32.mrf.mxu0
    %v1640 = vadd.f32 0.0, %v1639
    %v1641 = vpop.f32.mrf.mxu0
    %v1642 = vadd.f32 0.0, %v1641
    %v1643 = vpop.f32.mrf.mxu0
    %v1644 = vadd.f32 0.0, %v1643
    %v1645 = vpop.f32.mrf.mxu0
    %v1646 = vadd.f32 0.0, %v1645
    %1647 = vmatprep.mubr.bf16.mxu0 0
    %1648 = vmatmul.mubr.bf16.gmra.mxu0 %v1465
    %v1649 = vpop.f32.mrf.mxu0
    %v1650 = vadd.f32 0.0, %v1649
    %v1651 = vpop.f32.mrf.mxu0
    %v1652 = vadd.f32 0.0, %v1651
    %v1653 = vpop.f32.mrf.mxu0
    %v1654 = vadd.f32 0.0, %v1653
    %v1655 = vpop.f32.mrf.mxu0
    %v1656 = vadd.f32 0.0, %v1655
    %1657 = vmatprep.mubr.bf16.mxu0 0
    %1658 = vmatmul.mubr.bf16.gmra.mxu0 %v1468
    %v1659 = vpop.f32.mrf.mxu0
    %v1660 = vadd.f32 0.0, %v1659
    %v1661 = vpop.f32.mrf.mxu0
    %v1662 = vadd.f32 0.0, %v1661
    %v1663 = vpop.f32.mrf.mxu0
    %v1664 = vadd.f32 0.0, %v1663
    %v1665 = vpop.f32.mrf.mxu0
    %v1666 = vadd.f32 0.0, %v1665
    %1667 = vmatprep.mubr.bf16.mxu0 0
    %1668 = vmatmul.mubr.bf16.gmra.mxu0 %v1471
    %v1669 = vpop.f32.mrf.mxu0
    %v1670 = vadd.f32 0.0, %v1669
    %v1671 = vpop.f32.mrf.mxu0
    %v1672 = vadd.f32 0.0, %v1671
    %v1673 = vpop.f32.mrf.mxu0
    %v1674 = vadd.f32 0.0, %v1673
    %v1675 = vpop.f32.mrf.mxu0
    %v1676 = vadd.f32 0.0, %v1675
    %1677 = vdwg.mxu0
    %1678 = vmatprep.subr.bf16.mxu0 0
    %1679 = vmatpush1.bf16.msra.mxu0 0
    %1680 = vmatprep.subr.bf16.mxu0 0
    %1681 = vmatpush1.bf16.msra.mxu0 0
    %1682 = vmatprep.subr.bf16.mxu0 0
    %1683 = vmatpush1.bf16.msra.mxu0 0
    %1684 = vmatprep.subr.bf16.mxu0 %v1483
    %1685 = vmatpush1.bf16.msra.mxu0 %v1480
    %1686 = vmatprep.subr.bf16.mxu0 %v1404
    %1687 = vmatpush1.bf16.msra.mxu0 %v1403
    %1688 = vmatprep.subr.bf16.mxu0 %v1400
    %1689 = vmatpush1.bf16.msra.mxu0 %v1399
    %1690 = vmatprep.subr.bf16.mxu0 %v1396
    %1691 = vmatpush1.bf16.msra.mxu0 %v1395
    %1692 = vmatprep.subr.bf16.mxu0 %v1392
    %1693 = vmatpush1.bf16.msra.mxu0 %v1391
    %1694 = vmatprep.subr.bf16.mxu0 0
    %1695 = vmatpush2.bf16.msra.mxu0 0
    %1696 = vmatprep.subr.bf16.mxu0 0
    %1697 = vmatpush2.bf16.msra.mxu0 0
    %1698 = vmatprep.subr.bf16.mxu0 0
    %1699 = vmatpush2.bf16.msra.mxu0 0
    %1700 = vmatprep.subr.bf16.mxu0 0
    %1701 = vmatpush2.bf16.msra.mxu0 0
    %1702 = vmatprep.subr.bf16.mxu0 0
    %1703 = vmatpush2.bf16.msra.mxu0 0
    %1704 = vmatprep.subr.bf16.mxu0 0
    %1705 = vmatpush2.bf16.msra.mxu0 0
    %1706 = vmatprep.subr.bf16.mxu0 0
    %1707 = vmatpush2.bf16.msra.mxu0 0
    %1708 = vmatprep.subr.bf16.mxu0 0
    %1709 = vmatpush2.bf16.msra.mxu0 0
    %1710 = vmatprep.mubr.bf16.mxu0 0
    %1711 = vmatmul.mubr.bf16.gmra.mxu0 %v1426
    %v1712 = vpop.f32.mrf.mxu0
    %v1713 = vadd.f32 0.0, %v1712
    %v1714 = vpop.f32.mrf.mxu0
    %v1715 = vadd.f32 0.0, %v1714
    %v1716 = vpop.f32.mrf.mxu0
    %v1717 = vadd.f32 0.0, %v1716
    %v1718 = vpop.f32.mrf.mxu0
    %v1719 = vadd.f32 0.0, %v1718
    %1720 = vmatprep.mubr.bf16.mxu0 0
    %1721 = vmatmul.mubr.bf16.gmra.mxu0 %v1429
    %v1722 = vpop.f32.mrf.mxu0
    %v1723 = vadd.f32 0.0, %v1722
    %v1724 = vpop.f32.mrf.mxu0
    %v1725 = vadd.f32 0.0, %v1724
    %v1726 = vpop.f32.mrf.mxu0
    %v1727 = vadd.f32 0.0, %v1726
    %v1728 = vpop.f32.mrf.mxu0
    %v1729 = vadd.f32 0.0, %v1728
    %1730 = vmatprep.mubr.bf16.mxu0 0
    %1731 = vmatmul.mubr.bf16.gmra.mxu0 %v1432
    %v1732 = vpop.f32.mrf.mxu0
    %v1733 = vadd.f32 0.0, %v1732
    %v1734 = vpop.f32.mrf.mxu0
    %v1735 = vadd.f32 0.0, %v1734
    %v1736 = vpop.f32.mrf.mxu0
    %v1737 = vadd.f32 0.0, %v1736
    %v1738 = vpop.f32.mrf.mxu0
    %v1739 = vadd.f32 0.0, %v1738
    %1740 = vmatprep.mubr.bf16.mxu0 0
    %1741 = vmatmul.mubr.bf16.gmra.mxu0 %v1435
    %v1742 = vpop.f32.mrf.mxu0
    %v1743 = vadd.f32 0.0, %v1742
    %v1744 = vpop.f32.mrf.mxu0
    %v1745 = vadd.f32 0.0, %v1744
    %v1746 = vpop.f32.mrf.mxu0
    %v1747 = vadd.f32 0.0, %v1746
    %v1748 = vpop.f32.mrf.mxu0
    %v1749 = vadd.f32 0.0, %v1748
    %1750 = vmatprep.mubr.bf16.mxu0 0
    %1751 = vmatmul.mubr.bf16.gmra.mxu0 %v1438
    %v1752 = vpop.f32.mrf.mxu0
    %v1753 = vadd.f32 0.0, %v1752
    %v1754 = vpop.f32.mrf.mxu0
    %v1755 = vadd.f32 0.0, %v1754
    %v1756 = vpop.f32.mrf.mxu0
    %v1757 = vadd.f32 0.0, %v1756
    %v1758 = vpop.f32.mrf.mxu0
    %v1759 = vadd.f32 0.0, %v1758
    %1760 = vmatprep.mubr.bf16.mxu0 0
    %1761 = vmatmul.mubr.bf16.gmra.mxu0 %v1441
    %v1762 = vpop.f32.mrf.mxu0
    %v1763 = vadd.f32 0.0, %v1762
    %v1764 = vpop.f32.mrf.mxu0
    %v1765 = vadd.f32 0.0, %v1764
    %v1766 = vpop.f32.mrf.mxu0
    %v1767 = vadd.f32 0.0, %v1766
    %v1768 = vpop.f32.mrf.mxu0
    %v1769 = vadd.f32 0.0, %v1768
    %1770 = vmatprep.mubr.bf16.mxu0 0
    %1771 = vmatmul.mubr.bf16.gmra.mxu0 %v1444
    %v1772 = vpop.f32.mrf.mxu0
    %v1773 = vadd.f32 0.0, %v1772
    %v1774 = vpop.f32.mrf.mxu0
    %v1775 = vadd.f32 0.0, %v1774
    %v1776 = vpop.f32.mrf.mxu0
    %v1777 = vadd.f32 0.0, %v1776
    %v1778 = vpop.f32.mrf.mxu0
    %v1779 = vadd.f32 0.0, %v1778
    %1780 = vmatprep.mubr.bf16.mxu0 0
    %1781 = vmatmul.mubr.bf16.gmra.mxu0 %v1447
    %v1782 = vpop.f32.mrf.mxu0
    %v1783 = vadd.f32 0.0, %v1782
    %v1784 = vpop.f32.mrf.mxu0
    %v1785 = vadd.f32 0.0, %v1784
    %v1786 = vpop.f32.mrf.mxu0
    %v1787 = vadd.f32 0.0, %v1786
    %v1788 = vpop.f32.mrf.mxu0
    %v1789 = vadd.f32 0.0, %v1788
    %1790 = vmatprep.mubr.bf16.mxu0 0
    %1791 = vmatmul.mubr.bf16.gmra.mxu0 %v1450
    %v1792 = vpop.f32.mrf.mxu0
    %v1793 = vadd.f32 0.0, %v1792
    %v1794 = vpop.f32.mrf.mxu0
    %v1795 = vadd.f32 0.0, %v1794
    %v1796 = vpop.f32.mrf.mxu0
    %v1797 = vadd.f32 0.0, %v1796
    %v1798 = vpop.f32.mrf.mxu0
    %v1799 = vadd.f32 0.0, %v1798
    %1800 = vmatprep.mubr.bf16.mxu0 0
    %1801 = vmatmul.mubr.bf16.gmra.mxu0 %v1453
    %v1802 = vpop.f32.mrf.mxu0
    %v1803 = vadd.f32 0.0, %v1802
    %v1804 = vpop.f32.mrf.mxu0
    %v1805 = vadd.f32 0.0, %v1804
    %v1806 = vpop.f32.mrf.mxu0
    %v1807 = vadd.f32 0.0, %v1806
    %v1808 = vpop.f32.mrf.mxu0
    %v1809 = vadd.f32 0.0, %v1808
    %1810 = vmatprep.mubr.bf16.mxu0 0
    %1811 = vmatmul.mubr.bf16.gmra.mxu0 %v1456
    %v1812 = vpop.f32.mrf.mxu0
    %v1813 = vadd.f32 0.0, %v1812
    %v1814 = vpop.f32.mrf.mxu0
    %v1815 = vadd.f32 0.0, %v1814
    %v1816 = vpop.f32.mrf.mxu0
    %v1817 = vadd.f32 0.0, %v1816
    %v1818 = vpop.f32.mrf.mxu0
    %v1819 = vadd.f32 0.0, %v1818
    %1820 = vmatprep.mubr.bf16.mxu0 0
    %1821 = vmatmul.mubr.bf16.gmra.mxu0 %v1459
    %v1822 = vpop.f32.mrf.mxu0
    %v1823 = vadd.f32 0.0, %v1822
    %v1824 = vpop.f32.mrf.mxu0
    %v1825 = vadd.f32 0.0, %v1824
    %v1826 = vpop.f32.mrf.mxu0
    %v1827 = vadd.f32 0.0, %v1826
    %v1828 = vpop.f32.mrf.mxu0
    %v1829 = vadd.f32 0.0, %v1828
    %1830 = vmatprep.mubr.bf16.mxu0 0
    %1831 = vmatmul.mubr.bf16.gmra.mxu0 %v1462
    %v1832 = vpop.f32.mrf.mxu0
    %v1833 = vadd.f32 0.0, %v1832
    %v1834 = vpop.f32.mrf.mxu0
    %v1835 = vadd.f32 0.0, %v1834
    %v1836 = vpop.f32.mrf.mxu0
    %v1837 = vadd.f32 0.0, %v1836
    %v1838 = vpop.f32.mrf.mxu0
    %v1839 = vadd.f32 0.0, %v1838
    %1840 = vmatprep.mubr.bf16.mxu0 0
    %1841 = vmatmul.mubr.bf16.gmra.mxu0 %v1465
    %v1842 = vpop.f32.mrf.mxu0
    %v1843 = vadd.f32 0.0, %v1842
    %v1844 = vpop.f32.mrf.mxu0
    %v1845 = vadd.f32 0.0, %v1844
    %v1846 = vpop.f32.mrf.mxu0
    %v1847 = vadd.f32 0.0, %v1846
    %v1848 = vpop.f32.mrf.mxu0
    %v1849 = vadd.f32 0.0, %v1848
    %1850 = vmatprep.mubr.bf16.mxu0 0
    %1851 = vmatmul.mubr.bf16.gmra.mxu0 %v1468
    %v1852 = vpop.f32.mrf.mxu0
    %v1853 = vadd.f32 0.0, %v1852
    %v1854 = vpop.f32.mrf.mxu0
    %v1855 = vadd.f32 0.0, %v1854
    %v1856 = vpop.f32.mrf.mxu0
    %v1857 = vadd.f32 0.0, %v1856
    %v1858 = vpop.f32.mrf.mxu0
    %v1859 = vadd.f32 0.0, %v1858
    %1860 = vmatprep.mubr.bf16.mxu0 0
    %1861 = vmatmul.mubr.bf16.gmra.mxu0 %v1471
    %v1862 = vpop.f32.mrf.mxu0
    %v1863 = vadd.f32 0.0, %v1862
    %v1864 = vpop.f32.mrf.mxu0
    %v1865 = vadd.f32 0.0, %v1864
    %v1866 = vpop.f32.mrf.mxu0
    %v1867 = vadd.f32 0.0, %v1866
    %v1868 = vpop.f32.mrf.mxu0
    %v1869 = vadd.f32 0.0, %v1868
    %1870 = vdwg.mxu0
    %v1871 = vld [vmem:[#allocation2] sm:$0xff]
    %v1872 = vld [vmem:[#allocation2 + $0x8] sm:$0xff]
    %v1873 = vld [vmem:[#allocation2 + $0x10] sm:$0xff]
    %v1874 = vld [vmem:[#allocation2 + $0x18] sm:$0xff]
    %v1875 = vld [vmem:[#allocation2 + $0x20] sm:$0xff]
    %v1876 = vld [vmem:[#allocation2 + $0x28] sm:$0xff]
    %v1877 = vld [vmem:[#allocation2 + $0x30] sm:$0xff]
    %v1878 = vld [vmem:[#allocation2 + $0x38] sm:$0xff]
    %v1879 = vld [vmem:[#allocation2 + $0x40] sm:$0xff]
    %v1880 = vld [vmem:[#allocation2 + $0x48] sm:$0xff]
    %v1881 = vld [vmem:[#allocation2 + $0x50] sm:$0xff]
    %v1882 = vld [vmem:[#allocation2 + $0x58] sm:$0xff]
    %v1883 = vld [vmem:[#allocation2 + $0x60] sm:$0xff]
    %v1884 = vld [vmem:[#allocation2 + $0x68] sm:$0xff]
    %v1885 = vld [vmem:[#allocation2 + $0x70] sm:$0xff]
    %v1886 = vld [vmem:[#allocation2 + $0x78] sm:$0xff]
    %v1887 = vld [vmem:[#allocation2 + $0x80] sm:$0xff]
    %v1888 = vld [vmem:[#allocation2 + $0x88] sm:$0xff]
    %v1889 = vld [vmem:[#allocation2 + $0x90] sm:$0xff]
    %v1890 = vld [vmem:[#allocation2 + $0x98] sm:$0xff]
    %v1891 = vld [vmem:[#allocation2 + $0xa0] sm:$0xff]
    %v1892 = vld [vmem:[#allocation2 + $0xa8] sm:$0xff]
    %v1893 = vld [vmem:[#allocation2 + $0xb0] sm:$0xff]
    %v1894 = vld [vmem:[#allocation2 + $0xb8] sm:$0xff]
    %v1895 = vld [vmem:[#allocation2 + $0xc0] sm:$0xff]
    %v1896 = vld [vmem:[#allocation2 + $0xc8] sm:$0xff]
    %v1897 = vld [vmem:[#allocation2 + $0xd0] sm:$0xff]
    %v1898 = vld [vmem:[#allocation2 + $0xd8] sm:$0xff]
    %v1899 = vld [vmem:[#allocation2 + $0xe0] sm:$0xff]
    %v1900 = vld [vmem:[#allocation2 + $0xe8] sm:$0xff]
    %v1901 = vld [vmem:[#allocation2 + $0xf0] sm:$0xff]
    %v1902 = vld [vmem:[#allocation2 + $0xf8] sm:$0xff]
    %v1903 = vld [vmem:[#allocation2 + $0x100] sm:$0xff]
    %v1904 = vld [vmem:[#allocation2 + $0x108] sm:$0xff]
    %v1905 = vld [vmem:[#allocation2 + $0x110] sm:$0xff]
    %v1906 = vld [vmem:[#allocation2 + $0x118] sm:$0xff]
    %v1907 = vld [vmem:[#allocation2 + $0x120] sm:$0xff]
    %v1908 = vld [vmem:[#allocation2 + $0x128] sm:$0xff]
    %v1909 = vld [vmem:[#allocation2 + $0x130] sm:$0xff]
    %v1910 = vld [vmem:[#allocation2 + $0x138] sm:$0xff]
    %v1911 = vld [vmem:[#allocation2 + $0x140] sm:$0xff]
    %v1912 = vld [vmem:[#allocation2 + $0x148] sm:$0xff]
    %v1913 = vld [vmem:[#allocation2 + $0x150] sm:$0xff]
    %v1914 = vld [vmem:[#allocation2 + $0x158] sm:$0xff]
    %v1915 = vld [vmem:[#allocation2 + $0x160] sm:$0xff]
    %v1916 = vld [vmem:[#allocation2 + $0x168] sm:$0xff]
    %v1917 = vld [vmem:[#allocation2 + $0x170] sm:$0xff]
    %v1918 = vld [vmem:[#allocation2 + $0x178] sm:$0xff]
    %v1919 = vld [vmem:[#allocation2 + $0x180] sm:$0xff]
    %v1920 = vld [vmem:[#allocation2 + $0x188] sm:$0xff]
    %v1921 = vld [vmem:[#allocation2 + $0x190] sm:$0xff]
    %v1922 = vld [vmem:[#allocation2 + $0x198] sm:$0xff]
    %v1923 = vld [vmem:[#allocation2 + $0x1a0] sm:$0xff]
    %v1924 = vld [vmem:[#allocation2 + $0x1a8] sm:$0xff]
    %v1925 = vld [vmem:[#allocation2 + $0x1b0] sm:$0xff]
    %v1926 = vld [vmem:[#allocation2 + $0x1b8] sm:$0xff]
    %v1927 = vld [vmem:[#allocation2 + $0x1c0] sm:$0xff]
    %v1928 = vld [vmem:[#allocation2 + $0x1c8] sm:$0xff]
    %v1929 = vld [vmem:[#allocation2 + $0x1d0] sm:$0xff]
    %v1930 = vld [vmem:[#allocation2 + $0x1d8] sm:$0xff]
    %v1931 = vld [vmem:[#allocation2 + $0x1e0] sm:$0xff]
    %v1932 = vld [vmem:[#allocation2 + $0x1e8] sm:$0xff]
    %v1933 = vld [vmem:[#allocation2 + $0x1f0] sm:$0xff]
    %v1934 = vld [vmem:[#allocation2 + $0x1f8] sm:$0xff]
    %v1935 = vld [vmem:[#allocation2 + $0x200] sm:$0xff]
    %v1936 = vld [vmem:[#allocation2 + $0x208] sm:$0xff]
    %v1937 = vld [vmem:[#allocation2 + $0x210] sm:$0xff]
    %v1938 = vld [vmem:[#allocation2 + $0x218] sm:$0xff]
    %v1939 = vld [vmem:[#allocation2 + $0x220] sm:$0xff]
    %v1940 = vld [vmem:[#allocation2 + $0x228] sm:$0xff]
    %v1941 = vld [vmem:[#allocation2 + $0x230] sm:$0xff]
    %v1942 = vld [vmem:[#allocation2 + $0x238] sm:$0xff]
    %v1943 = vld [vmem:[#allocation2 + $0x240] sm:$0xff]
    %v1944 = vld [vmem:[#allocation2 + $0x248] sm:$0xff]
    %v1945 = vld [vmem:[#allocation2 + $0x250] sm:$0xff]
    %v1946 = vld [vmem:[#allocation2 + $0x258] sm:$0xff]
    %v1947 = vld [vmem:[#allocation2 + $0x260] sm:$0xff]
    %v1948 = vld [vmem:[#allocation2 + $0x268] sm:$0xff]
    %v1949 = vld [vmem:[#allocation2 + $0x270] sm:$0xff]
    %v1950 = vld [vmem:[#allocation2 + $0x278] sm:$0xff]
    %v1951 = vld [vmem:[#allocation2 + $0x280] sm:$0xff]
    %v1952 = vld [vmem:[#allocation2 + $0x288] sm:$0xff]
    %v1953 = vld [vmem:[#allocation2 + $0x290] sm:$0xff]
    %v1954 = vld [vmem:[#allocation2 + $0x298] sm:$0xff]
    %v1955 = vld [vmem:[#allocation2 + $0x2a0] sm:$0xff]
    %v1956 = vld [vmem:[#allocation2 + $0x2a8] sm:$0xff]
    %v1957 = vld [vmem:[#allocation2 + $0x2b0] sm:$0xff]
    %v1958 = vld [vmem:[#allocation2 + $0x2b8] sm:$0xff]
    %v1959 = vld [vmem:[#allocation2 + $0x2c0] sm:$0xff]
    %v1960 = vld [vmem:[#allocation2 + $0x2c8] sm:$0xff]
    %v1961 = vld [vmem:[#allocation2 + $0x2d0] sm:$0xff]
    %v1962 = vld [vmem:[#allocation2 + $0x2d8] sm:$0xff]
    %v1963 = vld [vmem:[#allocation2 + $0x2e0] sm:$0xff]
    %v1964 = vld [vmem:[#allocation2 + $0x2e8] sm:$0xff]
    %v1965 = vld [vmem:[#allocation2 + $0x2f0] sm:$0xff]
    %v1966 = vld [vmem:[#allocation2 + $0x2f8] sm:$0xff]
    %v1967 = vld [vmem:[#allocation2 + $0x300] sm:$0xff]
    %v1968 = vld [vmem:[#allocation2 + $0x308] sm:$0xff]
    %v1969 = vld [vmem:[#allocation2 + $0x310] sm:$0xff]
    %v1970 = vld [vmem:[#allocation2 + $0x318] sm:$0xff]
    %v1971 = vld [vmem:[#allocation2 + $0x320] sm:$0xff]
    %v1972 = vld [vmem:[#allocation2 + $0x328] sm:$0xff]
    %v1973 = vld [vmem:[#allocation2 + $0x330] sm:$0xff]
    %v1974 = vld [vmem:[#allocation2 + $0x338] sm:$0xff]
    %v1975 = vld [vmem:[#allocation2 + $0x340] sm:$0xff]
    %v1976 = vld [vmem:[#allocation2 + $0x348] sm:$0xff]
    %v1977 = vld [vmem:[#allocation2 + $0x350] sm:$0xff]
    %v1978 = vld [vmem:[#allocation2 + $0x358] sm:$0xff]
    %v1979 = vld [vmem:[#allocation2 + $0x360] sm:$0xff]
    %v1980 = vld [vmem:[#allocation2 + $0x368] sm:$0xff]
    %v1981 = vld [vmem:[#allocation2 + $0x370] sm:$0xff]
    %v1982 = vld [vmem:[#allocation2 + $0x378] sm:$0xff]
    %v1983 = vld [vmem:[#allocation2 + $0x380] sm:$0xff]
    %v1984 = vld [vmem:[#allocation2 + $0x388] sm:$0xff]
    %v1985 = vld [vmem:[#allocation2 + $0x390] sm:$0xff]
    %v1986 = vld [vmem:[#allocation2 + $0x398] sm:$0xff]
    %v1987 = vld [vmem:[#allocation2 + $0x3a0] sm:$0xff]
    %v1988 = vld [vmem:[#allocation2 + $0x3a8] sm:$0xff]
    %v1989 = vld [vmem:[#allocation2 + $0x3b0] sm:$0xff]
    %v1990 = vld [vmem:[#allocation2 + $0x3b8] sm:$0xff]
    %v1991 = vld [vmem:[#allocation2 + $0x3c0] sm:$0xff]
    %v1992 = vld [vmem:[#allocation2 + $0x3c8] sm:$0xff]
    %v1993 = vld [vmem:[#allocation2 + $0x3d0] sm:$0xff]
    %v1994 = vld [vmem:[#allocation2 + $0x3d8] sm:$0xff]
    %v1995 = vld [vmem:[#allocation2 + $0x3e0] sm:$0xff]
    %v1996 = vld [vmem:[#allocation2 + $0x3e8] sm:$0xff]
    %v1997 = vld [vmem:[#allocation2 + $0x3f0] sm:$0xff]
    %v1998 = vld [vmem:[#allocation2 + $0x3f8] sm:$0xff]
    %v1999 = vadd.f32 %v1871, %v1520
    %v2000 = vadd.f32 %v1872, %v1522
    %v2001 = vadd.f32 %v1873, %v1713
    %v2002 = vadd.f32 %v1874, %v1715
    %v2003 = vadd.f32 %v1875, %v1524
    %v2004 = vadd.f32 %v1876, %v1526
    %v2005 = vadd.f32 %v1877, %v1717
    %v2006 = vadd.f32 %v1878, %v1719
    %v2007 = vadd.f32 %v1879, %v1530
    %v2008 = vadd.f32 %v1880, %v1532
    %v2009 = vadd.f32 %v1881, %v1723
    %v2010 = vadd.f32 %v1882, %v1725
    %v2011 = vadd.f32 %v1883, %v1534
    %v2012 = vadd.f32 %v1884, %v1536
    %v2013 = vadd.f32 %v1885, %v1727
    %v2014 = vadd.f32 %v1886, %v1729
    %v2015 = vadd.f32 %v1887, %v1540
    %v2016 = vadd.f32 %v1888, %v1542
    %v2017 = vadd.f32 %v1889, %v1733
    %v2018 = vadd.f32 %v1890, %v1735
    %v2019 = vadd.f32 %v1891, %v1544
    %v2020 = vadd.f32 %v1892, %v1546
    %v2021 = vadd.f32 %v1893, %v1737
    %v2022 = vadd.f32 %v1894, %v1739
    %v2023 = vadd.f32 %v1895, %v1550
    %v2024 = vadd.f32 %v1896, %v1552
    %v2025 = vadd.f32 %v1897, %v1743
    %v2026 = vadd.f32 %v1898, %v1745
    %v2027 = vadd.f32 %v1899, %v1554
    %v2028 = vadd.f32 %v1900, %v1556
    %v2029 = vadd.f32 %v1901, %v1747
    %v2030 = vadd.f32 %v1902, %v1749
    %v2031 = vadd.f32 %v1903, %v1560
    %v2032 = vadd.f32 %v1904, %v1562
    %v2033 = vadd.f32 %v1905, %v1753
    %v2034 = vadd.f32 %v1906, %v1755
    %v2035 = vadd.f32 %v1907, %v1564
    %v2036 = vadd.f32 %v1908, %v1566
    %v2037 = vadd.f32 %v1909, %v1757
    %v2038 = vadd.f32 %v1910, %v1759
    %v2039 = vadd.f32 %v1911, %v1570
    %v2040 = vadd.f32 %v1912, %v1572
    %v2041 = vadd.f32 %v1913, %v1763
    %v2042 = vadd.f32 %v1914, %v1765
    %v2043 = vadd.f32 %v1915, %v1574
    %v2044 = vadd.f32 %v1916, %v1576
    %v2045 = vadd.f32 %v1917, %v1767
    %v2046 = vadd.f32 %v1918, %v1769
    %v2047 = vadd.f32 %v1919, %v1580
    %v2048 = vadd.f32 %v1920, %v1582
    %v2049 = vadd.f32 %v1921, %v1773
    %v2050 = vadd.f32 %v1922, %v1775
    %v2051 = vadd.f32 %v1923, %v1584
    %v2052 = vadd.f32 %v1924, %v1586
    %v2053 = vadd.f32 %v1925, %v1777
    %v2054 = vadd.f32 %v1926, %v1779
    %v2055 = vadd.f32 %v1927, %v1590
    %v2056 = vadd.f32 %v1928, %v1592
    %v2057 = vadd.f32 %v1929, %v1783
    %v2058 = vadd.f32 %v1930, %v1785
    %v2059 = vadd.f32 %v1931, %v1594
    %v2060 = vadd.f32 %v1932, %v1596
    %v2061 = vadd.f32 %v1933, %v1787
    %v2062 = vadd.f32 %v1934, %v1789
    %v2063 = vadd.f32 %v1935, %v1600
    %v2064 = vadd.f32 %v1936, %v1602
    %v2065 = vadd.f32 %v1937, %v1793
    %v2066 = vadd.f32 %v1938, %v1795
    %v2067 = vadd.f32 %v1939, %v1604
    %v2068 = vadd.f32 %v1940, %v1606
    %v2069 = vadd.f32 %v1941, %v1797
    %v2070 = vadd.f32 %v1942, %v1799
    %v2071 = vadd.f32 %v1943, %v1610
    %v2072 = vadd.f32 %v1944, %v1612
    %v2073 = vadd.f32 %v1945, %v1803
    %v2074 = vadd.f32 %v1946, %v1805
    %v2075 = vadd.f32 %v1947, %v1614
    %v2076 = vadd.f32 %v1948, %v1616
    %v2077 = vadd.f32 %v1949, %v1807
    %v2078 = vadd.f32 %v1950, %v1809
    %v2079 = vadd.f32 %v1951, %v1620
    %v2080 = vadd.f32 %v1952, %v1622
    %v2081 = vadd.f32 %v1953, %v1813
    %v2082 = vadd.f32 %v1954, %v1815
    %v2083 = vadd.f32 %v1955, %v1624
    %v2084 = vadd.f32 %v1956, %v1626
    %v2085 = vadd.f32 %v1957, %v1817
    %v2086 = vadd.f32 %v1958, %v1819
    %v2087 = vadd.f32 %v1959, %v1630
    %v2088 = vadd.f32 %v1960, %v1632
    %v2089 = vadd.f32 %v1961, %v1823
    %v2090 = vadd.f32 %v1962, %v1825
    %v2091 = vadd.f32 %v1963, %v1634
    %v2092 = vadd.f32 %v1964, %v1636
    %v2093 = vadd.f32 %v1965, %v1827
    %v2094 = vadd.f32 %v1966, %v1829
    %v2095 = vadd.f32 %v1967, %v1640
    %v2096 = vadd.f32 %v1968, %v1642
    %v2097 = vadd.f32 %v1969, %v1833
    %v2098 = vadd.f32 %v1970, %v1835
    %v2099 = vadd.f32 %v1971, %v1644
    %v2100 = vadd.f32 %v1972, %v1646
    %v2101 = vadd.f32 %v1973, %v1837
    %v2102 = vadd.f32 %v1974, %v1839
    %v2103 = vadd.f32 %v1975, %v1650
    %v2104 = vadd.f32 %v1976, %v1652
    %v2105 = vadd.f32 %v1977, %v1843
    %v2106 = vadd.f32 %v1978, %v1845
    %v2107 = vadd.f32 %v1979, %v1654
    %v2108 = vadd.f32 %v1980, %v1656
    %v2109 = vadd.f32 %v1981, %v1847
    %v2110 = vadd.f32 %v1982, %v1849
    %v2111 = vadd.f32 %v1983, %v1660
    %v2112 = vadd.f32 %v1984, %v1662
    %v2113 = vadd.f32 %v1985, %v1853
    %v2114 = vadd.f32 %v1986, %v1855
    %v2115 = vadd.f32 %v1987, %v1664
    %v2116 = vadd.f32 %v1988, %v1666
    %v2117 = vadd.f32 %v1989, %v1857
    %v2118 = vadd.f32 %v1990, %v1859
    %v2119 = vadd.f32 %v1991, %v1670
    %v2120 = vadd.f32 %v1992, %v1672
    %v2121 = vadd.f32 %v1993, %v1863
    %v2122 = vadd.f32 %v1994, %v1865
    %v2123 = vadd.f32 %v1995, %v1674
    %v2124 = vadd.f32 %v1996, %v1676
    %v2125 = vadd.f32 %v1997, %v1867
    %v2126 = vadd.f32 %v1998, %v1869
    %2127 = vst [vmem:[#allocation2] sm:$0xff] %v1999
    %2128 = vst [vmem:[#allocation2 + $0x8] sm:$0xff] %v2000
    %2129 = vst [vmem:[#allocation2 + $0x10] sm:$0xff] %v2001
    %2130 = vst [vmem:[#allocation2 + $0x18] sm:$0xff] %v2002
    %2131 = vst [vmem:[#allocation2 + $0x20] sm:$0xff] %v2003
    %2132 = vst [vmem:[#allocation2 + $0x28] sm:$0xff] %v2004
    %2133 = vst [vmem:[#allocation2 + $0x30] sm:$0xff] %v2005
    %2134 = vst [vmem:[#allocation2 + $0x38] sm:$0xff] %v2006
    %2135 = vst [vmem:[#allocation2 + $0x40] sm:$0xff] %v2007
    %2136 = vst [vmem:[#allocation2 + $0x48] sm:$0xff] %v2008
    %2137 = vst [vmem:[#allocation2 + $0x50] sm:$0xff] %v2009
    %2138 = vst [vmem:[#allocation2 + $0x58] sm:$0xff] %v2010
    %2139 = vst [vmem:[#allocation2 + $0x60] sm:$0xff] %v2011
    %2140 = vst [vmem:[#allocation2 + $0x68] sm:$0xff] %v2012
    %2141 = vst [vmem:[#allocation2 + $0x70] sm:$0xff] %v2013
    %2142 = vst [vmem:[#allocation2 + $0x78] sm:$0xff] %v2014
    %2143 = vst [vmem:[#allocation2 + $0x80] sm:$0xff] %v2015
    %2144 = vst [vmem:[#allocation2 + $0x88] sm:$0xff] %v2016
    %2145 = vst [vmem:[#allocation2 + $0x90] sm:$0xff] %v2017
    %2146 = vst [vmem:[#allocation2 + $0x98] sm:$0xff] %v2018
    %2147 = vst [vmem:[#allocation2 + $0xa0] sm:$0xff] %v2019
    %2148 = vst [vmem:[#allocation2 + $0xa8] sm:$0xff] %v2020
    %2149 = vst [vmem:[#allocation2 + $0xb0] sm:$0xff] %v2021
    %2150 = vst [vmem:[#allocation2 + $0xb8] sm:$0xff] %v2022
    %2151 = vst [vmem:[#allocation2 + $0xc0] sm:$0xff] %v2023
    %2152 = vst [vmem:[#allocation2 + $0xc8] sm:$0xff] %v2024
    %2153 = vst [vmem:[#allocation2 + $0xd0] sm:$0xff] %v2025
    %2154 = vst [vmem:[#allocation2 + $0xd8] sm:$0xff] %v2026
    %2155 = vst [vmem:[#allocation2 + $0xe0] sm:$0xff] %v2027
    %2156 = vst [vmem:[#allocation2 + $0xe8] sm:$0xff] %v2028
    %2157 = vst [vmem:[#allocation2 + $0xf0] sm:$0xff] %v2029
    %2158 = vst [vmem:[#allocation2 + $0xf8] sm:$0xff] %v2030
    %2159 = vst [vmem:[#allocation2 + $0x100] sm:$0xff] %v2031
    %2160 = vst [vmem:[#allocation2 + $0x108] sm:$0xff] %v2032
    %2161 = vst [vmem:[#allocation2 + $0x110] sm:$0xff] %v2033
    %2162 = vst [vmem:[#allocation2 + $0x118] sm:$0xff] %v2034
    %2163 = vst [vmem:[#allocation2 + $0x120] sm:$0xff] %v2035
    %2164 = vst [vmem:[#allocation2 + $0x128] sm:$0xff] %v2036
    %2165 = vst [vmem:[#allocation2 + $0x130] sm:$0xff] %v2037
    %2166 = vst [vmem:[#allocation2 + $0x138] sm:$0xff] %v2038
    %2167 = vst [vmem:[#allocation2 + $0x140] sm:$0xff] %v2039
    %2168 = vst [vmem:[#allocation2 + $0x148] sm:$0xff] %v2040
    %2169 = vst [vmem:[#allocation2 + $0x150] sm:$0xff] %v2041
    %2170 = vst [vmem:[#allocation2 + $0x158] sm:$0xff] %v2042
    %2171 = vst [vmem:[#allocation2 + $0x160] sm:$0xff] %v2043
    %2172 = vst [vmem:[#allocation2 + $0x168] sm:$0xff] %v2044
    %2173 = vst [vmem:[#allocation2 + $0x170] sm:$0xff] %v2045
    %2174 = vst [vmem:[#allocation2 + $0x178] sm:$0xff] %v2046
    %2175 = vst [vmem:[#allocation2 + $0x180] sm:$0xff] %v2047
    %2176 = vst [vmem:[#allocation2 + $0x188] sm:$0xff] %v2048
    %2177 = vst [vmem:[#allocation2 + $0x190] sm:$0xff] %v2049
    %2178 = vst [vmem:[#allocation2 + $0x198] sm:$0xff] %v2050
    %2179 = vst [vmem:[#allocation2 + $0x1a0] sm:$0xff] %v2051
    %2180 = vst [vmem:[#allocation2 + $0x1a8] sm:$0xff] %v2052
    %2181 = vst [vmem:[#allocation2 + $0x1b0] sm:$0xff] %v2053
    %2182 = vst [vmem:[#allocation2 + $0x1b8] sm:$0xff] %v2054
    %2183 = vst [vmem:[#allocation2 + $0x1c0] sm:$0xff] %v2055
    %2184 = vst [vmem:[#allocation2 + $0x1c8] sm:$0xff] %v2056
    %2185 = vst [vmem:[#allocation2 + $0x1d0] sm:$0xff] %v2057
    %2186 = vst [vmem:[#allocation2 + $0x1d8] sm:$0xff] %v2058
    %2187 = vst [vmem:[#allocation2 + $0x1e0] sm:$0xff] %v2059
    %2188 = vst [vmem:[#allocation2 + $0x1e8] sm:$0xff] %v2060
    %2189 = vst [vmem:[#allocation2 + $0x1f0] sm:$0xff] %v2061
    %2190 = vst [vmem:[#allocation2 + $0x1f8] sm:$0xff] %v2062
    %2191 = vst [vmem:[#allocation2 + $0x200] sm:$0xff] %v2063
    %2192 = vst [vmem:[#allocation2 + $0x208] sm:$0xff] %v2064
    %2193 = vst [vmem:[#allocation2 + $0x210] sm:$0xff] %v2065
    %2194 = vst [vmem:[#allocation2 + $0x218] sm:$0xff] %v2066
    %2195 = vst [vmem:[#allocation2 + $0x220] sm:$0xff] %v2067
    %2196 = vst [vmem:[#allocation2 + $0x228] sm:$0xff] %v2068
    %2197 = vst [vmem:[#allocation2 + $0x230] sm:$0xff] %v2069
    %2198 = vst [vmem:[#allocation2 + $0x238] sm:$0xff] %v2070
    %2199 = vst [vmem:[#allocation2 + $0x240] sm:$0xff] %v2071
    %2200 = vst [vmem:[#allocation2 + $0x248] sm:$0xff] %v2072
    %2201 = vst [vmem:[#allocation2 + $0x250] sm:$0xff] %v2073
    %2202 = vst [vmem:[#allocation2 + $0x258] sm:$0xff] %v2074
    %2203 = vst [vmem:[#allocation2 + $0x260] sm:$0xff] %v2075
    %2204 = vst [vmem:[#allocation2 + $0x268] sm:$0xff] %v2076
    %2205 = vst [vmem:[#allocation2 + $0x270] sm:$0xff] %v2077
    %2206 = vst [vmem:[#allocation2 + $0x278] sm:$0xff] %v2078
    %2207 = vst [vmem:[#allocation2 + $0x280] sm:$0xff] %v2079
    %2208 = vst [vmem:[#allocation2 + $0x288] sm:$0xff] %v2080
    %2209 = vst [vmem:[#allocation2 + $0x290] sm:$0xff] %v2081
    %2210 = vst [vmem:[#allocation2 + $0x298] sm:$0xff] %v2082
    %2211 = vst [vmem:[#allocation2 + $0x2a0] sm:$0xff] %v2083
    %2212 = vst [vmem:[#allocation2 + $0x2a8] sm:$0xff] %v2084
    %2213 = vst [vmem:[#allocation2 + $0x2b0] sm:$0xff] %v2085
    %2214 = vst [vmem:[#allocation2 + $0x2b8] sm:$0xff] %v2086
    %2215 = vst [vmem:[#allocation2 + $0x2c0] sm:$0xff] %v2087
    %2216 = vst [vmem:[#allocation2 + $0x2c8] sm:$0xff] %v2088
    %2217 = vst [vmem:[#allocation2 + $0x2d0] sm:$0xff] %v2089
    %2218 = vst [vmem:[#allocation2 + $0x2d8] sm:$0xff] %v2090
    %2219 = vst [vmem:[#allocation2 + $0x2e0] sm:$0xff] %v2091
    %2220 = vst [vmem:[#allocation2 + $0x2e8] sm:$0xff] %v2092
    %2221 = vst [vmem:[#allocation2 + $0x2f0] sm:$0xff] %v2093
    %2222 = vst [vmem:[#allocation2 + $0x2f8] sm:$0xff] %v2094
    %2223 = vst [vmem:[#allocation2 + $0x300] sm:$0xff] %v2095
    %2224 = vst [vmem:[#allocation2 + $0x308] sm:$0xff] %v2096
    %2225 = vst [vmem:[#allocation2 + $0x310] sm:$0xff] %v2097
    %2226 = vst [vmem:[#allocation2 + $0x318] sm:$0xff] %v2098
    %2227 = vst [vmem:[#allocation2 + $0x320] sm:$0xff] %v2099
    %2228 = vst [vmem:[#allocation2 + $0x328] sm:$0xff] %v2100
    %2229 = vst [vmem:[#allocation2 + $0x330] sm:$0xff] %v2101
    %2230 = vst [vmem:[#allocation2 + $0x338] sm:$0xff] %v2102
    %2231 = vst [vmem:[#allocation2 + $0x340] sm:$0xff] %v2103
    %2232 = vst [vmem:[#allocation2 + $0x348] sm:$0xff] %v2104
    %2233 = vst [vmem:[#allocation2 + $0x350] sm:$0xff] %v2105
    %2234 = vst [vmem:[#allocation2 + $0x358] sm:$0xff] %v2106
    %2235 = vst [vmem:[#allocation2 + $0x360] sm:$0xff] %v2107
    %2236 = vst [vmem:[#allocation2 + $0x368] sm:$0xff] %v2108
    %2237 = vst [vmem:[#allocation2 + $0x370] sm:$0xff] %v2109
    %2238 = vst [vmem:[#allocation2 + $0x378] sm:$0xff] %v2110
    %2239 = vst [vmem:[#allocation2 + $0x380] sm:$0xff] %v2111
    %2240 = vst [vmem:[#allocation2 + $0x388] sm:$0xff] %v2112
    %2241 = vst [vmem:[#allocation2 + $0x390] sm:$0xff] %v2113
    %2242 = vst [vmem:[#allocation2 + $0x398] sm:$0xff] %v2114
    %2243 = vst [vmem:[#allocation2 + $0x3a0] sm:$0xff] %v2115
    %2244 = vst [vmem:[#allocation2 + $0x3a8] sm:$0xff] %v2116
    %2245 = vst [vmem:[#allocation2 + $0x3b0] sm:$0xff] %v2117
    %2246 = vst [vmem:[#allocation2 + $0x3b8] sm:$0xff] %v2118
    %2247 = vst [vmem:[#allocation2 + $0x3c0] sm:$0xff] %v2119
    %2248 = vst [vmem:[#allocation2 + $0x3c8] sm:$0xff] %v2120
    %2249 = vst [vmem:[#allocation2 + $0x3d0] sm:$0xff] %v2121
    %2250 = vst [vmem:[#allocation2 + $0x3d8] sm:$0xff] %v2122
    %2251 = vst [vmem:[#allocation2 + $0x3e0] sm:$0xff] %v2123
    %2252 = vst [vmem:[#allocation2 + $0x3e8] sm:$0xff] %v2124
    %2253 = vst [vmem:[#allocation2 + $0x3f0] sm:$0xff] %v2125
    %2254 = vst [vmem:[#allocation2 + $0x3f8] sm:$0xff] %v2126
    %v2255 = vld [vmem:[%s0] sm:$0xe]
    %v2256 = vld [vmem:[%s0 + $0x4] sm:$0xf]
    %v2257 = vld [vmem:[%s0 + $0x8] sm:$0x1]
    %v2258 = vld [vmem:[%s0 + $0xc] sm:$0xe]
    %v2259 = vld [vmem:[%s0 + $0x10] sm:$0xf]
    %v2260 = vld [vmem:[%s0 + $0x14] sm:$0x1]
    %v2261 = vld [vmem:[%s0 + $0x18] sm:$0xe]
    %v2262 = vld [vmem:[%s0 + $0x1c] sm:$0xf]
    %v2263 = vld [vmem:[%s0 + $0x20] sm:$0x1]
    %v2264 = vld [vmem:[%s0 + $0x24] sm:$0xe]
    %v2265 = vld [vmem:[%s0 + $0x28] sm:$0xf]
    %v2266 = vld [vmem:[%s0 + $0x2c] sm:$0x1]
    %v2267 = vld [vmem:[%s0 + $0x30] sm:$0xe]
    %v2268 = vld [vmem:[%s0 + $0x34] sm:$0xf]
    %v2269 = vld [vmem:[%s0 + $0x38] sm:$0x1]
    %v2270 = vld [vmem:[%s0 + $0x3c] sm:$0xe]
    %v2271 = vld [vmem:[%s0 + $0x40] sm:$0xf]
    %v2272 = vld [vmem:[%s0 + $0x44] sm:$0x1]
    %v2273 = vld [vmem:[%s0 + $0x48] sm:$0xe]
    %v2274 = vld [vmem:[%s0 + $0x4c] sm:$0xf]
    %v2275 = vld [vmem:[%s0 + $0x50] sm:$0x1]
    %v2276 = vld [vmem:[%s0 + $0x54] sm:$0xe]
    %v2277 = vld [vmem:[%s0 + $0x58] sm:$0xf]
    %v2278 = vld [vmem:[%s0 + $0x5c] sm:$0x1]
    %vm2303 = vcmask 1042432
    %vm2304 = vcmask 1046532
    %vm2305 = vmor %vm2303, %vm2304
    %v2306 = vrot.slane %v2255, 5
    %v2307 = vrot.slane %v2306, 4
    %v2308 = vrot.slane %v2256, 5
    %v2309 = vsel %vm2305, %v2307, %v2308
    %v2310 = vrot.slane %v2308, 4
    %v2311 = vrot.slane %v2257, 5
    %v2312 = vsel %vm2305, %v2310, %v2311
    %v2313 = vrot.slane %v2258, 5
    %v2314 = vrot.slane %v2313, 4
    %v2315 = vrot.slane %v2259, 5
    %v2316 = vsel %vm2305, %v2314, %v2315
    %v2317 = vrot.slane %v2315, 4
    %v2318 = vrot.slane %v2260, 5
    %v2319 = vsel %vm2305, %v2317, %v2318
    %v2320 = vrot.slane %v2261, 5
    %v2321 = vrot.slane %v2320, 4
    %v2322 = vrot.slane %v2262, 5
    %v2323 = vsel %vm2305, %v2321, %v2322
    %v2324 = vrot.slane %v2322, 4
    %v2325 = vrot.slane %v2263, 5
    %v2326 = vsel %vm2305, %v2324, %v2325
    %v2327 = vrot.slane %v2264, 5
    %v2328 = vrot.slane %v2327, 4
    %v2329 = vrot.slane %v2265, 5
    %v2330 = vsel %vm2305, %v2328, %v2329
    %v2331 = vrot.slane %v2329, 4
    %v2332 = vrot.slane %v2266, 5
    %v2333 = vsel %vm2305, %v2331, %v2332
    %v2334 = vrot.slane %v2267, 5
    %v2335 = vrot.slane %v2334, 4
    %v2336 = vrot.slane %v2268, 5
    %v2337 = vsel %vm2305, %v2335, %v2336
    %v2338 = vrot.slane %v2336, 4
    %v2339 = vrot.slane %v2269, 5
    %v2340 = vsel %vm2305, %v2338, %v2339
    %v2341 = vrot.slane %v2270, 5
    %v2342 = vrot.slane %v2341, 4
    %v2343 = vrot.slane %v2271, 5
    %v2344 = vsel %vm2305, %v2342, %v2343
    %v2345 = vrot.slane %v2343, 4
    %v2346 = vrot.slane %v2272, 5
    %v2347 = vsel %vm2305, %v2345, %v2346
    %v2348 = vrot.slane %v2273, 5
    %v2349 = vrot.slane %v2348, 4
    %v2350 = vrot.slane %v2274, 5
    %v2351 = vsel %vm2305, %v2349, %v2350
    %v2352 = vrot.slane %v2350, 4
    %v2353 = vrot.slane %v2275, 5
    %v2354 = vsel %vm2305, %v2352, %v2353
    %v2355 = vrot.slane %v2276, 5
    %v2356 = vrot.slane %v2355, 4
    %v2357 = vrot.slane %v2277, 5
    %v2358 = vsel %vm2305, %v2356, %v2357
    %v2359 = vrot.slane %v2357, 4
    %v2360 = vrot.slane %v2278, 5
    %v2361 = vsel %vm2305, %v2359, %v2360
    %v2362 = vld [vmem:[%s52] sm:$0xe]
    %v2363 = vld [vmem:[%s52 + $0x4] sm:$0xf]
    %v2364 = vld [vmem:[%s52 + $0x8] sm:$0x1]
    %v2365 = vld [vmem:[%s52 + $0xc] sm:$0xe]
    %v2366 = vld [vmem:[%s52 + $0x10] sm:$0xf]
    %v2367 = vld [vmem:[%s52 + $0x14] sm:$0x1]
    %v2368 = vld [vmem:[%s52 + $0x18] sm:$0xe]
    %v2369 = vld [vmem:[%s52 + $0x1c] sm:$0xf]
    %v2370 = vld [vmem:[%s52 + $0x20] sm:$0x1]
    %v2371 = vld [vmem:[%s52 + $0x24] sm:$0xe]
    %v2372 = vld [vmem:[%s52 + $0x28] sm:$0xf]
    %v2373 = vld [vmem:[%s52 + $0x2c] sm:$0x1]
    %v2374 = vld [vmem:[%s52 + $0x30] sm:$0xe]
    %v2375 = vld [vmem:[%s52 + $0x34] sm:$0xf]
    %v2376 = vld [vmem:[%s52 + $0x38] sm:$0x1]
    %v2377 = vld [vmem:[%s52 + $0x3c] sm:$0xe]
    %v2378 = vld [vmem:[%s52 + $0x40] sm:$0xf]
    %v2379 = vld [vmem:[%s52 + $0x44] sm:$0x1]
    %v2380 = vld [vmem:[%s52 + $0x48] sm:$0xe]
    %v2381 = vld [vmem:[%s52 + $0x4c] sm:$0xf]
    %v2382 = vld [vmem:[%s52 + $0x50] sm:$0x1]
    %v2383 = vld [vmem:[%s52 + $0x54] sm:$0xe]
    %v2384 = vld [vmem:[%s52 + $0x58] sm:$0xf]
    %v2385 = vld [vmem:[%s52 + $0x5c] sm:$0x1]
    %v2410 = vrot.slane %v2362, 5
    %v2411 = vrot.slane %v2410, 4
    %v2412 = vrot.slane %v2363, 5
    %v2413 = vsel %vm2305, %v2411, %v2412
    %v2414 = vrot.slane %v2412, 4
    %v2415 = vrot.slane %v2364, 5
    %v2416 = vsel %vm2305, %v2414, %v2415
    %v2417 = vrot.slane %v2365, 5
    %v2418 = vrot.slane %v2417, 4
    %v2419 = vrot.slane %v2366, 5
    %v2420 = vsel %vm2305, %v2418, %v2419
    %v2421 = vrot.slane %v2419, 4
    %v2422 = vrot.slane %v2367, 5
    %v2423 = vsel %vm2305, %v2421, %v2422
    %v2424 = vrot.slane %v2368, 5
    %v2425 = vrot.slane %v2424, 4
    %v2426 = vrot.slane %v2369, 5
    %v2427 = vsel %vm2305, %v2425, %v2426
    %v2428 = vrot.slane %v2426, 4
    %v2429 = vrot.slane %v2370, 5
    %v2430 = vsel %vm2305, %v2428, %v2429
    %v2431 = vrot.slane %v2371, 5
    %v2432 = vrot.slane %v2431, 4
    %v2433 = vrot.slane %v2372, 5
    %v2434 = vsel %vm2305, %v2432, %v2433
    %v2435 = vrot.slane %v2433, 4
    %v2436 = vrot.slane %v2373, 5
    %v2437 = vsel %vm2305, %v2435, %v2436
    %v2438 = vrot.slane %v2374, 5
    %v2439 = vrot.slane %v2438, 4
    %v2440 = vrot.slane %v2375, 5
    %v2441 = vsel %vm2305, %v2439, %v2440
    %v2442 = vrot.slane %v2440, 4
    %v2443 = vrot.slane %v2376, 5
    %v2444 = vsel %vm2305, %v2442, %v2443
    %v2445 = vrot.slane %v2377, 5
    %v2446 = vrot.slane %v2445, 4
    %v2447 = vrot.slane %v2378, 5
    %v2448 = vsel %vm2305, %v2446, %v2447
    %v2449 = vrot.slane %v2447, 4
    %v2450 = vrot.slane %v2379, 5
    %v2451 = vsel %vm2305, %v2449, %v2450
    %v2452 = vrot.slane %v2380, 5
    %v2453 = vrot.slane %v2452, 4
    %v2454 = vrot.slane %v2381, 5
    %v2455 = vsel %vm2305, %v2453, %v2454
    %v2456 = vrot.slane %v2454, 4
    %v2457 = vrot.slane %v2382, 5
    %v2458 = vsel %vm2305, %v2456, %v2457
    %v2459 = vrot.slane %v2383, 5
    %v2460 = vrot.slane %v2459, 4
    %v2461 = vrot.slane %v2384, 5
    %v2462 = vsel %vm2305, %v2460, %v2461
    %v2463 = vrot.slane %v2461, 4
    %v2464 = vrot.slane %v2385, 5
    %v2465 = vsel %vm2305, %v2463, %v2464
    %v2466 = vunpack.c.l.b16 %v2309
    %v2467 = vunpack.c.l.b16 %v2312
    %v2468 = vunpack.c.l.b16 %v2316
    %v2469 = vunpack.c.l.b16 %v2319
    %v2470 = vunpack.c.l.b16 %v2323
    %v2471 = vunpack.c.l.b16 %v2326
    %v2472 = vunpack.c.l.b16 %v2330
    %v2473 = vunpack.c.l.b16 %v2333
    %v2474 = vunpack.c.l.b16 %v2337
    %v2475 = vunpack.c.l.b16 %v2340
    %v2476 = vunpack.c.l.b16 %v2344
    %v2477 = vunpack.c.l.b16 %v2347
    %v2478 = vunpack.c.l.b16 %v2351
    %v2479 = vunpack.c.l.b16 %v2354
    %v2480 = vunpack.c.l.b16 %v2358
    %v2481 = vunpack.c.l.b16 %v2361
    %v2482 = vpack.c.b16 %v2467, %v2466
    %v2483 = vpack.c.b16 %v2469, %v2468
    %v2484 = vpack.c.b16 %v2471, %v2470
    %v2485 = vpack.c.b16 %v2473, %v2472
    %v2486 = vpack.c.b16 %v2475, %v2474
    %v2487 = vpack.c.b16 %v2477, %v2476
    %v2488 = vpack.c.b16 %v2479, %v2478
    %v2489 = vpack.c.b16 %v2481, %v2480
    %v2490 = vunpack.c.l.b16 %v2413
    %v2491 = vunpack.c.l.b16 %v2416
    %v2492 = vunpack.c.l.b16 %v2420
    %v2493 = vunpack.c.l.b16 %v2423
    %v2494 = vunpack.c.l.b16 %v2427
    %v2495 = vunpack.c.l.b16 %v2430
    %v2496 = vunpack.c.l.b16 %v2434
    %v2497 = vunpack.c.l.b16 %v2437
    %v2498 = vunpack.c.l.b16 %v2441
    %v2499 = vunpack.c.l.b16 %v2444
    %v2500 = vunpack.c.l.b16 %v2448
    %v2501 = vunpack.c.l.b16 %v2451
    %v2502 = vunpack.c.l.b16 %v2455
    %v2503 = vunpack.c.l.b16 %v2458
    %v2504 = vunpack.c.l.b16 %v2462
    %v2505 = vunpack.c.l.b16 %v2465
    %v2506 = vpack.c.b16 %v2491, %v2490
    %v2507 = vpack.c.b16 %v2493, %v2492
    %v2508 = vpack.c.b16 %v2495, %v2494
    %v2509 = vpack.c.b16 %v2497, %v2496
    %v2510 = vpack.c.b16 %v2499, %v2498
    %v2511 = vpack.c.b16 %v2501, %v2500
    %v2512 = vpack.c.b16 %v2503, %v2502
    %v2513 = vpack.c.b16 %v2505, %v2504
    %s2514 = scalar_lea.vmem [#allocation3], 288
    %v2515 = vld [vmem:[%s2514] sm:$0xff]
    %v2516 = vld [vmem:[%s2514 + $0x8] sm:$0xff]
    %v2517 = vld [vmem:[%s2514 + $0x10] sm:$0xff]
    %v2518 = vld [vmem:[%s2514 + $0x18] sm:$0xff]
    %v2519 = vld [vmem:[%s2514 + $0x20] sm:$0xff]
    %v2520 = vld [vmem:[%s2514 + $0x28] sm:$0xff]
    %v2521 = vld [vmem:[%s2514 + $0x30] sm:$0xff]
    %v2522 = vld [vmem:[%s2514 + $0x38] sm:$0xff]
    %v2523 = vld [vmem:[%s2514 + $0x40] sm:$0xff]
    %v2524 = vld [vmem:[%s2514 + $0x48] sm:$0xff]
    %v2525 = vld [vmem:[%s2514 + $0x50] sm:$0xff]
    %v2526 = vld [vmem:[%s2514 + $0x58] sm:$0xff]
    %v2527 = vld [vmem:[%s2514 + $0x60] sm:$0xff]
    %v2528 = vld [vmem:[%s2514 + $0x68] sm:$0xff]
    %v2529 = vld [vmem:[%s2514 + $0x70] sm:$0xff]
    %v2530 = vld [vmem:[%s2514 + $0x78] sm:$0xff]
    %v2531 = vld [vmem:[%s2514 + $0x80] sm:$0xff]
    %v2532 = vld [vmem:[%s2514 + $0x88] sm:$0xff]
    %v2551 = vunpack.c.l.b16 %v2515
    %v2552 = vunpack.c.h.b16 %v2515
    %v2553 = vunpack.c.l.b16 %v2516
    %v2554 = vunpack.c.h.b16 %v2516
    %v2555 = vunpack.c.l.b16 %v2517
    %v2556 = vunpack.c.h.b16 %v2517
    %v2557 = vunpack.c.l.b16 %v2518
    %v2558 = vunpack.c.h.b16 %v2518
    %v2559 = vunpack.c.l.b16 %v2519
    %v2560 = vunpack.c.h.b16 %v2519
    %v2561 = vunpack.c.l.b16 %v2520
    %v2562 = vunpack.c.h.b16 %v2520
    %v2563 = vunpack.c.l.b16 %v2521
    %v2564 = vunpack.c.h.b16 %v2521
    %v2565 = vunpack.c.l.b16 %v2522
    %v2566 = vunpack.c.h.b16 %v2522
    %v2567 = vunpack.c.l.b16 %v2523
    %v2568 = vunpack.c.h.b16 %v2523
    %v2569 = vunpack.c.l.b16 %v2524
    %v2570 = vunpack.c.h.b16 %v2524
    %v2571 = vunpack.c.l.b16 %v2525
    %v2572 = vunpack.c.h.b16 %v2525
    %v2573 = vunpack.c.l.b16 %v2526
    %v2574 = vunpack.c.h.b16 %v2526
    %v2575 = vunpack.c.l.b16 %v2527
    %v2576 = vunpack.c.h.b16 %v2527
    %v2577 = vunpack.c.l.b16 %v2528
    %v2578 = vunpack.c.h.b16 %v2528
    %v2579 = vunpack.c.l.b16 %v2529
    %v2580 = vunpack.c.h.b16 %v2529
    %v2581 = vunpack.c.l.b16 %v2530
    %v2582 = vunpack.c.h.b16 %v2530
    %v2583 = vunpack.c.l.b16 %v2531
    %v2584 = vunpack.c.h.b16 %v2531
    %v2585 = vunpack.c.l.b16 %v2532
    %v2586 = vunpack.c.h.b16 %v2532
    %v2587 = vpack.c.b16 %v2555, %v2551
    %v2588 = vpack.c.b16 %v2556, %v2552
    %v2589 = vpack.c.b16 %v2557, %v2553
    %v2590 = vpack.c.b16 %v2558, %v2554
    %v2591 = vpack.c.b16 %v2563, %v2559
    %v2592 = vpack.c.b16 %v2564, %v2560
    %v2593 = vpack.c.b16 %v2565, %v2561
    %v2594 = vpack.c.b16 %v2566, %v2562
    %v2595 = vpack.c.b16 %v2571, %v2567
    %v2596 = vpack.c.b16 %v2572, %v2568
    %v2597 = vpack.c.b16 %v2573, %v2569
    %v2598 = vpack.c.b16 %v2574, %v2570
    %v2599 = vpack.c.b16 %v2579, %v2575
    %v2600 = vpack.c.b16 %v2580, %v2576
    %v2601 = vpack.c.b16 %v2581, %v2577
    %v2602 = vpack.c.b16 %v2582, %v2578
    %v2603 = vpack.c.b16 %v2583, %v2583
    %v2604 = vpack.c.b16 %v2584, %v2584
    %v2605 = vpack.c.b16 %v2585, %v2585
    %v2606 = vpack.c.b16 %v2586, %v2586
    %v2624 = vsel %vm257, %v2482, 0
    %v2627 = vsel %vm257, %v2483, 0
    %v2630 = vsel %vm257, %v2484, 0
    %v2633 = vsel %vm257, %v2485, 0
    %v2636 = vsel %vm257, %v2486, 0
    %v2639 = vsel %vm257, %v2487, 0
    %v2642 = vsel %vm257, %v2488, 0
    %v2645 = vsel %vm257, %v2489, 0
    %v2648 = vsel %vm257, %v2506, 0
    %v2651 = vsel %vm257, %v2507, 0
    %v2654 = vsel %vm257, %v2508, 0
    %v2657 = vsel %vm257, %v2509, 0
    %v2660 = vsel %vm257, %v2510, 0
    %v2663 = vsel %vm257, %v2511, 0
    %v2666 = vsel %vm257, %v2512, 0
    %v2669 = vsel %vm257, %v2513, 0
    %v2672 = vsel %vm306, %v2603, 0
    %v2675 = vsel %vm306, %v2604, 0
    %v2678 = vsel %vm306, %v2605, 0
    %v2681 = vsel %vm306, %v2606, 0
    %2683 = vmatprep.subr.bf16.mxu0 0
    %2684 = vmatpush1.bf16.msra.mxu0 0
    %2685 = vmatprep.subr.bf16.mxu0 0
    %2686 = vmatpush1.bf16.msra.mxu0 0
    %2687 = vmatprep.subr.bf16.mxu0 0
    %2688 = vmatpush1.bf16.msra.mxu0 0
    %2689 = vmatprep.subr.bf16.mxu0 %v2675
    %2690 = vmatpush1.bf16.msra.mxu0 %v2672
    %2691 = vmatprep.subr.bf16.mxu0 %v2600
    %2692 = vmatpush1.bf16.msra.mxu0 %v2599
    %2693 = vmatprep.subr.bf16.mxu0 %v2596
    %2694 = vmatpush1.bf16.msra.mxu0 %v2595
    %2695 = vmatprep.subr.bf16.mxu0 %v2592
    %2696 = vmatpush1.bf16.msra.mxu0 %v2591
    %2697 = vmatprep.subr.bf16.mxu0 %v2588
    %2698 = vmatpush1.bf16.msra.mxu0 %v2587
    %2699 = vmatprep.subr.bf16.mxu0 0
    %2700 = vmatpush2.bf16.msra.mxu0 0
    %2701 = vmatprep.subr.bf16.mxu0 0
    %2702 = vmatpush2.bf16.msra.mxu0 0
    %2703 = vmatprep.subr.bf16.mxu0 0
    %2704 = vmatpush2.bf16.msra.mxu0 0
    %2705 = vmatprep.subr.bf16.mxu0 0
    %2706 = vmatpush2.bf16.msra.mxu0 0
    %2707 = vmatprep.subr.bf16.mxu0 0
    %2708 = vmatpush2.bf16.msra.mxu0 0
    %2709 = vmatprep.subr.bf16.mxu0 0
    %2710 = vmatpush2.bf16.msra.mxu0 0
    %2711 = vmatprep.subr.bf16.mxu0 0
    %2712 = vmatpush2.bf16.msra.mxu0 0
    %2713 = vmatprep.subr.bf16.mxu0 0
    %2714 = vmatpush2.bf16.msra.mxu0 0
    %2715 = vmatprep.mubr.bf16.mxu0 0
    %2716 = vmatmul.mubr.bf16.gmra.mxu0 %v2624
    %v2717 = vpop.f32.mrf.mxu0
    %v2718 = vadd.f32 0.0, %v2717
    %v2719 = vpop.f32.mrf.mxu0
    %v2720 = vadd.f32 0.0, %v2719
    %v2721 = vpop.f32.mrf.mxu0
    %v2722 = vadd.f32 0.0, %v2721
    %v2723 = vpop.f32.mrf.mxu0
    %v2724 = vadd.f32 0.0, %v2723
    %2725 = vmatprep.mubr.bf16.mxu0 0
    %2726 = vmatmul.mubr.bf16.gmra.mxu0 %v2627
    %v2727 = vpop.f32.mrf.mxu0
    %v2728 = vadd.f32 0.0, %v2727
    %v2729 = vpop.f32.mrf.mxu0
    %v2730 = vadd.f32 0.0, %v2729
    %v2731 = vpop.f32.mrf.mxu0
    %v2732 = vadd.f32 0.0, %v2731
    %v2733 = vpop.f32.mrf.mxu0
    %v2734 = vadd.f32 0.0, %v2733
    %2735 = vmatprep.mubr.bf16.mxu0 0
    %2736 = vmatmul.mubr.bf16.gmra.mxu0 %v2630
    %v2737 = vpop.f32.mrf.mxu0
    %v2738 = vadd.f32 0.0, %v2737
    %v2739 = vpop.f32.mrf.mxu0
    %v2740 = vadd.f32 0.0, %v2739
    %v2741 = vpop.f32.mrf.mxu0
    %v2742 = vadd.f32 0.0, %v2741
    %v2743 = vpop.f32.mrf.mxu0
    %v2744 = vadd.f32 0.0, %v2743
    %2745 = vmatprep.mubr.bf16.mxu0 0
    %2746 = vmatmul.mubr.bf16.gmra.mxu0 %v2633
    %v2747 = vpop.f32.mrf.mxu0
    %v2748 = vadd.f32 0.0, %v2747
    %v2749 = vpop.f32.mrf.mxu0
    %v2750 = vadd.f32 0.0, %v2749
    %v2751 = vpop.f32.mrf.mxu0
    %v2752 = vadd.f32 0.0, %v2751
    %v2753 = vpop.f32.mrf.mxu0
    %v2754 = vadd.f32 0.0, %v2753
    %2755 = vmatprep.mubr.bf16.mxu0 0
    %2756 = vmatmul.mubr.bf16.gmra.mxu0 %v2636
    %v2757 = vpop.f32.mrf.mxu0
    %v2758 = vadd.f32 0.0, %v2757
    %v2759 = vpop.f32.mrf.mxu0
    %v2760 = vadd.f32 0.0, %v2759
    %v2761 = vpop.f32.mrf.mxu0
    %v2762 = vadd.f32 0.0, %v2761
    %v2763 = vpop.f32.mrf.mxu0
    %v2764 = vadd.f32 0.0, %v2763
    %2765 = vmatprep.mubr.bf16.mxu0 0
    %2766 = vmatmul.mubr.bf16.gmra.mxu0 %v2639
    %v2767 = vpop.f32.mrf.mxu0
    %v2768 = vadd.f32 0.0, %v2767
    %v2769 = vpop.f32.mrf.mxu0
    %v2770 = vadd.f32 0.0, %v2769
    %v2771 = vpop.f32.mrf.mxu0
    %v2772 = vadd.f32 0.0, %v2771
    %v2773 = vpop.f32.mrf.mxu0
    %v2774 = vadd.f32 0.0, %v2773
    %2775 = vmatprep.mubr.bf16.mxu0 0
    %2776 = vmatmul.mubr.bf16.gmra.mxu0 %v2642
    %v2777 = vpop.f32.mrf.mxu0
    %v2778 = vadd.f32 0.0, %v2777
    %v2779 = vpop.f32.mrf.mxu0
    %v2780 = vadd.f32 0.0, %v2779
    %v2781 = vpop.f32.mrf.mxu0
    %v2782 = vadd.f32 0.0, %v2781
    %v2783 = vpop.f32.mrf.mxu0
    %v2784 = vadd.f32 0.0, %v2783
    %2785 = vmatprep.mubr.bf16.mxu0 0
    %2786 = vmatmul.mubr.bf16.gmra.mxu0 %v2645
    %v2787 = vpop.f32.mrf.mxu0
    %v2788 = vadd.f32 0.0, %v2787
    %v2789 = vpop.f32.mrf.mxu0
    %v2790 = vadd.f32 0.0, %v2789
    %v2791 = vpop.f32.mrf.mxu0
    %v2792 = vadd.f32 0.0, %v2791
    %v2793 = vpop.f32.mrf.mxu0
    %v2794 = vadd.f32 0.0, %v2793
    %2795 = vmatprep.mubr.bf16.mxu0 0
    %2796 = vmatmul.mubr.bf16.gmra.mxu0 %v2648
    %v2797 = vpop.f32.mrf.mxu0
    %v2798 = vadd.f32 0.0, %v2797
    %v2799 = vpop.f32.mrf.mxu0
    %v2800 = vadd.f32 0.0, %v2799
    %v2801 = vpop.f32.mrf.mxu0
    %v2802 = vadd.f32 0.0, %v2801
    %v2803 = vpop.f32.mrf.mxu0
    %v2804 = vadd.f32 0.0, %v2803
    %2805 = vmatprep.mubr.bf16.mxu0 0
    %2806 = vmatmul.mubr.bf16.gmra.mxu0 %v2651
    %v2807 = vpop.f32.mrf.mxu0
    %v2808 = vadd.f32 0.0, %v2807
    %v2809 = vpop.f32.mrf.mxu0
    %v2810 = vadd.f32 0.0, %v2809
    %v2811 = vpop.f32.mrf.mxu0
    %v2812 = vadd.f32 0.0, %v2811
    %v2813 = vpop.f32.mrf.mxu0
    %v2814 = vadd.f32 0.0, %v2813
    %2815 = vmatprep.mubr.bf16.mxu0 0
    %2816 = vmatmul.mubr.bf16.gmra.mxu0 %v2654
    %v2817 = vpop.f32.mrf.mxu0
    %v2818 = vadd.f32 0.0, %v2817
    %v2819 = vpop.f32.mrf.mxu0
    %v2820 = vadd.f32 0.0, %v2819
    %v2821 = vpop.f32.mrf.mxu0
    %v2822 = vadd.f32 0.0, %v2821
    %v2823 = vpop.f32.mrf.mxu0
    %v2824 = vadd.f32 0.0, %v2823
    %2825 = vmatprep.mubr.bf16.mxu0 0
    %2826 = vmatmul.mubr.bf16.gmra.mxu0 %v2657
    %v2827 = vpop.f32.mrf.mxu0
    %v2828 = vadd.f32 0.0, %v2827
    %v2829 = vpop.f32.mrf.mxu0
    %v2830 = vadd.f32 0.0, %v2829
    %v2831 = vpop.f32.mrf.mxu0
    %v2832 = vadd.f32 0.0, %v2831
    %v2833 = vpop.f32.mrf.mxu0
    %v2834 = vadd.f32 0.0, %v2833
    %2835 = vmatprep.mubr.bf16.mxu0 0
    %2836 = vmatmul.mubr.bf16.gmra.mxu0 %v2660
    %v2837 = vpop.f32.mrf.mxu0
    %v2838 = vadd.f32 0.0, %v2837
    %v2839 = vpop.f32.mrf.mxu0
    %v2840 = vadd.f32 0.0, %v2839
    %v2841 = vpop.f32.mrf.mxu0
    %v2842 = vadd.f32 0.0, %v2841
    %v2843 = vpop.f32.mrf.mxu0
    %v2844 = vadd.f32 0.0, %v2843
    %2845 = vmatprep.mubr.bf16.mxu0 0
    %2846 = vmatmul.mubr.bf16.gmra.mxu0 %v2663
    %v2847 = vpop.f32.mrf.mxu0
    %v2848 = vadd.f32 0.0, %v2847
    %v2849 = vpop.f32.mrf.mxu0
    %v2850 = vadd.f32 0.0, %v2849
    %v2851 = vpop.f32.mrf.mxu0
    %v2852 = vadd.f32 0.0, %v2851
    %v2853 = vpop.f32.mrf.mxu0
    %v2854 = vadd.f32 0.0, %v2853
    %2855 = vmatprep.mubr.bf16.mxu0 0
    %2856 = vmatmul.mubr.bf16.gmra.mxu0 %v2666
    %v2857 = vpop.f32.mrf.mxu0
    %v2858 = vadd.f32 0.0, %v2857
    %v2859 = vpop.f32.mrf.mxu0
    %v2860 = vadd.f32 0.0, %v2859
    %v2861 = vpop.f32.mrf.mxu0
    %v2862 = vadd.f32 0.0, %v2861
    %v2863 = vpop.f32.mrf.mxu0
    %v2864 = vadd.f32 0.0, %v2863
    %2865 = vmatprep.mubr.bf16.mxu0 0
    %2866 = vmatmul.mubr.bf16.gmra.mxu0 %v2669
    %v2867 = vpop.f32.mrf.mxu0
    %v2868 = vadd.f32 0.0, %v2867
    %v2869 = vpop.f32.mrf.mxu0
    %v2870 = vadd.f32 0.0, %v2869
    %v2871 = vpop.f32.mrf.mxu0
    %v2872 = vadd.f32 0.0, %v2871
    %v2873 = vpop.f32.mrf.mxu0
    %v2874 = vadd.f32 0.0, %v2873
    %2875 = vdwg.mxu0
    %2876 = vmatprep.subr.bf16.mxu0 0
    %2877 = vmatpush1.bf16.msra.mxu0 0
    %2878 = vmatprep.subr.bf16.mxu0 0
    %2879 = vmatpush1.bf16.msra.mxu0 0
    %2880 = vmatprep.subr.bf16.mxu0 0
    %2881 = vmatpush1.bf16.msra.mxu0 0
    %2882 = vmatprep.subr.bf16.mxu0 %v2681
    %2883 = vmatpush1.bf16.msra.mxu0 %v2678
    %2884 = vmatprep.subr.bf16.mxu0 %v2602
    %2885 = vmatpush1.bf16.msra.mxu0 %v2601
    %2886 = vmatprep.subr.bf16.mxu0 %v2598
    %2887 = vmatpush1.bf16.msra.mxu0 %v2597
    %2888 = vmatprep.subr.bf16.mxu0 %v2594
    %2889 = vmatpush1.bf16.msra.mxu0 %v2593
    %2890 = vmatprep.subr.bf16.mxu0 %v2590
    %2891 = vmatpush1.bf16.msra.mxu0 %v2589
    %2892 = vmatprep.subr.bf16.mxu0 0
    %2893 = vmatpush2.bf16.msra.mxu0 0
    %2894 = vmatprep.subr.bf16.mxu0 0
    %2895 = vmatpush2.bf16.msra.mxu0 0
    %2896 = vmatprep.subr.bf16.mxu0 0
    %2897 = vmatpush2.bf16.msra.mxu0 0
    %2898 = vmatprep.subr.bf16.mxu0 0
    %2899 = vmatpush2.bf16.msra.mxu0 0
    %2900 = vmatprep.subr.bf16.mxu0 0
    %2901 = vmatpush2.bf16.msra.mxu0 0
    %2902 = vmatprep.subr.bf16.mxu0 0
    %2903 = vmatpush2.bf16.msra.mxu0 0
    %2904 = vmatprep.subr.bf16.mxu0 0
    %2905 = vmatpush2.bf16.msra.mxu0 0
    %2906 = vmatprep.subr.bf16.mxu0 0
    %2907 = vmatpush2.bf16.msra.mxu0 0
    %2908 = vmatprep.mubr.bf16.mxu0 0
    %2909 = vmatmul.mubr.bf16.gmra.mxu0 %v2624
    %v2910 = vpop.f32.mrf.mxu0
    %v2911 = vadd.f32 0.0, %v2910
    %v2912 = vpop.f32.mrf.mxu0
    %v2913 = vadd.f32 0.0, %v2912
    %v2914 = vpop.f32.mrf.mxu0
    %v2915 = vadd.f32 0.0, %v2914
    %v2916 = vpop.f32.mrf.mxu0
    %v2917 = vadd.f32 0.0, %v2916
    %2918 = vmatprep.mubr.bf16.mxu0 0
    %2919 = vmatmul.mubr.bf16.gmra.mxu0 %v2627
    %v2920 = vpop.f32.mrf.mxu0
    %v2921 = vadd.f32 0.0, %v2920
    %v2922 = vpop.f32.mrf.mxu0
    %v2923 = vadd.f32 0.0, %v2922
    %v2924 = vpop.f32.mrf.mxu0
    %v2925 = vadd.f32 0.0, %v2924
    %v2926 = vpop.f32.mrf.mxu0
    %v2927 = vadd.f32 0.0, %v2926
    %2928 = vmatprep.mubr.bf16.mxu0 0
    %2929 = vmatmul.mubr.bf16.gmra.mxu0 %v2630
    %v2930 = vpop.f32.mrf.mxu0
    %v2931 = vadd.f32 0.0, %v2930
    %v2932 = vpop.f32.mrf.mxu0
    %v2933 = vadd.f32 0.0, %v2932
    %v2934 = vpop.f32.mrf.mxu0
    %v2935 = vadd.f32 0.0, %v2934
    %v2936 = vpop.f32.mrf.mxu0
    %v2937 = vadd.f32 0.0, %v2936
    %2938 = vmatprep.mubr.bf16.mxu0 0
    %2939 = vmatmul.mubr.bf16.gmra.mxu0 %v2633
    %v2940 = vpop.f32.mrf.mxu0
    %v2941 = vadd.f32 0.0, %v2940
    %v2942 = vpop.f32.mrf.mxu0
    %v2943 = vadd.f32 0.0, %v2942
    %v2944 = vpop.f32.mrf.mxu0
    %v2945 = vadd.f32 0.0, %v2944
    %v2946 = vpop.f32.mrf.mxu0
    %v2947 = vadd.f32 0.0, %v2946
    %2948 = vmatprep.mubr.bf16.mxu0 0
    %2949 = vmatmul.mubr.bf16.gmra.mxu0 %v2636
    %v2950 = vpop.f32.mrf.mxu0
    %v2951 = vadd.f32 0.0, %v2950
    %v2952 = vpop.f32.mrf.mxu0
    %v2953 = vadd.f32 0.0, %v2952
    %v2954 = vpop.f32.mrf.mxu0
    %v2955 = vadd.f32 0.0, %v2954
    %v2956 = vpop.f32.mrf.mxu0
    %v2957 = vadd.f32 0.0, %v2956
    %2958 = vmatprep.mubr.bf16.mxu0 0
    %2959 = vmatmul.mubr.bf16.gmra.mxu0 %v2639
    %v2960 = vpop.f32.mrf.mxu0
    %v2961 = vadd.f32 0.0, %v2960
    %v2962 = vpop.f32.mrf.mxu0
    %v2963 = vadd.f32 0.0, %v2962
    %v2964 = vpop.f32.mrf.mxu0
    %v2965 = vadd.f32 0.0, %v2964
    %v2966 = vpop.f32.mrf.mxu0
    %v2967 = vadd.f32 0.0, %v2966
    %2968 = vmatprep.mubr.bf16.mxu0 0
    %2969 = vmatmul.mubr.bf16.gmra.mxu0 %v2642
    %v2970 = vpop.f32.mrf.mxu0
    %v2971 = vadd.f32 0.0, %v2970
    %v2972 = vpop.f32.mrf.mxu0
    %v2973 = vadd.f32 0.0, %v2972
    %v2974 = vpop.f32.mrf.mxu0
    %v2975 = vadd.f32 0.0, %v2974
    %v2976 = vpop.f32.mrf.mxu0
    %v2977 = vadd.f32 0.0, %v2976
    %2978 = vmatprep.mubr.bf16.mxu0 0
    %2979 = vmatmul.mubr.bf16.gmra.mxu0 %v2645
    %v2980 = vpop.f32.mrf.mxu0
    %v2981 = vadd.f32 0.0, %v2980
    %v2982 = vpop.f32.mrf.mxu0
    %v2983 = vadd.f32 0.0, %v2982
    %v2984 = vpop.f32.mrf.mxu0
    %v2985 = vadd.f32 0.0, %v2984
    %v2986 = vpop.f32.mrf.mxu0
    %v2987 = vadd.f32 0.0, %v2986
    %2988 = vmatprep.mubr.bf16.mxu0 0
    %2989 = vmatmul.mubr.bf16.gmra.mxu0 %v2648
    %v2990 = vpop.f32.mrf.mxu0
    %v2991 = vadd.f32 0.0, %v2990
    %v2992 = vpop.f32.mrf.mxu0
    %v2993 = vadd.f32 0.0, %v2992
    %v2994 = vpop.f32.mrf.mxu0
    %v2995 = vadd.f32 0.0, %v2994
    %v2996 = vpop.f32.mrf.mxu0
    %v2997 = vadd.f32 0.0, %v2996
    %2998 = vmatprep.mubr.bf16.mxu0 0
    %2999 = vmatmul.mubr.bf16.gmra.mxu0 %v2651
    %v3000 = vpop.f32.mrf.mxu0
    %v3001 = vadd.f32 0.0, %v3000
    %v3002 = vpop.f32.mrf.mxu0
    %v3003 = vadd.f32 0.0, %v3002
    %v3004 = vpop.f32.mrf.mxu0
    %v3005 = vadd.f32 0.0, %v3004
    %v3006 = vpop.f32.mrf.mxu0
    %v3007 = vadd.f32 0.0, %v3006
    %3008 = vmatprep.mubr.bf16.mxu0 0
    %3009 = vmatmul.mubr.bf16.gmra.mxu0 %v2654
    %v3010 = vpop.f32.mrf.mxu0
    %v3011 = vadd.f32 0.0, %v3010
    %v3012 = vpop.f32.mrf.mxu0
    %v3013 = vadd.f32 0.0, %v3012
    %v3014 = vpop.f32.mrf.mxu0
    %v3015 = vadd.f32 0.0, %v3014
    %v3016 = vpop.f32.mrf.mxu0
    %v3017 = vadd.f32 0.0, %v3016
    %3018 = vmatprep.mubr.bf16.mxu0 0
    %3019 = vmatmul.mubr.bf16.gmra.mxu0 %v2657
    %v3020 = vpop.f32.mrf.mxu0
    %v3021 = vadd.f32 0.0, %v3020
    %v3022 = vpop.f32.mrf.mxu0
    %v3023 = vadd.f32 0.0, %v3022
    %v3024 = vpop.f32.mrf.mxu0
    %v3025 = vadd.f32 0.0, %v3024
    %v3026 = vpop.f32.mrf.mxu0
    %v3027 = vadd.f32 0.0, %v3026
    %3028 = vmatprep.mubr.bf16.mxu0 0
    %3029 = vmatmul.mubr.bf16.gmra.mxu0 %v2660
    %v3030 = vpop.f32.mrf.mxu0
    %v3031 = vadd.f32 0.0, %v3030
    %v3032 = vpop.f32.mrf.mxu0
    %v3033 = vadd.f32 0.0, %v3032
    %v3034 = vpop.f32.mrf.mxu0
    %v3035 = vadd.f32 0.0, %v3034
    %v3036 = vpop.f32.mrf.mxu0
    %v3037 = vadd.f32 0.0, %v3036
    %3038 = vmatprep.mubr.bf16.mxu0 0
    %3039 = vmatmul.mubr.bf16.gmra.mxu0 %v2663
    %v3040 = vpop.f32.mrf.mxu0
    %v3041 = vadd.f32 0.0, %v3040
    %v3042 = vpop.f32.mrf.mxu0
    %v3043 = vadd.f32 0.0, %v3042
    %v3044 = vpop.f32.mrf.mxu0
    %v3045 = vadd.f32 0.0, %v3044
    %v3046 = vpop.f32.mrf.mxu0
    %v3047 = vadd.f32 0.0, %v3046
    %3048 = vmatprep.mubr.bf16.mxu0 0
    %3049 = vmatmul.mubr.bf16.gmra.mxu0 %v2666
    %v3050 = vpop.f32.mrf.mxu0
    %v3051 = vadd.f32 0.0, %v3050
    %v3052 = vpop.f32.mrf.mxu0
    %v3053 = vadd.f32 0.0, %v3052
    %v3054 = vpop.f32.mrf.mxu0
    %v3055 = vadd.f32 0.0, %v3054
    %v3056 = vpop.f32.mrf.mxu0
    %v3057 = vadd.f32 0.0, %v3056
    %3058 = vmatprep.mubr.bf16.mxu0 0
    %3059 = vmatmul.mubr.bf16.gmra.mxu0 %v2669
    %v3060 = vpop.f32.mrf.mxu0
    %v3061 = vadd.f32 0.0, %v3060
    %v3062 = vpop.f32.mrf.mxu0
    %v3063 = vadd.f32 0.0, %v3062
    %v3064 = vpop.f32.mrf.mxu0
    %v3065 = vadd.f32 0.0, %v3064
    %v3066 = vpop.f32.mrf.mxu0
    %v3067 = vadd.f32 0.0, %v3066
    %3068 = vdwg.mxu0
    %v3069 = vld [vmem:[#allocation2] sm:$0xff]
    %v3070 = vld [vmem:[#allocation2 + $0x8] sm:$0xff]
    %v3071 = vld [vmem:[#allocation2 + $0x10] sm:$0xff]
    %v3072 = vld [vmem:[#allocation2 + $0x18] sm:$0xff]
    %v3073 = vld [vmem:[#allocation2 + $0x20] sm:$0xff]
    %v3074 = vld [vmem:[#allocation2 + $0x28] sm:$0xff]
    %v3075 = vld [vmem:[#allocation2 + $0x30] sm:$0xff]
    %v3076 = vld [vmem:[#allocation2 + $0x38] sm:$0xff]
    %v3077 = vld [vmem:[#allocation2 + $0x40] sm:$0xff]
    %v3078 = vld [vmem:[#allocation2 + $0x48] sm:$0xff]
    %v3079 = vld [vmem:[#allocation2 + $0x50] sm:$0xff]
    %v3080 = vld [vmem:[#allocation2 + $0x58] sm:$0xff]
    %v3081 = vld [vmem:[#allocation2 + $0x60] sm:$0xff]
    %v3082 = vld [vmem:[#allocation2 + $0x68] sm:$0xff]
    %v3083 = vld [vmem:[#allocation2 + $0x70] sm:$0xff]
    %v3084 = vld [vmem:[#allocation2 + $0x78] sm:$0xff]
    %v3085 = vld [vmem:[#allocation2 + $0x80] sm:$0xff]
    %v3086 = vld [vmem:[#allocation2 + $0x88] sm:$0xff]
    %v3087 = vld [vmem:[#allocation2 + $0x90] sm:$0xff]
    %v3088 = vld [vmem:[#allocation2 + $0x98] sm:$0xff]
    %v3089 = vld [vmem:[#allocation2 + $0xa0] sm:$0xff]
    %v3090 = vld [vmem:[#allocation2 + $0xa8] sm:$0xff]
    %v3091 = vld [vmem:[#allocation2 + $0xb0] sm:$0xff]
    %v3092 = vld [vmem:[#allocation2 + $0xb8] sm:$0xff]
    %v3093 = vld [vmem:[#allocation2 + $0xc0] sm:$0xff]
    %v3094 = vld [vmem:[#allocation2 + $0xc8] sm:$0xff]
    %v3095 = vld [vmem:[#allocation2 + $0xd0] sm:$0xff]
    %v3096 = vld [vmem:[#allocation2 + $0xd8] sm:$0xff]
    %v3097 = vld [vmem:[#allocation2 + $0xe0] sm:$0xff]
    %v3098 = vld [vmem:[#allocation2 + $0xe8] sm:$0xff]
    %v3099 = vld [vmem:[#allocation2 + $0xf0] sm:$0xff]
    %v3100 = vld [vmem:[#allocation2 + $0xf8] sm:$0xff]
    %v3101 = vld [vmem:[#allocation2 + $0x100] sm:$0xff]
    %v3102 = vld [vmem:[#allocation2 + $0x108] sm:$0xff]
    %v3103 = vld [vmem:[#allocation2 + $0x110] sm:$0xff]
    %v3104 = vld [vmem:[#allocation2 + $0x118] sm:$0xff]
    %v3105 = vld [vmem:[#allocation2 + $0x120] sm:$0xff]
    %v3106 = vld [vmem:[#allocation2 + $0x128] sm:$0xff]
    %v3107 = vld [vmem:[#allocation2 + $0x130] sm:$0xff]
    %v3108 = vld [vmem:[#allocation2 + $0x138] sm:$0xff]
    %v3109 = vld [vmem:[#allocation2 + $0x140] sm:$0xff]
    %v3110 = vld [vmem:[#allocation2 + $0x148] sm:$0xff]
    %v3111 = vld [vmem:[#allocation2 + $0x150] sm:$0xff]
    %v3112 = vld [vmem:[#allocation2 + $0x158] sm:$0xff]
    %v3113 = vld [vmem:[#allocation2 + $0x160] sm:$0xff]
    %v3114 = vld [vmem:[#allocation2 + $0x168] sm:$0xff]
    %v3115 = vld [vmem:[#allocation2 + $0x170] sm:$0xff]
    %v3116 = vld [vmem:[#allocation2 + $0x178] sm:$0xff]
    %v3117 = vld [vmem:[#allocation2 + $0x180] sm:$0xff]
    %v3118 = vld [vmem:[#allocation2 + $0x188] sm:$0xff]
    %v3119 = vld [vmem:[#allocation2 + $0x190] sm:$0xff]
    %v3120 = vld [vmem:[#allocation2 + $0x198] sm:$0xff]
    %v3121 = vld [vmem:[#allocation2 + $0x1a0] sm:$0xff]
    %v3122 = vld [vmem:[#allocation2 + $0x1a8] sm:$0xff]
    %v3123 = vld [vmem:[#allocation2 + $0x1b0] sm:$0xff]
    %v3124 = vld [vmem:[#allocation2 + $0x1b8] sm:$0xff]
    %v3125 = vld [vmem:[#allocation2 + $0x1c0] sm:$0xff]
    %v3126 = vld [vmem:[#allocation2 + $0x1c8] sm:$0xff]
    %v3127 = vld [vmem:[#allocation2 + $0x1d0] sm:$0xff]
    %v3128 = vld [vmem:[#allocation2 + $0x1d8] sm:$0xff]
    %v3129 = vld [vmem:[#allocation2 + $0x1e0] sm:$0xff]
    %v3130 = vld [vmem:[#allocation2 + $0x1e8] sm:$0xff]
    %v3131 = vld [vmem:[#allocation2 + $0x1f0] sm:$0xff]
    %v3132 = vld [vmem:[#allocation2 + $0x1f8] sm:$0xff]
    %v3133 = vld [vmem:[#allocation2 + $0x200] sm:$0xff]
    %v3134 = vld [vmem:[#allocation2 + $0x208] sm:$0xff]
    %v3135 = vld [vmem:[#allocation2 + $0x210] sm:$0xff]
    %v3136 = vld [vmem:[#allocation2 + $0x218] sm:$0xff]
    %v3137 = vld [vmem:[#allocation2 + $0x220] sm:$0xff]
    %v3138 = vld [vmem:[#allocation2 + $0x228] sm:$0xff]
    %v3139 = vld [vmem:[#allocation2 + $0x230] sm:$0xff]
    %v3140 = vld [vmem:[#allocation2 + $0x238] sm:$0xff]
    %v3141 = vld [vmem:[#allocation2 + $0x240] sm:$0xff]
    %v3142 = vld [vmem:[#allocation2 + $0x248] sm:$0xff]
    %v3143 = vld [vmem:[#allocation2 + $0x250] sm:$0xff]
    %v3144 = vld [vmem:[#allocation2 + $0x258] sm:$0xff]
    %v3145 = vld [vmem:[#allocation2 + $0x260] sm:$0xff]
    %v3146 = vld [vmem:[#allocation2 + $0x268] sm:$0xff]
    %v3147 = vld [vmem:[#allocation2 + $0x270] sm:$0xff]
    %v3148 = vld [vmem:[#allocation2 + $0x278] sm:$0xff]
    %v3149 = vld [vmem:[#allocation2 + $0x280] sm:$0xff]
    %v3150 = vld [vmem:[#allocation2 + $0x288] sm:$0xff]
    %v3151 = vld [vmem:[#allocation2 + $0x290] sm:$0xff]
    %v3152 = vld [vmem:[#allocation2 + $0x298] sm:$0xff]
    %v3153 = vld [vmem:[#allocation2 + $0x2a0] sm:$0xff]
    %v3154 = vld [vmem:[#allocation2 + $0x2a8] sm:$0xff]
    %v3155 = vld [vmem:[#allocation2 + $0x2b0] sm:$0xff]
    %v3156 = vld [vmem:[#allocation2 + $0x2b8] sm:$0xff]
    %v3157 = vld [vmem:[#allocation2 + $0x2c0] sm:$0xff]
    %v3158 = vld [vmem:[#allocation2 + $0x2c8] sm:$0xff]
    %v3159 = vld [vmem:[#allocation2 + $0x2d0] sm:$0xff]
    %v3160 = vld [vmem:[#allocation2 + $0x2d8] sm:$0xff]
    %v3161 = vld [vmem:[#allocation2 + $0x2e0] sm:$0xff]
    %v3162 = vld [vmem:[#allocation2 + $0x2e8] sm:$0xff]
    %v3163 = vld [vmem:[#allocation2 + $0x2f0] sm:$0xff]
    %v3164 = vld [vmem:[#allocation2 + $0x2f8] sm:$0xff]
    %v3165 = vld [vmem:[#allocation2 + $0x300] sm:$0xff]
    %v3166 = vld [vmem:[#allocation2 + $0x308] sm:$0xff]
    %v3167 = vld [vmem:[#allocation2 + $0x310] sm:$0xff]
    %v3168 = vld [vmem:[#allocation2 + $0x318] sm:$0xff]
    %v3169 = vld [vmem:[#allocation2 + $0x320] sm:$0xff]
    %v3170 = vld [vmem:[#allocation2 + $0x328] sm:$0xff]
    %v3171 = vld [vmem:[#allocation2 + $0x330] sm:$0xff]
    %v3172 = vld [vmem:[#allocation2 + $0x338] sm:$0xff]
    %v3173 = vld [vmem:[#allocation2 + $0x340] sm:$0xff]
    %v3174 = vld [vmem:[#allocation2 + $0x348] sm:$0xff]
    %v3175 = vld [vmem:[#allocation2 + $0x350] sm:$0xff]
    %v3176 = vld [vmem:[#allocation2 + $0x358] sm:$0xff]
    %v3177 = vld [vmem:[#allocation2 + $0x360] sm:$0xff]
    %v3178 = vld [vmem:[#allocation2 + $0x368] sm:$0xff]
    %v3179 = vld [vmem:[#allocation2 + $0x370] sm:$0xff]
    %v3180 = vld [vmem:[#allocation2 + $0x378] sm:$0xff]
    %v3181 = vld [vmem:[#allocation2 + $0x380] sm:$0xff]
    %v3182 = vld [vmem:[#allocation2 + $0x388] sm:$0xff]
    %v3183 = vld [vmem:[#allocation2 + $0x390] sm:$0xff]
    %v3184 = vld [vmem:[#allocation2 + $0x398] sm:$0xff]
    %v3185 = vld [vmem:[#allocation2 + $0x3a0] sm:$0xff]
    %v3186 = vld [vmem:[#allocation2 + $0x3a8] sm:$0xff]
    %v3187 = vld [vmem:[#allocation2 + $0x3b0] sm:$0xff]
    %v3188 = vld [vmem:[#allocation2 + $0x3b8] sm:$0xff]
    %v3189 = vld [vmem:[#allocation2 + $0x3c0] sm:$0xff]
    %v3190 = vld [vmem:[#allocation2 + $0x3c8] sm:$0xff]
    %v3191 = vld [vmem:[#allocation2 + $0x3d0] sm:$0xff]
    %v3192 = vld [vmem:[#allocation2 + $0x3d8] sm:$0xff]
    %v3193 = vld [vmem:[#allocation2 + $0x3e0] sm:$0xff]
    %v3194 = vld [vmem:[#allocation2 + $0x3e8] sm:$0xff]
    %v3195 = vld [vmem:[#allocation2 + $0x3f0] sm:$0xff]
    %v3196 = vld [vmem:[#allocation2 + $0x3f8] sm:$0xff]
    %v3197 = vadd.f32 %v3069, %v2718
    %v3198 = vadd.f32 %v3070, %v2720
    %v3199 = vadd.f32 %v3071, %v2911
    %v3200 = vadd.f32 %v3072, %v2913
    %v3201 = vadd.f32 %v3073, %v2722
    %v3202 = vadd.f32 %v3074, %v2724
    %v3203 = vadd.f32 %v3075, %v2915
    %v3204 = vadd.f32 %v3076, %v2917
    %v3205 = vadd.f32 %v3077, %v2728
    %v3206 = vadd.f32 %v3078, %v2730
    %v3207 = vadd.f32 %v3079, %v2921
    %v3208 = vadd.f32 %v3080, %v2923
    %v3209 = vadd.f32 %v3081, %v2732
    %v3210 = vadd.f32 %v3082, %v2734
    %v3211 = vadd.f32 %v3083, %v2925
    %v3212 = vadd.f32 %v3084, %v2927
    %v3213 = vadd.f32 %v3085, %v2738
    %v3214 = vadd.f32 %v3086, %v2740
    %v3215 = vadd.f32 %v3087, %v2931
    %v3216 = vadd.f32 %v3088, %v2933
    %v3217 = vadd.f32 %v3089, %v2742
    %v3218 = vadd.f32 %v3090, %v2744
    %v3219 = vadd.f32 %v3091, %v2935
    %v3220 = vadd.f32 %v3092, %v2937
    %v3221 = vadd.f32 %v3093, %v2748
    %v3222 = vadd.f32 %v3094, %v2750
    %v3223 = vadd.f32 %v3095, %v2941
    %v3224 = vadd.f32 %v3096, %v2943
    %v3225 = vadd.f32 %v3097, %v2752
    %v3226 = vadd.f32 %v3098, %v2754
    %v3227 = vadd.f32 %v3099, %v2945
    %v3228 = vadd.f32 %v3100, %v2947
    %v3229 = vadd.f32 %v3101, %v2758
    %v3230 = vadd.f32 %v3102, %v2760
    %v3231 = vadd.f32 %v3103, %v2951
    %v3232 = vadd.f32 %v3104, %v2953
    %v3233 = vadd.f32 %v3105, %v2762
    %v3234 = vadd.f32 %v3106, %v2764
    %v3235 = vadd.f32 %v3107, %v2955
    %v3236 = vadd.f32 %v3108, %v2957
    %v3237 = vadd.f32 %v3109, %v2768
    %v3238 = vadd.f32 %v3110, %v2770
    %v3239 = vadd.f32 %v3111, %v2961
    %v3240 = vadd.f32 %v3112, %v2963
    %v3241 = vadd.f32 %v3113, %v2772
    %v3242 = vadd.f32 %v3114, %v2774
    %v3243 = vadd.f32 %v3115, %v2965
    %v3244 = vadd.f32 %v3116, %v2967
    %v3245 = vadd.f32 %v3117, %v2778
    %v3246 = vadd.f32 %v3118, %v2780
    %v3247 = vadd.f32 %v3119, %v2971
    %v3248 = vadd.f32 %v3120, %v2973
    %v3249 = vadd.f32 %v3121, %v2782
    %v3250 = vadd.f32 %v3122, %v2784
    %v3251 = vadd.f32 %v3123, %v2975
    %v3252 = vadd.f32 %v3124, %v2977
    %v3253 = vadd.f32 %v3125, %v2788
    %v3254 = vadd.f32 %v3126, %v2790
    %v3255 = vadd.f32 %v3127, %v2981
    %v3256 = vadd.f32 %v3128, %v2983
    %v3257 = vadd.f32 %v3129, %v2792
    %v3258 = vadd.f32 %v3130, %v2794
    %v3259 = vadd.f32 %v3131, %v2985
    %v3260 = vadd.f32 %v3132, %v2987
    %v3261 = vadd.f32 %v3133, %v2798
    %v3262 = vadd.f32 %v3134, %v2800
    %v3263 = vadd.f32 %v3135, %v2991
    %v3264 = vadd.f32 %v3136, %v2993
    %v3265 = vadd.f32 %v3137, %v2802
    %v3266 = vadd.f32 %v3138, %v2804
    %v3267 = vadd.f32 %v3139, %v2995
    %v3268 = vadd.f32 %v3140, %v2997
    %v3269 = vadd.f32 %v3141, %v2808
    %v3270 = vadd.f32 %v3142, %v2810
    %v3271 = vadd.f32 %v3143, %v3001
    %v3272 = vadd.f32 %v3144, %v3003
    %v3273 = vadd.f32 %v3145, %v2812
    %v3274 = vadd.f32 %v3146, %v2814
    %v3275 = vadd.f32 %v3147, %v3005
    %v3276 = vadd.f32 %v3148, %v3007
    %v3277 = vadd.f32 %v3149, %v2818
    %v3278 = vadd.f32 %v3150, %v2820
    %v3279 = vadd.f32 %v3151, %v3011
    %v3280 = vadd.f32 %v3152, %v3013
    %v3281 = vadd.f32 %v3153, %v2822
    %v3282 = vadd.f32 %v3154, %v2824
    %v3283 = vadd.f32 %v3155, %v3015
    %v3284 = vadd.f32 %v3156, %v3017
    %v3285 = vadd.f32 %v3157, %v2828
    %v3286 = vadd.f32 %v3158, %v2830
    %v3287 = vadd.f32 %v3159, %v3021
    %v3288 = vadd.f32 %v3160, %v3023
    %v3289 = vadd.f32 %v3161, %v2832
    %v3290 = vadd.f32 %v3162, %v2834
    %v3291 = vadd.f32 %v3163, %v3025
    %v3292 = vadd.f32 %v3164, %v3027
    %v3293 = vadd.f32 %v3165, %v2838
    %v3294 = vadd.f32 %v3166, %v2840
    %v3295 = vadd.f32 %v3167, %v3031
    %v3296 = vadd.f32 %v3168, %v3033
    %v3297 = vadd.f32 %v3169, %v2842
    %v3298 = vadd.f32 %v3170, %v2844
    %v3299 = vadd.f32 %v3171, %v3035
    %v3300 = vadd.f32 %v3172, %v3037
    %v3301 = vadd.f32 %v3173, %v2848
    %v3302 = vadd.f32 %v3174, %v2850
    %v3303 = vadd.f32 %v3175, %v3041
    %v3304 = vadd.f32 %v3176, %v3043
    %v3305 = vadd.f32 %v3177, %v2852
    %v3306 = vadd.f32 %v3178, %v2854
    %v3307 = vadd.f32 %v3179, %v3045
    %v3308 = vadd.f32 %v3180, %v3047
    %v3309 = vadd.f32 %v3181, %v2858
    %v3310 = vadd.f32 %v3182, %v2860
    %v3311 = vadd.f32 %v3183, %v3051
    %v3312 = vadd.f32 %v3184, %v3053
    %v3313 = vadd.f32 %v3185, %v2862
    %v3314 = vadd.f32 %v3186, %v2864
    %v3315 = vadd.f32 %v3187, %v3055
    %v3316 = vadd.f32 %v3188, %v3057
    %v3317 = vadd.f32 %v3189, %v2868
    %v3318 = vadd.f32 %v3190, %v2870
    %v3319 = vadd.f32 %v3191, %v3061
    %v3320 = vadd.f32 %v3192, %v3063
    %v3321 = vadd.f32 %v3193, %v2872
    %v3322 = vadd.f32 %v3194, %v2874
    %v3323 = vadd.f32 %v3195, %v3065
    %v3324 = vadd.f32 %v3196, %v3067
    %3325 = vst [vmem:[#allocation2] sm:$0xff] %v3197
    %3326 = vst [vmem:[#allocation2 + $0x8] sm:$0xff] %v3198
    %3327 = vst [vmem:[#allocation2 + $0x10] sm:$0xff] %v3199
    %3328 = vst [vmem:[#allocation2 + $0x18] sm:$0xff] %v3200
    %3329 = vst [vmem:[#allocation2 + $0x20] sm:$0xff] %v3201
    %3330 = vst [vmem:[#allocation2 + $0x28] sm:$0xff] %v3202
    %3331 = vst [vmem:[#allocation2 + $0x30] sm:$0xff] %v3203
    %3332 = vst [vmem:[#allocation2 + $0x38] sm:$0xff] %v3204
    %3333 = vst [vmem:[#allocation2 + $0x40] sm:$0xff] %v3205
    %3334 = vst [vmem:[#allocation2 + $0x48] sm:$0xff] %v3206
    %3335 = vst [vmem:[#allocation2 + $0x50] sm:$0xff] %v3207
    %3336 = vst [vmem:[#allocation2 + $0x58] sm:$0xff] %v3208
    %3337 = vst [vmem:[#allocation2 + $0x60] sm:$0xff] %v3209
    %3338 = vst [vmem:[#allocation2 + $0x68] sm:$0xff] %v3210
    %3339 = vst [vmem:[#allocation2 + $0x70] sm:$0xff] %v3211
    %3340 = vst [vmem:[#allocation2 + $0x78] sm:$0xff] %v3212
    %3341 = vst [vmem:[#allocation2 + $0x80] sm:$0xff] %v3213
    %3342 = vst [vmem:[#allocation2 + $0x88] sm:$0xff] %v3214
    %3343 = vst [vmem:[#allocation2 + $0x90] sm:$0xff] %v3215
    %3344 = vst [vmem:[#allocation2 + $0x98] sm:$0xff] %v3216
    %3345 = vst [vmem:[#allocation2 + $0xa0] sm:$0xff] %v3217
    %3346 = vst [vmem:[#allocation2 + $0xa8] sm:$0xff] %v3218
    %3347 = vst [vmem:[#allocation2 + $0xb0] sm:$0xff] %v3219
    %3348 = vst [vmem:[#allocation2 + $0xb8] sm:$0xff] %v3220
    %3349 = vst [vmem:[#allocation2 + $0xc0] sm:$0xff] %v3221
    %3350 = vst [vmem:[#allocation2 + $0xc8] sm:$0xff] %v3222
    %3351 = vst [vmem:[#allocation2 + $0xd0] sm:$0xff] %v3223
    %3352 = vst [vmem:[#allocation2 + $0xd8] sm:$0xff] %v3224
    %3353 = vst [vmem:[#allocation2 + $0xe0] sm:$0xff] %v3225
    %3354 = vst [vmem:[#allocation2 + $0xe8] sm:$0xff] %v3226
    %3355 = vst [vmem:[#allocation2 + $0xf0] sm:$0xff] %v3227
    %3356 = vst [vmem:[#allocation2 + $0xf8] sm:$0xff] %v3228
    %3357 = vst [vmem:[#allocation2 + $0x100] sm:$0xff] %v3229
    %3358 = vst [vmem:[#allocation2 + $0x108] sm:$0xff] %v3230
    %3359 = vst [vmem:[#allocation2 + $0x110] sm:$0xff] %v3231
    %3360 = vst [vmem:[#allocation2 + $0x118] sm:$0xff] %v3232
    %3361 = vst [vmem:[#allocation2 + $0x120] sm:$0xff] %v3233
    %3362 = vst [vmem:[#allocation2 + $0x128] sm:$0xff] %v3234
    %3363 = vst [vmem:[#allocation2 + $0x130] sm:$0xff] %v3235
    %3364 = vst [vmem:[#allocation2 + $0x138] sm:$0xff] %v3236
    %3365 = vst [vmem:[#allocation2 + $0x140] sm:$0xff] %v3237
    %3366 = vst [vmem:[#allocation2 + $0x148] sm:$0xff] %v3238
    %3367 = vst [vmem:[#allocation2 + $0x150] sm:$0xff] %v3239
    %3368 = vst [vmem:[#allocation2 + $0x158] sm:$0xff] %v3240
    %3369 = vst [vmem:[#allocation2 + $0x160] sm:$0xff] %v3241
    %3370 = vst [vmem:[#allocation2 + $0x168] sm:$0xff] %v3242
    %3371 = vst [vmem:[#allocation2 + $0x170] sm:$0xff] %v3243
    %3372 = vst [vmem:[#allocation2 + $0x178] sm:$0xff] %v3244
    %3373 = vst [vmem:[#allocation2 + $0x180] sm:$0xff] %v3245
    %3374 = vst [vmem:[#allocation2 + $0x188] sm:$0xff] %v3246
    %3375 = vst [vmem:[#allocation2 + $0x190] sm:$0xff] %v3247
    %3376 = vst [vmem:[#allocation2 + $0x198] sm:$0xff] %v3248
    %3377 = vst [vmem:[#allocation2 + $0x1a0] sm:$0xff] %v3249
    %3378 = vst [vmem:[#allocation2 + $0x1a8] sm:$0xff] %v3250
    %3379 = vst [vmem:[#allocation2 + $0x1b0] sm:$0xff] %v3251
    %3380 = vst [vmem:[#allocation2 + $0x1b8] sm:$0xff] %v3252
    %3381 = vst [vmem:[#allocation2 + $0x1c0] sm:$0xff] %v3253
    %3382 = vst [vmem:[#allocation2 + $0x1c8] sm:$0xff] %v3254
    %3383 = vst [vmem:[#allocation2 + $0x1d0] sm:$0xff] %v3255
    %3384 = vst [vmem:[#allocation2 + $0x1d8] sm:$0xff] %v3256
    %3385 = vst [vmem:[#allocation2 + $0x1e0] sm:$0xff] %v3257
    %3386 = vst [vmem:[#allocation2 + $0x1e8] sm:$0xff] %v3258
    %3387 = vst [vmem:[#allocation2 + $0x1f0] sm:$0xff] %v3259
    %3388 = vst [vmem:[#allocation2 + $0x1f8] sm:$0xff] %v3260
    %3389 = vst [vmem:[#allocation2 + $0x200] sm:$0xff] %v3261
    %3390 = vst [vmem:[#allocation2 + $0x208] sm:$0xff] %v3262
    %3391 = vst [vmem:[#allocation2 + $0x210] sm:$0xff] %v3263
    %3392 = vst [vmem:[#allocation2 + $0x218] sm:$0xff] %v3264
    %3393 = vst [vmem:[#allocation2 + $0x220] sm:$0xff] %v3265
    %3394 = vst [vmem:[#allocation2 + $0x228] sm:$0xff] %v3266
    %3395 = vst [vmem:[#allocation2 + $0x230] sm:$0xff] %v3267
    %3396 = vst [vmem:[#allocation2 + $0x238] sm:$0xff] %v3268
    %3397 = vst [vmem:[#allocation2 + $0x240] sm:$0xff] %v3269
    %3398 = vst [vmem:[#allocation2 + $0x248] sm:$0xff] %v3270
    %3399 = vst [vmem:[#allocation2 + $0x250] sm:$0xff] %v3271
    %3400 = vst [vmem:[#allocation2 + $0x258] sm:$0xff] %v3272
    %3401 = vst [vmem:[#allocation2 + $0x260] sm:$0xff] %v3273
    %3402 = vst [vmem:[#allocation2 + $0x268] sm:$0xff] %v3274
    %3403 = vst [vmem:[#allocation2 + $0x270] sm:$0xff] %v3275
    %3404 = vst [vmem:[#allocation2 + $0x278] sm:$0xff] %v3276
    %3405 = vst [vmem:[#allocation2 + $0x280] sm:$0xff] %v3277
    %3406 = vst [vmem:[#allocation2 + $0x288] sm:$0xff] %v3278
    %3407 = vst [vmem:[#allocation2 + $0x290] sm:$0xff] %v3279
    %3408 = vst [vmem:[#allocation2 + $0x298] sm:$0xff] %v3280
    %3409 = vst [vmem:[#allocation2 + $0x2a0] sm:$0xff] %v3281
    %3410 = vst [vmem:[#allocation2 + $0x2a8] sm:$0xff] %v3282
    %3411 = vst [vmem:[#allocation2 + $0x2b0] sm:$0xff] %v3283
    %3412 = vst [vmem:[#allocation2 + $0x2b8] sm:$0xff] %v3284
    %3413 = vst [vmem:[#allocation2 + $0x2c0] sm:$0xff] %v3285
    %3414 = vst [vmem:[#allocation2 + $0x2c8] sm:$0xff] %v3286
    %3415 = vst [vmem:[#allocation2 + $0x2d0] sm:$0xff] %v3287
    %3416 = vst [vmem:[#allocation2 + $0x2d8] sm:$0xff] %v3288
    %3417 = vst [vmem:[#allocation2 + $0x2e0] sm:$0xff] %v3289
    %3418 = vst [vmem:[#allocation2 + $0x2e8] sm:$0xff] %v3290
    %3419 = vst [vmem:[#allocation2 + $0x2f0] sm:$0xff] %v3291
    %3420 = vst [vmem:[#allocation2 + $0x2f8] sm:$0xff] %v3292
    %3421 = vst [vmem:[#allocation2 + $0x300] sm:$0xff] %v3293
    %3422 = vst [vmem:[#allocation2 + $0x308] sm:$0xff] %v3294
    %3423 = vst [vmem:[#allocation2 + $0x310] sm:$0xff] %v3295
    %3424 = vst [vmem:[#allocation2 + $0x318] sm:$0xff] %v3296
    %3425 = vst [vmem:[#allocation2 + $0x320] sm:$0xff] %v3297
    %3426 = vst [vmem:[#allocation2 + $0x328] sm:$0xff] %v3298
    %3427 = vst [vmem:[#allocation2 + $0x330] sm:$0xff] %v3299
    %3428 = vst [vmem:[#allocation2 + $0x338] sm:$0xff] %v3300
    %3429 = vst [vmem:[#allocation2 + $0x340] sm:$0xff] %v3301
    %3430 = vst [vmem:[#allocation2 + $0x348] sm:$0xff] %v3302
    %3431 = vst [vmem:[#allocation2 + $0x350] sm:$0xff] %v3303
    %3432 = vst [vmem:[#allocation2 + $0x358] sm:$0xff] %v3304
    %3433 = vst [vmem:[#allocation2 + $0x360] sm:$0xff] %v3305
    %3434 = vst [vmem:[#allocation2 + $0x368] sm:$0xff] %v3306
    %3435 = vst [vmem:[#allocation2 + $0x370] sm:$0xff] %v3307
    %3436 = vst [vmem:[#allocation2 + $0x378] sm:$0xff] %v3308
    %3437 = vst [vmem:[#allocation2 + $0x380] sm:$0xff] %v3309
    %3438 = vst [vmem:[#allocation2 + $0x388] sm:$0xff] %v3310
    %3439 = vst [vmem:[#allocation2 + $0x390] sm:$0xff] %v3311
    %3440 = vst [vmem:[#allocation2 + $0x398] sm:$0xff] %v3312
    %3441 = vst [vmem:[#allocation2 + $0x3a0] sm:$0xff] %v3313
    %3442 = vst [vmem:[#allocation2 + $0x3a8] sm:$0xff] %v3314
    %3443 = vst [vmem:[#allocation2 + $0x3b0] sm:$0xff] %v3315
    %3444 = vst [vmem:[#allocation2 + $0x3b8] sm:$0xff] %v3316
    %3445 = vst [vmem:[#allocation2 + $0x3c0] sm:$0xff] %v3317
    %3446 = vst [vmem:[#allocation2 + $0x3c8] sm:$0xff] %v3318
    %3447 = vst [vmem:[#allocation2 + $0x3d0] sm:$0xff] %v3319
    %3448 = vst [vmem:[#allocation2 + $0x3d8] sm:$0xff] %v3320
    %3449 = vst [vmem:[#allocation2 + $0x3e0] sm:$0xff] %v3321
    %3450 = vst [vmem:[#allocation2 + $0x3e8] sm:$0xff] %v3322
    %3451 = vst [vmem:[#allocation2 + $0x3f0] sm:$0xff] %v3323
    %3452 = vst [vmem:[#allocation2 + $0x3f8] sm:$0xff] %v3324
    %s3453 = scalar_lea.vmem %s0, 12
    %v3454 = vld [vmem:[%s3453] sm:$0xf]
    %v3455 = vld [vmem:[%s3453 + $0x4] sm:$0xf]
    %v3456 = vld [vmem:[%s3453 + $0xc] sm:$0xf]
    %v3457 = vld [vmem:[%s3453 + $0x10] sm:$0xf]
    %v3458 = vld [vmem:[%s3453 + $0x18] sm:$0xf]
    %v3459 = vld [vmem:[%s3453 + $0x1c] sm:$0xf]
    %v3460 = vld [vmem:[%s3453 + $0x24] sm:$0xf]
    %v3461 = vld [vmem:[%s3453 + $0x28] sm:$0xf]
    %v3462 = vld [vmem:[%s3453 + $0x30] sm:$0xf]
    %v3463 = vld [vmem:[%s3453 + $0x34] sm:$0xf]
    %v3464 = vld [vmem:[%s3453 + $0x3c] sm:$0xf]
    %v3465 = vld [vmem:[%s3453 + $0x40] sm:$0xf]
    %v3466 = vld [vmem:[%s3453 + $0x48] sm:$0xf]
    %v3467 = vld [vmem:[%s3453 + $0x4c] sm:$0xf]
    %v3468 = vld [vmem:[%s3453 + $0x54] sm:$0xf]
    %v3469 = vld [vmem:[%s3453 + $0x58] sm:$0xf]
    %s3470 = scalar_lea.vmem %s0, 132
    %v3471 = vld [vmem:[%s3470] sm:$0xf]
    %v3472 = vld [vmem:[%s3470 + $0x4] sm:$0xf]
    %v3473 = vld [vmem:[%s3470 + $0xc] sm:$0xf]
    %v3474 = vld [vmem:[%s3470 + $0x10] sm:$0xf]
    %v3475 = vld [vmem:[%s3470 + $0x18] sm:$0xf]
    %v3476 = vld [vmem:[%s3470 + $0x1c] sm:$0xf]
    %v3477 = vld [vmem:[%s3470 + $0x24] sm:$0xf]
    %v3478 = vld [vmem:[%s3470 + $0x28] sm:$0xf]
    %v3479 = vld [vmem:[%s3470 + $0x30] sm:$0xf]
    %v3480 = vld [vmem:[%s3470 + $0x34] sm:$0xf]
    %v3481 = vld [vmem:[%s3470 + $0x3c] sm:$0xf]
    %v3482 = vld [vmem:[%s3470 + $0x40] sm:$0xf]
    %v3483 = vld [vmem:[%s3470 + $0x48] sm:$0xf]
    %v3484 = vld [vmem:[%s3470 + $0x4c] sm:$0xf]
    %v3485 = vld [vmem:[%s3470 + $0x54] sm:$0xf]
    %v3486 = vld [vmem:[%s3470 + $0x58] sm:$0xf]
    %v3503 = vunpack.c.l.b16 %v3454
    %v3504 = vunpack.c.l.b16 %v3455
    %v3505 = vunpack.c.l.b16 %v3456
    %v3506 = vunpack.c.l.b16 %v3457
    %v3507 = vunpack.c.l.b16 %v3458
    %v3508 = vunpack.c.l.b16 %v3459
    %v3509 = vunpack.c.l.b16 %v3460
    %v3510 = vunpack.c.l.b16 %v3461
    %v3511 = vunpack.c.l.b16 %v3462
    %v3512 = vunpack.c.l.b16 %v3463
    %v3513 = vunpack.c.l.b16 %v3464
    %v3514 = vunpack.c.l.b16 %v3465
    %v3515 = vunpack.c.l.b16 %v3466
    %v3516 = vunpack.c.l.b16 %v3467
    %v3517 = vunpack.c.l.b16 %v3468
    %v3518 = vunpack.c.l.b16 %v3469
    %v3519 = vpack.c.b16 %v3504, %v3503
    %v3520 = vpack.c.b16 %v3506, %v3505
    %v3521 = vpack.c.b16 %v3508, %v3507
    %v3522 = vpack.c.b16 %v3510, %v3509
    %v3523 = vpack.c.b16 %v3512, %v3511
    %v3524 = vpack.c.b16 %v3514, %v3513
    %v3525 = vpack.c.b16 %v3516, %v3515
    %v3526 = vpack.c.b16 %v3518, %v3517
    %v3543 = vunpack.c.l.b16 %v3471
    %v3544 = vunpack.c.l.b16 %v3472
    %v3545 = vunpack.c.l.b16 %v3473
    %v3546 = vunpack.c.l.b16 %v3474
    %v3547 = vunpack.c.l.b16 %v3475
    %v3548 = vunpack.c.l.b16 %v3476
    %v3549 = vunpack.c.l.b16 %v3477
    %v3550 = vunpack.c.l.b16 %v3478
    %v3551 = vunpack.c.l.b16 %v3479
    %v3552 = vunpack.c.l.b16 %v3480
    %v3553 = vunpack.c.l.b16 %v3481
    %v3554 = vunpack.c.l.b16 %v3482
    %v3555 = vunpack.c.l.b16 %v3483
    %v3556 = vunpack.c.l.b16 %v3484
    %v3557 = vunpack.c.l.b16 %v3485
    %v3558 = vunpack.c.l.b16 %v3486
    %v3559 = vpack.c.b16 %v3544, %v3543
    %v3560 = vpack.c.b16 %v3546, %v3545
    %v3561 = vpack.c.b16 %v3548, %v3547
    %v3562 = vpack.c.b16 %v3550, %v3549
    %v3563 = vpack.c.b16 %v3552, %v3551
    %v3564 = vpack.c.b16 %v3554, %v3553
    %v3565 = vpack.c.b16 %v3556, %v3555
    %v3566 = vpack.c.b16 %v3558, %v3557
    %s3567 = scalar_lea.vmem [#allocation3], 432
    %v3568 = vld [vmem:[%s3567] sm:$0xff]
    %v3569 = vld [vmem:[%s3567 + $0x8] sm:$0xff]
    %v3570 = vld [vmem:[%s3567 + $0x10] sm:$0xff]
    %v3571 = vld [vmem:[%s3567 + $0x18] sm:$0xff]
    %v3572 = vld [vmem:[%s3567 + $0x20] sm:$0xff]
    %v3573 = vld [vmem:[%s3567 + $0x28] sm:$0xff]
    %v3574 = vld [vmem:[%s3567 + $0x30] sm:$0xff]
    %v3575 = vld [vmem:[%s3567 + $0x38] sm:$0xff]
    %v3576 = vld [vmem:[%s3567 + $0x40] sm:$0xff]
    %v3577 = vld [vmem:[%s3567 + $0x48] sm:$0xff]
    %v3578 = vld [vmem:[%s3567 + $0x50] sm:$0xff]
    %v3579 = vld [vmem:[%s3567 + $0x58] sm:$0xff]
    %v3580 = vld [vmem:[%s3567 + $0x60] sm:$0xff]
    %v3581 = vld [vmem:[%s3567 + $0x68] sm:$0xff]
    %v3582 = vld [vmem:[%s3567 + $0x70] sm:$0xff]
    %v3583 = vld [vmem:[%s3567 + $0x78] sm:$0xff]
    %v3584 = vld [vmem:[%s3567 + $0x80] sm:$0xff]
    %v3585 = vld [vmem:[%s3567 + $0x88] sm:$0xff]
    %v3604 = vunpack.c.l.b16 %v3568
    %v3605 = vunpack.c.h.b16 %v3568
    %v3606 = vunpack.c.l.b16 %v3569
    %v3607 = vunpack.c.h.b16 %v3569
    %v3608 = vunpack.c.l.b16 %v3570
    %v3609 = vunpack.c.h.b16 %v3570
    %v3610 = vunpack.c.l.b16 %v3571
    %v3611 = vunpack.c.h.b16 %v3571
    %v3612 = vunpack.c.l.b16 %v3572
    %v3613 = vunpack.c.h.b16 %v3572
    %v3614 = vunpack.c.l.b16 %v3573
    %v3615 = vunpack.c.h.b16 %v3573
    %v3616 = vunpack.c.l.b16 %v3574
    %v3617 = vunpack.c.h.b16 %v3574
    %v3618 = vunpack.c.l.b16 %v3575
    %v3619 = vunpack.c.h.b16 %v3575
    %v3620 = vunpack.c.l.b16 %v3576
    %v3621 = vunpack.c.h.b16 %v3576
    %v3622 = vunpack.c.l.b16 %v3577
    %v3623 = vunpack.c.h.b16 %v3577
    %v3624 = vunpack.c.l.b16 %v3578
    %v3625 = vunpack.c.h.b16 %v3578
    %v3626 = vunpack.c.l.b16 %v3579
    %v3627 = vunpack.c.h.b16 %v3579
    %v3628 = vunpack.c.l.b16 %v3580
    %v3629 = vunpack.c.h.b16 %v3580
    %v3630 = vunpack.c.l.b16 %v3581
    %v3631 = vunpack.c.h.b16 %v3581
    %v3632 = vunpack.c.l.b16 %v3582
    %v3633 = vunpack.c.h.b16 %v3582
    %v3634 = vunpack.c.l.b16 %v3583
    %v3635 = vunpack.c.h.b16 %v3583
    %v3636 = vunpack.c.l.b16 %v3584
    %v3637 = vunpack.c.h.b16 %v3584
    %v3638 = vunpack.c.l.b16 %v3585
    %v3639 = vunpack.c.h.b16 %v3585
    %v3640 = vpack.c.b16 %v3608, %v3604
    %v3641 = vpack.c.b16 %v3609, %v3605
    %v3642 = vpack.c.b16 %v3610, %v3606
    %v3643 = vpack.c.b16 %v3611, %v3607
    %v3644 = vpack.c.b16 %v3616, %v3612
    %v3645 = vpack.c.b16 %v3617, %v3613
    %v3646 = vpack.c.b16 %v3618, %v3614
    %v3647 = vpack.c.b16 %v3619, %v3615
    %v3648 = vpack.c.b16 %v3624, %v3620
    %v3649 = vpack.c.b16 %v3625, %v3621
    %v3650 = vpack.c.b16 %v3626, %v3622
    %v3651 = vpack.c.b16 %v3627, %v3623
    %v3652 = vpack.c.b16 %v3632, %v3628
    %v3653 = vpack.c.b16 %v3633, %v3629
    %v3654 = vpack.c.b16 %v3634, %v3630
    %v3655 = vpack.c.b16 %v3635, %v3631
    %v3656 = vpack.c.b16 %v3636, %v3636
    %v3657 = vpack.c.b16 %v3637, %v3637
    %v3658 = vpack.c.b16 %v3638, %v3638
    %v3659 = vpack.c.b16 %v3639, %v3639
    %v3677 = vsel %vm257, %v3519, 0
    %v3680 = vsel %vm257, %v3520, 0
    %v3683 = vsel %vm257, %v3521, 0
    %v3686 = vsel %vm257, %v3522, 0
    %v3689 = vsel %vm257, %v3523, 0
    %v3692 = vsel %vm257, %v3524, 0
    %v3695 = vsel %vm257, %v3525, 0
    %v3698 = vsel %vm257, %v3526, 0
    %v3701 = vsel %vm257, %v3559, 0
    %v3704 = vsel %vm257, %v3560, 0
    %v3707 = vsel %vm257, %v3561, 0
    %v3710 = vsel %vm257, %v3562, 0
    %v3713 = vsel %vm257, %v3563, 0
    %v3716 = vsel %vm257, %v3564, 0
    %v3719 = vsel %vm257, %v3565, 0
    %v3722 = vsel %vm257, %v3566, 0
    %v3725 = vsel %vm306, %v3656, 0
    %v3728 = vsel %vm306, %v3657, 0
    %v3731 = vsel %vm306, %v3658, 0
    %v3734 = vsel %vm306, %v3659, 0
    %3736 = vmatprep.subr.bf16.mxu0 0
    %3737 = vmatpush1.bf16.msra.mxu0 0
    %3738 = vmatprep.subr.bf16.mxu0 0
    %3739 = vmatpush1.bf16.msra.mxu0 0
    %3740 = vmatprep.subr.bf16.mxu0 0
    %3741 = vmatpush1.bf16.msra.mxu0 0
    %3742 = vmatprep.subr.bf16.mxu0 %v3728
    %3743 = vmatpush1.bf16.msra.mxu0 %v3725
    %3744 = vmatprep.subr.bf16.mxu0 %v3653
    %3745 = vmatpush1.bf16.msra.mxu0 %v3652
    %3746 = vmatprep.subr.bf16.mxu0 %v3649
    %3747 = vmatpush1.bf16.msra.mxu0 %v3648
    %3748 = vmatprep.subr.bf16.mxu0 %v3645
    %3749 = vmatpush1.bf16.msra.mxu0 %v3644
    %3750 = vmatprep.subr.bf16.mxu0 %v3641
    %3751 = vmatpush1.bf16.msra.mxu0 %v3640
    %3752 = vmatprep.subr.bf16.mxu0 0
    %3753 = vmatpush2.bf16.msra.mxu0 0
    %3754 = vmatprep.subr.bf16.mxu0 0
    %3755 = vmatpush2.bf16.msra.mxu0 0
    %3756 = vmatprep.subr.bf16.mxu0 0
    %3757 = vmatpush2.bf16.msra.mxu0 0
    %3758 = vmatprep.subr.bf16.mxu0 0
    %3759 = vmatpush2.bf16.msra.mxu0 0
    %3760 = vmatprep.subr.bf16.mxu0 0
    %3761 = vmatpush2.bf16.msra.mxu0 0
    %3762 = vmatprep.subr.bf16.mxu0 0
    %3763 = vmatpush2.bf16.msra.mxu0 0
    %3764 = vmatprep.subr.bf16.mxu0 0
    %3765 = vmatpush2.bf16.msra.mxu0 0
    %3766 = vmatprep.subr.bf16.mxu0 0
    %3767 = vmatpush2.bf16.msra.mxu0 0
    %3768 = vmatprep.mubr.bf16.mxu0 0
    %3769 = vmatmul.mubr.bf16.gmra.mxu0 %v3677
    %v3770 = vpop.f32.mrf.mxu0
    %v3771 = vadd.f32 0.0, %v3770
    %v3772 = vpop.f32.mrf.mxu0
    %v3773 = vadd.f32 0.0, %v3772
    %v3774 = vpop.f32.mrf.mxu0
    %v3775 = vadd.f32 0.0, %v3774
    %v3776 = vpop.f32.mrf.mxu0
    %v3777 = vadd.f32 0.0, %v3776
    %3778 = vmatprep.mubr.bf16.mxu0 0
    %3779 = vmatmul.mubr.bf16.gmra.mxu0 %v3680
    %v3780 = vpop.f32.mrf.mxu0
    %v3781 = vadd.f32 0.0, %v3780
    %v3782 = vpop.f32.mrf.mxu0
    %v3783 = vadd.f32 0.0, %v3782
    %v3784 = vpop.f32.mrf.mxu0
    %v3785 = vadd.f32 0.0, %v3784
    %v3786 = vpop.f32.mrf.mxu0
    %v3787 = vadd.f32 0.0, %v3786
    %3788 = vmatprep.mubr.bf16.mxu0 0
    %3789 = vmatmul.mubr.bf16.gmra.mxu0 %v3683
    %v3790 = vpop.f32.mrf.mxu0
    %v3791 = vadd.f32 0.0, %v3790
    %v3792 = vpop.f32.mrf.mxu0
    %v3793 = vadd.f32 0.0, %v3792
    %v3794 = vpop.f32.mrf.mxu0
    %v3795 = vadd.f32 0.0, %v3794
    %v3796 = vpop.f32.mrf.mxu0
    %v3797 = vadd.f32 0.0, %v3796
    %3798 = vmatprep.mubr.bf16.mxu0 0
    %3799 = vmatmul.mubr.bf16.gmra.mxu0 %v3686
    %v3800 = vpop.f32.mrf.mxu0
    %v3801 = vadd.f32 0.0, %v3800
    %v3802 = vpop.f32.mrf.mxu0
    %v3803 = vadd.f32 0.0, %v3802
    %v3804 = vpop.f32.mrf.mxu0
    %v3805 = vadd.f32 0.0, %v3804
    %v3806 = vpop.f32.mrf.mxu0
    %v3807 = vadd.f32 0.0, %v3806
    %3808 = vmatprep.mubr.bf16.mxu0 0
    %3809 = vmatmul.mubr.bf16.gmra.mxu0 %v3689
    %v3810 = vpop.f32.mrf.mxu0
    %v3811 = vadd.f32 0.0, %v3810
    %v3812 = vpop.f32.mrf.mxu0
    %v3813 = vadd.f32 0.0, %v3812
    %v3814 = vpop.f32.mrf.mxu0
    %v3815 = vadd.f32 0.0, %v3814
    %v3816 = vpop.f32.mrf.mxu0
    %v3817 = vadd.f32 0.0, %v3816
    %3818 = vmatprep.mubr.bf16.mxu0 0
    %3819 = vmatmul.mubr.bf16.gmra.mxu0 %v3692
    %v3820 = vpop.f32.mrf.mxu0
    %v3821 = vadd.f32 0.0, %v3820
    %v3822 = vpop.f32.mrf.mxu0
    %v3823 = vadd.f32 0.0, %v3822
    %v3824 = vpop.f32.mrf.mxu0
    %v3825 = vadd.f32 0.0, %v3824
    %v3826 = vpop.f32.mrf.mxu0
    %v3827 = vadd.f32 0.0, %v3826
    %3828 = vmatprep.mubr.bf16.mxu0 0
    %3829 = vmatmul.mubr.bf16.gmra.mxu0 %v3695
    %v3830 = vpop.f32.mrf.mxu0
    %v3831 = vadd.f32 0.0, %v3830
    %v3832 = vpop.f32.mrf.mxu0
    %v3833 = vadd.f32 0.0, %v3832
    %v3834 = vpop.f32.mrf.mxu0
    %v3835 = vadd.f32 0.0, %v3834
    %v3836 = vpop.f32.mrf.mxu0
    %v3837 = vadd.f32 0.0, %v3836
    %3838 = vmatprep.mubr.bf16.mxu0 0
    %3839 = vmatmul.mubr.bf16.gmra.mxu0 %v3698
    %v3840 = vpop.f32.mrf.mxu0
    %v3841 = vadd.f32 0.0, %v3840
    %v3842 = vpop.f32.mrf.mxu0
    %v3843 = vadd.f32 0.0, %v3842
    %v3844 = vpop.f32.mrf.mxu0
    %v3845 = vadd.f32 0.0, %v3844
    %v3846 = vpop.f32.mrf.mxu0
    %v3847 = vadd.f32 0.0, %v3846
    %3848 = vmatprep.mubr.bf16.mxu0 0
    %3849 = vmatmul.mubr.bf16.gmra.mxu0 %v3701
    %v3850 = vpop.f32.mrf.mxu0
    %v3851 = vadd.f32 0.0, %v3850
    %v3852 = vpop.f32.mrf.mxu0
    %v3853 = vadd.f32 0.0, %v3852
    %v3854 = vpop.f32.mrf.mxu0
    %v3855 = vadd.f32 0.0, %v3854
    %v3856 = vpop.f32.mrf.mxu0
    %v3857 = vadd.f32 0.0, %v3856
    %3858 = vmatprep.mubr.bf16.mxu0 0
    %3859 = vmatmul.mubr.bf16.gmra.mxu0 %v3704
    %v3860 = vpop.f32.mrf.mxu0
    %v3861 = vadd.f32 0.0, %v3860
    %v3862 = vpop.f32.mrf.mxu0
    %v3863 = vadd.f32 0.0, %v3862
    %v3864 = vpop.f32.mrf.mxu0
    %v3865 = vadd.f32 0.0, %v3864
    %v3866 = vpop.f32.mrf.mxu0
    %v3867 = vadd.f32 0.0, %v3866
    %3868 = vmatprep.mubr.bf16.mxu0 0
    %3869 = vmatmul.mubr.bf16.gmra.mxu0 %v3707
    %v3870 = vpop.f32.mrf.mxu0
    %v3871 = vadd.f32 0.0, %v3870
    %v3872 = vpop.f32.mrf.mxu0
    %v3873 = vadd.f32 0.0, %v3872
    %v3874 = vpop.f32.mrf.mxu0
    %v3875 = vadd.f32 0.0, %v3874
    %v3876 = vpop.f32.mrf.mxu0
    %v3877 = vadd.f32 0.0, %v3876
    %3878 = vmatprep.mubr.bf16.mxu0 0
    %3879 = vmatmul.mubr.bf16.gmra.mxu0 %v3710
    %v3880 = vpop.f32.mrf.mxu0
    %v3881 = vadd.f32 0.0, %v3880
    %v3882 = vpop.f32.mrf.mxu0
    %v3883 = vadd.f32 0.0, %v3882
    %v3884 = vpop.f32.mrf.mxu0
    %v3885 = vadd.f32 0.0, %v3884
    %v3886 = vpop.f32.mrf.mxu0
    %v3887 = vadd.f32 0.0, %v3886
    %3888 = vmatprep.mubr.bf16.mxu0 0
    %3889 = vmatmul.mubr.bf16.gmra.mxu0 %v3713
    %v3890 = vpop.f32.mrf.mxu0
    %v3891 = vadd.f32 0.0, %v3890
    %v3892 = vpop.f32.mrf.mxu0
    %v3893 = vadd.f32 0.0, %v3892
    %v3894 = vpop.f32.mrf.mxu0
    %v3895 = vadd.f32 0.0, %v3894
    %v3896 = vpop.f32.mrf.mxu0
    %v3897 = vadd.f32 0.0, %v3896
    %3898 = vmatprep.mubr.bf16.mxu0 0
    %3899 = vmatmul.mubr.bf16.gmra.mxu0 %v3716
    %v3900 = vpop.f32.mrf.mxu0
    %v3901 = vadd.f32 0.0, %v3900
    %v3902 = vpop.f32.mrf.mxu0
    %v3903 = vadd.f32 0.0, %v3902
    %v3904 = vpop.f32.mrf.mxu0
    %v3905 = vadd.f32 0.0, %v3904
    %v3906 = vpop.f32.mrf.mxu0
    %v3907 = vadd.f32 0.0, %v3906
    %3908 = vmatprep.mubr.bf16.mxu0 0
    %3909 = vmatmul.mubr.bf16.gmra.mxu0 %v3719
    %v3910 = vpop.f32.mrf.mxu0
    %v3911 = vadd.f32 0.0, %v3910
    %v3912 = vpop.f32.mrf.mxu0
    %v3913 = vadd.f32 0.0, %v3912
    %v3914 = vpop.f32.mrf.mxu0
    %v3915 = vadd.f32 0.0, %v3914
    %v3916 = vpop.f32.mrf.mxu0
    %v3917 = vadd.f32 0.0, %v3916
    %3918 = vmatprep.mubr.bf16.mxu0 0
    %3919 = vmatmul.mubr.bf16.gmra.mxu0 %v3722
    %v3920 = vpop.f32.mrf.mxu0
    %v3921 = vadd.f32 0.0, %v3920
    %v3922 = vpop.f32.mrf.mxu0
    %v3923 = vadd.f32 0.0, %v3922
    %v3924 = vpop.f32.mrf.mxu0
    %v3925 = vadd.f32 0.0, %v3924
    %v3926 = vpop.f32.mrf.mxu0
    %v3927 = vadd.f32 0.0, %v3926
    %3928 = vdwg.mxu0
    %3929 = vmatprep.subr.bf16.mxu0 0
    %3930 = vmatpush1.bf16.msra.mxu0 0
    %3931 = vmatprep.subr.bf16.mxu0 0
    %3932 = vmatpush1.bf16.msra.mxu0 0
    %3933 = vmatprep.subr.bf16.mxu0 0
    %3934 = vmatpush1.bf16.msra.mxu0 0
    %3935 = vmatprep.subr.bf16.mxu0 %v3734
    %3936 = vmatpush1.bf16.msra.mxu0 %v3731
    %3937 = vmatprep.subr.bf16.mxu0 %v3655
    %3938 = vmatpush1.bf16.msra.mxu0 %v3654
    %3939 = vmatprep.subr.bf16.mxu0 %v3651
    %3940 = vmatpush1.bf16.msra.mxu0 %v3650
    %3941 = vmatprep.subr.bf16.mxu0 %v3647
    %3942 = vmatpush1.bf16.msra.mxu0 %v3646
    %3943 = vmatprep.subr.bf16.mxu0 %v3643
    %3944 = vmatpush1.bf16.msra.mxu0 %v3642
    %3945 = vmatprep.subr.bf16.mxu0 0
    %3946 = vmatpush2.bf16.msra.mxu0 0
    %3947 = vmatprep.subr.bf16.mxu0 0
    %3948 = vmatpush2.bf16.msra.mxu0 0
    %3949 = vmatprep.subr.bf16.mxu0 0
    %3950 = vmatpush2.bf16.msra.mxu0 0
    %3951 = vmatprep.subr.bf16.mxu0 0
    %3952 = vmatpush2.bf16.msra.mxu0 0
    %3953 = vmatprep.subr.bf16.mxu0 0
    %3954 = vmatpush2.bf16.msra.mxu0 0
    %3955 = vmatprep.subr.bf16.mxu0 0
    %3956 = vmatpush2.bf16.msra.mxu0 0
    %3957 = vmatprep.subr.bf16.mxu0 0
    %3958 = vmatpush2.bf16.msra.mxu0 0
    %3959 = vmatprep.subr.bf16.mxu0 0
    %3960 = vmatpush2.bf16.msra.mxu0 0
    %3961 = vmatprep.mubr.bf16.mxu0 0
    %3962 = vmatmul.mubr.bf16.gmra.mxu0 %v3677
    %v3963 = vpop.f32.mrf.mxu0
    %v3964 = vadd.f32 0.0, %v3963
    %v3965 = vpop.f32.mrf.mxu0
    %v3966 = vadd.f32 0.0, %v3965
    %v3967 = vpop.f32.mrf.mxu0
    %v3968 = vadd.f32 0.0, %v3967
    %v3969 = vpop.f32.mrf.mxu0
    %v3970 = vadd.f32 0.0, %v3969
    %3971 = vmatprep.mubr.bf16.mxu0 0
    %3972 = vmatmul.mubr.bf16.gmra.mxu0 %v3680
    %v3973 = vpop.f32.mrf.mxu0
    %v3974 = vadd.f32 0.0, %v3973
    %v3975 = vpop.f32.mrf.mxu0
    %v3976 = vadd.f32 0.0, %v3975
    %v3977 = vpop.f32.mrf.mxu0
    %v3978 = vadd.f32 0.0, %v3977
    %v3979 = vpop.f32.mrf.mxu0
    %v3980 = vadd.f32 0.0, %v3979
    %3981 = vmatprep.mubr.bf16.mxu0 0
    %3982 = vmatmul.mubr.bf16.gmra.mxu0 %v3683
    %v3983 = vpop.f32.mrf.mxu0
    %v3984 = vadd.f32 0.0, %v3983
    %v3985 = vpop.f32.mrf.mxu0
    %v3986 = vadd.f32 0.0, %v3985
    %v3987 = vpop.f32.mrf.mxu0
    %v3988 = vadd.f32 0.0, %v3987
    %v3989 = vpop.f32.mrf.mxu0
    %v3990 = vadd.f32 0.0, %v3989
    %3991 = vmatprep.mubr.bf16.mxu0 0
    %3992 = vmatmul.mubr.bf16.gmra.mxu0 %v3686
    %v3993 = vpop.f32.mrf.mxu0
    %v3994 = vadd.f32 0.0, %v3993
    %v3995 = vpop.f32.mrf.mxu0
    %v3996 = vadd.f32 0.0, %v3995
    %v3997 = vpop.f32.mrf.mxu0
    %v3998 = vadd.f32 0.0, %v3997
    %v3999 = vpop.f32.mrf.mxu0
    %v4000 = vadd.f32 0.0, %v3999
    %4001 = vmatprep.mubr.bf16.mxu0 0
    %4002 = vmatmul.mubr.bf16.gmra.mxu0 %v3689
    %v4003 = vpop.f32.mrf.mxu0
    %v4004 = vadd.f32 0.0, %v4003
    %v4005 = vpop.f32.mrf.mxu0
    %v4006 = vadd.f32 0.0, %v4005
    %v4007 = vpop.f32.mrf.mxu0
    %v4008 = vadd.f32 0.0, %v4007
    %v4009 = vpop.f32.mrf.mxu0
    %v4010 = vadd.f32 0.0, %v4009
    %4011 = vmatprep.mubr.bf16.mxu0 0
    %4012 = vmatmul.mubr.bf16.gmra.mxu0 %v3692
    %v4013 = vpop.f32.mrf.mxu0
    %v4014 = vadd.f32 0.0, %v4013
    %v4015 = vpop.f32.mrf.mxu0
    %v4016 = vadd.f32 0.0, %v4015
    %v4017 = vpop.f32.mrf.mxu0
    %v4018 = vadd.f32 0.0, %v4017
    %v4019 = vpop.f32.mrf.mxu0
    %v4020 = vadd.f32 0.0, %v4019
    %4021 = vmatprep.mubr.bf16.mxu0 0
    %4022 = vmatmul.mubr.bf16.gmra.mxu0 %v3695
    %v4023 = vpop.f32.mrf.mxu0
    %v4024 = vadd.f32 0.0, %v4023
    %v4025 = vpop.f32.mrf.mxu0
    %v4026 = vadd.f32 0.0, %v4025
    %v4027 = vpop.f32.mrf.mxu0
    %v4028 = vadd.f32 0.0, %v4027
    %v4029 = vpop.f32.mrf.mxu0
    %v4030 = vadd.f32 0.0, %v4029
    %4031 = vmatprep.mubr.bf16.mxu0 0
    %4032 = vmatmul.mubr.bf16.gmra.mxu0 %v3698
    %v4033 = vpop.f32.mrf.mxu0
    %v4034 = vadd.f32 0.0, %v4033
    %v4035 = vpop.f32.mrf.mxu0
    %v4036 = vadd.f32 0.0, %v4035
    %v4037 = vpop.f32.mrf.mxu0
    %v4038 = vadd.f32 0.0, %v4037
    %v4039 = vpop.f32.mrf.mxu0
    %v4040 = vadd.f32 0.0, %v4039
    %4041 = vmatprep.mubr.bf16.mxu0 0
    %4042 = vmatmul.mubr.bf16.gmra.mxu0 %v3701
    %v4043 = vpop.f32.mrf.mxu0
    %v4044 = vadd.f32 0.0, %v4043
    %v4045 = vpop.f32.mrf.mxu0
    %v4046 = vadd.f32 0.0, %v4045
    %v4047 = vpop.f32.mrf.mxu0
    %v4048 = vadd.f32 0.0, %v4047
    %v4049 = vpop.f32.mrf.mxu0
    %v4050 = vadd.f32 0.0, %v4049
    %4051 = vmatprep.mubr.bf16.mxu0 0
    %4052 = vmatmul.mubr.bf16.gmra.mxu0 %v3704
    %v4053 = vpop.f32.mrf.mxu0
    %v4054 = vadd.f32 0.0, %v4053
    %v4055 = vpop.f32.mrf.mxu0
    %v4056 = vadd.f32 0.0, %v4055
    %v4057 = vpop.f32.mrf.mxu0
    %v4058 = vadd.f32 0.0, %v4057
    %v4059 = vpop.f32.mrf.mxu0
    %v4060 = vadd.f32 0.0, %v4059
    %4061 = vmatprep.mubr.bf16.mxu0 0
    %4062 = vmatmul.mubr.bf16.gmra.mxu0 %v3707
    %v4063 = vpop.f32.mrf.mxu0
    %v4064 = vadd.f32 0.0, %v4063
    %v4065 = vpop.f32.mrf.mxu0
    %v4066 = vadd.f32 0.0, %v4065
    %v4067 = vpop.f32.mrf.mxu0
    %v4068 = vadd.f32 0.0, %v4067
    %v4069 = vpop.f32.mrf.mxu0
    %v4070 = vadd.f32 0.0, %v4069
    %4071 = vmatprep.mubr.bf16.mxu0 0
    %4072 = vmatmul.mubr.bf16.gmra.mxu0 %v3710
    %v4073 = vpop.f32.mrf.mxu0
    %v4074 = vadd.f32 0.0, %v4073
    %v4075 = vpop.f32.mrf.mxu0
    %v4076 = vadd.f32 0.0, %v4075
    %v4077 = vpop.f32.mrf.mxu0
    %v4078 = vadd.f32 0.0, %v4077
    %v4079 = vpop.f32.mrf.mxu0
    %v4080 = vadd.f32 0.0, %v4079
    %4081 = vmatprep.mubr.bf16.mxu0 0
    %4082 = vmatmul.mubr.bf16.gmra.mxu0 %v3713
    %v4083 = vpop.f32.mrf.mxu0
    %v4084 = vadd.f32 0.0, %v4083
    %v4085 = vpop.f32.mrf.mxu0
    %v4086 = vadd.f32 0.0, %v4085
    %v4087 = vpop.f32.mrf.mxu0
    %v4088 = vadd.f32 0.0, %v4087
    %v4089 = vpop.f32.mrf.mxu0
    %v4090 = vadd.f32 0.0, %v4089
    %4091 = vmatprep.mubr.bf16.mxu0 0
    %4092 = vmatmul.mubr.bf16.gmra.mxu0 %v3716
    %v4093 = vpop.f32.mrf.mxu0
    %v4094 = vadd.f32 0.0, %v4093
    %v4095 = vpop.f32.mrf.mxu0
    %v4096 = vadd.f32 0.0, %v4095
    %v4097 = vpop.f32.mrf.mxu0
    %v4098 = vadd.f32 0.0, %v4097
    %v4099 = vpop.f32.mrf.mxu0
    %v4100 = vadd.f32 0.0, %v4099
    %4101 = vmatprep.mubr.bf16.mxu0 0
    %4102 = vmatmul.mubr.bf16.gmra.mxu0 %v3719
    %v4103 = vpop.f32.mrf.mxu0
    %v4104 = vadd.f32 0.0, %v4103
    %v4105 = vpop.f32.mrf.mxu0
    %v4106 = vadd.f32 0.0, %v4105
    %v4107 = vpop.f32.mrf.mxu0
    %v4108 = vadd.f32 0.0, %v4107
    %v4109 = vpop.f32.mrf.mxu0
    %v4110 = vadd.f32 0.0, %v4109
    %4111 = vmatprep.mubr.bf16.mxu0 0
    %4112 = vmatmul.mubr.bf16.gmra.mxu0 %v3722
    %v4113 = vpop.f32.mrf.mxu0
    %v4114 = vadd.f32 0.0, %v4113
    %v4115 = vpop.f32.mrf.mxu0
    %v4116 = vadd.f32 0.0, %v4115
    %v4117 = vpop.f32.mrf.mxu0
    %v4118 = vadd.f32 0.0, %v4117
    %v4119 = vpop.f32.mrf.mxu0
    %v4120 = vadd.f32 0.0, %v4119
    %4121 = vdwg.mxu0
    %v4122 = vld [vmem:[#allocation2] sm:$0xff]
    %v4123 = vld [vmem:[#allocation2 + $0x8] sm:$0xff]
    %v4124 = vld [vmem:[#allocation2 + $0x10] sm:$0xff]
    %v4125 = vld [vmem:[#allocation2 + $0x18] sm:$0xff]
    %v4126 = vld [vmem:[#allocation2 + $0x20] sm:$0xff]
    %v4127 = vld [vmem:[#allocation2 + $0x28] sm:$0xff]
    %v4128 = vld [vmem:[#allocation2 + $0x30] sm:$0xff]
    %v4129 = vld [vmem:[#allocation2 + $0x38] sm:$0xff]
    %v4130 = vld [vmem:[#allocation2 + $0x40] sm:$0xff]
    %v4131 = vld [vmem:[#allocation2 + $0x48] sm:$0xff]
    %v4132 = vld [vmem:[#allocation2 + $0x50] sm:$0xff]
    %v4133 = vld [vmem:[#allocation2 + $0x58] sm:$0xff]
    %v4134 = vld [vmem:[#allocation2 + $0x60] sm:$0xff]
    %v4135 = vld [vmem:[#allocation2 + $0x68] sm:$0xff]
    %v4136 = vld [vmem:[#allocation2 + $0x70] sm:$0xff]
    %v4137 = vld [vmem:[#allocation2 + $0x78] sm:$0xff]
    %v4138 = vld [vmem:[#allocation2 + $0x80] sm:$0xff]
    %v4139 = vld [vmem:[#allocation2 + $0x88] sm:$0xff]
    %v4140 = vld [vmem:[#allocation2 + $0x90] sm:$0xff]
    %v4141 = vld [vmem:[#allocation2 + $0x98] sm:$0xff]
    %v4142 = vld [vmem:[#allocation2 + $0xa0] sm:$0xff]
    %v4143 = vld [vmem:[#allocation2 + $0xa8] sm:$0xff]
    %v4144 = vld [vmem:[#allocation2 + $0xb0] sm:$0xff]
    %v4145 = vld [vmem:[#allocation2 + $0xb8] sm:$0xff]
    %v4146 = vld [vmem:[#allocation2 + $0xc0] sm:$0xff]
    %v4147 = vld [vmem:[#allocation2 + $0xc8] sm:$0xff]
    %v4148 = vld [vmem:[#allocation2 + $0xd0] sm:$0xff]
    %v4149 = vld [vmem:[#allocation2 + $0xd8] sm:$0xff]
    %v4150 = vld [vmem:[#allocation2 + $0xe0] sm:$0xff]
    %v4151 = vld [vmem:[#allocation2 + $0xe8] sm:$0xff]
    %v4152 = vld [vmem:[#allocation2 + $0xf0] sm:$0xff]
    %v4153 = vld [vmem:[#allocation2 + $0xf8] sm:$0xff]
    %v4154 = vld [vmem:[#allocation2 + $0x100] sm:$0xff]
    %v4155 = vld [vmem:[#allocation2 + $0x108] sm:$0xff]
    %v4156 = vld [vmem:[#allocation2 + $0x110] sm:$0xff]
    %v4157 = vld [vmem:[#allocation2 + $0x118] sm:$0xff]
    %v4158 = vld [vmem:[#allocation2 + $0x120] sm:$0xff]
    %v4159 = vld [vmem:[#allocation2 + $0x128] sm:$0xff]
    %v4160 = vld [vmem:[#allocation2 + $0x130] sm:$0xff]
    %v4161 = vld [vmem:[#allocation2 + $0x138] sm:$0xff]
    %v4162 = vld [vmem:[#allocation2 + $0x140] sm:$0xff]
    %v4163 = vld [vmem:[#allocation2 + $0x148] sm:$0xff]
    %v4164 = vld [vmem:[#allocation2 + $0x150] sm:$0xff]
    %v4165 = vld [vmem:[#allocation2 + $0x158] sm:$0xff]
    %v4166 = vld [vmem:[#allocation2 + $0x160] sm:$0xff]
    %v4167 = vld [vmem:[#allocation2 + $0x168] sm:$0xff]
    %v4168 = vld [vmem:[#allocation2 + $0x170] sm:$0xff]
    %v4169 = vld [vmem:[#allocation2 + $0x178] sm:$0xff]
    %v4170 = vld [vmem:[#allocation2 + $0x180] sm:$0xff]
    %v4171 = vld [vmem:[#allocation2 + $0x188] sm:$0xff]
    %v4172 = vld [vmem:[#allocation2 + $0x190] sm:$0xff]
    %v4173 = vld [vmem:[#allocation2 + $0x198] sm:$0xff]
    %v4174 = vld [vmem:[#allocation2 + $0x1a0] sm:$0xff]
    %v4175 = vld [vmem:[#allocation2 + $0x1a8] sm:$0xff]
    %v4176 = vld [vmem:[#allocation2 + $0x1b0] sm:$0xff]
    %v4177 = vld [vmem:[#allocation2 + $0x1b8] sm:$0xff]
    %v4178 = vld [vmem:[#allocation2 + $0x1c0] sm:$0xff]
    %v4179 = vld [vmem:[#allocation2 + $0x1c8] sm:$0xff]
    %v4180 = vld [vmem:[#allocation2 + $0x1d0] sm:$0xff]
    %v4181 = vld [vmem:[#allocation2 + $0x1d8] sm:$0xff]
    %v4182 = vld [vmem:[#allocation2 + $0x1e0] sm:$0xff]
    %v4183 = vld [vmem:[#allocation2 + $0x1e8] sm:$0xff]
    %v4184 = vld [vmem:[#allocation2 + $0x1f0] sm:$0xff]
    %v4185 = vld [vmem:[#allocation2 + $0x1f8] sm:$0xff]
    %v4186 = vld [vmem:[#allocation2 + $0x200] sm:$0xff]
    %v4187 = vld [vmem:[#allocation2 + $0x208] sm:$0xff]
    %v4188 = vld [vmem:[#allocation2 + $0x210] sm:$0xff]
    %v4189 = vld [vmem:[#allocation2 + $0x218] sm:$0xff]
    %v4190 = vld [vmem:[#allocation2 + $0x220] sm:$0xff]
    %v4191 = vld [vmem:[#allocation2 + $0x228] sm:$0xff]
    %v4192 = vld [vmem:[#allocation2 + $0x230] sm:$0xff]
    %v4193 = vld [vmem:[#allocation2 + $0x238] sm:$0xff]
    %v4194 = vld [vmem:[#allocation2 + $0x240] sm:$0xff]
    %v4195 = vld [vmem:[#allocation2 + $0x248] sm:$0xff]
    %v4196 = vld [vmem:[#allocation2 + $0x250] sm:$0xff]
    %v4197 = vld [vmem:[#allocation2 + $0x258] sm:$0xff]
    %v4198 = vld [vmem:[#allocation2 + $0x260] sm:$0xff]
    %v4199 = vld [vmem:[#allocation2 + $0x268] sm:$0xff]
    %v4200 = vld [vmem:[#allocation2 + $0x270] sm:$0xff]
    %v4201 = vld [vmem:[#allocation2 + $0x278] sm:$0xff]
    %v4202 = vld [vmem:[#allocation2 + $0x280] sm:$0xff]
    %v4203 = vld [vmem:[#allocation2 + $0x288] sm:$0xff]
    %v4204 = vld [vmem:[#allocation2 + $0x290] sm:$0xff]
    %v4205 = vld [vmem:[#allocation2 + $0x298] sm:$0xff]
    %v4206 = vld [vmem:[#allocation2 + $0x2a0] sm:$0xff]
    %v4207 = vld [vmem:[#allocation2 + $0x2a8] sm:$0xff]
    %v4208 = vld [vmem:[#allocation2 + $0x2b0] sm:$0xff]
    %v4209 = vld [vmem:[#allocation2 + $0x2b8] sm:$0xff]
    %v4210 = vld [vmem:[#allocation2 + $0x2c0] sm:$0xff]
    %v4211 = vld [vmem:[#allocation2 + $0x2c8] sm:$0xff]
    %v4212 = vld [vmem:[#allocation2 + $0x2d0] sm:$0xff]
    %v4213 = vld [vmem:[#allocation2 + $0x2d8] sm:$0xff]
    %v4214 = vld [vmem:[#allocation2 + $0x2e0] sm:$0xff]
    %v4215 = vld [vmem:[#allocation2 + $0x2e8] sm:$0xff]
    %v4216 = vld [vmem:[#allocation2 + $0x2f0] sm:$0xff]
    %v4217 = vld [vmem:[#allocation2 + $0x2f8] sm:$0xff]
    %v4218 = vld [vmem:[#allocation2 + $0x300] sm:$0xff]
    %v4219 = vld [vmem:[#allocation2 + $0x308] sm:$0xff]
    %v4220 = vld [vmem:[#allocation2 + $0x310] sm:$0xff]
    %v4221 = vld [vmem:[#allocation2 + $0x318] sm:$0xff]
    %v4222 = vld [vmem:[#allocation2 + $0x320] sm:$0xff]
    %v4223 = vld [vmem:[#allocation2 + $0x328] sm:$0xff]
    %v4224 = vld [vmem:[#allocation2 + $0x330] sm:$0xff]
    %v4225 = vld [vmem:[#allocation2 + $0x338] sm:$0xff]
    %v4226 = vld [vmem:[#allocation2 + $0x340] sm:$0xff]
    %v4227 = vld [vmem:[#allocation2 + $0x348] sm:$0xff]
    %v4228 = vld [vmem:[#allocation2 + $0x350] sm:$0xff]
    %v4229 = vld [vmem:[#allocation2 + $0x358] sm:$0xff]
    %v4230 = vld [vmem:[#allocation2 + $0x360] sm:$0xff]
    %v4231 = vld [vmem:[#allocation2 + $0x368] sm:$0xff]
    %v4232 = vld [vmem:[#allocation2 + $0x370] sm:$0xff]
    %v4233 = vld [vmem:[#allocation2 + $0x378] sm:$0xff]
    %v4234 = vld [vmem:[#allocation2 + $0x380] sm:$0xff]
    %v4235 = vld [vmem:[#allocation2 + $0x388] sm:$0xff]
    %v4236 = vld [vmem:[#allocation2 + $0x390] sm:$0xff]
    %v4237 = vld [vmem:[#allocation2 + $0x398] sm:$0xff]
    %v4238 = vld [vmem:[#allocation2 + $0x3a0] sm:$0xff]
    %v4239 = vld [vmem:[#allocation2 + $0x3a8] sm:$0xff]
    %v4240 = vld [vmem:[#allocation2 + $0x3b0] sm:$0xff]
    %v4241 = vld [vmem:[#allocation2 + $0x3b8] sm:$0xff]
    %v4242 = vld [vmem:[#allocation2 + $0x3c0] sm:$0xff]
    %v4243 = vld [vmem:[#allocation2 + $0x3c8] sm:$0xff]
    %v4244 = vld [vmem:[#allocation2 + $0x3d0] sm:$0xff]
    %v4245 = vld [vmem:[#allocation2 + $0x3d8] sm:$0xff]
    %v4246 = vld [vmem:[#allocation2 + $0x3e0] sm:$0xff]
    %v4247 = vld [vmem:[#allocation2 + $0x3e8] sm:$0xff]
    %v4248 = vld [vmem:[#allocation2 + $0x3f0] sm:$0xff]
    %v4249 = vld [vmem:[#allocation2 + $0x3f8] sm:$0xff]
    %v4250 = vadd.f32 %v4122, %v3771
    %v4251 = vadd.f32 %v4123, %v3773
    %v4252 = vadd.f32 %v4124, %v3964
    %v4253 = vadd.f32 %v4125, %v3966
    %v4254 = vadd.f32 %v4126, %v3775
    %v4255 = vadd.f32 %v4127, %v3777
    %v4256 = vadd.f32 %v4128, %v3968
    %v4257 = vadd.f32 %v4129, %v3970
    %v4258 = vadd.f32 %v4130, %v3781
    %v4259 = vadd.f32 %v4131, %v3783
    %v4260 = vadd.f32 %v4132, %v3974
    %v4261 = vadd.f32 %v4133, %v3976
    %v4262 = vadd.f32 %v4134, %v3785
    %v4263 = vadd.f32 %v4135, %v3787
    %v4264 = vadd.f32 %v4136, %v3978
    %v4265 = vadd.f32 %v4137, %v3980
    %v4266 = vadd.f32 %v4138, %v3791
    %v4267 = vadd.f32 %v4139, %v3793
    %v4268 = vadd.f32 %v4140, %v3984
    %v4269 = vadd.f32 %v4141, %v3986
    %v4270 = vadd.f32 %v4142, %v3795
    %v4271 = vadd.f32 %v4143, %v3797
    %v4272 = vadd.f32 %v4144, %v3988
    %v4273 = vadd.f32 %v4145, %v3990
    %v4274 = vadd.f32 %v4146, %v3801
    %v4275 = vadd.f32 %v4147, %v3803
    %v4276 = vadd.f32 %v4148, %v3994
    %v4277 = vadd.f32 %v4149, %v3996
    %v4278 = vadd.f32 %v4150, %v3805
    %v4279 = vadd.f32 %v4151, %v3807
    %v4280 = vadd.f32 %v4152, %v3998
    %v4281 = vadd.f32 %v4153, %v4000
    %v4282 = vadd.f32 %v4154, %v3811
    %v4283 = vadd.f32 %v4155, %v3813
    %v4284 = vadd.f32 %v4156, %v4004
    %v4285 = vadd.f32 %v4157, %v4006
    %v4286 = vadd.f32 %v4158, %v3815
    %v4287 = vadd.f32 %v4159, %v3817
    %v4288 = vadd.f32 %v4160, %v4008
    %v4289 = vadd.f32 %v4161, %v4010
    %v4290 = vadd.f32 %v4162, %v3821
    %v4291 = vadd.f32 %v4163, %v3823
    %v4292 = vadd.f32 %v4164, %v4014
    %v4293 = vadd.f32 %v4165, %v4016
    %v4294 = vadd.f32 %v4166, %v3825
    %v4295 = vadd.f32 %v4167, %v3827
    %v4296 = vadd.f32 %v4168, %v4018
    %v4297 = vadd.f32 %v4169, %v4020
    %v4298 = vadd.f32 %v4170, %v3831
    %v4299 = vadd.f32 %v4171, %v3833
    %v4300 = vadd.f32 %v4172, %v4024
    %v4301 = vadd.f32 %v4173, %v4026
    %v4302 = vadd.f32 %v4174, %v3835
    %v4303 = vadd.f32 %v4175, %v3837
    %v4304 = vadd.f32 %v4176, %v4028
    %v4305 = vadd.f32 %v4177, %v4030
    %v4306 = vadd.f32 %v4178, %v3841
    %v4307 = vadd.f32 %v4179, %v3843
    %v4308 = vadd.f32 %v4180, %v4034
    %v4309 = vadd.f32 %v4181, %v4036
    %v4310 = vadd.f32 %v4182, %v3845
    %v4311 = vadd.f32 %v4183, %v3847
    %v4312 = vadd.f32 %v4184, %v4038
    %v4313 = vadd.f32 %v4185, %v4040
    %v4314 = vadd.f32 %v4186, %v3851
    %v4315 = vadd.f32 %v4187, %v3853
    %v4316 = vadd.f32 %v4188, %v4044
    %v4317 = vadd.f32 %v4189, %v4046
    %v4318 = vadd.f32 %v4190, %v3855
    %v4319 = vadd.f32 %v4191, %v3857
    %v4320 = vadd.f32 %v4192, %v4048
    %v4321 = vadd.f32 %v4193, %v4050
    %v4322 = vadd.f32 %v4194, %v3861
    %v4323 = vadd.f32 %v4195, %v3863
    %v4324 = vadd.f32 %v4196, %v4054
    %v4325 = vadd.f32 %v4197, %v4056
    %v4326 = vadd.f32 %v4198, %v3865
    %v4327 = vadd.f32 %v4199, %v3867
    %v4328 = vadd.f32 %v4200, %v4058
    %v4329 = vadd.f32 %v4201, %v4060
    %v4330 = vadd.f32 %v4202, %v3871
    %v4331 = vadd.f32 %v4203, %v3873
    %v4332 = vadd.f32 %v4204, %v4064
    %v4333 = vadd.f32 %v4205, %v4066
    %v4334 = vadd.f32 %v4206, %v3875
    %v4335 = vadd.f32 %v4207, %v3877
    %v4336 = vadd.f32 %v4208, %v4068
    %v4337 = vadd.f32 %v4209, %v4070
    %v4338 = vadd.f32 %v4210, %v3881
    %v4339 = vadd.f32 %v4211, %v3883
    %v4340 = vadd.f32 %v4212, %v4074
    %v4341 = vadd.f32 %v4213, %v4076
    %v4342 = vadd.f32 %v4214, %v3885
    %v4343 = vadd.f32 %v4215, %v3887
    %v4344 = vadd.f32 %v4216, %v4078
    %v4345 = vadd.f32 %v4217, %v4080
    %v4346 = vadd.f32 %v4218, %v3891
    %v4347 = vadd.f32 %v4219, %v3893
    %v4348 = vadd.f32 %v4220, %v4084
    %v4349 = vadd.f32 %v4221, %v4086
    %v4350 = vadd.f32 %v4222, %v3895
    %v4351 = vadd.f32 %v4223, %v3897
    %v4352 = vadd.f32 %v4224, %v4088
    %v4353 = vadd.f32 %v4225, %v4090
    %v4354 = vadd.f32 %v4226, %v3901
    %v4355 = vadd.f32 %v4227, %v3903
    %v4356 = vadd.f32 %v4228, %v4094
    %v4357 = vadd.f32 %v4229, %v4096
    %v4358 = vadd.f32 %v4230, %v3905
    %v4359 = vadd.f32 %v4231, %v3907
    %v4360 = vadd.f32 %v4232, %v4098
    %v4361 = vadd.f32 %v4233, %v4100
    %v4362 = vadd.f32 %v4234, %v3911
    %v4363 = vadd.f32 %v4235, %v3913
    %v4364 = vadd.f32 %v4236, %v4104
    %v4365 = vadd.f32 %v4237, %v4106
    %v4366 = vadd.f32 %v4238, %v3915
    %v4367 = vadd.f32 %v4239, %v3917
    %v4368 = vadd.f32 %v4240, %v4108
    %v4369 = vadd.f32 %v4241, %v4110
    %v4370 = vadd.f32 %v4242, %v3921
    %v4371 = vadd.f32 %v4243, %v3923
    %v4372 = vadd.f32 %v4244, %v4114
    %v4373 = vadd.f32 %v4245, %v4116
    %v4374 = vadd.f32 %v4246, %v3925
    %v4375 = vadd.f32 %v4247, %v3927
    %v4376 = vadd.f32 %v4248, %v4118
    %v4377 = vadd.f32 %v4249, %v4120
    %4378 = vst [vmem:[#allocation2] sm:$0xff] %v4250
    %4379 = vst [vmem:[#allocation2 + $0x8] sm:$0xff] %v4251
    %4380 = vst [vmem:[#allocation2 + $0x10] sm:$0xff] %v4252
    %4381 = vst [vmem:[#allocation2 + $0x18] sm:$0xff] %v4253
    %4382 = vst [vmem:[#allocation2 + $0x20] sm:$0xff] %v4254
    %4383 = vst [vmem:[#allocation2 + $0x28] sm:$0xff] %v4255
    %4384 = vst [vmem:[#allocation2 + $0x30] sm:$0xff] %v4256
    %4385 = vst [vmem:[#allocation2 + $0x38] sm:$0xff] %v4257
    %4386 = vst [vmem:[#allocation2 + $0x40] sm:$0xff] %v4258
    %4387 = vst [vmem:[#allocation2 + $0x48] sm:$0xff] %v4259
    %4388 = vst [vmem:[#allocation2 + $0x50] sm:$0xff] %v4260
    %4389 = vst [vmem:[#allocation2 + $0x58] sm:$0xff] %v4261
    %4390 = vst [vmem:[#allocation2 + $0x60] sm:$0xff] %v4262
    %4391 = vst [vmem:[#allocation2 + $0x68] sm:$0xff] %v4263
    %4392 = vst [vmem:[#allocation2 + $0x70] sm:$0xff] %v4264
    %4393 = vst [vmem:[#allocation2 + $0x78] sm:$0xff] %v4265
    %4394 = vst [vmem:[#allocation2 + $0x80] sm:$0xff] %v4266
    %4395 = vst [vmem:[#allocation2 + $0x88] sm:$0xff] %v4267
    %4396 = vst [vmem:[#allocation2 + $0x90] sm:$0xff] %v4268
    %4397 = vst [vmem:[#allocation2 + $0x98] sm:$0xff] %v4269
    %4398 = vst [vmem:[#allocation2 + $0xa0] sm:$0xff] %v4270
    %4399 = vst [vmem:[#allocation2 + $0xa8] sm:$0xff] %v4271
    %4400 = vst [vmem:[#allocation2 + $0xb0] sm:$0xff] %v4272
    %4401 = vst [vmem:[#allocation2 + $0xb8] sm:$0xff] %v4273
    %4402 = vst [vmem:[#allocation2 + $0xc0] sm:$0xff] %v4274
    %4403 = vst [vmem:[#allocation2 + $0xc8] sm:$0xff] %v4275
    %4404 = vst [vmem:[#allocation2 + $0xd0] sm:$0xff] %v4276
    %4405 = vst [vmem:[#allocation2 + $0xd8] sm:$0xff] %v4277
    %4406 = vst [vmem:[#allocation2 + $0xe0] sm:$0xff] %v4278
    %4407 = vst [vmem:[#allocation2 + $0xe8] sm:$0xff] %v4279
    %4408 = vst [vmem:[#allocation2 + $0xf0] sm:$0xff] %v4280
    %4409 = vst [vmem:[#allocation2 + $0xf8] sm:$0xff] %v4281
    %4410 = vst [vmem:[#allocation2 + $0x100] sm:$0xff] %v4282
    %4411 = vst [vmem:[#allocation2 + $0x108] sm:$0xff] %v4283
    %4412 = vst [vmem:[#allocation2 + $0x110] sm:$0xff] %v4284
    %4413 = vst [vmem:[#allocation2 + $0x118] sm:$0xff] %v4285
    %4414 = vst [vmem:[#allocation2 + $0x120] sm:$0xff] %v4286
    %4415 = vst [vmem:[#allocation2 + $0x128] sm:$0xff] %v4287
    %4416 = vst [vmem:[#allocation2 + $0x130] sm:$0xff] %v4288
    %4417 = vst [vmem:[#allocation2 + $0x138] sm:$0xff] %v4289
    %4418 = vst [vmem:[#allocation2 + $0x140] sm:$0xff] %v4290
    %4419 = vst [vmem:[#allocation2 + $0x148] sm:$0xff] %v4291
    %4420 = vst [vmem:[#allocation2 + $0x150] sm:$0xff] %v4292
    %4421 = vst [vmem:[#allocation2 + $0x158] sm:$0xff] %v4293
    %4422 = vst [vmem:[#allocation2 + $0x160] sm:$0xff] %v4294
    %4423 = vst [vmem:[#allocation2 + $0x168] sm:$0xff] %v4295
    %4424 = vst [vmem:[#allocation2 + $0x170] sm:$0xff] %v4296
    %4425 = vst [vmem:[#allocation2 + $0x178] sm:$0xff] %v4297
    %4426 = vst [vmem:[#allocation2 + $0x180] sm:$0xff] %v4298
    %4427 = vst [vmem:[#allocation2 + $0x188] sm:$0xff] %v4299
    %4428 = vst [vmem:[#allocation2 + $0x190] sm:$0xff] %v4300
    %4429 = vst [vmem:[#allocation2 + $0x198] sm:$0xff] %v4301
    %4430 = vst [vmem:[#allocation2 + $0x1a0] sm:$0xff] %v4302
    %4431 = vst [vmem:[#allocation2 + $0x1a8] sm:$0xff] %v4303
    %4432 = vst [vmem:[#allocation2 + $0x1b0] sm:$0xff] %v4304
    %4433 = vst [vmem:[#allocation2 + $0x1b8] sm:$0xff] %v4305
    %4434 = vst [vmem:[#allocation2 + $0x1c0] sm:$0xff] %v4306
    %4435 = vst [vmem:[#allocation2 + $0x1c8] sm:$0xff] %v4307
    %4436 = vst [vmem:[#allocation2 + $0x1d0] sm:$0xff] %v4308
    %4437 = vst [vmem:[#allocation2 + $0x1d8] sm:$0xff] %v4309
    %4438 = vst [vmem:[#allocation2 + $0x1e0] sm:$0xff] %v4310
    %4439 = vst [vmem:[#allocation2 + $0x1e8] sm:$0xff] %v4311
    %4440 = vst [vmem:[#allocation2 + $0x1f0] sm:$0xff] %v4312
    %4441 = vst [vmem:[#allocation2 + $0x1f8] sm:$0xff] %v4313
    %4442 = vst [vmem:[#allocation2 + $0x200] sm:$0xff] %v4314
    %4443 = vst [vmem:[#allocation2 + $0x208] sm:$0xff] %v4315
    %4444 = vst [vmem:[#allocation2 + $0x210] sm:$0xff] %v4316
    %4445 = vst [vmem:[#allocation2 + $0x218] sm:$0xff] %v4317
    %4446 = vst [vmem:[#allocation2 + $0x220] sm:$0xff] %v4318
    %4447 = vst [vmem:[#allocation2 + $0x228] sm:$0xff] %v4319
    %4448 = vst [vmem:[#allocation2 + $0x230] sm:$0xff] %v4320
    %4449 = vst [vmem:[#allocation2 + $0x238] sm:$0xff] %v4321
    %4450 = vst [vmem:[#allocation2 + $0x240] sm:$0xff] %v4322
    %4451 = vst [vmem:[#allocation2 + $0x248] sm:$0xff] %v4323
    %4452 = vst [vmem:[#allocation2 + $0x250] sm:$0xff] %v4324
    %4453 = vst [vmem:[#allocation2 + $0x258] sm:$0xff] %v4325
    %4454 = vst [vmem:[#allocation2 + $0x260] sm:$0xff] %v4326
    %4455 = vst [vmem:[#allocation2 + $0x268] sm:$0xff] %v4327
    %4456 = vst [vmem:[#allocation2 + $0x270] sm:$0xff] %v4328
    %4457 = vst [vmem:[#allocation2 + $0x278] sm:$0xff] %v4329
    %4458 = vst [vmem:[#allocation2 + $0x280] sm:$0xff] %v4330
    %4459 = vst [vmem:[#allocation2 + $0x288] sm:$0xff] %v4331
    %4460 = vst [vmem:[#allocation2 + $0x290] sm:$0xff] %v4332
    %4461 = vst [vmem:[#allocation2 + $0x298] sm:$0xff] %v4333
    %4462 = vst [vmem:[#allocation2 + $0x2a0] sm:$0xff] %v4334
    %4463 = vst [vmem:[#allocation2 + $0x2a8] sm:$0xff] %v4335
    %4464 = vst [vmem:[#allocation2 + $0x2b0] sm:$0xff] %v4336
    %4465 = vst [vmem:[#allocation2 + $0x2b8] sm:$0xff] %v4337
    %4466 = vst [vmem:[#allocation2 + $0x2c0] sm:$0xff] %v4338
    %4467 = vst [vmem:[#allocation2 + $0x2c8] sm:$0xff] %v4339
    %4468 = vst [vmem:[#allocation2 + $0x2d0] sm:$0xff] %v4340
    %4469 = vst [vmem:[#allocation2 + $0x2d8] sm:$0xff] %v4341
    %4470 = vst [vmem:[#allocation2 + $0x2e0] sm:$0xff] %v4342
    %4471 = vst [vmem:[#allocation2 + $0x2e8] sm:$0xff] %v4343
    %4472 = vst [vmem:[#allocation2 + $0x2f0] sm:$0xff] %v4344
    %4473 = vst [vmem:[#allocation2 + $0x2f8] sm:$0xff] %v4345
    %4474 = vst [vmem:[#allocation2 + $0x300] sm:$0xff] %v4346
    %4475 = vst [vmem:[#allocation2 + $0x308] sm:$0xff] %v4347
    %4476 = vst [vmem:[#allocation2 + $0x310] sm:$0xff] %v4348
    %4477 = vst [vmem:[#allocation2 + $0x318] sm:$0xff] %v4349
    %4478 = vst [vmem:[#allocation2 + $0x320] sm:$0xff] %v4350
    %4479 = vst [vmem:[#allocation2 + $0x328] sm:$0xff] %v4351
    %4480 = vst [vmem:[#allocation2 + $0x330] sm:$0xff] %v4352
    %4481 = vst [vmem:[#allocation2 + $0x338] sm:$0xff] %v4353
    %4482 = vst [vmem:[#allocation2 + $0x340] sm:$0xff] %v4354
    %4483 = vst [vmem:[#allocation2 + $0x348] sm:$0xff] %v4355
    %4484 = vst [vmem:[#allocation2 + $0x350] sm:$0xff] %v4356
    %4485 = vst [vmem:[#allocation2 + $0x358] sm:$0xff] %v4357
    %4486 = vst [vmem:[#allocation2 + $0x360] sm:$0xff] %v4358
    %4487 = vst [vmem:[#allocation2 + $0x368] sm:$0xff] %v4359
    %4488 = vst [vmem:[#allocation2 + $0x370] sm:$0xff] %v4360
    %4489 = vst [vmem:[#allocation2 + $0x378] sm:$0xff] %v4361
    %4490 = vst [vmem:[#allocation2 + $0x380] sm:$0xff] %v4362
    %4491 = vst [vmem:[#allocation2 + $0x388] sm:$0xff] %v4363
    %4492 = vst [vmem:[#allocation2 + $0x390] sm:$0xff] %v4364
    %4493 = vst [vmem:[#allocation2 + $0x398] sm:$0xff] %v4365
    %4494 = vst [vmem:[#allocation2 + $0x3a0] sm:$0xff] %v4366
    %4495 = vst [vmem:[#allocation2 + $0x3a8] sm:$0xff] %v4367
    %4496 = vst [vmem:[#allocation2 + $0x3b0] sm:$0xff] %v4368
    %4497 = vst [vmem:[#allocation2 + $0x3b8] sm:$0xff] %v4369
    %4498 = vst [vmem:[#allocation2 + $0x3c0] sm:$0xff] %v4370
    %4499 = vst [vmem:[#allocation2 + $0x3c8] sm:$0xff] %v4371
    %4500 = vst [vmem:[#allocation2 + $0x3d0] sm:$0xff] %v4372
    %4501 = vst [vmem:[#allocation2 + $0x3d8] sm:$0xff] %v4373
    %4502 = vst [vmem:[#allocation2 + $0x3e0] sm:$0xff] %v4374
    %4503 = vst [vmem:[#allocation2 + $0x3e8] sm:$0xff] %v4375
    %4504 = vst [vmem:[#allocation2 + $0x3f0] sm:$0xff] %v4376
    %4505 = vst [vmem:[#allocation2 + $0x3f8] sm:$0xff] %v4377
    %v4506 = vld [vmem:[%s3453] sm:$0xf]
    %v4507 = vld [vmem:[%s3453 + $0x4] sm:$0xf]
    %v4508 = vld [vmem:[%s3453 + $0x8] sm:$0x1]
    %v4509 = vld [vmem:[%s3453 + $0xc] sm:$0xf]
    %v4510 = vld [vmem:[%s3453 + $0x10] sm:$0xf]
    %v4511 = vld [vmem:[%s3453 + $0x14] sm:$0x1]
    %v4512 = vld [vmem:[%s3453 + $0x18] sm:$0xf]
    %v4513 = vld [vmem:[%s3453 + $0x1c] sm:$0xf]
    %v4514 = vld [vmem:[%s3453 + $0x20] sm:$0x1]
    %v4515 = vld [vmem:[%s3453 + $0x24] sm:$0xf]
    %v4516 = vld [vmem:[%s3453 + $0x28] sm:$0xf]
    %v4517 = vld [vmem:[%s3453 + $0x2c] sm:$0x1]
    %v4518 = vld [vmem:[%s3453 + $0x30] sm:$0xf]
    %v4519 = vld [vmem:[%s3453 + $0x34] sm:$0xf]
    %v4520 = vld [vmem:[%s3453 + $0x38] sm:$0x1]
    %v4521 = vld [vmem:[%s3453 + $0x3c] sm:$0xf]
    %v4522 = vld [vmem:[%s3453 + $0x40] sm:$0xf]
    %v4523 = vld [vmem:[%s3453 + $0x44] sm:$0x1]
    %v4524 = vld [vmem:[%s3453 + $0x48] sm:$0xf]
    %v4525 = vld [vmem:[%s3453 + $0x4c] sm:$0xf]
    %v4526 = vld [vmem:[%s3453 + $0x50] sm:$0x1]
    %v4527 = vld [vmem:[%s3453 + $0x54] sm:$0xf]
    %v4528 = vld [vmem:[%s3453 + $0x58] sm:$0xf]
    %v4529 = vld [vmem:[%s3453 + $0x5c] sm:$0x1]
    %v4531 = vshrl.u32 %v4506, 16
    %v4533 = vrot.slane %v4531, 4
    %v4534 = vshll.u32 %v4506, 16
    %v4536 = vrot.slane %v4534, 5
    %v4537 = vor.u32 %v4533, %v4536
    %v4538 = vrot.slane %v4537, 4
    %v4540 = vshll.u32 %v4507, 16
    %v4542 = vrot.slane %v4540, 5
    %v4543 = vsel %vm859, %v4538, %v4542
    %v4544 = vshrl.u32 %v4507, 16
    %v4546 = vrot.slane %v4544, 4
    %v4547 = vor.u32 %v4546, %v4542
    %v4548 = vrot.slane %v4547, 4
    %v4550 = vshll.u32 %v4508, 16
    %v4552 = vrot.slane %v4550, 5
    %v4553 = vsel %vm859, %v4548, %v4552
    %v4555 = vshrl.u32 %v4509, 16
    %v4557 = vrot.slane %v4555, 4
    %v4558 = vshll.u32 %v4509, 16
    %v4560 = vrot.slane %v4558, 5
    %v4561 = vor.u32 %v4557, %v4560
    %v4562 = vrot.slane %v4561, 4
    %v4564 = vshll.u32 %v4510, 16
    %v4566 = vrot.slane %v4564, 5
    %v4567 = vsel %vm859, %v4562, %v4566
    %v4568 = vshrl.u32 %v4510, 16
    %v4570 = vrot.slane %v4568, 4
    %v4571 = vor.u32 %v4570, %v4566
    %v4572 = vrot.slane %v4571, 4
    %v4574 = vshll.u32 %v4511, 16
    %v4576 = vrot.slane %v4574, 5
    %v4577 = vsel %vm859, %v4572, %v4576
    %v4579 = vshrl.u32 %v4512, 16
    %v4581 = vrot.slane %v4579, 4
    %v4582 = vshll.u32 %v4512, 16
    %v4584 = vrot.slane %v4582, 5
    %v4585 = vor.u32 %v4581, %v4584
    %v4586 = vrot.slane %v4585, 4
    %v4588 = vshll.u32 %v4513, 16
    %v4590 = vrot.slane %v4588, 5
    %v4591 = vsel %vm859, %v4586, %v4590
    %v4592 = vshrl.u32 %v4513, 16
    %v4594 = vrot.slane %v4592, 4
    %v4595 = vor.u32 %v4594, %v4590
    %v4596 = vrot.slane %v4595, 4
    %v4598 = vshll.u32 %v4514, 16
    %v4600 = vrot.slane %v4598, 5
    %v4601 = vsel %vm859, %v4596, %v4600
    %v4603 = vshrl.u32 %v4515, 16
    %v4605 = vrot.slane %v4603, 4
    %v4606 = vshll.u32 %v4515, 16
    %v4608 = vrot.slane %v4606, 5
    %v4609 = vor.u32 %v4605, %v4608
    %v4610 = vrot.slane %v4609, 4
    %v4612 = vshll.u32 %v4516, 16
    %v4614 = vrot.slane %v4612, 5
    %v4615 = vsel %vm859, %v4610, %v4614
    %v4616 = vshrl.u32 %v4516, 16
    %v4618 = vrot.slane %v4616, 4
    %v4619 = vor.u32 %v4618, %v4614
    %v4620 = vrot.slane %v4619, 4
    %v4622 = vshll.u32 %v4517, 16
    %v4624 = vrot.slane %v4622, 5
    %v4625 = vsel %vm859, %v4620, %v4624
    %v4627 = vshrl.u32 %v4518, 16
    %v4629 = vrot.slane %v4627, 4
    %v4630 = vshll.u32 %v4518, 16
    %v4632 = vrot.slane %v4630, 5
    %v4633 = vor.u32 %v4629, %v4632
    %v4634 = vrot.slane %v4633, 4
    %v4636 = vshll.u32 %v4519, 16
    %v4638 = vrot.slane %v4636, 5
    %v4639 = vsel %vm859, %v4634, %v4638
    %v4640 = vshrl.u32 %v4519, 16
    %v4642 = vrot.slane %v4640, 4
    %v4643 = vor.u32 %v4642, %v4638
    %v4644 = vrot.slane %v4643, 4
    %v4646 = vshll.u32 %v4520, 16
    %v4648 = vrot.slane %v4646, 5
    %v4649 = vsel %vm859, %v4644, %v4648
    %v4651 = vshrl.u32 %v4521, 16
    %v4653 = vrot.slane %v4651, 4
    %v4654 = vshll.u32 %v4521, 16
    %v4656 = vrot.slane %v4654, 5
    %v4657 = vor.u32 %v4653, %v4656
    %v4658 = vrot.slane %v4657, 4
    %v4660 = vshll.u32 %v4522, 16
    %v4662 = vrot.slane %v4660, 5
    %v4663 = vsel %vm859, %v4658, %v4662
    %v4664 = vshrl.u32 %v4522, 16
    %v4666 = vrot.slane %v4664, 4
    %v4667 = vor.u32 %v4666, %v4662
    %v4668 = vrot.slane %v4667, 4
    %v4670 = vshll.u32 %v4523, 16
    %v4672 = vrot.slane %v4670, 5
    %v4673 = vsel %vm859, %v4668, %v4672
    %v4675 = vshrl.u32 %v4524, 16
    %v4677 = vrot.slane %v4675, 4
    %v4678 = vshll.u32 %v4524, 16
    %v4680 = vrot.slane %v4678, 5
    %v4681 = vor.u32 %v4677, %v4680
    %v4682 = vrot.slane %v4681, 4
    %v4684 = vshll.u32 %v4525, 16
    %v4686 = vrot.slane %v4684, 5
    %v4687 = vsel %vm859, %v4682, %v4686
    %v4688 = vshrl.u32 %v4525, 16
    %v4690 = vrot.slane %v4688, 4
    %v4691 = vor.u32 %v4690, %v4686
    %v4692 = vrot.slane %v4691, 4
    %v4694 = vshll.u32 %v4526, 16
    %v4696 = vrot.slane %v4694, 5
    %v4697 = vsel %vm859, %v4692, %v4696
    %v4699 = vshrl.u32 %v4527, 16
    %v4701 = vrot.slane %v4699, 4
    %v4702 = vshll.u32 %v4527, 16
    %v4704 = vrot.slane %v4702, 5
    %v4705 = vor.u32 %v4701, %v4704
    %v4706 = vrot.slane %v4705, 4
    %v4708 = vshll.u32 %v4528, 16
    %v4710 = vrot.slane %v4708, 5
    %v4711 = vsel %vm859, %v4706, %v4710
    %v4712 = vshrl.u32 %v4528, 16
    %v4714 = vrot.slane %v4712, 4
    %v4715 = vor.u32 %v4714, %v4710
    %v4716 = vrot.slane %v4715, 4
    %v4718 = vshll.u32 %v4529, 16
    %v4720 = vrot.slane %v4718, 5
    %v4721 = vsel %vm859, %v4716, %v4720
    %v4722 = vld [vmem:[%s3470] sm:$0xf]
    %v4723 = vld [vmem:[%s3470 + $0x4] sm:$0xf]
    %v4724 = vld [vmem:[%s3470 + $0x8] sm:$0x1]
    %v4725 = vld [vmem:[%s3470 + $0xc] sm:$0xf]
    %v4726 = vld [vmem:[%s3470 + $0x10] sm:$0xf]
    %v4727 = vld [vmem:[%s3470 + $0x14] sm:$0x1]
    %v4728 = vld [vmem:[%s3470 + $0x18] sm:$0xf]
    %v4729 = vld [vmem:[%s3470 + $0x1c] sm:$0xf]
    %v4730 = vld [vmem:[%s3470 + $0x20] sm:$0x1]
    %v4731 = vld [vmem:[%s3470 + $0x24] sm:$0xf]
    %v4732 = vld [vmem:[%s3470 + $0x28] sm:$0xf]
    %v4733 = vld [vmem:[%s3470 + $0x2c] sm:$0x1]
    %v4734 = vld [vmem:[%s3470 + $0x30] sm:$0xf]
    %v4735 = vld [vmem:[%s3470 + $0x34] sm:$0xf]
    %v4736 = vld [vmem:[%s3470 + $0x38] sm:$0x1]
    %v4737 = vld [vmem:[%s3470 + $0x3c] sm:$0xf]
    %v4738 = vld [vmem:[%s3470 + $0x40] sm:$0xf]
    %v4739 = vld [vmem:[%s3470 + $0x44] sm:$0x1]
    %v4740 = vld [vmem:[%s3470 + $0x48] sm:$0xf]
    %v4741 = vld [vmem:[%s3470 + $0x4c] sm:$0xf]
    %v4742 = vld [vmem:[%s3470 + $0x50] sm:$0x1]
    %v4743 = vld [vmem:[%s3470 + $0x54] sm:$0xf]
    %v4744 = vld [vmem:[%s3470 + $0x58] sm:$0xf]
    %v4745 = vld [vmem:[%s3470 + $0x5c] sm:$0x1]
    %v4747 = vshrl.u32 %v4722, 16
    %v4749 = vrot.slane %v4747, 4
    %v4750 = vshll.u32 %v4722, 16
    %v4752 = vrot.slane %v4750, 5
    %v4753 = vor.u32 %v4749, %v4752
    %v4754 = vrot.slane %v4753, 4
    %v4756 = vshll.u32 %v4723, 16
    %v4758 = vrot.slane %v4756, 5
    %v4759 = vsel %vm859, %v4754, %v4758
    %v4760 = vshrl.u32 %v4723, 16
    %v4762 = vrot.slane %v4760, 4
    %v4763 = vor.u32 %v4762, %v4758
    %v4764 = vrot.slane %v4763, 4
    %v4766 = vshll.u32 %v4724, 16
    %v4768 = vrot.slane %v4766, 5
    %v4769 = vsel %vm859, %v4764, %v4768
    %v4771 = vshrl.u32 %v4725, 16
    %v4773 = vrot.slane %v4771, 4
    %v4774 = vshll.u32 %v4725, 16
    %v4776 = vrot.slane %v4774, 5
    %v4777 = vor.u32 %v4773, %v4776
    %v4778 = vrot.slane %v4777, 4
    %v4780 = vshll.u32 %v4726, 16
    %v4782 = vrot.slane %v4780, 5
    %v4783 = vsel %vm859, %v4778, %v4782
    %v4784 = vshrl.u32 %v4726, 16
    %v4786 = vrot.slane %v4784, 4
    %v4787 = vor.u32 %v4786, %v4782
    %v4788 = vrot.slane %v4787, 4
    %v4790 = vshll.u32 %v4727, 16
    %v4792 = vrot.slane %v4790, 5
    %v4793 = vsel %vm859, %v4788, %v4792
    %v4795 = vshrl.u32 %v4728, 16
    %v4797 = vrot.slane %v4795, 4
    %v4798 = vshll.u32 %v4728, 16
    %v4800 = vrot.slane %v4798, 5
    %v4801 = vor.u32 %v4797, %v4800
    %v4802 = vrot.slane %v4801, 4
    %v4804 = vshll.u32 %v4729, 16
    %v4806 = vrot.slane %v4804, 5
    %v4807 = vsel %vm859, %v4802, %v4806
    %v4808 = vshrl.u32 %v4729, 16
    %v4810 = vrot.slane %v4808, 4
    %v4811 = vor.u32 %v4810, %v4806
    %v4812 = vrot.slane %v4811, 4
    %v4814 = vshll.u32 %v4730, 16
    %v4816 = vrot.slane %v4814, 5
    %v4817 = vsel %vm859, %v4812, %v4816
    %v4819 = vshrl.u32 %v4731, 16
    %v4821 = vrot.slane %v4819, 4
    %v4822 = vshll.u32 %v4731, 16
    %v4824 = vrot.slane %v4822, 5
    %v4825 = vor.u32 %v4821, %v4824
    %v4826 = vrot.slane %v4825, 4
    %v4828 = vshll.u32 %v4732, 16
    %v4830 = vrot.slane %v4828, 5
    %v4831 = vsel %vm859, %v4826, %v4830
    %v4832 = vshrl.u32 %v4732, 16
    %v4834 = vrot.slane %v4832, 4
    %v4835 = vor.u32 %v4834, %v4830
    %v4836 = vrot.slane %v4835, 4
    %v4838 = vshll.u32 %v4733, 16
    %v4840 = vrot.slane %v4838, 5
    %v4841 = vsel %vm859, %v4836, %v4840
    %v4843 = vshrl.u32 %v4734, 16
    %v4845 = vrot.slane %v4843, 4
    %v4846 = vshll.u32 %v4734, 16
    %v4848 = vrot.slane %v4846, 5
    %v4849 = vor.u32 %v4845, %v4848
    %v4850 = vrot.slane %v4849, 4
    %v4852 = vshll.u32 %v4735, 16
    %v4854 = vrot.slane %v4852, 5
    %v4855 = vsel %vm859, %v4850, %v4854
    %v4856 = vshrl.u32 %v4735, 16
    %v4858 = vrot.slane %v4856, 4
    %v4859 = vor.u32 %v4858, %v4854
    %v4860 = vrot.slane %v4859, 4
    %v4862 = vshll.u32 %v4736, 16
    %v4864 = vrot.slane %v4862, 5
    %v4865 = vsel %vm859, %v4860, %v4864
    %v4867 = vshrl.u32 %v4737, 16
    %v4869 = vrot.slane %v4867, 4
    %v4870 = vshll.u32 %v4737, 16
    %v4872 = vrot.slane %v4870, 5
    %v4873 = vor.u32 %v4869, %v4872
    %v4874 = vrot.slane %v4873, 4
    %v4876 = vshll.u32 %v4738, 16
    %v4878 = vrot.slane %v4876, 5
    %v4879 = vsel %vm859, %v4874, %v4878
    %v4880 = vshrl.u32 %v4738, 16
    %v4882 = vrot.slane %v4880, 4
    %v4883 = vor.u32 %v4882, %v4878
    %v4884 = vrot.slane %v4883, 4
    %v4886 = vshll.u32 %v4739, 16
    %v4888 = vrot.slane %v4886, 5
    %v4889 = vsel %vm859, %v4884, %v4888
    %v4891 = vshrl.u32 %v4740, 16
    %v4893 = vrot.slane %v4891, 4
    %v4894 = vshll.u32 %v4740, 16
    %v4896 = vrot.slane %v4894, 5
    %v4897 = vor.u32 %v4893, %v4896
    %v4898 = vrot.slane %v4897, 4
    %v4900 = vshll.u32 %v4741, 16
    %v4902 = vrot.slane %v4900, 5
    %v4903 = vsel %vm859, %v4898, %v4902
    %v4904 = vshrl.u32 %v4741, 16
    %v4906 = vrot.slane %v4904, 4
    %v4907 = vor.u32 %v4906, %v4902
    %v4908 = vrot.slane %v4907, 4
    %v4910 = vshll.u32 %v4742, 16
    %v4912 = vrot.slane %v4910, 5
    %v4913 = vsel %vm859, %v4908, %v4912
    %v4915 = vshrl.u32 %v4743, 16
    %v4917 = vrot.slane %v4915, 4
    %v4918 = vshll.u32 %v4743, 16
    %v4920 = vrot.slane %v4918, 5
    %v4921 = vor.u32 %v4917, %v4920
    %v4922 = vrot.slane %v4921, 4
    %v4924 = vshll.u32 %v4744, 16
    %v4926 = vrot.slane %v4924, 5
    %v4927 = vsel %vm859, %v4922, %v4926
    %v4928 = vshrl.u32 %v4744, 16
    %v4930 = vrot.slane %v4928, 4
    %v4931 = vor.u32 %v4930, %v4926
    %v4932 = vrot.slane %v4931, 4
    %v4934 = vshll.u32 %v4745, 16
    %v4936 = vrot.slane %v4934, 5
    %v4937 = vsel %vm859, %v4932, %v4936
    %v4938 = vunpack.c.l.b16 %v4543
    %v4939 = vunpack.c.l.b16 %v4553
    %v4940 = vunpack.c.l.b16 %v4567
    %v4941 = vunpack.c.l.b16 %v4577
    %v4942 = vunpack.c.l.b16 %v4591
    %v4943 = vunpack.c.l.b16 %v4601
    %v4944 = vunpack.c.l.b16 %v4615
    %v4945 = vunpack.c.l.b16 %v4625
    %v4946 = vunpack.c.l.b16 %v4639
    %v4947 = vunpack.c.l.b16 %v4649
    %v4948 = vunpack.c.l.b16 %v4663
    %v4949 = vunpack.c.l.b16 %v4673
    %v4950 = vunpack.c.l.b16 %v4687
    %v4951 = vunpack.c.l.b16 %v4697
    %v4952 = vunpack.c.l.b16 %v4711
    %v4953 = vunpack.c.l.b16 %v4721
    %v4954 = vpack.c.b16 %v4939, %v4938
    %v4955 = vpack.c.b16 %v4941, %v4940
    %v4956 = vpack.c.b16 %v4943, %v4942
    %v4957 = vpack.c.b16 %v4945, %v4944
    %v4958 = vpack.c.b16 %v4947, %v4946
    %v4959 = vpack.c.b16 %v4949, %v4948
    %v4960 = vpack.c.b16 %v4951, %v4950
    %v4961 = vpack.c.b16 %v4953, %v4952
    %v4962 = vunpack.c.l.b16 %v4759
    %v4963 = vunpack.c.l.b16 %v4769
    %v4964 = vunpack.c.l.b16 %v4783
    %v4965 = vunpack.c.l.b16 %v4793
    %v4966 = vunpack.c.l.b16 %v4807
    %v4967 = vunpack.c.l.b16 %v4817
    %v4968 = vunpack.c.l.b16 %v4831
    %v4969 = vunpack.c.l.b16 %v4841
    %v4970 = vunpack.c.l.b16 %v4855
    %v4971 = vunpack.c.l.b16 %v4865
    %v4972 = vunpack.c.l.b16 %v4879
    %v4973 = vunpack.c.l.b16 %v4889
    %v4974 = vunpack.c.l.b16 %v4903
    %v4975 = vunpack.c.l.b16 %v4913
    %v4976 = vunpack.c.l.b16 %v4927
    %v4977 = vunpack.c.l.b16 %v4937
    %v4978 = vpack.c.b16 %v4963, %v4962
    %v4979 = vpack.c.b16 %v4965, %v4964
    %v4980 = vpack.c.b16 %v4967, %v4966
    %v4981 = vpack.c.b16 %v4969, %v4968
    %v4982 = vpack.c.b16 %v4971, %v4970
    %v4983 = vpack.c.b16 %v4973, %v4972
    %v4984 = vpack.c.b16 %v4975, %v4974
    %v4985 = vpack.c.b16 %v4977, %v4976
    %s4986 = scalar_lea.vmem [#allocation3], 576
    %v4987 = vld [vmem:[%s4986] sm:$0xff]
    %v4988 = vld [vmem:[%s4986 + $0x8] sm:$0xff]
    %v4989 = vld [vmem:[%s4986 + $0x10] sm:$0xff]
    %v4990 = vld [vmem:[%s4986 + $0x18] sm:$0xff]
    %v4991 = vld [vmem:[%s4986 + $0x20] sm:$0xff]
    %v4992 = vld [vmem:[%s4986 + $0x28] sm:$0xff]
    %v4993 = vld [vmem:[%s4986 + $0x30] sm:$0xff]
    %v4994 = vld [vmem:[%s4986 + $0x38] sm:$0xff]
    %v4995 = vld [vmem:[%s4986 + $0x40] sm:$0xff]
    %v4996 = vld [vmem:[%s4986 + $0x48] sm:$0xff]
    %v4997 = vld [vmem:[%s4986 + $0x50] sm:$0xff]
    %v4998 = vld [vmem:[%s4986 + $0x58] sm:$0xff]
    %v4999 = vld [vmem:[%s4986 + $0x60] sm:$0xff]
    %v5000 = vld [vmem:[%s4986 + $0x68] sm:$0xff]
    %v5001 = vld [vmem:[%s4986 + $0x70] sm:$0xff]
    %v5002 = vld [vmem:[%s4986 + $0x78] sm:$0xff]
    %v5003 = vld [vmem:[%s4986 + $0x80] sm:$0xff]
    %v5004 = vld [vmem:[%s4986 + $0x88] sm:$0xff]
    %v5023 = vunpack.c.l.b16 %v4987
    %v5024 = vunpack.c.h.b16 %v4987
    %v5025 = vunpack.c.l.b16 %v4988
    %v5026 = vunpack.c.h.b16 %v4988
    %v5027 = vunpack.c.l.b16 %v4989
    %v5028 = vunpack.c.h.b16 %v4989
    %v5029 = vunpack.c.l.b16 %v4990
    %v5030 = vunpack.c.h.b16 %v4990
    %v5031 = vunpack.c.l.b16 %v4991
    %v5032 = vunpack.c.h.b16 %v4991
    %v5033 = vunpack.c.l.b16 %v4992
    %v5034 = vunpack.c.h.b16 %v4992
    %v5035 = vunpack.c.l.b16 %v4993
    %v5036 = vunpack.c.h.b16 %v4993
    %v5037 = vunpack.c.l.b16 %v4994
    %v5038 = vunpack.c.h.b16 %v4994
    %v5039 = vunpack.c.l.b16 %v4995
    %v5040 = vunpack.c.h.b16 %v4995
    %v5041 = vunpack.c.l.b16 %v4996
    %v5042 = vunpack.c.h.b16 %v4996
    %v5043 = vunpack.c.l.b16 %v4997
    %v5044 = vunpack.c.h.b16 %v4997
    %v5045 = vunpack.c.l.b16 %v4998
    %v5046 = vunpack.c.h.b16 %v4998
    %v5047 = vunpack.c.l.b16 %v4999
    %v5048 = vunpack.c.h.b16 %v4999
    %v5049 = vunpack.c.l.b16 %v5000
    %v5050 = vunpack.c.h.b16 %v5000
    %v5051 = vunpack.c.l.b16 %v5001
    %v5052 = vunpack.c.h.b16 %v5001
    %v5053 = vunpack.c.l.b16 %v5002
    %v5054 = vunpack.c.h.b16 %v5002
    %v5055 = vunpack.c.l.b16 %v5003
    %v5056 = vunpack.c.h.b16 %v5003
    %v5057 = vunpack.c.l.b16 %v5004
    %v5058 = vunpack.c.h.b16 %v5004
    %v5059 = vpack.c.b16 %v5027, %v5023
    %v5060 = vpack.c.b16 %v5028, %v5024
    %v5061 = vpack.c.b16 %v5029, %v5025
    %v5062 = vpack.c.b16 %v5030, %v5026
    %v5063 = vpack.c.b16 %v5035, %v5031
    %v5064 = vpack.c.b16 %v5036, %v5032
    %v5065 = vpack.c.b16 %v5037, %v5033
    %v5066 = vpack.c.b16 %v5038, %v5034
    %v5067 = vpack.c.b16 %v5043, %v5039
    %v5068 = vpack.c.b16 %v5044, %v5040
    %v5069 = vpack.c.b16 %v5045, %v5041
    %v5070 = vpack.c.b16 %v5046, %v5042
    %v5071 = vpack.c.b16 %v5051, %v5047
    %v5072 = vpack.c.b16 %v5052, %v5048
    %v5073 = vpack.c.b16 %v5053, %v5049
    %v5074 = vpack.c.b16 %v5054, %v5050
    %v5075 = vpack.c.b16 %v5055, %v5055
    %v5076 = vpack.c.b16 %v5056, %v5056
    %v5077 = vpack.c.b16 %v5057, %v5057
    %v5078 = vpack.c.b16 %v5058, %v5058
    %v5096 = vsel %vm257, %v4954, 0
    %v5099 = vsel %vm257, %v4955, 0
    %v5102 = vsel %vm257, %v4956, 0
    %v5105 = vsel %vm257, %v4957, 0
    %v5108 = vsel %vm257, %v4958, 0
    %v5111 = vsel %vm257, %v4959, 0
    %v5114 = vsel %vm257, %v4960, 0
    %v5117 = vsel %vm257, %v4961, 0
    %v5120 = vsel %vm257, %v4978, 0
    %v5123 = vsel %vm257, %v4979, 0
    %v5126 = vsel %vm257, %v4980, 0
    %v5129 = vsel %vm257, %v4981, 0
    %v5132 = vsel %vm257, %v4982, 0
    %v5135 = vsel %vm257, %v4983, 0
    %v5138 = vsel %vm257, %v4984, 0
    %v5141 = vsel %vm257, %v4985, 0
    %v5144 = vsel %vm306, %v5075, 0
    %v5147 = vsel %vm306, %v5076, 0
    %v5150 = vsel %vm306, %v5077, 0
    %v5153 = vsel %vm306, %v5078, 0
    %5155 = vmatprep.subr.bf16.mxu0 0
    %5156 = vmatpush1.bf16.msra.mxu0 0
    %5157 = vmatprep.subr.bf16.mxu0 0
    %5158 = vmatpush1.bf16.msra.mxu0 0
    %5159 = vmatprep.subr.bf16.mxu0 0
    %5160 = vmatpush1.bf16.msra.mxu0 0
    %5161 = vmatprep.subr.bf16.mxu0 %v5147
    %5162 = vmatpush1.bf16.msra.mxu0 %v5144
    %5163 = vmatprep.subr.bf16.mxu0 %v5072
    %5164 = vmatpush1.bf16.msra.mxu0 %v5071
    %5165 = vmatprep.subr.bf16.mxu0 %v5068
    %5166 = vmatpush1.bf16.msra.mxu0 %v5067
    %5167 = vmatprep.subr.bf16.mxu0 %v5064
    %5168 = vmatpush1.bf16.msra.mxu0 %v5063
    %5169 = vmatprep.subr.bf16.mxu0 %v5060
    %5170 = vmatpush1.bf16.msra.mxu0 %v5059
    %5171 = vmatprep.subr.bf16.mxu0 0
    %5172 = vmatpush2.bf16.msra.mxu0 0
    %5173 = vmatprep.subr.bf16.mxu0 0
    %5174 = vmatpush2.bf16.msra.mxu0 0
    %5175 = vmatprep.subr.bf16.mxu0 0
    %5176 = vmatpush2.bf16.msra.mxu0 0
    %5177 = vmatprep.subr.bf16.mxu0 0
    %5178 = vmatpush2.bf16.msra.mxu0 0
    %5179 = vmatprep.subr.bf16.mxu0 0
    %5180 = vmatpush2.bf16.msra.mxu0 0
    %5181 = vmatprep.subr.bf16.mxu0 0
    %5182 = vmatpush2.bf16.msra.mxu0 0
    %5183 = vmatprep.subr.bf16.mxu0 0
    %5184 = vmatpush2.bf16.msra.mxu0 0
    %5185 = vmatprep.subr.bf16.mxu0 0
    %5186 = vmatpush2.bf16.msra.mxu0 0
    %5187 = vmatprep.mubr.bf16.mxu0 0
    %5188 = vmatmul.mubr.bf16.gmra.mxu0 %v5096
    %v5189 = vpop.f32.mrf.mxu0
    %v5190 = vadd.f32 0.0, %v5189
    %v5191 = vpop.f32.mrf.mxu0
    %v5192 = vadd.f32 0.0, %v5191
    %v5193 = vpop.f32.mrf.mxu0
    %v5194 = vadd.f32 0.0, %v5193
    %v5195 = vpop.f32.mrf.mxu0
    %v5196 = vadd.f32 0.0, %v5195
    %5197 = vmatprep.mubr.bf16.mxu0 0
    %5198 = vmatmul.mubr.bf16.gmra.mxu0 %v5099
    %v5199 = vpop.f32.mrf.mxu0
    %v5200 = vadd.f32 0.0, %v5199
    %v5201 = vpop.f32.mrf.mxu0
    %v5202 = vadd.f32 0.0, %v5201
    %v5203 = vpop.f32.mrf.mxu0
    %v5204 = vadd.f32 0.0, %v5203
    %v5205 = vpop.f32.mrf.mxu0
    %v5206 = vadd.f32 0.0, %v5205
    %5207 = vmatprep.mubr.bf16.mxu0 0
    %5208 = vmatmul.mubr.bf16.gmra.mxu0 %v5102
    %v5209 = vpop.f32.mrf.mxu0
    %v5210 = vadd.f32 0.0, %v5209
    %v5211 = vpop.f32.mrf.mxu0
    %v5212 = vadd.f32 0.0, %v5211
    %v5213 = vpop.f32.mrf.mxu0
    %v5214 = vadd.f32 0.0, %v5213
    %v5215 = vpop.f32.mrf.mxu0
    %v5216 = vadd.f32 0.0, %v5215
    %5217 = vmatprep.mubr.bf16.mxu0 0
    %5218 = vmatmul.mubr.bf16.gmra.mxu0 %v5105
    %v5219 = vpop.f32.mrf.mxu0
    %v5220 = vadd.f32 0.0, %v5219
    %v5221 = vpop.f32.mrf.mxu0
    %v5222 = vadd.f32 0.0, %v5221
    %v5223 = vpop.f32.mrf.mxu0
    %v5224 = vadd.f32 0.0, %v5223
    %v5225 = vpop.f32.mrf.mxu0
    %v5226 = vadd.f32 0.0, %v5225
    %5227 = vmatprep.mubr.bf16.mxu0 0
    %5228 = vmatmul.mubr.bf16.gmra.mxu0 %v5108
    %v5229 = vpop.f32.mrf.mxu0
    %v5230 = vadd.f32 0.0, %v5229
    %v5231 = vpop.f32.mrf.mxu0
    %v5232 = vadd.f32 0.0, %v5231
    %v5233 = vpop.f32.mrf.mxu0
    %v5234 = vadd.f32 0.0, %v5233
    %v5235 = vpop.f32.mrf.mxu0
    %v5236 = vadd.f32 0.0, %v5235
    %5237 = vmatprep.mubr.bf16.mxu0 0
    %5238 = vmatmul.mubr.bf16.gmra.mxu0 %v5111
    %v5239 = vpop.f32.mrf.mxu0
    %v5240 = vadd.f32 0.0, %v5239
    %v5241 = vpop.f32.mrf.mxu0
    %v5242 = vadd.f32 0.0, %v5241
    %v5243 = vpop.f32.mrf.mxu0
    %v5244 = vadd.f32 0.0, %v5243
    %v5245 = vpop.f32.mrf.mxu0
    %v5246 = vadd.f32 0.0, %v5245
    %5247 = vmatprep.mubr.bf16.mxu0 0
    %5248 = vmatmul.mubr.bf16.gmra.mxu0 %v5114
    %v5249 = vpop.f32.mrf.mxu0
    %v5250 = vadd.f32 0.0, %v5249
    %v5251 = vpop.f32.mrf.mxu0
    %v5252 = vadd.f32 0.0, %v5251
    %v5253 = vpop.f32.mrf.mxu0
    %v5254 = vadd.f32 0.0, %v5253
    %v5255 = vpop.f32.mrf.mxu0
    %v5256 = vadd.f32 0.0, %v5255
    %5257 = vmatprep.mubr.bf16.mxu0 0
    %5258 = vmatmul.mubr.bf16.gmra.mxu0 %v5117
    %v5259 = vpop.f32.mrf.mxu0
    %v5260 = vadd.f32 0.0, %v5259
    %v5261 = vpop.f32.mrf.mxu0
    %v5262 = vadd.f32 0.0, %v5261
    %v5263 = vpop.f32.mrf.mxu0
    %v5264 = vadd.f32 0.0, %v5263
    %v5265 = vpop.f32.mrf.mxu0
    %v5266 = vadd.f32 0.0, %v5265
    %5267 = vmatprep.mubr.bf16.mxu0 0
    %5268 = vmatmul.mubr.bf16.gmra.mxu0 %v5120
    %v5269 = vpop.f32.mrf.mxu0
    %v5270 = vadd.f32 0.0, %v5269
    %v5271 = vpop.f32.mrf.mxu0
    %v5272 = vadd.f32 0.0, %v5271
    %v5273 = vpop.f32.mrf.mxu0
    %v5274 = vadd.f32 0.0, %v5273
    %v5275 = vpop.f32.mrf.mxu0
    %v5276 = vadd.f32 0.0, %v5275
    %5277 = vmatprep.mubr.bf16.mxu0 0
    %5278 = vmatmul.mubr.bf16.gmra.mxu0 %v5123
    %v5279 = vpop.f32.mrf.mxu0
    %v5280 = vadd.f32 0.0, %v5279
    %v5281 = vpop.f32.mrf.mxu0
    %v5282 = vadd.f32 0.0, %v5281
    %v5283 = vpop.f32.mrf.mxu0
    %v5284 = vadd.f32 0.0, %v5283
    %v5285 = vpop.f32.mrf.mxu0
    %v5286 = vadd.f32 0.0, %v5285
    %5287 = vmatprep.mubr.bf16.mxu0 0
    %5288 = vmatmul.mubr.bf16.gmra.mxu0 %v5126
    %v5289 = vpop.f32.mrf.mxu0
    %v5290 = vadd.f32 0.0, %v5289
    %v5291 = vpop.f32.mrf.mxu0
    %v5292 = vadd.f32 0.0, %v5291
    %v5293 = vpop.f32.mrf.mxu0
    %v5294 = vadd.f32 0.0, %v5293
    %v5295 = vpop.f32.mrf.mxu0
    %v5296 = vadd.f32 0.0, %v5295
    %5297 = vmatprep.mubr.bf16.mxu0 0
    %5298 = vmatmul.mubr.bf16.gmra.mxu0 %v5129
    %v5299 = vpop.f32.mrf.mxu0
    %v5300 = vadd.f32 0.0, %v5299
    %v5301 = vpop.f32.mrf.mxu0
    %v5302 = vadd.f32 0.0, %v5301
    %v5303 = vpop.f32.mrf.mxu0
    %v5304 = vadd.f32 0.0, %v5303
    %v5305 = vpop.f32.mrf.mxu0
    %v5306 = vadd.f32 0.0, %v5305
    %5307 = vmatprep.mubr.bf16.mxu0 0
    %5308 = vmatmul.mubr.bf16.gmra.mxu0 %v5132
    %v5309 = vpop.f32.mrf.mxu0
    %v5310 = vadd.f32 0.0, %v5309
    %v5311 = vpop.f32.mrf.mxu0
    %v5312 = vadd.f32 0.0, %v5311
    %v5313 = vpop.f32.mrf.mxu0
    %v5314 = vadd.f32 0.0, %v5313
    %v5315 = vpop.f32.mrf.mxu0
    %v5316 = vadd.f32 0.0, %v5315
    %5317 = vmatprep.mubr.bf16.mxu0 0
    %5318 = vmatmul.mubr.bf16.gmra.mxu0 %v5135
    %v5319 = vpop.f32.mrf.mxu0
    %v5320 = vadd.f32 0.0, %v5319
    %v5321 = vpop.f32.mrf.mxu0
    %v5322 = vadd.f32 0.0, %v5321
    %v5323 = vpop.f32.mrf.mxu0
    %v5324 = vadd.f32 0.0, %v5323
    %v5325 = vpop.f32.mrf.mxu0
    %v5326 = vadd.f32 0.0, %v5325
    %5327 = vmatprep.mubr.bf16.mxu0 0
    %5328 = vmatmul.mubr.bf16.gmra.mxu0 %v5138
    %v5329 = vpop.f32.mrf.mxu0
    %v5330 = vadd.f32 0.0, %v5329
    %v5331 = vpop.f32.mrf.mxu0
    %v5332 = vadd.f32 0.0, %v5331
    %v5333 = vpop.f32.mrf.mxu0
    %v5334 = vadd.f32 0.0, %v5333
    %v5335 = vpop.f32.mrf.mxu0
    %v5336 = vadd.f32 0.0, %v5335
    %5337 = vmatprep.mubr.bf16.mxu0 0
    %5338 = vmatmul.mubr.bf16.gmra.mxu0 %v5141
    %v5339 = vpop.f32.mrf.mxu0
    %v5340 = vadd.f32 0.0, %v5339
    %v5341 = vpop.f32.mrf.mxu0
    %v5342 = vadd.f32 0.0, %v5341
    %v5343 = vpop.f32.mrf.mxu0
    %v5344 = vadd.f32 0.0, %v5343
    %v5345 = vpop.f32.mrf.mxu0
    %v5346 = vadd.f32 0.0, %v5345
    %5347 = vdwg.mxu0
    %5348 = vmatprep.subr.bf16.mxu0 0
    %5349 = vmatpush1.bf16.msra.mxu0 0
    %5350 = vmatprep.subr.bf16.mxu0 0
    %5351 = vmatpush1.bf16.msra.mxu0 0
    %5352 = vmatprep.subr.bf16.mxu0 0
    %5353 = vmatpush1.bf16.msra.mxu0 0
    %5354 = vmatprep.subr.bf16.mxu0 %v5153
    %5355 = vmatpush1.bf16.msra.mxu0 %v5150
    %5356 = vmatprep.subr.bf16.mxu0 %v5074
    %5357 = vmatpush1.bf16.msra.mxu0 %v5073
    %5358 = vmatprep.subr.bf16.mxu0 %v5070
    %5359 = vmatpush1.bf16.msra.mxu0 %v5069
    %5360 = vmatprep.subr.bf16.mxu0 %v5066
    %5361 = vmatpush1.bf16.msra.mxu0 %v5065
    %5362 = vmatprep.subr.bf16.mxu0 %v5062
    %5363 = vmatpush1.bf16.msra.mxu0 %v5061
    %5364 = vmatprep.subr.bf16.mxu0 0
    %5365 = vmatpush2.bf16.msra.mxu0 0
    %5366 = vmatprep.subr.bf16.mxu0 0
    %5367 = vmatpush2.bf16.msra.mxu0 0
    %5368 = vmatprep.subr.bf16.mxu0 0
    %5369 = vmatpush2.bf16.msra.mxu0 0
    %5370 = vmatprep.subr.bf16.mxu0 0
    %5371 = vmatpush2.bf16.msra.mxu0 0
    %5372 = vmatprep.subr.bf16.mxu0 0
    %5373 = vmatpush2.bf16.msra.mxu0 0
    %5374 = vmatprep.subr.bf16.mxu0 0
    %5375 = vmatpush2.bf16.msra.mxu0 0
    %5376 = vmatprep.subr.bf16.mxu0 0
    %5377 = vmatpush2.bf16.msra.mxu0 0
    %5378 = vmatprep.subr.bf16.mxu0 0
    %5379 = vmatpush2.bf16.msra.mxu0 0
    %5380 = vmatprep.mubr.bf16.mxu0 0
    %5381 = vmatmul.mubr.bf16.gmra.mxu0 %v5096
    %v5382 = vpop.f32.mrf.mxu0
    %v5383 = vadd.f32 0.0, %v5382
    %v5384 = vpop.f32.mrf.mxu0
    %v5385 = vadd.f32 0.0, %v5384
    %v5386 = vpop.f32.mrf.mxu0
    %v5387 = vadd.f32 0.0, %v5386
    %v5388 = vpop.f32.mrf.mxu0
    %v5389 = vadd.f32 0.0, %v5388
    %5390 = vmatprep.mubr.bf16.mxu0 0
    %5391 = vmatmul.mubr.bf16.gmra.mxu0 %v5099
    %v5392 = vpop.f32.mrf.mxu0
    %v5393 = vadd.f32 0.0, %v5392
    %v5394 = vpop.f32.mrf.mxu0
    %v5395 = vadd.f32 0.0, %v5394
    %v5396 = vpop.f32.mrf.mxu0
    %v5397 = vadd.f32 0.0, %v5396
    %v5398 = vpop.f32.mrf.mxu0
    %v5399 = vadd.f32 0.0, %v5398
    %5400 = vmatprep.mubr.bf16.mxu0 0
    %5401 = vmatmul.mubr.bf16.gmra.mxu0 %v5102
    %v5402 = vpop.f32.mrf.mxu0
    %v5403 = vadd.f32 0.0, %v5402
    %v5404 = vpop.f32.mrf.mxu0
    %v5405 = vadd.f32 0.0, %v5404
    %v5406 = vpop.f32.mrf.mxu0
    %v5407 = vadd.f32 0.0, %v5406
    %v5408 = vpop.f32.mrf.mxu0
    %v5409 = vadd.f32 0.0, %v5408
    %5410 = vmatprep.mubr.bf16.mxu0 0
    %5411 = vmatmul.mubr.bf16.gmra.mxu0 %v5105
    %v5412 = vpop.f32.mrf.mxu0
    %v5413 = vadd.f32 0.0, %v5412
    %v5414 = vpop.f32.mrf.mxu0
    %v5415 = vadd.f32 0.0, %v5414
    %v5416 = vpop.f32.mrf.mxu0
    %v5417 = vadd.f32 0.0, %v5416
    %v5418 = vpop.f32.mrf.mxu0
    %v5419 = vadd.f32 0.0, %v5418
    %5420 = vmatprep.mubr.bf16.mxu0 0
    %5421 = vmatmul.mubr.bf16.gmra.mxu0 %v5108
    %v5422 = vpop.f32.mrf.mxu0
    %v5423 = vadd.f32 0.0, %v5422
    %v5424 = vpop.f32.mrf.mxu0
    %v5425 = vadd.f32 0.0, %v5424
    %v5426 = vpop.f32.mrf.mxu0
    %v5427 = vadd.f32 0.0, %v5426
    %v5428 = vpop.f32.mrf.mxu0
    %v5429 = vadd.f32 0.0, %v5428
    %5430 = vmatprep.mubr.bf16.mxu0 0
    %5431 = vmatmul.mubr.bf16.gmra.mxu0 %v5111
    %v5432 = vpop.f32.mrf.mxu0
    %v5433 = vadd.f32 0.0, %v5432
    %v5434 = vpop.f32.mrf.mxu0
    %v5435 = vadd.f32 0.0, %v5434
    %v5436 = vpop.f32.mrf.mxu0
    %v5437 = vadd.f32 0.0, %v5436
    %v5438 = vpop.f32.mrf.mxu0
    %v5439 = vadd.f32 0.0, %v5438
    %5440 = vmatprep.mubr.bf16.mxu0 0
    %5441 = vmatmul.mubr.bf16.gmra.mxu0 %v5114
    %v5442 = vpop.f32.mrf.mxu0
    %v5443 = vadd.f32 0.0, %v5442
    %v5444 = vpop.f32.mrf.mxu0
    %v5445 = vadd.f32 0.0, %v5444
    %v5446 = vpop.f32.mrf.mxu0
    %v5447 = vadd.f32 0.0, %v5446
    %v5448 = vpop.f32.mrf.mxu0
    %v5449 = vadd.f32 0.0, %v5448
    %5450 = vmatprep.mubr.bf16.mxu0 0
    %5451 = vmatmul.mubr.bf16.gmra.mxu0 %v5117
    %v5452 = vpop.f32.mrf.mxu0
    %v5453 = vadd.f32 0.0, %v5452
    %v5454 = vpop.f32.mrf.mxu0
    %v5455 = vadd.f32 0.0, %v5454
    %v5456 = vpop.f32.mrf.mxu0
    %v5457 = vadd.f32 0.0, %v5456
    %v5458 = vpop.f32.mrf.mxu0
    %v5459 = vadd.f32 0.0, %v5458
    %5460 = vmatprep.mubr.bf16.mxu0 0
    %5461 = vmatmul.mubr.bf16.gmra.mxu0 %v5120
    %v5462 = vpop.f32.mrf.mxu0
    %v5463 = vadd.f32 0.0, %v5462
    %v5464 = vpop.f32.mrf.mxu0
    %v5465 = vadd.f32 0.0, %v5464
    %v5466 = vpop.f32.mrf.mxu0
    %v5467 = vadd.f32 0.0, %v5466
    %v5468 = vpop.f32.mrf.mxu0
    %v5469 = vadd.f32 0.0, %v5468
    %5470 = vmatprep.mubr.bf16.mxu0 0
    %5471 = vmatmul.mubr.bf16.gmra.mxu0 %v5123
    %v5472 = vpop.f32.mrf.mxu0
    %v5473 = vadd.f32 0.0, %v5472
    %v5474 = vpop.f32.mrf.mxu0
    %v5475 = vadd.f32 0.0, %v5474
    %v5476 = vpop.f32.mrf.mxu0
    %v5477 = vadd.f32 0.0, %v5476
    %v5478 = vpop.f32.mrf.mxu0
    %v5479 = vadd.f32 0.0, %v5478
    %5480 = vmatprep.mubr.bf16.mxu0 0
    %5481 = vmatmul.mubr.bf16.gmra.mxu0 %v5126
    %v5482 = vpop.f32.mrf.mxu0
    %v5483 = vadd.f32 0.0, %v5482
    %v5484 = vpop.f32.mrf.mxu0
    %v5485 = vadd.f32 0.0, %v5484
    %v5486 = vpop.f32.mrf.mxu0
    %v5487 = vadd.f32 0.0, %v5486
    %v5488 = vpop.f32.mrf.mxu0
    %v5489 = vadd.f32 0.0, %v5488
    %5490 = vmatprep.mubr.bf16.mxu0 0
    %5491 = vmatmul.mubr.bf16.gmra.mxu0 %v5129
    %v5492 = vpop.f32.mrf.mxu0
    %v5493 = vadd.f32 0.0, %v5492
    %v5494 = vpop.f32.mrf.mxu0
    %v5495 = vadd.f32 0.0, %v5494
    %v5496 = vpop.f32.mrf.mxu0
    %v5497 = vadd.f32 0.0, %v5496
    %v5498 = vpop.f32.mrf.mxu0
    %v5499 = vadd.f32 0.0, %v5498
    %5500 = vmatprep.mubr.bf16.mxu0 0
    %5501 = vmatmul.mubr.bf16.gmra.mxu0 %v5132
    %v5502 = vpop.f32.mrf.mxu0
    %v5503 = vadd.f32 0.0, %v5502
    %v5504 = vpop.f32.mrf.mxu0
    %v5505 = vadd.f32 0.0, %v5504
    %v5506 = vpop.f32.mrf.mxu0
    %v5507 = vadd.f32 0.0, %v5506
    %v5508 = vpop.f32.mrf.mxu0
    %v5509 = vadd.f32 0.0, %v5508
    %5510 = vmatprep.mubr.bf16.mxu0 0
    %5511 = vmatmul.mubr.bf16.gmra.mxu0 %v5135
    %v5512 = vpop.f32.mrf.mxu0
    %v5513 = vadd.f32 0.0, %v5512
    %v5514 = vpop.f32.mrf.mxu0
    %v5515 = vadd.f32 0.0, %v5514
    %v5516 = vpop.f32.mrf.mxu0
    %v5517 = vadd.f32 0.0, %v5516
    %v5518 = vpop.f32.mrf.mxu0
    %v5519 = vadd.f32 0.0, %v5518
    %5520 = vmatprep.mubr.bf16.mxu0 0
    %5521 = vmatmul.mubr.bf16.gmra.mxu0 %v5138
    %v5522 = vpop.f32.mrf.mxu0
    %v5523 = vadd.f32 0.0, %v5522
    %v5524 = vpop.f32.mrf.mxu0
    %v5525 = vadd.f32 0.0, %v5524
    %v5526 = vpop.f32.mrf.mxu0
    %v5527 = vadd.f32 0.0, %v5526
    %v5528 = vpop.f32.mrf.mxu0
    %v5529 = vadd.f32 0.0, %v5528
    %5530 = vmatprep.mubr.bf16.mxu0 0
    %5531 = vmatmul.mubr.bf16.gmra.mxu0 %v5141
    %v5532 = vpop.f32.mrf.mxu0
    %v5533 = vadd.f32 0.0, %v5532
    %v5534 = vpop.f32.mrf.mxu0
    %v5535 = vadd.f32 0.0, %v5534
    %v5536 = vpop.f32.mrf.mxu0
    %v5537 = vadd.f32 0.0, %v5536
    %v5538 = vpop.f32.mrf.mxu0
    %v5539 = vadd.f32 0.0, %v5538
    %5540 = vdwg.mxu0
    %v5541 = vld [vmem:[#allocation2] sm:$0xff]
    %v5542 = vld [vmem:[#allocation2 + $0x8] sm:$0xff]
    %v5543 = vld [vmem:[#allocation2 + $0x10] sm:$0xff]
    %v5544 = vld [vmem:[#allocation2 + $0x18] sm:$0xff]
    %v5545 = vld [vmem:[#allocation2 + $0x20] sm:$0xff]
    %v5546 = vld [vmem:[#allocation2 + $0x28] sm:$0xff]
    %v5547 = vld [vmem:[#allocation2 + $0x30] sm:$0xff]
    %v5548 = vld [vmem:[#allocation2 + $0x38] sm:$0xff]
    %v5549 = vld [vmem:[#allocation2 + $0x40] sm:$0xff]
    %v5550 = vld [vmem:[#allocation2 + $0x48] sm:$0xff]
    %v5551 = vld [vmem:[#allocation2 + $0x50] sm:$0xff]
    %v5552 = vld [vmem:[#allocation2 + $0x58] sm:$0xff]
    %v5553 = vld [vmem:[#allocation2 + $0x60] sm:$0xff]
    %v5554 = vld [vmem:[#allocation2 + $0x68] sm:$0xff]
    %v5555 = vld [vmem:[#allocation2 + $0x70] sm:$0xff]
    %v5556 = vld [vmem:[#allocation2 + $0x78] sm:$0xff]
    %v5557 = vld [vmem:[#allocation2 + $0x80] sm:$0xff]
    %v5558 = vld [vmem:[#allocation2 + $0x88] sm:$0xff]
    %v5559 = vld [vmem:[#allocation2 + $0x90] sm:$0xff]
    %v5560 = vld [vmem:[#allocation2 + $0x98] sm:$0xff]
    %v5561 = vld [vmem:[#allocation2 + $0xa0] sm:$0xff]
    %v5562 = vld [vmem:[#allocation2 + $0xa8] sm:$0xff]
    %v5563 = vld [vmem:[#allocation2 + $0xb0] sm:$0xff]
    %v5564 = vld [vmem:[#allocation2 + $0xb8] sm:$0xff]
    %v5565 = vld [vmem:[#allocation2 + $0xc0] sm:$0xff]
    %v5566 = vld [vmem:[#allocation2 + $0xc8] sm:$0xff]
    %v5567 = vld [vmem:[#allocation2 + $0xd0] sm:$0xff]
    %v5568 = vld [vmem:[#allocation2 + $0xd8] sm:$0xff]
    %v5569 = vld [vmem:[#allocation2 + $0xe0] sm:$0xff]
    %v5570 = vld [vmem:[#allocation2 + $0xe8] sm:$0xff]
    %v5571 = vld [vmem:[#allocation2 + $0xf0] sm:$0xff]
    %v5572 = vld [vmem:[#allocation2 + $0xf8] sm:$0xff]
    %v5573 = vld [vmem:[#allocation2 + $0x100] sm:$0xff]
    %v5574 = vld [vmem:[#allocation2 + $0x108] sm:$0xff]
    %v5575 = vld [vmem:[#allocation2 + $0x110] sm:$0xff]
    %v5576 = vld [vmem:[#allocation2 + $0x118] sm:$0xff]
    %v5577 = vld [vmem:[#allocation2 + $0x120] sm:$0xff]
    %v5578 = vld [vmem:[#allocation2 + $0x128] sm:$0xff]
    %v5579 = vld [vmem:[#allocation2 + $0x130] sm:$0xff]
    %v5580 = vld [vmem:[#allocation2 + $0x138] sm:$0xff]
    %v5581 = vld [vmem:[#allocation2 + $0x140] sm:$0xff]
    %v5582 = vld [vmem:[#allocation2 + $0x148] sm:$0xff]
    %v5583 = vld [vmem:[#allocation2 + $0x150] sm:$0xff]
    %v5584 = vld [vmem:[#allocation2 + $0x158] sm:$0xff]
    %v5585 = vld [vmem:[#allocation2 + $0x160] sm:$0xff]
    %v5586 = vld [vmem:[#allocation2 + $0x168] sm:$0xff]
    %v5587 = vld [vmem:[#allocation2 + $0x170] sm:$0xff]
    %v5588 = vld [vmem:[#allocation2 + $0x178] sm:$0xff]
    %v5589 = vld [vmem:[#allocation2 + $0x180] sm:$0xff]
    %v5590 = vld [vmem:[#allocation2 + $0x188] sm:$0xff]
    %v5591 = vld [vmem:[#allocation2 + $0x190] sm:$0xff]
    %v5592 = vld [vmem:[#allocation2 + $0x198] sm:$0xff]
    %v5593 = vld [vmem:[#allocation2 + $0x1a0] sm:$0xff]
    %v5594 = vld [vmem:[#allocation2 + $0x1a8] sm:$0xff]
    %v5595 = vld [vmem:[#allocation2 + $0x1b0] sm:$0xff]
    %v5596 = vld [vmem:[#allocation2 + $0x1b8] sm:$0xff]
    %v5597 = vld [vmem:[#allocation2 + $0x1c0] sm:$0xff]
    %v5598 = vld [vmem:[#allocation2 + $0x1c8] sm:$0xff]
    %v5599 = vld [vmem:[#allocation2 + $0x1d0] sm:$0xff]
    %v5600 = vld [vmem:[#allocation2 + $0x1d8] sm:$0xff]
    %v5601 = vld [vmem:[#allocation2 + $0x1e0] sm:$0xff]
    %v5602 = vld [vmem:[#allocation2 + $0x1e8] sm:$0xff]
    %v5603 = vld [vmem:[#allocation2 + $0x1f0] sm:$0xff]
    %v5604 = vld [vmem:[#allocation2 + $0x1f8] sm:$0xff]
    %v5605 = vld [vmem:[#allocation2 + $0x200] sm:$0xff]
    %v5606 = vld [vmem:[#allocation2 + $0x208] sm:$0xff]
    %v5607 = vld [vmem:[#allocation2 + $0x210] sm:$0xff]
    %v5608 = vld [vmem:[#allocation2 + $0x218] sm:$0xff]
    %v5609 = vld [vmem:[#allocation2 + $0x220] sm:$0xff]
    %v5610 = vld [vmem:[#allocation2 + $0x228] sm:$0xff]
    %v5611 = vld [vmem:[#allocation2 + $0x230] sm:$0xff]
    %v5612 = vld [vmem:[#allocation2 + $0x238] sm:$0xff]
    %v5613 = vld [vmem:[#allocation2 + $0x240] sm:$0xff]
    %v5614 = vld [vmem:[#allocation2 + $0x248] sm:$0xff]
    %v5615 = vld [vmem:[#allocation2 + $0x250] sm:$0xff]
    %v5616 = vld [vmem:[#allocation2 + $0x258] sm:$0xff]
    %v5617 = vld [vmem:[#allocation2 + $0x260] sm:$0xff]
    %v5618 = vld [vmem:[#allocation2 + $0x268] sm:$0xff]
    %v5619 = vld [vmem:[#allocation2 + $0x270] sm:$0xff]
    %v5620 = vld [vmem:[#allocation2 + $0x278] sm:$0xff]
    %v5621 = vld [vmem:[#allocation2 + $0x280] sm:$0xff]
    %v5622 = vld [vmem:[#allocation2 + $0x288] sm:$0xff]
    %v5623 = vld [vmem:[#allocation2 + $0x290] sm:$0xff]
    %v5624 = vld [vmem:[#allocation2 + $0x298] sm:$0xff]
    %v5625 = vld [vmem:[#allocation2 + $0x2a0] sm:$0xff]
    %v5626 = vld [vmem:[#allocation2 + $0x2a8] sm:$0xff]
    %v5627 = vld [vmem:[#allocation2 + $0x2b0] sm:$0xff]
    %v5628 = vld [vmem:[#allocation2 + $0x2b8] sm:$0xff]
    %v5629 = vld [vmem:[#allocation2 + $0x2c0] sm:$0xff]
    %v5630 = vld [vmem:[#allocation2 + $0x2c8] sm:$0xff]
    %v5631 = vld [vmem:[#allocation2 + $0x2d0] sm:$0xff]
    %v5632 = vld [vmem:[#allocation2 + $0x2d8] sm:$0xff]
    %v5633 = vld [vmem:[#allocation2 + $0x2e0] sm:$0xff]
    %v5634 = vld [vmem:[#allocation2 + $0x2e8] sm:$0xff]
    %v5635 = vld [vmem:[#allocation2 + $0x2f0] sm:$0xff]
    %v5636 = vld [vmem:[#allocation2 + $0x2f8] sm:$0xff]
    %v5637 = vld [vmem:[#allocation2 + $0x300] sm:$0xff]
    %v5638 = vld [vmem:[#allocation2 + $0x308] sm:$0xff]
    %v5639 = vld [vmem:[#allocation2 + $0x310] sm:$0xff]
    %v5640 = vld [vmem:[#allocation2 + $0x318] sm:$0xff]
    %v5641 = vld [vmem:[#allocation2 + $0x320] sm:$0xff]
    %v5642 = vld [vmem:[#allocation2 + $0x328] sm:$0xff]
    %v5643 = vld [vmem:[#allocation2 + $0x330] sm:$0xff]
    %v5644 = vld [vmem:[#allocation2 + $0x338] sm:$0xff]
    %v5645 = vld [vmem:[#allocation2 + $0x340] sm:$0xff]
    %v5646 = vld [vmem:[#allocation2 + $0x348] sm:$0xff]
    %v5647 = vld [vmem:[#allocation2 + $0x350] sm:$0xff]
    %v5648 = vld [vmem:[#allocation2 + $0x358] sm:$0xff]
    %v5649 = vld [vmem:[#allocation2 + $0x360] sm:$0xff]
    %v5650 = vld [vmem:[#allocation2 + $0x368] sm:$0xff]
    %v5651 = vld [vmem:[#allocation2 + $0x370] sm:$0xff]
    %v5652 = vld [vmem:[#allocation2 + $0x378] sm:$0xff]
    %v5653 = vld [vmem:[#allocation2 + $0x380] sm:$0xff]
    %v5654 = vld [vmem:[#allocation2 + $0x388] sm:$0xff]
    %v5655 = vld [vmem:[#allocation2 + $0x390] sm:$0xff]
    %v5656 = vld [vmem:[#allocation2 + $0x398] sm:$0xff]
    %v5657 = vld [vmem:[#allocation2 + $0x3a0] sm:$0xff]
    %v5658 = vld [vmem:[#allocation2 + $0x3a8] sm:$0xff]
    %v5659 = vld [vmem:[#allocation2 + $0x3b0] sm:$0xff]
    %v5660 = vld [vmem:[#allocation2 + $0x3b8] sm:$0xff]
    %v5661 = vld [vmem:[#allocation2 + $0x3c0] sm:$0xff]
    %v5662 = vld [vmem:[#allocation2 + $0x3c8] sm:$0xff]
    %v5663 = vld [vmem:[#allocation2 + $0x3d0] sm:$0xff]
    %v5664 = vld [vmem:[#allocation2 + $0x3d8] sm:$0xff]
    %v5665 = vld [vmem:[#allocation2 + $0x3e0] sm:$0xff]
    %v5666 = vld [vmem:[#allocation2 + $0x3e8] sm:$0xff]
    %v5667 = vld [vmem:[#allocation2 + $0x3f0] sm:$0xff]
    %v5668 = vld [vmem:[#allocation2 + $0x3f8] sm:$0xff]
    %v5669 = vadd.f32 %v5541, %v5190
    %v5670 = vadd.f32 %v5542, %v5192
    %v5671 = vadd.f32 %v5543, %v5383
    %v5672 = vadd.f32 %v5544, %v5385
    %v5673 = vadd.f32 %v5545, %v5194
    %v5674 = vadd.f32 %v5546, %v5196
    %v5675 = vadd.f32 %v5547, %v5387
    %v5676 = vadd.f32 %v5548, %v5389
    %v5677 = vadd.f32 %v5549, %v5200
    %v5678 = vadd.f32 %v5550, %v5202
    %v5679 = vadd.f32 %v5551, %v5393
    %v5680 = vadd.f32 %v5552, %v5395
    %v5681 = vadd.f32 %v5553, %v5204
    %v5682 = vadd.f32 %v5554, %v5206
    %v5683 = vadd.f32 %v5555, %v5397
    %v5684 = vadd.f32 %v5556, %v5399
    %v5685 = vadd.f32 %v5557, %v5210
    %v5686 = vadd.f32 %v5558, %v5212
    %v5687 = vadd.f32 %v5559, %v5403
    %v5688 = vadd.f32 %v5560, %v5405
    %v5689 = vadd.f32 %v5561, %v5214
    %v5690 = vadd.f32 %v5562, %v5216
    %v5691 = vadd.f32 %v5563, %v5407
    %v5692 = vadd.f32 %v5564, %v5409
    %v5693 = vadd.f32 %v5565, %v5220
    %v5694 = vadd.f32 %v5566, %v5222
    %v5695 = vadd.f32 %v5567, %v5413
    %v5696 = vadd.f32 %v5568, %v5415
    %v5697 = vadd.f32 %v5569, %v5224
    %v5698 = vadd.f32 %v5570, %v5226
    %v5699 = vadd.f32 %v5571, %v5417
    %v5700 = vadd.f32 %v5572, %v5419
    %v5701 = vadd.f32 %v5573, %v5230
    %v5702 = vadd.f32 %v5574, %v5232
    %v5703 = vadd.f32 %v5575, %v5423
    %v5704 = vadd.f32 %v5576, %v5425
    %v5705 = vadd.f32 %v5577, %v5234
    %v5706 = vadd.f32 %v5578, %v5236
    %v5707 = vadd.f32 %v5579, %v5427
    %v5708 = vadd.f32 %v5580, %v5429
    %v5709 = vadd.f32 %v5581, %v5240
    %v5710 = vadd.f32 %v5582, %v5242
    %v5711 = vadd.f32 %v5583, %v5433
    %v5712 = vadd.f32 %v5584, %v5435
    %v5713 = vadd.f32 %v5585, %v5244
    %v5714 = vadd.f32 %v5586, %v5246
    %v5715 = vadd.f32 %v5587, %v5437
    %v5716 = vadd.f32 %v5588, %v5439
    %v5717 = vadd.f32 %v5589, %v5250
    %v5718 = vadd.f32 %v5590, %v5252
    %v5719 = vadd.f32 %v5591, %v5443
    %v5720 = vadd.f32 %v5592, %v5445
    %v5721 = vadd.f32 %v5593, %v5254
    %v5722 = vadd.f32 %v5594, %v5256
    %v5723 = vadd.f32 %v5595, %v5447
    %v5724 = vadd.f32 %v5596, %v5449
    %v5725 = vadd.f32 %v5597, %v5260
    %v5726 = vadd.f32 %v5598, %v5262
    %v5727 = vadd.f32 %v5599, %v5453
    %v5728 = vadd.f32 %v5600, %v5455
    %v5729 = vadd.f32 %v5601, %v5264
    %v5730 = vadd.f32 %v5602, %v5266
    %v5731 = vadd.f32 %v5603, %v5457
    %v5732 = vadd.f32 %v5604, %v5459
    %v5733 = vadd.f32 %v5605, %v5270
    %v5734 = vadd.f32 %v5606, %v5272
    %v5735 = vadd.f32 %v5607, %v5463
    %v5736 = vadd.f32 %v5608, %v5465
    %v5737 = vadd.f32 %v5609, %v5274
    %v5738 = vadd.f32 %v5610, %v5276
    %v5739 = vadd.f32 %v5611, %v5467
    %v5740 = vadd.f32 %v5612, %v5469
    %v5741 = vadd.f32 %v5613, %v5280
    %v5742 = vadd.f32 %v5614, %v5282
    %v5743 = vadd.f32 %v5615, %v5473
    %v5744 = vadd.f32 %v5616, %v5475
    %v5745 = vadd.f32 %v5617, %v5284
    %v5746 = vadd.f32 %v5618, %v5286
    %v5747 = vadd.f32 %v5619, %v5477
    %v5748 = vadd.f32 %v5620, %v5479
    %v5749 = vadd.f32 %v5621, %v5290
    %v5750 = vadd.f32 %v5622, %v5292
    %v5751 = vadd.f32 %v5623, %v5483
    %v5752 = vadd.f32 %v5624, %v5485
    %v5753 = vadd.f32 %v5625, %v5294
    %v5754 = vadd.f32 %v5626, %v5296
    %v5755 = vadd.f32 %v5627, %v5487
    %v5756 = vadd.f32 %v5628, %v5489
    %v5757 = vadd.f32 %v5629, %v5300
    %v5758 = vadd.f32 %v5630, %v5302
    %v5759 = vadd.f32 %v5631, %v5493
    %v5760 = vadd.f32 %v5632, %v5495
    %v5761 = vadd.f32 %v5633, %v5304
    %v5762 = vadd.f32 %v5634, %v5306
    %v5763 = vadd.f32 %v5635, %v5497
    %v5764 = vadd.f32 %v5636, %v5499
    %v5765 = vadd.f32 %v5637, %v5310
    %v5766 = vadd.f32 %v5638, %v5312
    %v5767 = vadd.f32 %v5639, %v5503
    %v5768 = vadd.f32 %v5640, %v5505
    %v5769 = vadd.f32 %v5641, %v5314
    %v5770 = vadd.f32 %v5642, %v5316
    %v5771 = vadd.f32 %v5643, %v5507
    %v5772 = vadd.f32 %v5644, %v5509
    %v5773 = vadd.f32 %v5645, %v5320
    %v5774 = vadd.f32 %v5646, %v5322
    %v5775 = vadd.f32 %v5647, %v5513
    %v5776 = vadd.f32 %v5648, %v5515
    %v5777 = vadd.f32 %v5649, %v5324
    %v5778 = vadd.f32 %v5650, %v5326
    %v5779 = vadd.f32 %v5651, %v5517
    %v5780 = vadd.f32 %v5652, %v5519
    %v5781 = vadd.f32 %v5653, %v5330
    %v5782 = vadd.f32 %v5654, %v5332
    %v5783 = vadd.f32 %v5655, %v5523
    %v5784 = vadd.f32 %v5656, %v5525
    %v5785 = vadd.f32 %v5657, %v5334
    %v5786 = vadd.f32 %v5658, %v5336
    %v5787 = vadd.f32 %v5659, %v5527
    %v5788 = vadd.f32 %v5660, %v5529
    %v5789 = vadd.f32 %v5661, %v5340
    %v5790 = vadd.f32 %v5662, %v5342
    %v5791 = vadd.f32 %v5663, %v5533
    %v5792 = vadd.f32 %v5664, %v5535
    %v5793 = vadd.f32 %v5665, %v5344
    %v5794 = vadd.f32 %v5666, %v5346
    %v5795 = vadd.f32 %v5667, %v5537
    %v5796 = vadd.f32 %v5668, %v5539
    %5797 = vst [vmem:[#allocation2] sm:$0xff] %v5669
    %5798 = vst [vmem:[#allocation2 + $0x8] sm:$0xff] %v5670
    %5799 = vst [vmem:[#allocation2 + $0x10] sm:$0xff] %v5671
    %5800 = vst [vmem:[#allocation2 + $0x18] sm:$0xff] %v5672
    %5801 = vst [vmem:[#allocation2 + $0x20] sm:$0xff] %v5673
    %5802 = vst [vmem:[#allocation2 + $0x28] sm:$0xff] %v5674
    %5803 = vst [vmem:[#allocation2 + $0x30] sm:$0xff] %v5675
    %5804 = vst [vmem:[#allocation2 + $0x38] sm:$0xff] %v5676
    %5805 = vst [vmem:[#allocation2 + $0x40] sm:$0xff] %v5677
    %5806 = vst [vmem:[#allocation2 + $0x48] sm:$0xff] %v5678
    %5807 = vst [vmem:[#allocation2 + $0x50] sm:$0xff] %v5679
    %5808 = vst [vmem:[#allocation2 + $0x58] sm:$0xff] %v5680
    %5809 = vst [vmem:[#allocation2 + $0x60] sm:$0xff] %v5681
    %5810 = vst [vmem:[#allocation2 + $0x68] sm:$0xff] %v5682
    %5811 = vst [vmem:[#allocation2 + $0x70] sm:$0xff] %v5683
    %5812 = vst [vmem:[#allocation2 + $0x78] sm:$0xff] %v5684
    %5813 = vst [vmem:[#allocation2 + $0x80] sm:$0xff] %v5685
    %5814 = vst [vmem:[#allocation2 + $0x88] sm:$0xff] %v5686
    %5815 = vst [vmem:[#allocation2 + $0x90] sm:$0xff] %v5687
    %5816 = vst [vmem:[#allocation2 + $0x98] sm:$0xff] %v5688
    %5817 = vst [vmem:[#allocation2 + $0xa0] sm:$0xff] %v5689
    %5818 = vst [vmem:[#allocation2 + $0xa8] sm:$0xff] %v5690
    %5819 = vst [vmem:[#allocation2 + $0xb0] sm:$0xff] %v5691
    %5820 = vst [vmem:[#allocation2 + $0xb8] sm:$0xff] %v5692
    %5821 = vst [vmem:[#allocation2 + $0xc0] sm:$0xff] %v5693
    %5822 = vst [vmem:[#allocation2 + $0xc8] sm:$0xff] %v5694
    %5823 = vst [vmem:[#allocation2 + $0xd0] sm:$0xff] %v5695
    %5824 = vst [vmem:[#allocation2 + $0xd8] sm:$0xff] %v5696
    %5825 = vst [vmem:[#allocation2 + $0xe0] sm:$0xff] %v5697
    %5826 = vst [vmem:[#allocation2 + $0xe8] sm:$0xff] %v5698
    %5827 = vst [vmem:[#allocation2 + $0xf0] sm:$0xff] %v5699
    %5828 = vst [vmem:[#allocation2 + $0xf8] sm:$0xff] %v5700
    %5829 = vst [vmem:[#allocation2 + $0x100] sm:$0xff] %v5701
    %5830 = vst [vmem:[#allocation2 + $0x108] sm:$0xff] %v5702
    %5831 = vst [vmem:[#allocation2 + $0x110] sm:$0xff] %v5703
    %5832 = vst [vmem:[#allocation2 + $0x118] sm:$0xff] %v5704
    %5833 = vst [vmem:[#allocation2 + $0x120] sm:$0xff] %v5705
    %5834 = vst [vmem:[#allocation2 + $0x128] sm:$0xff] %v5706
    %5835 = vst [vmem:[#allocation2 + $0x130] sm:$0xff] %v5707
    %5836 = vst [vmem:[#allocation2 + $0x138] sm:$0xff] %v5708
    %5837 = vst [vmem:[#allocation2 + $0x140] sm:$0xff] %v5709
    %5838 = vst [vmem:[#allocation2 + $0x148] sm:$0xff] %v5710
    %5839 = vst [vmem:[#allocation2 + $0x150] sm:$0xff] %v5711
    %5840 = vst [vmem:[#allocation2 + $0x158] sm:$0xff] %v5712
    %5841 = vst [vmem:[#allocation2 + $0x160] sm:$0xff] %v5713
    %5842 = vst [vmem:[#allocation2 + $0x168] sm:$0xff] %v5714
    %5843 = vst [vmem:[#allocation2 + $0x170] sm:$0xff] %v5715
    %5844 = vst [vmem:[#allocation2 + $0x178] sm:$0xff] %v5716
    %5845 = vst [vmem:[#allocation2 + $0x180] sm:$0xff] %v5717
    %5846 = vst [vmem:[#allocation2 + $0x188] sm:$0xff] %v5718
    %5847 = vst [vmem:[#allocation2 + $0x190] sm:$0xff] %v5719
    %5848 = vst [vmem:[#allocation2 + $0x198] sm:$0xff] %v5720
    %5849 = vst [vmem:[#allocation2 + $0x1a0] sm:$0xff] %v5721
    %5850 = vst [vmem:[#allocation2 + $0x1a8] sm:$0xff] %v5722
    %5851 = vst [vmem:[#allocation2 + $0x1b0] sm:$0xff] %v5723
    %5852 = vst [vmem:[#allocation2 + $0x1b8] sm:$0xff] %v5724
    %5853 = vst [vmem:[#allocation2 + $0x1c0] sm:$0xff] %v5725
    %5854 = vst [vmem:[#allocation2 + $0x1c8] sm:$0xff] %v5726
    %5855 = vst [vmem:[#allocation2 + $0x1d0] sm:$0xff] %v5727
    %5856 = vst [vmem:[#allocation2 + $0x1d8] sm:$0xff] %v5728
    %5857 = vst [vmem:[#allocation2 + $0x1e0] sm:$0xff] %v5729
    %5858 = vst [vmem:[#allocation2 + $0x1e8] sm:$0xff] %v5730
    %5859 = vst [vmem:[#allocation2 + $0x1f0] sm:$0xff] %v5731
    %5860 = vst [vmem:[#allocation2 + $0x1f8] sm:$0xff] %v5732
    %5861 = vst [vmem:[#allocation2 + $0x200] sm:$0xff] %v5733
    %5862 = vst [vmem:[#allocation2 + $0x208] sm:$0xff] %v5734
    %5863 = vst [vmem:[#allocation2 + $0x210] sm:$0xff] %v5735
    %5864 = vst [vmem:[#allocation2 + $0x218] sm:$0xff] %v5736
    %5865 = vst [vmem:[#allocation2 + $0x220] sm:$0xff] %v5737
    %5866 = vst [vmem:[#allocation2 + $0x228] sm:$0xff] %v5738
    %5867 = vst [vmem:[#allocation2 + $0x230] sm:$0xff] %v5739
    %5868 = vst [vmem:[#allocation2 + $0x238] sm:$0xff] %v5740
    %5869 = vst [vmem:[#allocation2 + $0x240] sm:$0xff] %v5741
    %5870 = vst [vmem:[#allocation2 + $0x248] sm:$0xff] %v5742
    %5871 = vst [vmem:[#allocation2 + $0x250] sm:$0xff] %v5743
    %5872 = vst [vmem:[#allocation2 + $0x258] sm:$0xff] %v5744
    %5873 = vst [vmem:[#allocation2 + $0x260] sm:$0xff] %v5745
    %5874 = vst [vmem:[#allocation2 + $0x268] sm:$0xff] %v5746
    %5875 = vst [vmem:[#allocation2 + $0x270] sm:$0xff] %v5747
    %5876 = vst [vmem:[#allocation2 + $0x278] sm:$0xff] %v5748
    %5877 = vst [vmem:[#allocation2 + $0x280] sm:$0xff] %v5749
    %5878 = vst [vmem:[#allocation2 + $0x288] sm:$0xff] %v5750
    %5879 = vst [vmem:[#allocation2 + $0x290] sm:$0xff] %v5751
    %5880 = vst [vmem:[#allocation2 + $0x298] sm:$0xff] %v5752
    %5881 = vst [vmem:[#allocation2 + $0x2a0] sm:$0xff] %v5753
    %5882 = vst [vmem:[#allocation2 + $0x2a8] sm:$0xff] %v5754
    %5883 = vst [vmem:[#allocation2 + $0x2b0] sm:$0xff] %v5755
    %5884 = vst [vmem:[#allocation2 + $0x2b8] sm:$0xff] %v5756
    %5885 = vst [vmem:[#allocation2 + $0x2c0] sm:$0xff] %v5757
    %5886 = vst [vmem:[#allocation2 + $0x2c8] sm:$0xff] %v5758
    %5887 = vst [vmem:[#allocation2 + $0x2d0] sm:$0xff] %v5759
    %5888 = vst [vmem:[#allocation2 + $0x2d8] sm:$0xff] %v5760
    %5889 = vst [vmem:[#allocation2 + $0x2e0] sm:$0xff] %v5761
    %5890 = vst [vmem:[#allocation2 + $0x2e8] sm:$0xff] %v5762
    %5891 = vst [vmem:[#allocation2 + $0x2f0] sm:$0xff] %v5763
    %5892 = vst [vmem:[#allocation2 + $0x2f8] sm:$0xff] %v5764
    %5893 = vst [vmem:[#allocation2 + $0x300] sm:$0xff] %v5765
    %5894 = vst [vmem:[#allocation2 + $0x308] sm:$0xff] %v5766
    %5895 = vst [vmem:[#allocation2 + $0x310] sm:$0xff] %v5767
    %5896 = vst [vmem:[#allocation2 + $0x318] sm:$0xff] %v5768
    %5897 = vst [vmem:[#allocation2 + $0x320] sm:$0xff] %v5769
    %5898 = vst [vmem:[#allocation2 + $0x328] sm:$0xff] %v5770
    %5899 = vst [vmem:[#allocation2 + $0x330] sm:$0xff] %v5771
    %5900 = vst [vmem:[#allocation2 + $0x338] sm:$0xff] %v5772
    %5901 = vst [vmem:[#allocation2 + $0x340] sm:$0xff] %v5773
    %5902 = vst [vmem:[#allocation2 + $0x348] sm:$0xff] %v5774
    %5903 = vst [vmem:[#allocation2 + $0x350] sm:$0xff] %v5775
    %5904 = vst [vmem:[#allocation2 + $0x358] sm:$0xff] %v5776
    %5905 = vst [vmem:[#allocation2 + $0x360] sm:$0xff] %v5777
    %5906 = vst [vmem:[#allocation2 + $0x368] sm:$0xff] %v5778
    %5907 = vst [vmem:[#allocation2 + $0x370] sm:$0xff] %v5779
    %5908 = vst [vmem:[#allocation2 + $0x378] sm:$0xff] %v5780
    %5909 = vst [vmem:[#allocation2 + $0x380] sm:$0xff] %v5781
    %5910 = vst [vmem:[#allocation2 + $0x388] sm:$0xff] %v5782
    %5911 = vst [vmem:[#allocation2 + $0x390] sm:$0xff] %v5783
    %5912 = vst [vmem:[#allocation2 + $0x398] sm:$0xff] %v5784
    %5913 = vst [vmem:[#allocation2 + $0x3a0] sm:$0xff] %v5785
    %5914 = vst [vmem:[#allocation2 + $0x3a8] sm:$0xff] %v5786
    %5915 = vst [vmem:[#allocation2 + $0x3b0] sm:$0xff] %v5787
    %5916 = vst [vmem:[#allocation2 + $0x3b8] sm:$0xff] %v5788
    %5917 = vst [vmem:[#allocation2 + $0x3c0] sm:$0xff] %v5789
    %5918 = vst [vmem:[#allocation2 + $0x3c8] sm:$0xff] %v5790
    %5919 = vst [vmem:[#allocation2 + $0x3d0] sm:$0xff] %v5791
    %5920 = vst [vmem:[#allocation2 + $0x3d8] sm:$0xff] %v5792
    %5921 = vst [vmem:[#allocation2 + $0x3e0] sm:$0xff] %v5793
    %5922 = vst [vmem:[#allocation2 + $0x3e8] sm:$0xff] %v5794
    %5923 = vst [vmem:[#allocation2 + $0x3f0] sm:$0xff] %v5795
    %5924 = vst [vmem:[#allocation2 + $0x3f8] sm:$0xff] %v5796
    %v5925 = vld [vmem:[%s3453] sm:$0xe]
    %v5926 = vld [vmem:[%s3453 + $0x4] sm:$0xf]
    %v5927 = vld [vmem:[%s3453 + $0x8] sm:$0x1]
    %v5928 = vld [vmem:[%s3453 + $0xc] sm:$0xe]
    %v5929 = vld [vmem:[%s3453 + $0x10] sm:$0xf]
    %v5930 = vld [vmem:[%s3453 + $0x14] sm:$0x1]
    %v5931 = vld [vmem:[%s3453 + $0x18] sm:$0xe]
    %v5932 = vld [vmem:[%s3453 + $0x1c] sm:$0xf]
    %v5933 = vld [vmem:[%s3453 + $0x20] sm:$0x1]
    %v5934 = vld [vmem:[%s3453 + $0x24] sm:$0xe]
    %v5935 = vld [vmem:[%s3453 + $0x28] sm:$0xf]
    %v5936 = vld [vmem:[%s3453 + $0x2c] sm:$0x1]
    %v5937 = vld [vmem:[%s3453 + $0x30] sm:$0xe]
    %v5938 = vld [vmem:[%s3453 + $0x34] sm:$0xf]
    %v5939 = vld [vmem:[%s3453 + $0x38] sm:$0x1]
    %v5940 = vld [vmem:[%s3453 + $0x3c] sm:$0xe]
    %v5941 = vld [vmem:[%s3453 + $0x40] sm:$0xf]
    %v5942 = vld [vmem:[%s3453 + $0x44] sm:$0x1]
    %v5943 = vld [vmem:[%s3453 + $0x48] sm:$0xe]
    %v5944 = vld [vmem:[%s3453 + $0x4c] sm:$0xf]
    %v5945 = vld [vmem:[%s3453 + $0x50] sm:$0x1]
    %v5946 = vld [vmem:[%s3453 + $0x54] sm:$0xe]
    %v5947 = vld [vmem:[%s3453 + $0x58] sm:$0xf]
    %v5948 = vld [vmem:[%s3453 + $0x5c] sm:$0x1]
    %v5973 = vrot.slane %v5925, 5
    %v5974 = vrot.slane %v5973, 4
    %v5975 = vrot.slane %v5926, 5
    %v5976 = vsel %vm2305, %v5974, %v5975
    %v5977 = vrot.slane %v5975, 4
    %v5978 = vrot.slane %v5927, 5
    %v5979 = vsel %vm2305, %v5977, %v5978
    %v5980 = vrot.slane %v5928, 5
    %v5981 = vrot.slane %v5980, 4
    %v5982 = vrot.slane %v5929, 5
    %v5983 = vsel %vm2305, %v5981, %v5982
    %v5984 = vrot.slane %v5982, 4
    %v5985 = vrot.slane %v5930, 5
    %v5986 = vsel %vm2305, %v5984, %v5985
    %v5987 = vrot.slane %v5931, 5
    %v5988 = vrot.slane %v5987, 4
    %v5989 = vrot.slane %v5932, 5
    %v5990 = vsel %vm2305, %v5988, %v5989
    %v5991 = vrot.slane %v5989, 4
    %v5992 = vrot.slane %v5933, 5
    %v5993 = vsel %vm2305, %v5991, %v5992
    %v5994 = vrot.slane %v5934, 5
    %v5995 = vrot.slane %v5994, 4
    %v5996 = vrot.slane %v5935, 5
    %v5997 = vsel %vm2305, %v5995, %v5996
    %v5998 = vrot.slane %v5996, 4
    %v5999 = vrot.slane %v5936, 5
    %v6000 = vsel %vm2305, %v5998, %v5999
    %v6001 = vrot.slane %v5937, 5
    %v6002 = vrot.slane %v6001, 4
    %v6003 = vrot.slane %v5938, 5
    %v6004 = vsel %vm2305, %v6002, %v6003
    %v6005 = vrot.slane %v6003, 4
    %v6006 = vrot.slane %v5939, 5
    %v6007 = vsel %vm2305, %v6005, %v6006
    %v6008 = vrot.slane %v5940, 5
    %v6009 = vrot.slane %v6008, 4
    %v6010 = vrot.slane %v5941, 5
    %v6011 = vsel %vm2305, %v6009, %v6010
    %v6012 = vrot.slane %v6010, 4
    %v6013 = vrot.slane %v5942, 5
    %v6014 = vsel %vm2305, %v6012, %v6013
    %v6015 = vrot.slane %v5943, 5
    %v6016 = vrot.slane %v6015, 4
    %v6017 = vrot.slane %v5944, 5
    %v6018 = vsel %vm2305, %v6016, %v6017
    %v6019 = vrot.slane %v6017, 4
    %v6020 = vrot.slane %v5945, 5
    %v6021 = vsel %vm2305, %v6019, %v6020
    %v6022 = vrot.slane %v5946, 5
    %v6023 = vrot.slane %v6022, 4
    %v6024 = vrot.slane %v5947, 5
    %v6025 = vsel %vm2305, %v6023, %v6024
    %v6026 = vrot.slane %v6024, 4
    %v6027 = vrot.slane %v5948, 5
    %v6028 = vsel %vm2305, %v6026, %v6027
    %v6029 = vld [vmem:[%s3470] sm:$0xe]
    %v6030 = vld [vmem:[%s3470 + $0x4] sm:$0xf]
    %v6031 = vld [vmem:[%s3470 + $0x8] sm:$0x1]
    %v6032 = vld [vmem:[%s3470 + $0xc] sm:$0xe]
    %v6033 = vld [vmem:[%s3470 + $0x10] sm:$0xf]
    %v6034 = vld [vmem:[%s3470 + $0x14] sm:$0x1]
    %v6035 = vld [vmem:[%s3470 + $0x18] sm:$0xe]
    %v6036 = vld [vmem:[%s3470 + $0x1c] sm:$0xf]
    %v6037 = vld [vmem:[%s3470 + $0x20] sm:$0x1]
    %v6038 = vld [vmem:[%s3470 + $0x24] sm:$0xe]
    %v6039 = vld [vmem:[%s3470 + $0x28] sm:$0xf]
    %v6040 = vld [vmem:[%s3470 + $0x2c] sm:$0x1]
    %v6041 = vld [vmem:[%s3470 + $0x30] sm:$0xe]
    %v6042 = vld [vmem:[%s3470 + $0x34] sm:$0xf]
    %v6043 = vld [vmem:[%s3470 + $0x38] sm:$0x1]
    %v6044 = vld [vmem:[%s3470 + $0x3c] sm:$0xe]
    %v6045 = vld [vmem:[%s3470 + $0x40] sm:$0xf]
    %v6046 = vld [vmem:[%s3470 + $0x44] sm:$0x1]
    %v6047 = vld [vmem:[%s3470 + $0x48] sm:$0xe]
    %v6048 = vld [vmem:[%s3470 + $0x4c] sm:$0xf]
    %v6049 = vld [vmem:[%s3470 + $0x50] sm:$0x1]
    %v6050 = vld [vmem:[%s3470 + $0x54] sm:$0xe]
    %v6051 = vld [vmem:[%s3470 + $0x58] sm:$0xf]
    %v6052 = vld [vmem:[%s3470 + $0x5c] sm:$0x1]
    %v6077 = vrot.slane %v6029, 5
    %v6078 = vrot.slane %v6077, 4
    %v6079 = vrot.slane %v6030, 5
    %v6080 = vsel %vm2305, %v6078, %v6079
    %v6081 = vrot.slane %v6079, 4
    %v6082 = vrot.slane %v6031, 5
    %v6083 = vsel %vm2305, %v6081, %v6082
    %v6084 = vrot.slane %v6032, 5
    %v6085 = vrot.slane %v6084, 4
    %v6086 = vrot.slane %v6033, 5
    %v6087 = vsel %vm2305, %v6085, %v6086
    %v6088 = vrot.slane %v6086, 4
    %v6089 = vrot.slane %v6034, 5
    %v6090 = vsel %vm2305, %v6088, %v6089
    %v6091 = vrot.slane %v6035, 5
    %v6092 = vrot.slane %v6091, 4
    %v6093 = vrot.slane %v6036, 5
    %v6094 = vsel %vm2305, %v6092, %v6093
    %v6095 = vrot.slane %v6093, 4
    %v6096 = vrot.slane %v6037, 5
    %v6097 = vsel %vm2305, %v6095, %v6096
    %v6098 = vrot.slane %v6038, 5
    %v6099 = vrot.slane %v6098, 4
    %v6100 = vrot.slane %v6039, 5
    %v6101 = vsel %vm2305, %v6099, %v6100
    %v6102 = vrot.slane %v6100, 4
    %v6103 = vrot.slane %v6040, 5
    %v6104 = vsel %vm2305, %v6102, %v6103
    %v6105 = vrot.slane %v6041, 5
    %v6106 = vrot.slane %v6105, 4
    %v6107 = vrot.slane %v6042, 5
    %v6108 = vsel %vm2305, %v6106, %v6107
    %v6109 = vrot.slane %v6107, 4
    %v6110 = vrot.slane %v6043, 5
    %v6111 = vsel %vm2305, %v6109, %v6110
    %v6112 = vrot.slane %v6044, 5
    %v6113 = vrot.slane %v6112, 4
    %v6114 = vrot.slane %v6045, 5
    %v6115 = vsel %vm2305, %v6113, %v6114
    %v6116 = vrot.slane %v6114, 4
    %v6117 = vrot.slane %v6046, 5
    %v6118 = vsel %vm2305, %v6116, %v6117
    %v6119 = vrot.slane %v6047, 5
    %v6120 = vrot.slane %v6119, 4
    %v6121 = vrot.slane %v6048, 5
    %v6122 = vsel %vm2305, %v6120, %v6121
    %v6123 = vrot.slane %v6121, 4
    %v6124 = vrot.slane %v6049, 5
    %v6125 = vsel %vm2305, %v6123, %v6124
    %v6126 = vrot.slane %v6050, 5
    %v6127 = vrot.slane %v6126, 4
    %v6128 = vrot.slane %v6051, 5
    %v6129 = vsel %vm2305, %v6127, %v6128
    %v6130 = vrot.slane %v6128, 4
    %v6131 = vrot.slane %v6052, 5
    %v6132 = vsel %vm2305, %v6130, %v6131
    %v6133 = vunpack.c.l.b16 %v5976
    %v6134 = vunpack.c.l.b16 %v5979
    %v6135 = vunpack.c.l.b16 %v5983
    %v6136 = vunpack.c.l.b16 %v5986
    %v6137 = vunpack.c.l.b16 %v5990
    %v6138 = vunpack.c.l.b16 %v5993
    %v6139 = vunpack.c.l.b16 %v5997
    %v6140 = vunpack.c.l.b16 %v6000
    %v6141 = vunpack.c.l.b16 %v6004
    %v6142 = vunpack.c.l.b16 %v6007
    %v6143 = vunpack.c.l.b16 %v6011
    %v6144 = vunpack.c.l.b16 %v6014
    %v6145 = vunpack.c.l.b16 %v6018
    %v6146 = vunpack.c.l.b16 %v6021
    %v6147 = vunpack.c.l.b16 %v6025
    %v6148 = vunpack.c.l.b16 %v6028
    %v6149 = vpack.c.b16 %v6134, %v6133
    %v6150 = vpack.c.b16 %v6136, %v6135
    %v6151 = vpack.c.b16 %v6138, %v6137
    %v6152 = vpack.c.b16 %v6140, %v6139
    %v6153 = vpack.c.b16 %v6142, %v6141
    %v6154 = vpack.c.b16 %v6144, %v6143
    %v6155 = vpack.c.b16 %v6146, %v6145
    %v6156 = vpack.c.b16 %v6148, %v6147
    %v6157 = vunpack.c.l.b16 %v6080
    %v6158 = vunpack.c.l.b16 %v6083
    %v6159 = vunpack.c.l.b16 %v6087
    %v6160 = vunpack.c.l.b16 %v6090
    %v6161 = vunpack.c.l.b16 %v6094
    %v6162 = vunpack.c.l.b16 %v6097
    %v6163 = vunpack.c.l.b16 %v6101
    %v6164 = vunpack.c.l.b16 %v6104
    %v6165 = vunpack.c.l.b16 %v6108
    %v6166 = vunpack.c.l.b16 %v6111
    %v6167 = vunpack.c.l.b16 %v6115
    %v6168 = vunpack.c.l.b16 %v6118
    %v6169 = vunpack.c.l.b16 %v6122
    %v6170 = vunpack.c.l.b16 %v6125
    %v6171 = vunpack.c.l.b16 %v6129
    %v6172 = vunpack.c.l.b16 %v6132
    %v6173 = vpack.c.b16 %v6158, %v6157
    %v6174 = vpack.c.b16 %v6160, %v6159
    %v6175 = vpack.c.b16 %v6162, %v6161
    %v6176 = vpack.c.b16 %v6164, %v6163
    %v6177 = vpack.c.b16 %v6166, %v6165
    %v6178 = vpack.c.b16 %v6168, %v6167
    %v6179 = vpack.c.b16 %v6170, %v6169
    %v6180 = vpack.c.b16 %v6172, %v6171
    %s6181 = scalar_lea.vmem [#allocation3], 720
    %v6182 = vld [vmem:[%s6181] sm:$0xff]
    %v6183 = vld [vmem:[%s6181 + $0x8] sm:$0xff]
    %v6184 = vld [vmem:[%s6181 + $0x10] sm:$0xff]
    %v6185 = vld [vmem:[%s6181 + $0x18] sm:$0xff]
    %v6186 = vld [vmem:[%s6181 + $0x20] sm:$0xff]
    %v6187 = vld [vmem:[%s6181 + $0x28] sm:$0xff]
    %v6188 = vld [vmem:[%s6181 + $0x30] sm:$0xff]
    %v6189 = vld [vmem:[%s6181 + $0x38] sm:$0xff]
    %v6190 = vld [vmem:[%s6181 + $0x40] sm:$0xff]
    %v6191 = vld [vmem:[%s6181 + $0x48] sm:$0xff]
    %v6192 = vld [vmem:[%s6181 + $0x50] sm:$0xff]
    %v6193 = vld [vmem:[%s6181 + $0x58] sm:$0xff]
    %v6194 = vld [vmem:[%s6181 + $0x60] sm:$0xff]
    %v6195 = vld [vmem:[%s6181 + $0x68] sm:$0xff]
    %v6196 = vld [vmem:[%s6181 + $0x70] sm:$0xff]
    %v6197 = vld [vmem:[%s6181 + $0x78] sm:$0xff]
    %v6198 = vld [vmem:[%s6181 + $0x80] sm:$0xff]
    %v6199 = vld [vmem:[%s6181 + $0x88] sm:$0xff]
    %v6218 = vunpack.c.l.b16 %v6182
    %v6219 = vunpack.c.h.b16 %v6182
    %v6220 = vunpack.c.l.b16 %v6183
    %v6221 = vunpack.c.h.b16 %v6183
    %v6222 = vunpack.c.l.b16 %v6184
    %v6223 = vunpack.c.h.b16 %v6184
    %v6224 = vunpack.c.l.b16 %v6185
    %v6225 = vunpack.c.h.b16 %v6185
    %v6226 = vunpack.c.l.b16 %v6186
    %v6227 = vunpack.c.h.b16 %v6186
    %v6228 = vunpack.c.l.b16 %v6187
    %v6229 = vunpack.c.h.b16 %v6187
    %v6230 = vunpack.c.l.b16 %v6188
    %v6231 = vunpack.c.h.b16 %v6188
    %v6232 = vunpack.c.l.b16 %v6189
    %v6233 = vunpack.c.h.b16 %v6189
    %v6234 = vunpack.c.l.b16 %v6190
    %v6235 = vunpack.c.h.b16 %v6190
    %v6236 = vunpack.c.l.b16 %v6191
    %v6237 = vunpack.c.h.b16 %v6191
    %v6238 = vunpack.c.l.b16 %v6192
    %v6239 = vunpack.c.h.b16 %v6192
    %v6240 = vunpack.c.l.b16 %v6193
    %v6241 = vunpack.c.h.b16 %v6193
    %v6242 = vunpack.c.l.b16 %v6194
    %v6243 = vunpack.c.h.b16 %v6194
    %v6244 = vunpack.c.l.b16 %v6195
    %v6245 = vunpack.c.h.b16 %v6195
    %v6246 = vunpack.c.l.b16 %v6196
    %v6247 = vunpack.c.h.b16 %v6196
    %v6248 = vunpack.c.l.b16 %v6197
    %v6249 = vunpack.c.h.b16 %v6197
    %v6250 = vunpack.c.l.b16 %v6198
    %v6251 = vunpack.c.h.b16 %v6198
    %v6252 = vunpack.c.l.b16 %v6199
    %v6253 = vunpack.c.h.b16 %v6199
    %v6254 = vpack.c.b16 %v6222, %v6218
    %v6255 = vpack.c.b16 %v6223, %v6219
    %v6256 = vpack.c.b16 %v6224, %v6220
    %v6257 = vpack.c.b16 %v6225, %v6221
    %v6258 = vpack.c.b16 %v6230, %v6226
    %v6259 = vpack.c.b16 %v6231, %v6227
    %v6260 = vpack.c.b16 %v6232, %v6228
    %v6261 = vpack.c.b16 %v6233, %v6229
    %v6262 = vpack.c.b16 %v6238, %v6234
    %v6263 = vpack.c.b16 %v6239, %v6235
    %v6264 = vpack.c.b16 %v6240, %v6236
    %v6265 = vpack.c.b16 %v6241, %v6237
    %v6266 = vpack.c.b16 %v6246, %v6242
    %v6267 = vpack.c.b16 %v6247, %v6243
    %v6268 = vpack.c.b16 %v6248, %v6244
    %v6269 = vpack.c.b16 %v6249, %v6245
    %v6270 = vpack.c.b16 %v6250, %v6250
    %v6271 = vpack.c.b16 %v6251, %v6251
    %v6272 = vpack.c.b16 %v6252, %v6252
    %v6273 = vpack.c.b16 %v6253, %v6253
    %v6291 = vsel %vm257, %v6149, 0
    %v6294 = vsel %vm257, %v6150, 0
    %v6297 = vsel %vm257, %v6151, 0
    %v6300 = vsel %vm257, %v6152, 0
    %v6303 = vsel %vm257, %v6153, 0
    %v6306 = vsel %vm257, %v6154, 0
    %v6309 = vsel %vm257, %v6155, 0
    %v6312 = vsel %vm257, %v6156, 0
    %v6315 = vsel %vm257, %v6173, 0
    %v6318 = vsel %vm257, %v6174, 0
    %v6321 = vsel %vm257, %v6175, 0
    %v6324 = vsel %vm257, %v6176, 0
    %v6327 = vsel %vm257, %v6177, 0
    %v6330 = vsel %vm257, %v6178, 0
    %v6333 = vsel %vm257, %v6179, 0
    %v6336 = vsel %vm257, %v6180, 0
    %v6339 = vsel %vm306, %v6270, 0
    %v6342 = vsel %vm306, %v6271, 0
    %v6345 = vsel %vm306, %v6272, 0
    %v6348 = vsel %vm306, %v6273, 0
    %6350 = vmatprep.subr.bf16.mxu0 0
    %6351 = vmatpush1.bf16.msra.mxu0 0
    %6352 = vmatprep.subr.bf16.mxu0 0
    %6353 = vmatpush1.bf16.msra.mxu0 0
    %6354 = vmatprep.subr.bf16.mxu0 0
    %6355 = vmatpush1.bf16.msra.mxu0 0
    %6356 = vmatprep.subr.bf16.mxu0 %v6342
    %6357 = vmatpush1.bf16.msra.mxu0 %v6339
    %6358 = vmatprep.subr.bf16.mxu0 %v6267
    %6359 = vmatpush1.bf16.msra.mxu0 %v6266
    %6360 = vmatprep.subr.bf16.mxu0 %v6263
    %6361 = vmatpush1.bf16.msra.mxu0 %v6262
    %6362 = vmatprep.subr.bf16.mxu0 %v6259
    %6363 = vmatpush1.bf16.msra.mxu0 %v6258
    %6364 = vmatprep.subr.bf16.mxu0 %v6255
    %6365 = vmatpush1.bf16.msra.mxu0 %v6254
    %6366 = vmatprep.subr.bf16.mxu0 0
    %6367 = vmatpush2.bf16.msra.mxu0 0
    %6368 = vmatprep.subr.bf16.mxu0 0
    %6369 = vmatpush2.bf16.msra.mxu0 0
    %6370 = vmatprep.subr.bf16.mxu0 0
    %6371 = vmatpush2.bf16.msra.mxu0 0
    %6372 = vmatprep.subr.bf16.mxu0 0
    %6373 = vmatpush2.bf16.msra.mxu0 0
    %6374 = vmatprep.subr.bf16.mxu0 0
    %6375 = vmatpush2.bf16.msra.mxu0 0
    %6376 = vmatprep.subr.bf16.mxu0 0
    %6377 = vmatpush2.bf16.msra.mxu0 0
    %6378 = vmatprep.subr.bf16.mxu0 0
    %6379 = vmatpush2.bf16.msra.mxu0 0
    %6380 = vmatprep.subr.bf16.mxu0 0
    %6381 = vmatpush2.bf16.msra.mxu0 0
    %6382 = vmatprep.mubr.bf16.mxu0 0
    %6383 = vmatmul.mubr.bf16.gmra.mxu0 %v6291
    %v6384 = vpop.f32.mrf.mxu0
    %v6385 = vadd.f32 0.0, %v6384
    %v6386 = vpop.f32.mrf.mxu0
    %v6387 = vadd.f32 0.0, %v6386
    %v6388 = vpop.f32.mrf.mxu0
    %v6389 = vadd.f32 0.0, %v6388
    %v6390 = vpop.f32.mrf.mxu0
    %v6391 = vadd.f32 0.0, %v6390
    %6392 = vmatprep.mubr.bf16.mxu0 0
    %6393 = vmatmul.mubr.bf16.gmra.mxu0 %v6294
    %v6394 = vpop.f32.mrf.mxu0
    %v6395 = vadd.f32 0.0, %v6394
    %v6396 = vpop.f32.mrf.mxu0
    %v6397 = vadd.f32 0.0, %v6396
    %v6398 = vpop.f32.mrf.mxu0
    %v6399 = vadd.f32 0.0, %v6398
    %v6400 = vpop.f32.mrf.mxu0
    %v6401 = vadd.f32 0.0, %v6400
    %6402 = vmatprep.mubr.bf16.mxu0 0
    %6403 = vmatmul.mubr.bf16.gmra.mxu0 %v6297
    %v6404 = vpop.f32.mrf.mxu0
    %v6405 = vadd.f32 0.0, %v6404
    %v6406 = vpop.f32.mrf.mxu0
    %v6407 = vadd.f32 0.0, %v6406
    %v6408 = vpop.f32.mrf.mxu0
    %v6409 = vadd.f32 0.0, %v6408
    %v6410 = vpop.f32.mrf.mxu0
    %v6411 = vadd.f32 0.0, %v6410
    %6412 = vmatprep.mubr.bf16.mxu0 0
    %6413 = vmatmul.mubr.bf16.gmra.mxu0 %v6300
    %v6414 = vpop.f32.mrf.mxu0
    %v6415 = vadd.f32 0.0, %v6414
    %v6416 = vpop.f32.mrf.mxu0
    %v6417 = vadd.f32 0.0, %v6416
    %v6418 = vpop.f32.mrf.mxu0
    %v6419 = vadd.f32 0.0, %v6418
    %v6420 = vpop.f32.mrf.mxu0
    %v6421 = vadd.f32 0.0, %v6420
    %6422 = vmatprep.mubr.bf16.mxu0 0
    %6423 = vmatmul.mubr.bf16.gmra.mxu0 %v6303
    %v6424 = vpop.f32.mrf.mxu0
    %v6425 = vadd.f32 0.0, %v6424
    %v6426 = vpop.f32.mrf.mxu0
    %v6427 = vadd.f32 0.0, %v6426
    %v6428 = vpop.f32.mrf.mxu0
    %v6429 = vadd.f32 0.0, %v6428
    %v6430 = vpop.f32.mrf.mxu0
    %v6431 = vadd.f32 0.0, %v6430
    %6432 = vmatprep.mubr.bf16.mxu0 0
    %6433 = vmatmul.mubr.bf16.gmra.mxu0 %v6306
    %v6434 = vpop.f32.mrf.mxu0
    %v6435 = vadd.f32 0.0, %v6434
    %v6436 = vpop.f32.mrf.mxu0
    %v6437 = vadd.f32 0.0, %v6436
    %v6438 = vpop.f32.mrf.mxu0
    %v6439 = vadd.f32 0.0, %v6438
    %v6440 = vpop.f32.mrf.mxu0
    %v6441 = vadd.f32 0.0, %v6440
    %6442 = vmatprep.mubr.bf16.mxu0 0
    %6443 = vmatmul.mubr.bf16.gmra.mxu0 %v6309
    %v6444 = vpop.f32.mrf.mxu0
    %v6445 = vadd.f32 0.0, %v6444
    %v6446 = vpop.f32.mrf.mxu0
    %v6447 = vadd.f32 0.0, %v6446
    %v6448 = vpop.f32.mrf.mxu0
    %v6449 = vadd.f32 0.0, %v6448
    %v6450 = vpop.f32.mrf.mxu0
    %v6451 = vadd.f32 0.0, %v6450
    %6452 = vmatprep.mubr.bf16.mxu0 0
    %6453 = vmatmul.mubr.bf16.gmra.mxu0 %v6312
    %v6454 = vpop.f32.mrf.mxu0
    %v6455 = vadd.f32 0.0, %v6454
    %v6456 = vpop.f32.mrf.mxu0
    %v6457 = vadd.f32 0.0, %v6456
    %v6458 = vpop.f32.mrf.mxu0
    %v6459 = vadd.f32 0.0, %v6458
    %v6460 = vpop.f32.mrf.mxu0
    %v6461 = vadd.f32 0.0, %v6460
    %6462 = vmatprep.mubr.bf16.mxu0 0
    %6463 = vmatmul.mubr.bf16.gmra.mxu0 %v6315
    %v6464 = vpop.f32.mrf.mxu0
    %v6465 = vadd.f32 0.0, %v6464
    %v6466 = vpop.f32.mrf.mxu0
    %v6467 = vadd.f32 0.0, %v6466
    %v6468 = vpop.f32.mrf.mxu0
    %v6469 = vadd.f32 0.0, %v6468
    %v6470 = vpop.f32.mrf.mxu0
    %v6471 = vadd.f32 0.0, %v6470
    %6472 = vmatprep.mubr.bf16.mxu0 0
    %6473 = vmatmul.mubr.bf16.gmra.mxu0 %v6318
    %v6474 = vpop.f32.mrf.mxu0
    %v6475 = vadd.f32 0.0, %v6474
    %v6476 = vpop.f32.mrf.mxu0
    %v6477 = vadd.f32 0.0, %v6476
    %v6478 = vpop.f32.mrf.mxu0
    %v6479 = vadd.f32 0.0, %v6478
    %v6480 = vpop.f32.mrf.mxu0
    %v6481 = vadd.f32 0.0, %v6480
    %6482 = vmatprep.mubr.bf16.mxu0 0
    %6483 = vmatmul.mubr.bf16.gmra.mxu0 %v6321
    %v6484 = vpop.f32.mrf.mxu0
    %v6485 = vadd.f32 0.0, %v6484
    %v6486 = vpop.f32.mrf.mxu0
    %v6487 = vadd.f32 0.0, %v6486
    %v6488 = vpop.f32.mrf.mxu0
    %v6489 = vadd.f32 0.0, %v6488
    %v6490 = vpop.f32.mrf.mxu0
    %v6491 = vadd.f32 0.0, %v6490
    %6492 = vmatprep.mubr.bf16.mxu0 0
    %6493 = vmatmul.mubr.bf16.gmra.mxu0 %v6324
    %v6494 = vpop.f32.mrf.mxu0
    %v6495 = vadd.f32 0.0, %v6494
    %v6496 = vpop.f32.mrf.mxu0
    %v6497 = vadd.f32 0.0, %v6496
    %v6498 = vpop.f32.mrf.mxu0
    %v6499 = vadd.f32 0.0, %v6498
    %v6500 = vpop.f32.mrf.mxu0
    %v6501 = vadd.f32 0.0, %v6500
    %6502 = vmatprep.mubr.bf16.mxu0 0
    %6503 = vmatmul.mubr.bf16.gmra.mxu0 %v6327
    %v6504 = vpop.f32.mrf.mxu0
    %v6505 = vadd.f32 0.0, %v6504
    %v6506 = vpop.f32.mrf.mxu0
    %v6507 = vadd.f32 0.0, %v6506
    %v6508 = vpop.f32.mrf.mxu0
    %v6509 = vadd.f32 0.0, %v6508
    %v6510 = vpop.f32.mrf.mxu0
    %v6511 = vadd.f32 0.0, %v6510
    %6512 = vmatprep.mubr.bf16.mxu0 0
    %6513 = vmatmul.mubr.bf16.gmra.mxu0 %v6330
    %v6514 = vpop.f32.mrf.mxu0
    %v6515 = vadd.f32 0.0, %v6514
    %v6516 = vpop.f32.mrf.mxu0
    %v6517 = vadd.f32 0.0, %v6516
    %v6518 = vpop.f32.mrf.mxu0
    %v6519 = vadd.f32 0.0, %v6518
    %v6520 = vpop.f32.mrf.mxu0
    %v6521 = vadd.f32 0.0, %v6520
    %6522 = vmatprep.mubr.bf16.mxu0 0
    %6523 = vmatmul.mubr.bf16.gmra.mxu0 %v6333
    %v6524 = vpop.f32.mrf.mxu0
    %v6525 = vadd.f32 0.0, %v6524
    %v6526 = vpop.f32.mrf.mxu0
    %v6527 = vadd.f32 0.0, %v6526
    %v6528 = vpop.f32.mrf.mxu0
    %v6529 = vadd.f32 0.0, %v6528
    %v6530 = vpop.f32.mrf.mxu0
    %v6531 = vadd.f32 0.0, %v6530
    %6532 = vmatprep.mubr.bf16.mxu0 0
    %6533 = vmatmul.mubr.bf16.gmra.mxu0 %v6336
    %v6534 = vpop.f32.mrf.mxu0
    %v6535 = vadd.f32 0.0, %v6534
    %v6536 = vpop.f32.mrf.mxu0
    %v6537 = vadd.f32 0.0, %v6536
    %v6538 = vpop.f32.mrf.mxu0
    %v6539 = vadd.f32 0.0, %v6538
    %v6540 = vpop.f32.mrf.mxu0
    %v6541 = vadd.f32 0.0, %v6540
    %6542 = vdwg.mxu0
    %6543 = vmatprep.subr.bf16.mxu0 0
    %6544 = vmatpush1.bf16.msra.mxu0 0
    %6545 = vmatprep.subr.bf16.mxu0 0
    %6546 = vmatpush1.bf16.msra.mxu0 0
    %6547 = vmatprep.subr.bf16.mxu0 0
    %6548 = vmatpush1.bf16.msra.mxu0 0
    %6549 = vmatprep.subr.bf16.mxu0 %v6348
    %6550 = vmatpush1.bf16.msra.mxu0 %v6345
    %6551 = vmatprep.subr.bf16.mxu0 %v6269
    %6552 = vmatpush1.bf16.msra.mxu0 %v6268
    %6553 = vmatprep.subr.bf16.mxu0 %v6265
    %6554 = vmatpush1.bf16.msra.mxu0 %v6264
    %6555 = vmatprep.subr.bf16.mxu0 %v6261
    %6556 = vmatpush1.bf16.msra.mxu0 %v6260
    %6557 = vmatprep.subr.bf16.mxu0 %v6257
    %6558 = vmatpush1.bf16.msra.mxu0 %v6256
    %6559 = vmatprep.subr.bf16.mxu0 0
    %6560 = vmatpush2.bf16.msra.mxu0 0
    %6561 = vmatprep.subr.bf16.mxu0 0
    %6562 = vmatpush2.bf16.msra.mxu0 0
    %6563 = vmatprep.subr.bf16.mxu0 0
    %6564 = vmatpush2.bf16.msra.mxu0 0
    %6565 = vmatprep.subr.bf16.mxu0 0
    %6566 = vmatpush2.bf16.msra.mxu0 0
    %6567 = vmatprep.subr.bf16.mxu0 0
    %6568 = vmatpush2.bf16.msra.mxu0 0
    %6569 = vmatprep.subr.bf16.mxu0 0
    %6570 = vmatpush2.bf16.msra.mxu0 0
    %6571 = vmatprep.subr.bf16.mxu0 0
    %6572 = vmatpush2.bf16.msra.mxu0 0
    %6573 = vmatprep.subr.bf16.mxu0 0
    %6574 = vmatpush2.bf16.msra.mxu0 0
    %6575 = vmatprep.mubr.bf16.mxu0 0
    %6576 = vmatmul.mubr.bf16.gmra.mxu0 %v6291
    %v6577 = vpop.f32.mrf.mxu0
    %v6578 = vadd.f32 0.0, %v6577
    %v6579 = vpop.f32.mrf.mxu0
    %v6580 = vadd.f32 0.0, %v6579
    %v6581 = vpop.f32.mrf.mxu0
    %v6582 = vadd.f32 0.0, %v6581
    %v6583 = vpop.f32.mrf.mxu0
    %v6584 = vadd.f32 0.0, %v6583
    %6585 = vmatprep.mubr.bf16.mxu0 0
    %6586 = vmatmul.mubr.bf16.gmra.mxu0 %v6294
    %v6587 = vpop.f32.mrf.mxu0
    %v6588 = vadd.f32 0.0, %v6587
    %v6589 = vpop.f32.mrf.mxu0
    %v6590 = vadd.f32 0.0, %v6589
    %v6591 = vpop.f32.mrf.mxu0
    %v6592 = vadd.f32 0.0, %v6591
    %v6593 = vpop.f32.mrf.mxu0
    %v6594 = vadd.f32 0.0, %v6593
    %6595 = vmatprep.mubr.bf16.mxu0 0
    %6596 = vmatmul.mubr.bf16.gmra.mxu0 %v6297
    %v6597 = vpop.f32.mrf.mxu0
    %v6598 = vadd.f32 0.0, %v6597
    %v6599 = vpop.f32.mrf.mxu0
    %v6600 = vadd.f32 0.0, %v6599
    %v6601 = vpop.f32.mrf.mxu0
    %v6602 = vadd.f32 0.0, %v6601
    %v6603 = vpop.f32.mrf.mxu0
    %v6604 = vadd.f32 0.0, %v6603
    %6605 = vmatprep.mubr.bf16.mxu0 0
    %6606 = vmatmul.mubr.bf16.gmra.mxu0 %v6300
    %v6607 = vpop.f32.mrf.mxu0
    %v6608 = vadd.f32 0.0, %v6607
    %v6609 = vpop.f32.mrf.mxu0
    %v6610 = vadd.f32 0.0, %v6609
    %v6611 = vpop.f32.mrf.mxu0
    %v6612 = vadd.f32 0.0, %v6611
    %v6613 = vpop.f32.mrf.mxu0
    %v6614 = vadd.f32 0.0, %v6613
    %6615 = vmatprep.mubr.bf16.mxu0 0
    %6616 = vmatmul.mubr.bf16.gmra.mxu0 %v6303
    %v6617 = vpop.f32.mrf.mxu0
    %v6618 = vadd.f32 0.0, %v6617
    %v6619 = vpop.f32.mrf.mxu0
    %v6620 = vadd.f32 0.0, %v6619
    %v6621 = vpop.f32.mrf.mxu0
    %v6622 = vadd.f32 0.0, %v6621
    %v6623 = vpop.f32.mrf.mxu0
    %v6624 = vadd.f32 0.0, %v6623
    %6625 = vmatprep.mubr.bf16.mxu0 0
    %6626 = vmatmul.mubr.bf16.gmra.mxu0 %v6306
    %v6627 = vpop.f32.mrf.mxu0
    %v6628 = vadd.f32 0.0, %v6627
    %v6629 = vpop.f32.mrf.mxu0
    %v6630 = vadd.f32 0.0, %v6629
    %v6631 = vpop.f32.mrf.mxu0
    %v6632 = vadd.f32 0.0, %v6631
    %v6633 = vpop.f32.mrf.mxu0
    %v6634 = vadd.f32 0.0, %v6633
    %6635 = vmatprep.mubr.bf16.mxu0 0
    %6636 = vmatmul.mubr.bf16.gmra.mxu0 %v6309
    %v6637 = vpop.f32.mrf.mxu0
    %v6638 = vadd.f32 0.0, %v6637
    %v6639 = vpop.f32.mrf.mxu0
    %v6640 = vadd.f32 0.0, %v6639
    %v6641 = vpop.f32.mrf.mxu0
    %v6642 = vadd.f32 0.0, %v6641
    %v6643 = vpop.f32.mrf.mxu0
    %v6644 = vadd.f32 0.0, %v6643
    %6645 = vmatprep.mubr.bf16.mxu0 0
    %6646 = vmatmul.mubr.bf16.gmra.mxu0 %v6312
    %v6647 = vpop.f32.mrf.mxu0
    %v6648 = vadd.f32 0.0, %v6647
    %v6649 = vpop.f32.mrf.mxu0
    %v6650 = vadd.f32 0.0, %v6649
    %v6651 = vpop.f32.mrf.mxu0
    %v6652 = vadd.f32 0.0, %v6651
    %v6653 = vpop.f32.mrf.mxu0
    %v6654 = vadd.f32 0.0, %v6653
    %6655 = vmatprep.mubr.bf16.mxu0 0
    %6656 = vmatmul.mubr.bf16.gmra.mxu0 %v6315
    %v6657 = vpop.f32.mrf.mxu0
    %v6658 = vadd.f32 0.0, %v6657
    %v6659 = vpop.f32.mrf.mxu0
    %v6660 = vadd.f32 0.0, %v6659
    %v6661 = vpop.f32.mrf.mxu0
    %v6662 = vadd.f32 0.0, %v6661
    %v6663 = vpop.f32.mrf.mxu0
    %v6664 = vadd.f32 0.0, %v6663
    %6665 = vmatprep.mubr.bf16.mxu0 0
    %6666 = vmatmul.mubr.bf16.gmra.mxu0 %v6318
    %v6667 = vpop.f32.mrf.mxu0
    %v6668 = vadd.f32 0.0, %v6667
    %v6669 = vpop.f32.mrf.mxu0
    %v6670 = vadd.f32 0.0, %v6669
    %v6671 = vpop.f32.mrf.mxu0
    %v6672 = vadd.f32 0.0, %v6671
    %v6673 = vpop.f32.mrf.mxu0
    %v6674 = vadd.f32 0.0, %v6673
    %6675 = vmatprep.mubr.bf16.mxu0 0
    %6676 = vmatmul.mubr.bf16.gmra.mxu0 %v6321
    %v6677 = vpop.f32.mrf.mxu0
    %v6678 = vadd.f32 0.0, %v6677
    %v6679 = vpop.f32.mrf.mxu0
    %v6680 = vadd.f32 0.0, %v6679
    %v6681 = vpop.f32.mrf.mxu0
    %v6682 = vadd.f32 0.0, %v6681
    %v6683 = vpop.f32.mrf.mxu0
    %v6684 = vadd.f32 0.0, %v6683
    %6685 = vmatprep.mubr.bf16.mxu0 0
    %6686 = vmatmul.mubr.bf16.gmra.mxu0 %v6324
    %v6687 = vpop.f32.mrf.mxu0
    %v6688 = vadd.f32 0.0, %v6687
    %v6689 = vpop.f32.mrf.mxu0
    %v6690 = vadd.f32 0.0, %v6689
    %v6691 = vpop.f32.mrf.mxu0
    %v6692 = vadd.f32 0.0, %v6691
    %v6693 = vpop.f32.mrf.mxu0
    %v6694 = vadd.f32 0.0, %v6693
    %6695 = vmatprep.mubr.bf16.mxu0 0
    %6696 = vmatmul.mubr.bf16.gmra.mxu0 %v6327
    %v6697 = vpop.f32.mrf.mxu0
    %v6698 = vadd.f32 0.0, %v6697
    %v6699 = vpop.f32.mrf.mxu0
    %v6700 = vadd.f32 0.0, %v6699
    %v6701 = vpop.f32.mrf.mxu0
    %v6702 = vadd.f32 0.0, %v6701
    %v6703 = vpop.f32.mrf.mxu0
    %v6704 = vadd.f32 0.0, %v6703
    %6705 = vmatprep.mubr.bf16.mxu0 0
    %6706 = vmatmul.mubr.bf16.gmra.mxu0 %v6330
    %v6707 = vpop.f32.mrf.mxu0
    %v6708 = vadd.f32 0.0, %v6707
    %v6709 = vpop.f32.mrf.mxu0
    %v6710 = vadd.f32 0.0, %v6709
    %v6711 = vpop.f32.mrf.mxu0
    %v6712 = vadd.f32 0.0, %v6711
    %v6713 = vpop.f32.mrf.mxu0
    %v6714 = vadd.f32 0.0, %v6713
    %6715 = vmatprep.mubr.bf16.mxu0 0
    %6716 = vmatmul.mubr.bf16.gmra.mxu0 %v6333
    %v6717 = vpop.f32.mrf.mxu0
    %v6718 = vadd.f32 0.0, %v6717
    %v6719 = vpop.f32.mrf.mxu0
    %v6720 = vadd.f32 0.0, %v6719
    %v6721 = vpop.f32.mrf.mxu0
    %v6722 = vadd.f32 0.0, %v6721
    %v6723 = vpop.f32.mrf.mxu0
    %v6724 = vadd.f32 0.0, %v6723
    %6725 = vmatprep.mubr.bf16.mxu0 0
    %6726 = vmatmul.mubr.bf16.gmra.mxu0 %v6336
    %v6727 = vpop.f32.mrf.mxu0
    %v6728 = vadd.f32 0.0, %v6727
    %v6729 = vpop.f32.mrf.mxu0
    %v6730 = vadd.f32 0.0, %v6729
    %v6731 = vpop.f32.mrf.mxu0
    %v6732 = vadd.f32 0.0, %v6731
    %v6733 = vpop.f32.mrf.mxu0
    %v6734 = vadd.f32 0.0, %v6733
    %6735 = vdwg.mxu0
    %v6736 = vld [vmem:[#allocation2] sm:$0xff]
    %v6737 = vld [vmem:[#allocation2 + $0x8] sm:$0xff]
    %v6738 = vld [vmem:[#allocation2 + $0x10] sm:$0xff]
    %v6739 = vld [vmem:[#allocation2 + $0x18] sm:$0xff]
    %v6740 = vld [vmem:[#allocation2 + $0x20] sm:$0xff]
    %v6741 = vld [vmem:[#allocation2 + $0x28] sm:$0xff]
    %v6742 = vld [vmem:[#allocation2 + $0x30] sm:$0xff]
    %v6743 = vld [vmem:[#allocation2 + $0x38] sm:$0xff]
    %v6744 = vld [vmem:[#allocation2 + $0x40] sm:$0xff]
    %v6745 = vld [vmem:[#allocation2 + $0x48] sm:$0xff]
    %v6746 = vld [vmem:[#allocation2 + $0x50] sm:$0xff]
    %v6747 = vld [vmem:[#allocation2 + $0x58] sm:$0xff]
    %v6748 = vld [vmem:[#allocation2 + $0x60] sm:$0xff]
    %v6749 = vld [vmem:[#allocation2 + $0x68] sm:$0xff]
    %v6750 = vld [vmem:[#allocation2 + $0x70] sm:$0xff]
    %v6751 = vld [vmem:[#allocation2 + $0x78] sm:$0xff]
    %v6752 = vld [vmem:[#allocation2 + $0x80] sm:$0xff]
    %v6753 = vld [vmem:[#allocation2 + $0x88] sm:$0xff]
    %v6754 = vld [vmem:[#allocation2 + $0x90] sm:$0xff]
    %v6755 = vld [vmem:[#allocation2 + $0x98] sm:$0xff]
    %v6756 = vld [vmem:[#allocation2 + $0xa0] sm:$0xff]
    %v6757 = vld [vmem:[#allocation2 + $0xa8] sm:$0xff]
    %v6758 = vld [vmem:[#allocation2 + $0xb0] sm:$0xff]
    %v6759 = vld [vmem:[#allocation2 + $0xb8] sm:$0xff]
    %v6760 = vld [vmem:[#allocation2 + $0xc0] sm:$0xff]
    %v6761 = vld [vmem:[#allocation2 + $0xc8] sm:$0xff]
    %v6762 = vld [vmem:[#allocation2 + $0xd0] sm:$0xff]
    %v6763 = vld [vmem:[#allocation2 + $0xd8] sm:$0xff]
    %v6764 = vld [vmem:[#allocation2 + $0xe0] sm:$0xff]
    %v6765 = vld [vmem:[#allocation2 + $0xe8] sm:$0xff]
    %v6766 = vld [vmem:[#allocation2 + $0xf0] sm:$0xff]
    %v6767 = vld [vmem:[#allocation2 + $0xf8] sm:$0xff]
    %v6768 = vld [vmem:[#allocation2 + $0x100] sm:$0xff]
    %v6769 = vld [vmem:[#allocation2 + $0x108] sm:$0xff]
    %v6770 = vld [vmem:[#allocation2 + $0x110] sm:$0xff]
    %v6771 = vld [vmem:[#allocation2 + $0x118] sm:$0xff]
    %v6772 = vld [vmem:[#allocation2 + $0x120] sm:$0xff]
    %v6773 = vld [vmem:[#allocation2 + $0x128] sm:$0xff]
    %v6774 = vld [vmem:[#allocation2 + $0x130] sm:$0xff]
    %v6775 = vld [vmem:[#allocation2 + $0x138] sm:$0xff]
    %v6776 = vld [vmem:[#allocation2 + $0x140] sm:$0xff]
    %v6777 = vld [vmem:[#allocation2 + $0x148] sm:$0xff]
    %v6778 = vld [vmem:[#allocation2 + $0x150] sm:$0xff]
    %v6779 = vld [vmem:[#allocation2 + $0x158] sm:$0xff]
    %v6780 = vld [vmem:[#allocation2 + $0x160] sm:$0xff]
    %v6781 = vld [vmem:[#allocation2 + $0x168] sm:$0xff]
    %v6782 = vld [vmem:[#allocation2 + $0x170] sm:$0xff]
    %v6783 = vld [vmem:[#allocation2 + $0x178] sm:$0xff]
    %v6784 = vld [vmem:[#allocation2 + $0x180] sm:$0xff]
    %v6785 = vld [vmem:[#allocation2 + $0x188] sm:$0xff]
    %v6786 = vld [vmem:[#allocation2 + $0x190] sm:$0xff]
    %v6787 = vld [vmem:[#allocation2 + $0x198] sm:$0xff]
    %v6788 = vld [vmem:[#allocation2 + $0x1a0] sm:$0xff]
    %v6789 = vld [vmem:[#allocation2 + $0x1a8] sm:$0xff]
    %v6790 = vld [vmem:[#allocation2 + $0x1b0] sm:$0xff]
    %v6791 = vld [vmem:[#allocation2 + $0x1b8] sm:$0xff]
    %v6792 = vld [vmem:[#allocation2 + $0x1c0] sm:$0xff]
    %v6793 = vld [vmem:[#allocation2 + $0x1c8] sm:$0xff]
    %v6794 = vld [vmem:[#allocation2 + $0x1d0] sm:$0xff]
    %v6795 = vld [vmem:[#allocation2 + $0x1d8] sm:$0xff]
    %v6796 = vld [vmem:[#allocation2 + $0x1e0] sm:$0xff]
    %v6797 = vld [vmem:[#allocation2 + $0x1e8] sm:$0xff]
    %v6798 = vld [vmem:[#allocation2 + $0x1f0] sm:$0xff]
    %v6799 = vld [vmem:[#allocation2 + $0x1f8] sm:$0xff]
    %v6800 = vld [vmem:[#allocation2 + $0x200] sm:$0xff]
    %v6801 = vld [vmem:[#allocation2 + $0x208] sm:$0xff]
    %v6802 = vld [vmem:[#allocation2 + $0x210] sm:$0xff]
    %v6803 = vld [vmem:[#allocation2 + $0x218] sm:$0xff]
    %v6804 = vld [vmem:[#allocation2 + $0x220] sm:$0xff]
    %v6805 = vld [vmem:[#allocation2 + $0x228] sm:$0xff]
    %v6806 = vld [vmem:[#allocation2 + $0x230] sm:$0xff]
    %v6807 = vld [vmem:[#allocation2 + $0x238] sm:$0xff]
    %v6808 = vld [vmem:[#allocation2 + $0x240] sm:$0xff]
    %v6809 = vld [vmem:[#allocation2 + $0x248] sm:$0xff]
    %v6810 = vld [vmem:[#allocation2 + $0x250] sm:$0xff]
    %v6811 = vld [vmem:[#allocation2 + $0x258] sm:$0xff]
    %v6812 = vld [vmem:[#allocation2 + $0x260] sm:$0xff]
    %v6813 = vld [vmem:[#allocation2 + $0x268] sm:$0xff]
    %v6814 = vld [vmem:[#allocation2 + $0x270] sm:$0xff]
    %v6815 = vld [vmem:[#allocation2 + $0x278] sm:$0xff]
    %v6816 = vld [vmem:[#allocation2 + $0x280] sm:$0xff]
    %v6817 = vld [vmem:[#allocation2 + $0x288] sm:$0xff]
    %v6818 = vld [vmem:[#allocation2 + $0x290] sm:$0xff]
    %v6819 = vld [vmem:[#allocation2 + $0x298] sm:$0xff]
    %v6820 = vld [vmem:[#allocation2 + $0x2a0] sm:$0xff]
    %v6821 = vld [vmem:[#allocation2 + $0x2a8] sm:$0xff]
    %v6822 = vld [vmem:[#allocation2 + $0x2b0] sm:$0xff]
    %v6823 = vld [vmem:[#allocation2 + $0x2b8] sm:$0xff]
    %v6824 = vld [vmem:[#allocation2 + $0x2c0] sm:$0xff]
    %v6825 = vld [vmem:[#allocation2 + $0x2c8] sm:$0xff]
    %v6826 = vld [vmem:[#allocation2 + $0x2d0] sm:$0xff]
    %v6827 = vld [vmem:[#allocation2 + $0x2d8] sm:$0xff]
    %v6828 = vld [vmem:[#allocation2 + $0x2e0] sm:$0xff]
    %v6829 = vld [vmem:[#allocation2 + $0x2e8] sm:$0xff]
    %v6830 = vld [vmem:[#allocation2 + $0x2f0] sm:$0xff]
    %v6831 = vld [vmem:[#allocation2 + $0x2f8] sm:$0xff]
    %v6832 = vld [vmem:[#allocation2 + $0x300] sm:$0xff]
    %v6833 = vld [vmem:[#allocation2 + $0x308] sm:$0xff]
    %v6834 = vld [vmem:[#allocation2 + $0x310] sm:$0xff]
    %v6835 = vld [vmem:[#allocation2 + $0x318] sm:$0xff]
    %v6836 = vld [vmem:[#allocation2 + $0x320] sm:$0xff]
    %v6837 = vld [vmem:[#allocation2 + $0x328] sm:$0xff]
    %v6838 = vld [vmem:[#allocation2 + $0x330] sm:$0xff]
    %v6839 = vld [vmem:[#allocation2 + $0x338] sm:$0xff]
    %v6840 = vld [vmem:[#allocation2 + $0x340] sm:$0xff]
    %v6841 = vld [vmem:[#allocation2 + $0x348] sm:$0xff]
    %v6842 = vld [vmem:[#allocation2 + $0x350] sm:$0xff]
    %v6843 = vld [vmem:[#allocation2 + $0x358] sm:$0xff]
    %v6844 = vld [vmem:[#allocation2 + $0x360] sm:$0xff]
    %v6845 = vld [vmem:[#allocation2 + $0x368] sm:$0xff]
    %v6846 = vld [vmem:[#allocation2 + $0x370] sm:$0xff]
    %v6847 = vld [vmem:[#allocation2 + $0x378] sm:$0xff]
    %v6848 = vld [vmem:[#allocation2 + $0x380] sm:$0xff]
    %v6849 = vld [vmem:[#allocation2 + $0x388] sm:$0xff]
    %v6850 = vld [vmem:[#allocation2 + $0x390] sm:$0xff]
    %v6851 = vld [vmem:[#allocation2 + $0x398] sm:$0xff]
    %v6852 = vld [vmem:[#allocation2 + $0x3a0] sm:$0xff]
    %v6853 = vld [vmem:[#allocation2 + $0x3a8] sm:$0xff]
    %v6854 = vld [vmem:[#allocation2 + $0x3b0] sm:$0xff]
    %v6855 = vld [vmem:[#allocation2 + $0x3b8] sm:$0xff]
    %v6856 = vld [vmem:[#allocation2 + $0x3c0] sm:$0xff]
    %v6857 = vld [vmem:[#allocation2 + $0x3c8] sm:$0xff]
    %v6858 = vld [vmem:[#allocation2 + $0x3d0] sm:$0xff]
    %v6859 = vld [vmem:[#allocation2 + $0x3d8] sm:$0xff]
    %v6860 = vld [vmem:[#allocation2 + $0x3e0] sm:$0xff]
    %v6861 = vld [vmem:[#allocation2 + $0x3e8] sm:$0xff]
    %v6862 = vld [vmem:[#allocation2 + $0x3f0] sm:$0xff]
    %v6863 = vld [vmem:[#allocation2 + $0x3f8] sm:$0xff]
    %v6864 = vadd.f32 %v6736, %v6385
    %v6865 = vadd.f32 %v6737, %v6387
    %v6866 = vadd.f32 %v6738, %v6578
    %v6867 = vadd.f32 %v6739, %v6580
    %v6868 = vadd.f32 %v6740, %v6389
    %v6869 = vadd.f32 %v6741, %v6391
    %v6870 = vadd.f32 %v6742, %v6582
    %v6871 = vadd.f32 %v6743, %v6584
    %v6872 = vadd.f32 %v6744, %v6395
    %v6873 = vadd.f32 %v6745, %v6397
    %v6874 = vadd.f32 %v6746, %v6588
    %v6875 = vadd.f32 %v6747, %v6590
    %v6876 = vadd.f32 %v6748, %v6399
    %v6877 = vadd.f32 %v6749, %v6401
    %v6878 = vadd.f32 %v6750, %v6592
    %v6879 = vadd.f32 %v6751, %v6594
    %v6880 = vadd.f32 %v6752, %v6405
    %v6881 = vadd.f32 %v6753, %v6407
    %v6882 = vadd.f32 %v6754, %v6598
    %v6883 = vadd.f32 %v6755, %v6600
    %v6884 = vadd.f32 %v6756, %v6409
    %v6885 = vadd.f32 %v6757, %v6411
    %v6886 = vadd.f32 %v6758, %v6602
    %v6887 = vadd.f32 %v6759, %v6604
    %v6888 = vadd.f32 %v6760, %v6415
    %v6889 = vadd.f32 %v6761, %v6417
    %v6890 = vadd.f32 %v6762, %v6608
    %v6891 = vadd.f32 %v6763, %v6610
    %v6892 = vadd.f32 %v6764, %v6419
    %v6893 = vadd.f32 %v6765, %v6421
    %v6894 = vadd.f32 %v6766, %v6612
    %v6895 = vadd.f32 %v6767, %v6614
    %v6896 = vadd.f32 %v6768, %v6425
    %v6897 = vadd.f32 %v6769, %v6427
    %v6898 = vadd.f32 %v6770, %v6618
    %v6899 = vadd.f32 %v6771, %v6620
    %v6900 = vadd.f32 %v6772, %v6429
    %v6901 = vadd.f32 %v6773, %v6431
    %v6902 = vadd.f32 %v6774, %v6622
    %v6903 = vadd.f32 %v6775, %v6624
    %v6904 = vadd.f32 %v6776, %v6435
    %v6905 = vadd.f32 %v6777, %v6437
    %v6906 = vadd.f32 %v6778, %v6628
    %v6907 = vadd.f32 %v6779, %v6630
    %v6908 = vadd.f32 %v6780, %v6439
    %v6909 = vadd.f32 %v6781, %v6441
    %v6910 = vadd.f32 %v6782, %v6632
    %v6911 = vadd.f32 %v6783, %v6634
    %v6912 = vadd.f32 %v6784, %v6445
    %v6913 = vadd.f32 %v6785, %v6447
    %v6914 = vadd.f32 %v6786, %v6638
    %v6915 = vadd.f32 %v6787, %v6640
    %v6916 = vadd.f32 %v6788, %v6449
    %v6917 = vadd.f32 %v6789, %v6451
    %v6918 = vadd.f32 %v6790, %v6642
    %v6919 = vadd.f32 %v6791, %v6644
    %v6920 = vadd.f32 %v6792, %v6455
    %v6921 = vadd.f32 %v6793, %v6457
    %v6922 = vadd.f32 %v6794, %v6648
    %v6923 = vadd.f32 %v6795, %v6650
    %v6924 = vadd.f32 %v6796, %v6459
    %v6925 = vadd.f32 %v6797, %v6461
    %v6926 = vadd.f32 %v6798, %v6652
    %v6927 = vadd.f32 %v6799, %v6654
    %v6928 = vadd.f32 %v6800, %v6465
    %v6929 = vadd.f32 %v6801, %v6467
    %v6930 = vadd.f32 %v6802, %v6658
    %v6931 = vadd.f32 %v6803, %v6660
    %v6932 = vadd.f32 %v6804, %v6469
    %v6933 = vadd.f32 %v6805, %v6471
    %v6934 = vadd.f32 %v6806, %v6662
    %v6935 = vadd.f32 %v6807, %v6664
    %v6936 = vadd.f32 %v6808, %v6475
    %v6937 = vadd.f32 %v6809, %v6477
    %v6938 = vadd.f32 %v6810, %v6668
    %v6939 = vadd.f32 %v6811, %v6670
    %v6940 = vadd.f32 %v6812, %v6479
    %v6941 = vadd.f32 %v6813, %v6481
    %v6942 = vadd.f32 %v6814, %v6672
    %v6943 = vadd.f32 %v6815, %v6674
    %v6944 = vadd.f32 %v6816, %v6485
    %v6945 = vadd.f32 %v6817, %v6487
    %v6946 = vadd.f32 %v6818, %v6678
    %v6947 = vadd.f32 %v6819, %v6680
    %v6948 = vadd.f32 %v6820, %v6489
    %v6949 = vadd.f32 %v6821, %v6491
    %v6950 = vadd.f32 %v6822, %v6682
    %v6951 = vadd.f32 %v6823, %v6684
    %v6952 = vadd.f32 %v6824, %v6495
    %v6953 = vadd.f32 %v6825, %v6497
    %v6954 = vadd.f32 %v6826, %v6688
    %v6955 = vadd.f32 %v6827, %v6690
    %v6956 = vadd.f32 %v6828, %v6499
    %v6957 = vadd.f32 %v6829, %v6501
    %v6958 = vadd.f32 %v6830, %v6692
    %v6959 = vadd.f32 %v6831, %v6694
    %v6960 = vadd.f32 %v6832, %v6505
    %v6961 = vadd.f32 %v6833, %v6507
    %v6962 = vadd.f32 %v6834, %v6698
    %v6963 = vadd.f32 %v6835, %v6700
    %v6964 = vadd.f32 %v6836, %v6509
    %v6965 = vadd.f32 %v6837, %v6511
    %v6966 = vadd.f32 %v6838, %v6702
    %v6967 = vadd.f32 %v6839, %v6704
    %v6968 = vadd.f32 %v6840, %v6515
    %v6969 = vadd.f32 %v6841, %v6517
    %v6970 = vadd.f32 %v6842, %v6708
    %v6971 = vadd.f32 %v6843, %v6710
    %v6972 = vadd.f32 %v6844, %v6519
    %v6973 = vadd.f32 %v6845, %v6521
    %v6974 = vadd.f32 %v6846, %v6712
    %v6975 = vadd.f32 %v6847, %v6714
    %v6976 = vadd.f32 %v6848, %v6525
    %v6977 = vadd.f32 %v6849, %v6527
    %v6978 = vadd.f32 %v6850, %v6718
    %v6979 = vadd.f32 %v6851, %v6720
    %v6980 = vadd.f32 %v6852, %v6529
    %v6981 = vadd.f32 %v6853, %v6531
    %v6982 = vadd.f32 %v6854, %v6722
    %v6983 = vadd.f32 %v6855, %v6724
    %v6984 = vadd.f32 %v6856, %v6535
    %v6985 = vadd.f32 %v6857, %v6537
    %v6986 = vadd.f32 %v6858, %v6728
    %v6987 = vadd.f32 %v6859, %v6730
    %v6988 = vadd.f32 %v6860, %v6539
    %v6989 = vadd.f32 %v6861, %v6541
    %v6990 = vadd.f32 %v6862, %v6732
    %v6991 = vadd.f32 %v6863, %v6734
    %6992 = vst [vmem:[#allocation2] sm:$0xff] %v6864
    %6993 = vst [vmem:[#allocation2 + $0x8] sm:$0xff] %v6865
    %6994 = vst [vmem:[#allocation2 + $0x10] sm:$0xff] %v6866
    %6995 = vst [vmem:[#allocation2 + $0x18] sm:$0xff] %v6867
    %6996 = vst [vmem:[#allocation2 + $0x20] sm:$0xff] %v6868
    %6997 = vst [vmem:[#allocation2 + $0x28] sm:$0xff] %v6869
    %6998 = vst [vmem:[#allocation2 + $0x30] sm:$0xff] %v6870
    %6999 = vst [vmem:[#allocation2 + $0x38] sm:$0xff] %v6871
    %7000 = vst [vmem:[#allocation2 + $0x40] sm:$0xff] %v6872
    %7001 = vst [vmem:[#allocation2 + $0x48] sm:$0xff] %v6873
    %7002 = vst [vmem:[#allocation2 + $0x50] sm:$0xff] %v6874
    %7003 = vst [vmem:[#allocation2 + $0x58] sm:$0xff] %v6875
    %7004 = vst [vmem:[#allocation2 + $0x60] sm:$0xff] %v6876
    %7005 = vst [vmem:[#allocation2 + $0x68] sm:$0xff] %v6877
    %7006 = vst [vmem:[#allocation2 + $0x70] sm:$0xff] %v6878
    %7007 = vst [vmem:[#allocation2 + $0x78] sm:$0xff] %v6879
    %7008 = vst [vmem:[#allocation2 + $0x80] sm:$0xff] %v6880
    %7009 = vst [vmem:[#allocation2 + $0x88] sm:$0xff] %v6881
    %7010 = vst [vmem:[#allocation2 + $0x90] sm:$0xff] %v6882
    %7011 = vst [vmem:[#allocation2 + $0x98] sm:$0xff] %v6883
    %7012 = vst [vmem:[#allocation2 + $0xa0] sm:$0xff] %v6884
    %7013 = vst [vmem:[#allocation2 + $0xa8] sm:$0xff] %v6885
    %7014 = vst [vmem:[#allocation2 + $0xb0] sm:$0xff] %v6886
    %7015 = vst [vmem:[#allocation2 + $0xb8] sm:$0xff] %v6887
    %7016 = vst [vmem:[#allocation2 + $0xc0] sm:$0xff] %v6888
    %7017 = vst [vmem:[#allocation2 + $0xc8] sm:$0xff] %v6889
    %7018 = vst [vmem:[#allocation2 + $0xd0] sm:$0xff] %v6890
    %7019 = vst [vmem:[#allocation2 + $0xd8] sm:$0xff] %v6891
    %7020 = vst [vmem:[#allocation2 + $0xe0] sm:$0xff] %v6892
    %7021 = vst [vmem:[#allocation2 + $0xe8] sm:$0xff] %v6893
    %7022 = vst [vmem:[#allocation2 + $0xf0] sm:$0xff] %v6894
    %7023 = vst [vmem:[#allocation2 + $0xf8] sm:$0xff] %v6895
    %7024 = vst [vmem:[#allocation2 + $0x100] sm:$0xff] %v6896
    %7025 = vst [vmem:[#allocation2 + $0x108] sm:$0xff] %v6897
    %7026 = vst [vmem:[#allocation2 + $0x110] sm:$0xff] %v6898
    %7027 = vst [vmem:[#allocation2 + $0x118] sm:$0xff] %v6899
    %7028 = vst [vmem:[#allocation2 + $0x120] sm:$0xff] %v6900
    %7029 = vst [vmem:[#allocation2 + $0x128] sm:$0xff] %v6901
    %7030 = vst [vmem:[#allocation2 + $0x130] sm:$0xff] %v6902
    %7031 = vst [vmem:[#allocation2 + $0x138] sm:$0xff] %v6903
    %7032 = vst [vmem:[#allocation2 + $0x140] sm:$0xff] %v6904
    %7033 = vst [vmem:[#allocation2 + $0x148] sm:$0xff] %v6905
    %7034 = vst [vmem:[#allocation2 + $0x150] sm:$0xff] %v6906
    %7035 = vst [vmem:[#allocation2 + $0x158] sm:$0xff] %v6907
    %7036 = vst [vmem:[#allocation2 + $0x160] sm:$0xff] %v6908
    %7037 = vst [vmem:[#allocation2 + $0x168] sm:$0xff] %v6909
    %7038 = vst [vmem:[#allocation2 + $0x170] sm:$0xff] %v6910
    %7039 = vst [vmem:[#allocation2 + $0x178] sm:$0xff] %v6911
    %7040 = vst [vmem:[#allocation2 + $0x180] sm:$0xff] %v6912
    %7041 = vst [vmem:[#allocation2 + $0x188] sm:$0xff] %v6913
    %7042 = vst [vmem:[#allocation2 + $0x190] sm:$0xff] %v6914
    %7043 = vst [vmem:[#allocation2 + $0x198] sm:$0xff] %v6915
    %7044 = vst [vmem:[#allocation2 + $0x1a0] sm:$0xff] %v6916
    %7045 = vst [vmem:[#allocation2 + $0x1a8] sm:$0xff] %v6917
    %7046 = vst [vmem:[#allocation2 + $0x1b0] sm:$0xff] %v6918
    %7047 = vst [vmem:[#allocation2 + $0x1b8] sm:$0xff] %v6919
    %7048 = vst [vmem:[#allocation2 + $0x1c0] sm:$0xff] %v6920
    %7049 = vst [vmem:[#allocation2 + $0x1c8] sm:$0xff] %v6921
    %7050 = vst [vmem:[#allocation2 + $0x1d0] sm:$0xff] %v6922
    %7051 = vst [vmem:[#allocation2 + $0x1d8] sm:$0xff] %v6923
    %7052 = vst [vmem:[#allocation2 + $0x1e0] sm:$0xff] %v6924
    %7053 = vst [vmem:[#allocation2 + $0x1e8] sm:$0xff] %v6925
    %7054 = vst [vmem:[#allocation2 + $0x1f0] sm:$0xff] %v6926
    %7055 = vst [vmem:[#allocation2 + $0x1f8] sm:$0xff] %v6927
    %7056 = vst [vmem:[#allocation2 + $0x200] sm:$0xff] %v6928
    %7057 = vst [vmem:[#allocation2 + $0x208] sm:$0xff] %v6929
    %7058 = vst [vmem:[#allocation2 + $0x210] sm:$0xff] %v6930
    %7059 = vst [vmem:[#allocation2 + $0x218] sm:$0xff] %v6931
    %7060 = vst [vmem:[#allocation2 + $0x220] sm:$0xff] %v6932
    %7061 = vst [vmem:[#allocation2 + $0x228] sm:$0xff] %v6933
    %7062 = vst [vmem:[#allocation2 + $0x230] sm:$0xff] %v6934
    %7063 = vst [vmem:[#allocation2 + $0x238] sm:$0xff] %v6935
    %7064 = vst [vmem:[#allocation2 + $0x240] sm:$0xff] %v6936
    %7065 = vst [vmem:[#allocation2 + $0x248] sm:$0xff] %v6937
    %7066 = vst [vmem:[#allocation2 + $0x250] sm:$0xff] %v6938
    %7067 = vst [vmem:[#allocation2 + $0x258] sm:$0xff] %v6939
    %7068 = vst [vmem:[#allocation2 + $0x260] sm:$0xff] %v6940
    %7069 = vst [vmem:[#allocation2 + $0x268] sm:$0xff] %v6941
    %7070 = vst [vmem:[#allocation2 + $0x270] sm:$0xff] %v6942
    %7071 = vst [vmem:[#allocation2 + $0x278] sm:$0xff] %v6943
    %7072 = vst [vmem:[#allocation2 + $0x280] sm:$0xff] %v6944
    %7073 = vst [vmem:[#allocation2 + $0x288] sm:$0xff] %v6945
    %7074 = vst [vmem:[#allocation2 + $0x290] sm:$0xff] %v6946
    %7075 = vst [vmem:[#allocation2 + $0x298] sm:$0xff] %v6947
    %7076 = vst [vmem:[#allocation2 + $0x2a0] sm:$0xff] %v6948
    %7077 = vst [vmem:[#allocation2 + $0x2a8] sm:$0xff] %v6949
    %7078 = vst [vmem:[#allocation2 + $0x2b0] sm:$0xff] %v6950
    %7079 = vst [vmem:[#allocation2 + $0x2b8] sm:$0xff] %v6951
    %7080 = vst [vmem:[#allocation2 + $0x2c0] sm:$0xff] %v6952
    %7081 = vst [vmem:[#allocation2 + $0x2c8] sm:$0xff] %v6953
    %7082 = vst [vmem:[#allocation2 + $0x2d0] sm:$0xff] %v6954
    %7083 = vst [vmem:[#allocation2 + $0x2d8] sm:$0xff] %v6955
    %7084 = vst [vmem:[#allocation2 + $0x2e0] sm:$0xff] %v6956
    %7085 = vst [vmem:[#allocation2 + $0x2e8] sm:$0xff] %v6957
    %7086 = vst [vmem:[#allocation2 + $0x2f0] sm:$0xff] %v6958
    %7087 = vst [vmem:[#allocation2 + $0x2f8] sm:$0xff] %v6959
    %7088 = vst [vmem:[#allocation2 + $0x300] sm:$0xff] %v6960
    %7089 = vst [vmem:[#allocation2 + $0x308] sm:$0xff] %v6961
    %7090 = vst [vmem:[#allocation2 + $0x310] sm:$0xff] %v6962
    %7091 = vst [vmem:[#allocation2 + $0x318] sm:$0xff] %v6963
    %7092 = vst [vmem:[#allocation2 + $0x320] sm:$0xff] %v6964
    %7093 = vst [vmem:[#allocation2 + $0x328] sm:$0xff] %v6965
    %7094 = vst [vmem:[#allocation2 + $0x330] sm:$0xff] %v6966
    %7095 = vst [vmem:[#allocation2 + $0x338] sm:$0xff] %v6967
    %7096 = vst [vmem:[#allocation2 + $0x340] sm:$0xff] %v6968
    %7097 = vst [vmem:[#allocation2 + $0x348] sm:$0xff] %v6969
    %7098 = vst [vmem:[#allocation2 + $0x350] sm:$0xff] %v6970
    %7099 = vst [vmem:[#allocation2 + $0x358] sm:$0xff] %v6971
    %7100 = vst [vmem:[#allocation2 + $0x360] sm:$0xff] %v6972
    %7101 = vst [vmem:[#allocation2 + $0x368] sm:$0xff] %v6973
    %7102 = vst [vmem:[#allocation2 + $0x370] sm:$0xff] %v6974
    %7103 = vst [vmem:[#allocation2 + $0x378] sm:$0xff] %v6975
    %7104 = vst [vmem:[#allocation2 + $0x380] sm:$0xff] %v6976
    %7105 = vst [vmem:[#allocation2 + $0x388] sm:$0xff] %v6977
    %7106 = vst [vmem:[#allocation2 + $0x390] sm:$0xff] %v6978
    %7107 = vst [vmem:[#allocation2 + $0x398] sm:$0xff] %v6979
    %7108 = vst [vmem:[#allocation2 + $0x3a0] sm:$0xff] %v6980
    %7109 = vst [vmem:[#allocation2 + $0x3a8] sm:$0xff] %v6981
    %7110 = vst [vmem:[#allocation2 + $0x3b0] sm:$0xff] %v6982
    %7111 = vst [vmem:[#allocation2 + $0x3b8] sm:$0xff] %v6983
    %7112 = vst [vmem:[#allocation2 + $0x3c0] sm:$0xff] %v6984
    %7113 = vst [vmem:[#allocation2 + $0x3c8] sm:$0xff] %v6985
    %7114 = vst [vmem:[#allocation2 + $0x3d0] sm:$0xff] %v6986
    %7115 = vst [vmem:[#allocation2 + $0x3d8] sm:$0xff] %v6987
    %7116 = vst [vmem:[#allocation2 + $0x3e0] sm:$0xff] %v6988
    %7117 = vst [vmem:[#allocation2 + $0x3e8] sm:$0xff] %v6989
    %7118 = vst [vmem:[#allocation2 + $0x3f0] sm:$0xff] %v6990
    %7119 = vst [vmem:[#allocation2 + $0x3f8] sm:$0xff] %v6991
    %s7120 = scalar_lea.vmem %s0, 24
    %v7121 = vld [vmem:[%s7120] sm:$0xf]
    %v7122 = vld [vmem:[%s7120 + $0x4] sm:$0xf]
    %v7123 = vld [vmem:[%s7120 + $0xc] sm:$0xf]
    %v7124 = vld [vmem:[%s7120 + $0x10] sm:$0xf]
    %v7125 = vld [vmem:[%s7120 + $0x18] sm:$0xf]
    %v7126 = vld [vmem:[%s7120 + $0x1c] sm:$0xf]
    %v7127 = vld [vmem:[%s7120 + $0x24] sm:$0xf]
    %v7128 = vld [vmem:[%s7120 + $0x28] sm:$0xf]
    %v7129 = vld [vmem:[%s7120 + $0x30] sm:$0xf]
    %v7130 = vld [vmem:[%s7120 + $0x34] sm:$0xf]
    %v7131 = vld [vmem:[%s7120 + $0x3c] sm:$0xf]
    %v7132 = vld [vmem:[%s7120 + $0x40] sm:$0xf]
    %v7133 = vld [vmem:[%s7120 + $0x48] sm:$0xf]
    %v7134 = vld [vmem:[%s7120 + $0x4c] sm:$0xf]
    %v7135 = vld [vmem:[%s7120 + $0x54] sm:$0xf]
    %v7136 = vld [vmem:[%s7120 + $0x58] sm:$0xf]
    %s7137 = scalar_lea.vmem %s0, 144
    %v7138 = vld [vmem:[%s7137] sm:$0xf]
    %v7139 = vld [vmem:[%s7137 + $0x4] sm:$0xf]
    %v7140 = vld [vmem:[%s7137 + $0xc] sm:$0xf]
    %v7141 = vld [vmem:[%s7137 + $0x10] sm:$0xf]
    %v7142 = vld [vmem:[%s7137 + $0x18] sm:$0xf]
    %v7143 = vld [vmem:[%s7137 + $0x1c] sm:$0xf]
    %v7144 = vld [vmem:[%s7137 + $0x24] sm:$0xf]
    %v7145 = vld [vmem:[%s7137 + $0x28] sm:$0xf]
    %v7146 = vld [vmem:[%s7137 + $0x30] sm:$0xf]
    %v7147 = vld [vmem:[%s7137 + $0x34] sm:$0xf]
    %v7148 = vld [vmem:[%s7137 + $0x3c] sm:$0xf]
    %v7149 = vld [vmem:[%s7137 + $0x40] sm:$0xf]
    %v7150 = vld [vmem:[%s7137 + $0x48] sm:$0xf]
    %v7151 = vld [vmem:[%s7137 + $0x4c] sm:$0xf]
    %v7152 = vld [vmem:[%s7137 + $0x54] sm:$0xf]
    %v7153 = vld [vmem:[%s7137 + $0x58] sm:$0xf]
    %v7170 = vunpack.c.l.b16 %v7121
    %v7171 = vunpack.c.l.b16 %v7122
    %v7172 = vunpack.c.l.b16 %v7123
    %v7173 = vunpack.c.l.b16 %v7124
    %v7174 = vunpack.c.l.b16 %v7125
    %v7175 = vunpack.c.l.b16 %v7126
    %v7176 = vunpack.c.l.b16 %v7127
    %v7177 = vunpack.c.l.b16 %v7128
    %v7178 = vunpack.c.l.b16 %v7129
    %v7179 = vunpack.c.l.b16 %v7130
    %v7180 = vunpack.c.l.b16 %v7131
    %v7181 = vunpack.c.l.b16 %v7132
    %v7182 = vunpack.c.l.b16 %v7133
    %v7183 = vunpack.c.l.b16 %v7134
    %v7184 = vunpack.c.l.b16 %v7135
    %v7185 = vunpack.c.l.b16 %v7136
    %v7186 = vpack.c.b16 %v7171, %v7170
    %v7187 = vpack.c.b16 %v7173, %v7172
    %v7188 = vpack.c.b16 %v7175, %v7174
    %v7189 = vpack.c.b16 %v7177, %v7176
    %v7190 = vpack.c.b16 %v7179, %v7178
    %v7191 = vpack.c.b16 %v7181, %v7180
    %v7192 = vpack.c.b16 %v7183, %v7182
    %v7193 = vpack.c.b16 %v7185, %v7184
    %v7210 = vunpack.c.l.b16 %v7138
    %v7211 = vunpack.c.l.b16 %v7139
    %v7212 = vunpack.c.l.b16 %v7140
    %v7213 = vunpack.c.l.b16 %v7141
    %v7214 = vunpack.c.l.b16 %v7142
    %v7215 = vunpack.c.l.b16 %v7143
    %v7216 = vunpack.c.l.b16 %v7144
    %v7217 = vunpack.c.l.b16 %v7145
    %v7218 = vunpack.c.l.b16 %v7146
    %v7219 = vunpack.c.l.b16 %v7147
    %v7220 = vunpack.c.l.b16 %v7148
    %v7221 = vunpack.c.l.b16 %v7149
    %v7222 = vunpack.c.l.b16 %v7150
    %v7223 = vunpack.c.l.b16 %v7151
    %v7224 = vunpack.c.l.b16 %v7152
    %v7225 = vunpack.c.l.b16 %v7153
    %v7226 = vpack.c.b16 %v7211, %v7210
    %v7227 = vpack.c.b16 %v7213, %v7212
    %v7228 = vpack.c.b16 %v7215, %v7214
    %v7229 = vpack.c.b16 %v7217, %v7216
    %v7230 = vpack.c.b16 %v7219, %v7218
    %v7231 = vpack.c.b16 %v7221, %v7220
    %v7232 = vpack.c.b16 %v7223, %v7222
    %v7233 = vpack.c.b16 %v7225, %v7224
    %s7234 = scalar_lea.vmem [#allocation3], 864
    %v7235 = vld [vmem:[%s7234] sm:$0xff]
    %v7236 = vld [vmem:[%s7234 + $0x8] sm:$0xff]
    %v7237 = vld [vmem:[%s7234 + $0x10] sm:$0xff]
    %v7238 = vld [vmem:[%s7234 + $0x18] sm:$0xff]
    %v7239 = vld [vmem:[%s7234 + $0x20] sm:$0xff]
    %v7240 = vld [vmem:[%s7234 + $0x28] sm:$0xff]
    %v7241 = vld [vmem:[%s7234 + $0x30] sm:$0xff]
    %v7242 = vld [vmem:[%s7234 + $0x38] sm:$0xff]
    %v7243 = vld [vmem:[%s7234 + $0x40] sm:$0xff]
    %v7244 = vld [vmem:[%s7234 + $0x48] sm:$0xff]
    %v7245 = vld [vmem:[%s7234 + $0x50] sm:$0xff]
    %v7246 = vld [vmem:[%s7234 + $0x58] sm:$0xff]
    %v7247 = vld [vmem:[%s7234 + $0x60] sm:$0xff]
    %v7248 = vld [vmem:[%s7234 + $0x68] sm:$0xff]
    %v7249 = vld [vmem:[%s7234 + $0x70] sm:$0xff]
    %v7250 = vld [vmem:[%s7234 + $0x78] sm:$0xff]
    %v7251 = vld [vmem:[%s7234 + $0x80] sm:$0xff]
    %v7252 = vld [vmem:[%s7234 + $0x88] sm:$0xff]
    %v7271 = vunpack.c.l.b16 %v7235
    %v7272 = vunpack.c.h.b16 %v7235
    %v7273 = vunpack.c.l.b16 %v7236
    %v7274 = vunpack.c.h.b16 %v7236
    %v7275 = vunpack.c.l.b16 %v7237
    %v7276 = vunpack.c.h.b16 %v7237
    %v7277 = vunpack.c.l.b16 %v7238
    %v7278 = vunpack.c.h.b16 %v7238
    %v7279 = vunpack.c.l.b16 %v7239
    %v7280 = vunpack.c.h.b16 %v7239
    %v7281 = vunpack.c.l.b16 %v7240
    %v7282 = vunpack.c.h.b16 %v7240
    %v7283 = vunpack.c.l.b16 %v7241
    %v7284 = vunpack.c.h.b16 %v7241
    %v7285 = vunpack.c.l.b16 %v7242
    %v7286 = vunpack.c.h.b16 %v7242
    %v7287 = vunpack.c.l.b16 %v7243
    %v7288 = vunpack.c.h.b16 %v7243
    %v7289 = vunpack.c.l.b16 %v7244
    %v7290 = vunpack.c.h.b16 %v7244
    %v7291 = vunpack.c.l.b16 %v7245
    %v7292 = vunpack.c.h.b16 %v7245
    %v7293 = vunpack.c.l.b16 %v7246
    %v7294 = vunpack.c.h.b16 %v7246
    %v7295 = vunpack.c.l.b16 %v7247
    %v7296 = vunpack.c.h.b16 %v7247
    %v7297 = vunpack.c.l.b16 %v7248
    %v7298 = vunpack.c.h.b16 %v7248
    %v7299 = vunpack.c.l.b16 %v7249
    %v7300 = vunpack.c.h.b16 %v7249
    %v7301 = vunpack.c.l.b16 %v7250
    %v7302 = vunpack.c.h.b16 %v7250
    %v7303 = vunpack.c.l.b16 %v7251
    %v7304 = vunpack.c.h.b16 %v7251
    %v7305 = vunpack.c.l.b16 %v7252
    %v7306 = vunpack.c.h.b16 %v7252
    %v7307 = vpack.c.b16 %v7275, %v7271
    %v7308 = vpack.c.b16 %v7276, %v7272
    %v7309 = vpack.c.b16 %v7277, %v7273
    %v7310 = vpack.c.b16 %v7278, %v7274
    %v7311 = vpack.c.b16 %v7283, %v7279
    %v7312 = vpack.c.b16 %v7284, %v7280
    %v7313 = vpack.c.b16 %v7285, %v7281
    %v7314 = vpack.c.b16 %v7286, %v7282
    %v7315 = vpack.c.b16 %v7291, %v7287
    %v7316 = vpack.c.b16 %v7292, %v7288
    %v7317 = vpack.c.b16 %v7293, %v7289
    %v7318 = vpack.c.b16 %v7294, %v7290
    %v7319 = vpack.c.b16 %v7299, %v7295
    %v7320 = vpack.c.b16 %v7300, %v7296
    %v7321 = vpack.c.b16 %v7301, %v7297
    %v7322 = vpack.c.b16 %v7302, %v7298
    %v7323 = vpack.c.b16 %v7303, %v7303
    %v7324 = vpack.c.b16 %v7304, %v7304
    %v7325 = vpack.c.b16 %v7305, %v7305
    %v7326 = vpack.c.b16 %v7306, %v7306
    %v7344 = vsel %vm257, %v7186, 0
    %v7347 = vsel %vm257, %v7187, 0
    %v7350 = vsel %vm257, %v7188, 0
    %v7353 = vsel %vm257, %v7189, 0
    %v7356 = vsel %vm257, %v7190, 0
    %v7359 = vsel %vm257, %v7191, 0
    %v7362 = vsel %vm257, %v7192, 0
    %v7365 = vsel %vm257, %v7193, 0
    %v7368 = vsel %vm257, %v7226, 0
    %v7371 = vsel %vm257, %v7227, 0
    %v7374 = vsel %vm257, %v7228, 0
    %v7377 = vsel %vm257, %v7229, 0
    %v7380 = vsel %vm257, %v7230, 0
    %v7383 = vsel %vm257, %v7231, 0
    %v7386 = vsel %vm257, %v7232, 0
    %v7389 = vsel %vm257, %v7233, 0
    %v7392 = vsel %vm306, %v7323, 0
    %v7395 = vsel %vm306, %v7324, 0
    %v7398 = vsel %vm306, %v7325, 0
    %v7401 = vsel %vm306, %v7326, 0
    %7403 = vmatprep.subr.bf16.mxu0 0
    %7404 = vmatpush1.bf16.msra.mxu0 0
    %7405 = vmatprep.subr.bf16.mxu0 0
    %7406 = vmatpush1.bf16.msra.mxu0 0
    %7407 = vmatprep.subr.bf16.mxu0 0
    %7408 = vmatpush1.bf16.msra.mxu0 0
    %7409 = vmatprep.subr.bf16.mxu0 %v7395
    %7410 = vmatpush1.bf16.msra.mxu0 %v7392
    %7411 = vmatprep.subr.bf16.mxu0 %v7320
    %7412 = vmatpush1.bf16.msra.mxu0 %v7319
    %7413 = vmatprep.subr.bf16.mxu0 %v7316
    %7414 = vmatpush1.bf16.msra.mxu0 %v7315
    %7415 = vmatprep.subr.bf16.mxu0 %v7312
    %7416 = vmatpush1.bf16.msra.mxu0 %v7311
    %7417 = vmatprep.subr.bf16.mxu0 %v7308
    %7418 = vmatpush1.bf16.msra.mxu0 %v7307
    %7419 = vmatprep.subr.bf16.mxu0 0
    %7420 = vmatpush2.bf16.msra.mxu0 0
    %7421 = vmatprep.subr.bf16.mxu0 0
    %7422 = vmatpush2.bf16.msra.mxu0 0
    %7423 = vmatprep.subr.bf16.mxu0 0
    %7424 = vmatpush2.bf16.msra.mxu0 0
    %7425 = vmatprep.subr.bf16.mxu0 0
    %7426 = vmatpush2.bf16.msra.mxu0 0
    %7427 = vmatprep.subr.bf16.mxu0 0
    %7428 = vmatpush2.bf16.msra.mxu0 0
    %7429 = vmatprep.subr.bf16.mxu0 0
    %7430 = vmatpush2.bf16.msra.mxu0 0
    %7431 = vmatprep.subr.bf16.mxu0 0
    %7432 = vmatpush2.bf16.msra.mxu0 0
    %7433 = vmatprep.subr.bf16.mxu0 0
    %7434 = vmatpush2.bf16.msra.mxu0 0
    %7435 = vmatprep.mubr.bf16.mxu0 0
    %7436 = vmatmul.mubr.bf16.gmra.mxu0 %v7344
    %v7437 = vpop.f32.mrf.mxu0
    %v7438 = vadd.f32 0.0, %v7437
    %v7439 = vpop.f32.mrf.mxu0
    %v7440 = vadd.f32 0.0, %v7439
    %v7441 = vpop.f32.mrf.mxu0
    %v7442 = vadd.f32 0.0, %v7441
    %v7443 = vpop.f32.mrf.mxu0
    %v7444 = vadd.f32 0.0, %v7443
    %7445 = vmatprep.mubr.bf16.mxu0 0
    %7446 = vmatmul.mubr.bf16.gmra.mxu0 %v7347
    %v7447 = vpop.f32.mrf.mxu0
    %v7448 = vadd.f32 0.0, %v7447
    %v7449 = vpop.f32.mrf.mxu0
    %v7450 = vadd.f32 0.0, %v7449
    %v7451 = vpop.f32.mrf.mxu0
    %v7452 = vadd.f32 0.0, %v7451
    %v7453 = vpop.f32.mrf.mxu0
    %v7454 = vadd.f32 0.0, %v7453
    %7455 = vmatprep.mubr.bf16.mxu0 0
    %7456 = vmatmul.mubr.bf16.gmra.mxu0 %v7350
    %v7457 = vpop.f32.mrf.mxu0
    %v7458 = vadd.f32 0.0, %v7457
    %v7459 = vpop.f32.mrf.mxu0
    %v7460 = vadd.f32 0.0, %v7459
    %v7461 = vpop.f32.mrf.mxu0
    %v7462 = vadd.f32 0.0, %v7461
    %v7463 = vpop.f32.mrf.mxu0
    %v7464 = vadd.f32 0.0, %v7463
    %7465 = vmatprep.mubr.bf16.mxu0 0
    %7466 = vmatmul.mubr.bf16.gmra.mxu0 %v7353
    %v7467 = vpop.f32.mrf.mxu0
    %v7468 = vadd.f32 0.0, %v7467
    %v7469 = vpop.f32.mrf.mxu0
    %v7470 = vadd.f32 0.0, %v7469
    %v7471 = vpop.f32.mrf.mxu0
    %v7472 = vadd.f32 0.0, %v7471
    %v7473 = vpop.f32.mrf.mxu0
    %v7474 = vadd.f32 0.0, %v7473
    %7475 = vmatprep.mubr.bf16.mxu0 0
    %7476 = vmatmul.mubr.bf16.gmra.mxu0 %v7356
    %v7477 = vpop.f32.mrf.mxu0
    %v7478 = vadd.f32 0.0, %v7477
    %v7479 = vpop.f32.mrf.mxu0
    %v7480 = vadd.f32 0.0, %v7479
    %v7481 = vpop.f32.mrf.mxu0
    %v7482 = vadd.f32 0.0, %v7481
    %v7483 = vpop.f32.mrf.mxu0
    %v7484 = vadd.f32 0.0, %v7483
    %7485 = vmatprep.mubr.bf16.mxu0 0
    %7486 = vmatmul.mubr.bf16.gmra.mxu0 %v7359
    %v7487 = vpop.f32.mrf.mxu0
    %v7488 = vadd.f32 0.0, %v7487
    %v7489 = vpop.f32.mrf.mxu0
    %v7490 = vadd.f32 0.0, %v7489
    %v7491 = vpop.f32.mrf.mxu0
    %v7492 = vadd.f32 0.0, %v7491
    %v7493 = vpop.f32.mrf.mxu0
    %v7494 = vadd.f32 0.0, %v7493
    %7495 = vmatprep.mubr.bf16.mxu0 0
    %7496 = vmatmul.mubr.bf16.gmra.mxu0 %v7362
    %v7497 = vpop.f32.mrf.mxu0
    %v7498 = vadd.f32 0.0, %v7497
    %v7499 = vpop.f32.mrf.mxu0
    %v7500 = vadd.f32 0.0, %v7499
    %v7501 = vpop.f32.mrf.mxu0
    %v7502 = vadd.f32 0.0, %v7501
    %v7503 = vpop.f32.mrf.mxu0
    %v7504 = vadd.f32 0.0, %v7503
    %7505 = vmatprep.mubr.bf16.mxu0 0
    %7506 = vmatmul.mubr.bf16.gmra.mxu0 %v7365
    %v7507 = vpop.f32.mrf.mxu0
    %v7508 = vadd.f32 0.0, %v7507
    %v7509 = vpop.f32.mrf.mxu0
    %v7510 = vadd.f32 0.0, %v7509
    %v7511 = vpop.f32.mrf.mxu0
    %v7512 = vadd.f32 0.0, %v7511
    %v7513 = vpop.f32.mrf.mxu0
    %v7514 = vadd.f32 0.0, %v7513
    %7515 = vmatprep.mubr.bf16.mxu0 0
    %7516 = vmatmul.mubr.bf16.gmra.mxu0 %v7368
    %v7517 = vpop.f32.mrf.mxu0
    %v7518 = vadd.f32 0.0, %v7517
    %v7519 = vpop.f32.mrf.mxu0
    %v7520 = vadd.f32 0.0, %v7519
    %v7521 = vpop.f32.mrf.mxu0
    %v7522 = vadd.f32 0.0, %v7521
    %v7523 = vpop.f32.mrf.mxu0
    %v7524 = vadd.f32 0.0, %v7523
    %7525 = vmatprep.mubr.bf16.mxu0 0
    %7526 = vmatmul.mubr.bf16.gmra.mxu0 %v7371
    %v7527 = vpop.f32.mrf.mxu0
    %v7528 = vadd.f32 0.0, %v7527
    %v7529 = vpop.f32.mrf.mxu0
    %v7530 = vadd.f32 0.0, %v7529
    %v7531 = vpop.f32.mrf.mxu0
    %v7532 = vadd.f32 0.0, %v7531
    %v7533 = vpop.f32.mrf.mxu0
    %v7534 = vadd.f32 0.0, %v7533
    %7535 = vmatprep.mubr.bf16.mxu0 0
    %7536 = vmatmul.mubr.bf16.gmra.mxu0 %v7374
    %v7537 = vpop.f32.mrf.mxu0
    %v7538 = vadd.f32 0.0, %v7537
    %v7539 = vpop.f32.mrf.mxu0
    %v7540 = vadd.f32 0.0, %v7539
    %v7541 = vpop.f32.mrf.mxu0
    %v7542 = vadd.f32 0.0, %v7541
    %v7543 = vpop.f32.mrf.mxu0
    %v7544 = vadd.f32 0.0, %v7543
    %7545 = vmatprep.mubr.bf16.mxu0 0
    %7546 = vmatmul.mubr.bf16.gmra.mxu0 %v7377
    %v7547 = vpop.f32.mrf.mxu0
    %v7548 = vadd.f32 0.0, %v7547
    %v7549 = vpop.f32.mrf.mxu0
    %v7550 = vadd.f32 0.0, %v7549
    %v7551 = vpop.f32.mrf.mxu0
    %v7552 = vadd.f32 0.0, %v7551
    %v7553 = vpop.f32.mrf.mxu0
    %v7554 = vadd.f32 0.0, %v7553
    %7555 = vmatprep.mubr.bf16.mxu0 0
    %7556 = vmatmul.mubr.bf16.gmra.mxu0 %v7380
    %v7557 = vpop.f32.mrf.mxu0
    %v7558 = vadd.f32 0.0, %v7557
    %v7559 = vpop.f32.mrf.mxu0
    %v7560 = vadd.f32 0.0, %v7559
    %v7561 = vpop.f32.mrf.mxu0
    %v7562 = vadd.f32 0.0, %v7561
    %v7563 = vpop.f32.mrf.mxu0
    %v7564 = vadd.f32 0.0, %v7563
    %7565 = vmatprep.mubr.bf16.mxu0 0
    %7566 = vmatmul.mubr.bf16.gmra.mxu0 %v7383
    %v7567 = vpop.f32.mrf.mxu0
    %v7568 = vadd.f32 0.0, %v7567
    %v7569 = vpop.f32.mrf.mxu0
    %v7570 = vadd.f32 0.0, %v7569
    %v7571 = vpop.f32.mrf.mxu0
    %v7572 = vadd.f32 0.0, %v7571
    %v7573 = vpop.f32.mrf.mxu0
    %v7574 = vadd.f32 0.0, %v7573
    %7575 = vmatprep.mubr.bf16.mxu0 0
    %7576 = vmatmul.mubr.bf16.gmra.mxu0 %v7386
    %v7577 = vpop.f32.mrf.mxu0
    %v7578 = vadd.f32 0.0, %v7577
    %v7579 = vpop.f32.mrf.mxu0
    %v7580 = vadd.f32 0.0, %v7579
    %v7581 = vpop.f32.mrf.mxu0
    %v7582 = vadd.f32 0.0, %v7581
    %v7583 = vpop.f32.mrf.mxu0
    %v7584 = vadd.f32 0.0, %v7583
    %7585 = vmatprep.mubr.bf16.mxu0 0
    %7586 = vmatmul.mubr.bf16.gmra.mxu0 %v7389
    %v7587 = vpop.f32.mrf.mxu0
    %v7588 = vadd.f32 0.0, %v7587
    %v7589 = vpop.f32.mrf.mxu0
    %v7590 = vadd.f32 0.0, %v7589
    %v7591 = vpop.f32.mrf.mxu0
    %v7592 = vadd.f32 0.0, %v7591
    %v7593 = vpop.f32.mrf.mxu0
    %v7594 = vadd.f32 0.0, %v7593
    %7595 = vdwg.mxu0
    %7596 = vmatprep.subr.bf16.mxu0 0
    %7597 = vmatpush1.bf16.msra.mxu0 0
    %7598 = vmatprep.subr.bf16.mxu0 0
    %7599 = vmatpush1.bf16.msra.mxu0 0
    %7600 = vmatprep.subr.bf16.mxu0 0
    %7601 = vmatpush1.bf16.msra.mxu0 0
    %7602 = vmatprep.subr.bf16.mxu0 %v7401
    %7603 = vmatpush1.bf16.msra.mxu0 %v7398
    %7604 = vmatprep.subr.bf16.mxu0 %v7322
    %7605 = vmatpush1.bf16.msra.mxu0 %v7321
    %7606 = vmatprep.subr.bf16.mxu0 %v7318
    %7607 = vmatpush1.bf16.msra.mxu0 %v7317
    %7608 = vmatprep.subr.bf16.mxu0 %v7314
    %7609 = vmatpush1.bf16.msra.mxu0 %v7313
    %7610 = vmatprep.subr.bf16.mxu0 %v7310
    %7611 = vmatpush1.bf16.msra.mxu0 %v7309
    %7612 = vmatprep.subr.bf16.mxu0 0
    %7613 = vmatpush2.bf16.msra.mxu0 0
    %7614 = vmatprep.subr.bf16.mxu0 0
    %7615 = vmatpush2.bf16.msra.mxu0 0
    %7616 = vmatprep.subr.bf16.mxu0 0
    %7617 = vmatpush2.bf16.msra.mxu0 0
    %7618 = vmatprep.subr.bf16.mxu0 0
    %7619 = vmatpush2.bf16.msra.mxu0 0
    %7620 = vmatprep.subr.bf16.mxu0 0
    %7621 = vmatpush2.bf16.msra.mxu0 0
    %7622 = vmatprep.subr.bf16.mxu0 0
    %7623 = vmatpush2.bf16.msra.mxu0 0
    %7624 = vmatprep.subr.bf16.mxu0 0
    %7625 = vmatpush2.bf16.msra.mxu0 0
    %7626 = vmatprep.subr.bf16.mxu0 0
    %7627 = vmatpush2.bf16.msra.mxu0 0
    %7628 = vmatprep.mubr.bf16.mxu0 0
    %7629 = vmatmul.mubr.bf16.gmra.mxu0 %v7344
    %v7630 = vpop.f32.mrf.mxu0
    %v7631 = vadd.f32 0.0, %v7630
    %v7632 = vpop.f32.mrf.mxu0
    %v7633 = vadd.f32 0.0, %v7632
    %v7634 = vpop.f32.mrf.mxu0
    %v7635 = vadd.f32 0.0, %v7634
    %v7636 = vpop.f32.mrf.mxu0
    %v7637 = vadd.f32 0.0, %v7636
    %7638 = vmatprep.mubr.bf16.mxu0 0
    %7639 = vmatmul.mubr.bf16.gmra.mxu0 %v7347
    %v7640 = vpop.f32.mrf.mxu0
    %v7641 = vadd.f32 0.0, %v7640
    %v7642 = vpop.f32.mrf.mxu0
    %v7643 = vadd.f32 0.0, %v7642
    %v7644 = vpop.f32.mrf.mxu0
    %v7645 = vadd.f32 0.0, %v7644
    %v7646 = vpop.f32.mrf.mxu0
    %v7647 = vadd.f32 0.0, %v7646
    %7648 = vmatprep.mubr.bf16.mxu0 0
    %7649 = vmatmul.mubr.bf16.gmra.mxu0 %v7350
    %v7650 = vpop.f32.mrf.mxu0
    %v7651 = vadd.f32 0.0, %v7650
    %v7652 = vpop.f32.mrf.mxu0
    %v7653 = vadd.f32 0.0, %v7652
    %v7654 = vpop.f32.mrf.mxu0
    %v7655 = vadd.f32 0.0, %v7654
    %v7656 = vpop.f32.mrf.mxu0
    %v7657 = vadd.f32 0.0, %v7656
    %7658 = vmatprep.mubr.bf16.mxu0 0
    %7659 = vmatmul.mubr.bf16.gmra.mxu0 %v7353
    %v7660 = vpop.f32.mrf.mxu0
    %v7661 = vadd.f32 0.0, %v7660
    %v7662 = vpop.f32.mrf.mxu0
    %v7663 = vadd.f32 0.0, %v7662
    %v7664 = vpop.f32.mrf.mxu0
    %v7665 = vadd.f32 0.0, %v7664
    %v7666 = vpop.f32.mrf.mxu0
    %v7667 = vadd.f32 0.0, %v7666
    %7668 = vmatprep.mubr.bf16.mxu0 0
    %7669 = vmatmul.mubr.bf16.gmra.mxu0 %v7356
    %v7670 = vpop.f32.mrf.mxu0
    %v7671 = vadd.f32 0.0, %v7670
    %v7672 = vpop.f32.mrf.mxu0
    %v7673 = vadd.f32 0.0, %v7672
    %v7674 = vpop.f32.mrf.mxu0
    %v7675 = vadd.f32 0.0, %v7674
    %v7676 = vpop.f32.mrf.mxu0
    %v7677 = vadd.f32 0.0, %v7676
    %7678 = vmatprep.mubr.bf16.mxu0 0
    %7679 = vmatmul.mubr.bf16.gmra.mxu0 %v7359
    %v7680 = vpop.f32.mrf.mxu0
    %v7681 = vadd.f32 0.0, %v7680
    %v7682 = vpop.f32.mrf.mxu0
    %v7683 = vadd.f32 0.0, %v7682
    %v7684 = vpop.f32.mrf.mxu0
    %v7685 = vadd.f32 0.0, %v7684
    %v7686 = vpop.f32.mrf.mxu0
    %v7687 = vadd.f32 0.0, %v7686
    %7688 = vmatprep.mubr.bf16.mxu0 0
    %7689 = vmatmul.mubr.bf16.gmra.mxu0 %v7362
    %v7690 = vpop.f32.mrf.mxu0
    %v7691 = vadd.f32 0.0, %v7690
    %v7692 = vpop.f32.mrf.mxu0
    %v7693 = vadd.f32 0.0, %v7692
    %v7694 = vpop.f32.mrf.mxu0
    %v7695 = vadd.f32 0.0, %v7694
    %v7696 = vpop.f32.mrf.mxu0
    %v7697 = vadd.f32 0.0, %v7696
    %7698 = vmatprep.mubr.bf16.mxu0 0
    %7699 = vmatmul.mubr.bf16.gmra.mxu0 %v7365
    %v7700 = vpop.f32.mrf.mxu0
    %v7701 = vadd.f32 0.0, %v7700
    %v7702 = vpop.f32.mrf.mxu0
    %v7703 = vadd.f32 0.0, %v7702
    %v7704 = vpop.f32.mrf.mxu0
    %v7705 = vadd.f32 0.0, %v7704
    %v7706 = vpop.f32.mrf.mxu0
    %v7707 = vadd.f32 0.0, %v7706
    %7708 = vmatprep.mubr.bf16.mxu0 0
    %7709 = vmatmul.mubr.bf16.gmra.mxu0 %v7368
    %v7710 = vpop.f32.mrf.mxu0
    %v7711 = vadd.f32 0.0, %v7710
    %v7712 = vpop.f32.mrf.mxu0
    %v7713 = vadd.f32 0.0, %v7712
    %v7714 = vpop.f32.mrf.mxu0
    %v7715 = vadd.f32 0.0, %v7714
    %v7716 = vpop.f32.mrf.mxu0
    %v7717 = vadd.f32 0.0, %v7716
    %7718 = vmatprep.mubr.bf16.mxu0 0
    %7719 = vmatmul.mubr.bf16.gmra.mxu0 %v7371
    %v7720 = vpop.f32.mrf.mxu0
    %v7721 = vadd.f32 0.0, %v7720
    %v7722 = vpop.f32.mrf.mxu0
    %v7723 = vadd.f32 0.0, %v7722
    %v7724 = vpop.f32.mrf.mxu0
    %v7725 = vadd.f32 0.0, %v7724
    %v7726 = vpop.f32.mrf.mxu0
    %v7727 = vadd.f32 0.0, %v7726
    %7728 = vmatprep.mubr.bf16.mxu0 0
    %7729 = vmatmul.mubr.bf16.gmra.mxu0 %v7374
    %v7730 = vpop.f32.mrf.mxu0
    %v7731 = vadd.f32 0.0, %v7730
    %v7732 = vpop.f32.mrf.mxu0
    %v7733 = vadd.f32 0.0, %v7732
    %v7734 = vpop.f32.mrf.mxu0
    %v7735 = vadd.f32 0.0, %v7734
    %v7736 = vpop.f32.mrf.mxu0
    %v7737 = vadd.f32 0.0, %v7736
    %7738 = vmatprep.mubr.bf16.mxu0 0
    %7739 = vmatmul.mubr.bf16.gmra.mxu0 %v7377
    %v7740 = vpop.f32.mrf.mxu0
    %v7741 = vadd.f32 0.0, %v7740
    %v7742 = vpop.f32.mrf.mxu0
    %v7743 = vadd.f32 0.0, %v7742
    %v7744 = vpop.f32.mrf.mxu0
    %v7745 = vadd.f32 0.0, %v7744
    %v7746 = vpop.f32.mrf.mxu0
    %v7747 = vadd.f32 0.0, %v7746
    %7748 = vmatprep.mubr.bf16.mxu0 0
    %7749 = vmatmul.mubr.bf16.gmra.mxu0 %v7380
    %v7750 = vpop.f32.mrf.mxu0
    %v7751 = vadd.f32 0.0, %v7750
    %v7752 = vpop.f32.mrf.mxu0
    %v7753 = vadd.f32 0.0, %v7752
    %v7754 = vpop.f32.mrf.mxu0
    %v7755 = vadd.f32 0.0, %v7754
    %v7756 = vpop.f32.mrf.mxu0
    %v7757 = vadd.f32 0.0, %v7756
    %7758 = vmatprep.mubr.bf16.mxu0 0
    %7759 = vmatmul.mubr.bf16.gmra.mxu0 %v7383
    %v7760 = vpop.f32.mrf.mxu0
    %v7761 = vadd.f32 0.0, %v7760
    %v7762 = vpop.f32.mrf.mxu0
    %v7763 = vadd.f32 0.0, %v7762
    %v7764 = vpop.f32.mrf.mxu0
    %v7765 = vadd.f32 0.0, %v7764
    %v7766 = vpop.f32.mrf.mxu0
    %v7767 = vadd.f32 0.0, %v7766
    %7768 = vmatprep.mubr.bf16.mxu0 0
    %7769 = vmatmul.mubr.bf16.gmra.mxu0 %v7386
    %v7770 = vpop.f32.mrf.mxu0
    %v7771 = vadd.f32 0.0, %v7770
    %v7772 = vpop.f32.mrf.mxu0
    %v7773 = vadd.f32 0.0, %v7772
    %v7774 = vpop.f32.mrf.mxu0
    %v7775 = vadd.f32 0.0, %v7774
    %v7776 = vpop.f32.mrf.mxu0
    %v7777 = vadd.f32 0.0, %v7776
    %7778 = vmatprep.mubr.bf16.mxu0 0
    %7779 = vmatmul.mubr.bf16.gmra.mxu0 %v7389
    %v7780 = vpop.f32.mrf.mxu0
    %v7781 = vadd.f32 0.0, %v7780
    %v7782 = vpop.f32.mrf.mxu0
    %v7783 = vadd.f32 0.0, %v7782
    %v7784 = vpop.f32.mrf.mxu0
    %v7785 = vadd.f32 0.0, %v7784
    %v7786 = vpop.f32.mrf.mxu0
    %v7787 = vadd.f32 0.0, %v7786
    %7788 = vdwg.mxu0
    %v7789 = vld [vmem:[#allocation2] sm:$0xff]
    %v7790 = vld [vmem:[#allocation2 + $0x8] sm:$0xff]
    %v7791 = vld [vmem:[#allocation2 + $0x10] sm:$0xff]
    %v7792 = vld [vmem:[#allocation2 + $0x18] sm:$0xff]
    %v7793 = vld [vmem:[#allocation2 + $0x20] sm:$0xff]
    %v7794 = vld [vmem:[#allocation2 + $0x28] sm:$0xff]
    %v7795 = vld [vmem:[#allocation2 + $0x30] sm:$0xff]
    %v7796 = vld [vmem:[#allocation2 + $0x38] sm:$0xff]
    %v7797 = vld [vmem:[#allocation2 + $0x40] sm:$0xff]
    %v7798 = vld [vmem:[#allocation2 + $0x48] sm:$0xff]
    %v7799 = vld [vmem:[#allocation2 + $0x50] sm:$0xff]
    %v7800 = vld [vmem:[#allocation2 + $0x58] sm:$0xff]
    %v7801 = vld [vmem:[#allocation2 + $0x60] sm:$0xff]
    %v7802 = vld [vmem:[#allocation2 + $0x68] sm:$0xff]
    %v7803 = vld [vmem:[#allocation2 + $0x70] sm:$0xff]
    %v7804 = vld [vmem:[#allocation2 + $0x78] sm:$0xff]
    %v7805 = vld [vmem:[#allocation2 + $0x80] sm:$0xff]
    %v7806 = vld [vmem:[#allocation2 + $0x88] sm:$0xff]
    %v7807 = vld [vmem:[#allocation2 + $0x90] sm:$0xff]
    %v7808 = vld [vmem:[#allocation2 + $0x98] sm:$0xff]
    %v7809 = vld [vmem:[#allocation2 + $0xa0] sm:$0xff]
    %v7810 = vld [vmem:[#allocation2 + $0xa8] sm:$0xff]
    %v7811 = vld [vmem:[#allocation2 + $0xb0] sm:$0xff]
    %v7812 = vld [vmem:[#allocation2 + $0xb8] sm:$0xff]
    %v7813 = vld [vmem:[#allocation2 + $0xc0] sm:$0xff]
    %v7814 = vld [vmem:[#allocation2 + $0xc8] sm:$0xff]
    %v7815 = vld [vmem:[#allocation2 + $0xd0] sm:$0xff]
    %v7816 = vld [vmem:[#allocation2 + $0xd8] sm:$0xff]
    %v7817 = vld [vmem:[#allocation2 + $0xe0] sm:$0xff]
    %v7818 = vld [vmem:[#allocation2 + $0xe8] sm:$0xff]
    %v7819 = vld [vmem:[#allocation2 + $0xf0] sm:$0xff]
    %v7820 = vld [vmem:[#allocation2 + $0xf8] sm:$0xff]
    %v7821 = vld [vmem:[#allocation2 + $0x100] sm:$0xff]
    %v7822 = vld [vmem:[#allocation2 + $0x108] sm:$0xff]
    %v7823 = vld [vmem:[#allocation2 + $0x110] sm:$0xff]
    %v7824 = vld [vmem:[#allocation2 + $0x118] sm:$0xff]
    %v7825 = vld [vmem:[#allocation2 + $0x120] sm:$0xff]
    %v7826 = vld [vmem:[#allocation2 + $0x128] sm:$0xff]
    %v7827 = vld [vmem:[#allocation2 + $0x130] sm:$0xff]
    %v7828 = vld [vmem:[#allocation2 + $0x138] sm:$0xff]
    %v7829 = vld [vmem:[#allocation2 + $0x140] sm:$0xff]
    %v7830 = vld [vmem:[#allocation2 + $0x148] sm:$0xff]
    %v7831 = vld [vmem:[#allocation2 + $0x150] sm:$0xff]
    %v7832 = vld [vmem:[#allocation2 + $0x158] sm:$0xff]
    %v7833 = vld [vmem:[#allocation2 + $0x160] sm:$0xff]
    %v7834 = vld [vmem:[#allocation2 + $0x168] sm:$0xff]
    %v7835 = vld [vmem:[#allocation2 + $0x170] sm:$0xff]
    %v7836 = vld [vmem:[#allocation2 + $0x178] sm:$0xff]
    %v7837 = vld [vmem:[#allocation2 + $0x180] sm:$0xff]
    %v7838 = vld [vmem:[#allocation2 + $0x188] sm:$0xff]
    %v7839 = vld [vmem:[#allocation2 + $0x190] sm:$0xff]
    %v7840 = vld [vmem:[#allocation2 + $0x198] sm:$0xff]
    %v7841 = vld [vmem:[#allocation2 + $0x1a0] sm:$0xff]
    %v7842 = vld [vmem:[#allocation2 + $0x1a8] sm:$0xff]
    %v7843 = vld [vmem:[#allocation2 + $0x1b0] sm:$0xff]
    %v7844 = vld [vmem:[#allocation2 + $0x1b8] sm:$0xff]
    %v7845 = vld [vmem:[#allocation2 + $0x1c0] sm:$0xff]
    %v7846 = vld [vmem:[#allocation2 + $0x1c8] sm:$0xff]
    %v7847 = vld [vmem:[#allocation2 + $0x1d0] sm:$0xff]
    %v7848 = vld [vmem:[#allocation2 + $0x1d8] sm:$0xff]
    %v7849 = vld [vmem:[#allocation2 + $0x1e0] sm:$0xff]
    %v7850 = vld [vmem:[#allocation2 + $0x1e8] sm:$0xff]
    %v7851 = vld [vmem:[#allocation2 + $0x1f0] sm:$0xff]
    %v7852 = vld [vmem:[#allocation2 + $0x1f8] sm:$0xff]
    %v7853 = vld [vmem:[#allocation2 + $0x200] sm:$0xff]
    %v7854 = vld [vmem:[#allocation2 + $0x208] sm:$0xff]
    %v7855 = vld [vmem:[#allocation2 + $0x210] sm:$0xff]
    %v7856 = vld [vmem:[#allocation2 + $0x218] sm:$0xff]
    %v7857 = vld [vmem:[#allocation2 + $0x220] sm:$0xff]
    %v7858 = vld [vmem:[#allocation2 + $0x228] sm:$0xff]
    %v7859 = vld [vmem:[#allocation2 + $0x230] sm:$0xff]
    %v7860 = vld [vmem:[#allocation2 + $0x238] sm:$0xff]
    %v7861 = vld [vmem:[#allocation2 + $0x240] sm:$0xff]
    %v7862 = vld [vmem:[#allocation2 + $0x248] sm:$0xff]
    %v7863 = vld [vmem:[#allocation2 + $0x250] sm:$0xff]
    %v7864 = vld [vmem:[#allocation2 + $0x258] sm:$0xff]
    %v7865 = vld [vmem:[#allocation2 + $0x260] sm:$0xff]
    %v7866 = vld [vmem:[#allocation2 + $0x268] sm:$0xff]
    %v7867 = vld [vmem:[#allocation2 + $0x270] sm:$0xff]
    %v7868 = vld [vmem:[#allocation2 + $0x278] sm:$0xff]
    %v7869 = vld [vmem:[#allocation2 + $0x280] sm:$0xff]
    %v7870 = vld [vmem:[#allocation2 + $0x288] sm:$0xff]
    %v7871 = vld [vmem:[#allocation2 + $0x290] sm:$0xff]
    %v7872 = vld [vmem:[#allocation2 + $0x298] sm:$0xff]
    %v7873 = vld [vmem:[#allocation2 + $0x2a0] sm:$0xff]
    %v7874 = vld [vmem:[#allocation2 + $0x2a8] sm:$0xff]
    %v7875 = vld [vmem:[#allocation2 + $0x2b0] sm:$0xff]
    %v7876 = vld [vmem:[#allocation2 + $0x2b8] sm:$0xff]
    %v7877 = vld [vmem:[#allocation2 + $0x2c0] sm:$0xff]
    %v7878 = vld [vmem:[#allocation2 + $0x2c8] sm:$0xff]
    %v7879 = vld [vmem:[#allocation2 + $0x2d0] sm:$0xff]
    %v7880 = vld [vmem:[#allocation2 + $0x2d8] sm:$0xff]
    %v7881 = vld [vmem:[#allocation2 + $0x2e0] sm:$0xff]
    %v7882 = vld [vmem:[#allocation2 + $0x2e8] sm:$0xff]
    %v7883 = vld [vmem:[#allocation2 + $0x2f0] sm:$0xff]
    %v7884 = vld [vmem:[#allocation2 + $0x2f8] sm:$0xff]
    %v7885 = vld [vmem:[#allocation2 + $0x300] sm:$0xff]
    %v7886 = vld [vmem:[#allocation2 + $0x308] sm:$0xff]
    %v7887 = vld [vmem:[#allocation2 + $0x310] sm:$0xff]
    %v7888 = vld [vmem:[#allocation2 + $0x318] sm:$0xff]
    %v7889 = vld [vmem:[#allocation2 + $0x320] sm:$0xff]
    %v7890 = vld [vmem:[#allocation2 + $0x328] sm:$0xff]
    %v7891 = vld [vmem:[#allocation2 + $0x330] sm:$0xff]
    %v7892 = vld [vmem:[#allocation2 + $0x338] sm:$0xff]
    %v7893 = vld [vmem:[#allocation2 + $0x340] sm:$0xff]
    %v7894 = vld [vmem:[#allocation2 + $0x348] sm:$0xff]
    %v7895 = vld [vmem:[#allocation2 + $0x350] sm:$0xff]
    %v7896 = vld [vmem:[#allocation2 + $0x358] sm:$0xff]
    %v7897 = vld [vmem:[#allocation2 + $0x360] sm:$0xff]
    %v7898 = vld [vmem:[#allocation2 + $0x368] sm:$0xff]
    %v7899 = vld [vmem:[#allocation2 + $0x370] sm:$0xff]
    %v7900 = vld [vmem:[#allocation2 + $0x378] sm:$0xff]
    %v7901 = vld [vmem:[#allocation2 + $0x380] sm:$0xff]
    %v7902 = vld [vmem:[#allocation2 + $0x388] sm:$0xff]
    %v7903 = vld [vmem:[#allocation2 + $0x390] sm:$0xff]
    %v7904 = vld [vmem:[#allocation2 + $0x398] sm:$0xff]
    %v7905 = vld [vmem:[#allocation2 + $0x3a0] sm:$0xff]
    %v7906 = vld [vmem:[#allocation2 + $0x3a8] sm:$0xff]
    %v7907 = vld [vmem:[#allocation2 + $0x3b0] sm:$0xff]
    %v7908 = vld [vmem:[#allocation2 + $0x3b8] sm:$0xff]
    %v7909 = vld [vmem:[#allocation2 + $0x3c0] sm:$0xff]
    %v7910 = vld [vmem:[#allocation2 + $0x3c8] sm:$0xff]
    %v7911 = vld [vmem:[#allocation2 + $0x3d0] sm:$0xff]
    %v7912 = vld [vmem:[#allocation2 + $0x3d8] sm:$0xff]
    %v7913 = vld [vmem:[#allocation2 + $0x3e0] sm:$0xff]
    %v7914 = vld [vmem:[#allocation2 + $0x3e8] sm:$0xff]
    %v7915 = vld [vmem:[#allocation2 + $0x3f0] sm:$0xff]
    %v7916 = vld [vmem:[#allocation2 + $0x3f8] sm:$0xff]
    %v7917 = vadd.f32 %v7789, %v7438
    %v7918 = vadd.f32 %v7790, %v7440
    %v7919 = vadd.f32 %v7791, %v7631
    %v7920 = vadd.f32 %v7792, %v7633
    %v7921 = vadd.f32 %v7793, %v7442
    %v7922 = vadd.f32 %v7794, %v7444
    %v7923 = vadd.f32 %v7795, %v7635
    %v7924 = vadd.f32 %v7796, %v7637
    %v7925 = vadd.f32 %v7797, %v7448
    %v7926 = vadd.f32 %v7798, %v7450
    %v7927 = vadd.f32 %v7799, %v7641
    %v7928 = vadd.f32 %v7800, %v7643
    %v7929 = vadd.f32 %v7801, %v7452
    %v7930 = vadd.f32 %v7802, %v7454
    %v7931 = vadd.f32 %v7803, %v7645
    %v7932 = vadd.f32 %v7804, %v7647
    %v7933 = vadd.f32 %v7805, %v7458
    %v7934 = vadd.f32 %v7806, %v7460
    %v7935 = vadd.f32 %v7807, %v7651
    %v7936 = vadd.f32 %v7808, %v7653
    %v7937 = vadd.f32 %v7809, %v7462
    %v7938 = vadd.f32 %v7810, %v7464
    %v7939 = vadd.f32 %v7811, %v7655
    %v7940 = vadd.f32 %v7812, %v7657
    %v7941 = vadd.f32 %v7813, %v7468
    %v7942 = vadd.f32 %v7814, %v7470
    %v7943 = vadd.f32 %v7815, %v7661
    %v7944 = vadd.f32 %v7816, %v7663
    %v7945 = vadd.f32 %v7817, %v7472
    %v7946 = vadd.f32 %v7818, %v7474
    %v7947 = vadd.f32 %v7819, %v7665
    %v7948 = vadd.f32 %v7820, %v7667
    %v7949 = vadd.f32 %v7821, %v7478
    %v7950 = vadd.f32 %v7822, %v7480
    %v7951 = vadd.f32 %v7823, %v7671
    %v7952 = vadd.f32 %v7824, %v7673
    %v7953 = vadd.f32 %v7825, %v7482
    %v7954 = vadd.f32 %v7826, %v7484
    %v7955 = vadd.f32 %v7827, %v7675
    %v7956 = vadd.f32 %v7828, %v7677
    %v7957 = vadd.f32 %v7829, %v7488
    %v7958 = vadd.f32 %v7830, %v7490
    %v7959 = vadd.f32 %v7831, %v7681
    %v7960 = vadd.f32 %v7832, %v7683
    %v7961 = vadd.f32 %v7833, %v7492
    %v7962 = vadd.f32 %v7834, %v7494
    %v7963 = vadd.f32 %v7835, %v7685
    %v7964 = vadd.f32 %v7836, %v7687
    %v7965 = vadd.f32 %v7837, %v7498
    %v7966 = vadd.f32 %v7838, %v7500
    %v7967 = vadd.f32 %v7839, %v7691
    %v7968 = vadd.f32 %v7840, %v7693
    %v7969 = vadd.f32 %v7841, %v7502
    %v7970 = vadd.f32 %v7842, %v7504
    %v7971 = vadd.f32 %v7843, %v7695
    %v7972 = vadd.f32 %v7844, %v7697
    %v7973 = vadd.f32 %v7845, %v7508
    %v7974 = vadd.f32 %v7846, %v7510
    %v7975 = vadd.f32 %v7847, %v7701
    %v7976 = vadd.f32 %v7848, %v7703
    %v7977 = vadd.f32 %v7849, %v7512
    %v7978 = vadd.f32 %v7850, %v7514
    %v7979 = vadd.f32 %v7851, %v7705
    %v7980 = vadd.f32 %v7852, %v7707
    %v7981 = vadd.f32 %v7853, %v7518
    %v7982 = vadd.f32 %v7854, %v7520
    %v7983 = vadd.f32 %v7855, %v7711
    %v7984 = vadd.f32 %v7856, %v7713
    %v7985 = vadd.f32 %v7857, %v7522
    %v7986 = vadd.f32 %v7858, %v7524
    %v7987 = vadd.f32 %v7859, %v7715
    %v7988 = vadd.f32 %v7860, %v7717
    %v7989 = vadd.f32 %v7861, %v7528
    %v7990 = vadd.f32 %v7862, %v7530
    %v7991 = vadd.f32 %v7863, %v7721
    %v7992 = vadd.f32 %v7864, %v7723
    %v7993 = vadd.f32 %v7865, %v7532
    %v7994 = vadd.f32 %v7866, %v7534
    %v7995 = vadd.f32 %v7867, %v7725
    %v7996 = vadd.f32 %v7868, %v7727
    %v7997 = vadd.f32 %v7869, %v7538
    %v7998 = vadd.f32 %v7870, %v7540
    %v7999 = vadd.f32 %v7871, %v7731
    %v8000 = vadd.f32 %v7872, %v7733
    %v8001 = vadd.f32 %v7873, %v7542
    %v8002 = vadd.f32 %v7874, %v7544
    %v8003 = vadd.f32 %v7875, %v7735
    %v8004 = vadd.f32 %v7876, %v7737
    %v8005 = vadd.f32 %v7877, %v7548
    %v8006 = vadd.f32 %v7878, %v7550
    %v8007 = vadd.f32 %v7879, %v7741
    %v8008 = vadd.f32 %v7880, %v7743
    %v8009 = vadd.f32 %v7881, %v7552
    %v8010 = vadd.f32 %v7882, %v7554
    %v8011 = vadd.f32 %v7883, %v7745
    %v8012 = vadd.f32 %v7884, %v7747
    %v8013 = vadd.f32 %v7885, %v7558
    %v8014 = vadd.f32 %v7886, %v7560
    %v8015 = vadd.f32 %v7887, %v7751
    %v8016 = vadd.f32 %v7888, %v7753
    %v8017 = vadd.f32 %v7889, %v7562
    %v8018 = vadd.f32 %v7890, %v7564
    %v8019 = vadd.f32 %v7891, %v7755
    %v8020 = vadd.f32 %v7892, %v7757
    %v8021 = vadd.f32 %v7893, %v7568
    %v8022 = vadd.f32 %v7894, %v7570
    %v8023 = vadd.f32 %v7895, %v7761
    %v8024 = vadd.f32 %v7896, %v7763
    %v8025 = vadd.f32 %v7897, %v7572
    %v8026 = vadd.f32 %v7898, %v7574
    %v8027 = vadd.f32 %v7899, %v7765
    %v8028 = vadd.f32 %v7900, %v7767
    %v8029 = vadd.f32 %v7901, %v7578
    %v8030 = vadd.f32 %v7902, %v7580
    %v8031 = vadd.f32 %v7903, %v7771
    %v8032 = vadd.f32 %v7904, %v7773
    %v8033 = vadd.f32 %v7905, %v7582
    %v8034 = vadd.f32 %v7906, %v7584
    %v8035 = vadd.f32 %v7907, %v7775
    %v8036 = vadd.f32 %v7908, %v7777
    %v8037 = vadd.f32 %v7909, %v7588
    %v8038 = vadd.f32 %v7910, %v7590
    %v8039 = vadd.f32 %v7911, %v7781
    %v8040 = vadd.f32 %v7912, %v7783
    %v8041 = vadd.f32 %v7913, %v7592
    %v8042 = vadd.f32 %v7914, %v7594
    %v8043 = vadd.f32 %v7915, %v7785
    %v8044 = vadd.f32 %v7916, %v7787
    %8045 = vst [vmem:[#allocation2] sm:$0xff] %v7917
    %8046 = vst [vmem:[#allocation2 + $0x8] sm:$0xff] %v7918
    %8047 = vst [vmem:[#allocation2 + $0x10] sm:$0xff] %v7919
    %8048 = vst [vmem:[#allocation2 + $0x18] sm:$0xff] %v7920
    %8049 = vst [vmem:[#allocation2 + $0x20] sm:$0xff] %v7921
    %8050 = vst [vmem:[#allocation2 + $0x28] sm:$0xff] %v7922
    %8051 = vst [vmem:[#allocation2 + $0x30] sm:$0xff] %v7923
    %8052 = vst [vmem:[#allocation2 + $0x38] sm:$0xff] %v7924
    %8053 = vst [vmem:[#allocation2 + $0x40] sm:$0xff] %v7925
    %8054 = vst [vmem:[#allocation2 + $0x48] sm:$0xff] %v7926
    %8055 = vst [vmem:[#allocation2 + $0x50] sm:$0xff] %v7927
    %8056 = vst [vmem:[#allocation2 + $0x58] sm:$0xff] %v7928
    %8057 = vst [vmem:[#allocation2 + $0x60] sm:$0xff] %v7929
    %8058 = vst [vmem:[#allocation2 + $0x68] sm:$0xff] %v7930
    %8059 = vst [vmem:[#allocation2 + $0x70] sm:$0xff] %v7931
    %8060 = vst [vmem:[#allocation2 + $0x78] sm:$0xff] %v7932
    %8061 = vst [vmem:[#allocation2 + $0x80] sm:$0xff] %v7933
    %8062 = vst [vmem:[#allocation2 + $0x88] sm:$0xff] %v7934
    %8063 = vst [vmem:[#allocation2 + $0x90] sm:$0xff] %v7935
    %8064 = vst [vmem:[#allocation2 + $0x98] sm:$0xff] %v7936
    %8065 = vst [vmem:[#allocation2 + $0xa0] sm:$0xff] %v7937
    %8066 = vst [vmem:[#allocation2 + $0xa8] sm:$0xff] %v7938
    %8067 = vst [vmem:[#allocation2 + $0xb0] sm:$0xff] %v7939
    %8068 = vst [vmem:[#allocation2 + $0xb8] sm:$0xff] %v7940
    %8069 = vst [vmem:[#allocation2 + $0xc0] sm:$0xff] %v7941
    %8070 = vst [vmem:[#allocation2 + $0xc8] sm:$0xff] %v7942
    %8071 = vst [vmem:[#allocation2 + $0xd0] sm:$0xff] %v7943
    %8072 = vst [vmem:[#allocation2 + $0xd8] sm:$0xff] %v7944
    %8073 = vst [vmem:[#allocation2 + $0xe0] sm:$0xff] %v7945
    %8074 = vst [vmem:[#allocation2 + $0xe8] sm:$0xff] %v7946
    %8075 = vst [vmem:[#allocation2 + $0xf0] sm:$0xff] %v7947
    %8076 = vst [vmem:[#allocation2 + $0xf8] sm:$0xff] %v7948
    %8077 = vst [vmem:[#allocation2 + $0x100] sm:$0xff] %v7949
    %8078 = vst [vmem:[#allocation2 + $0x108] sm:$0xff] %v7950
    %8079 = vst [vmem:[#allocation2 + $0x110] sm:$0xff] %v7951
    %8080 = vst [vmem:[#allocation2 + $0x118] sm:$0xff] %v7952
    %8081 = vst [vmem:[#allocation2 + $0x120] sm:$0xff] %v7953
    %8082 = vst [vmem:[#allocation2 + $0x128] sm:$0xff] %v7954
    %8083 = vst [vmem:[#allocation2 + $0x130] sm:$0xff] %v7955
    %8084 = vst [vmem:[#allocation2 + $0x138] sm:$0xff] %v7956
    %8085 = vst [vmem:[#allocation2 + $0x140] sm:$0xff] %v7957
    %8086 = vst [vmem:[#allocation2 + $0x148] sm:$0xff] %v7958
    %8087 = vst [vmem:[#allocation2 + $0x150] sm:$0xff] %v7959
    %8088 = vst [vmem:[#allocation2 + $0x158] sm:$0xff] %v7960
    %8089 = vst [vmem:[#allocation2 + $0x160] sm:$0xff] %v7961
    %8090 = vst [vmem:[#allocation2 + $0x168] sm:$0xff] %v7962
    %8091 = vst [vmem:[#allocation2 + $0x170] sm:$0xff] %v7963
    %8092 = vst [vmem:[#allocation2 + $0x178] sm:$0xff] %v7964
    %8093 = vst [vmem:[#allocation2 + $0x180] sm:$0xff] %v7965
    %8094 = vst [vmem:[#allocation2 + $0x188] sm:$0xff] %v7966
    %8095 = vst [vmem:[#allocation2 + $0x190] sm:$0xff] %v7967
    %8096 = vst [vmem:[#allocation2 + $0x198] sm:$0xff] %v7968
    %8097 = vst [vmem:[#allocation2 + $0x1a0] sm:$0xff] %v7969
    %8098 = vst [vmem:[#allocation2 + $0x1a8] sm:$0xff] %v7970
    %8099 = vst [vmem:[#allocation2 + $0x1b0] sm:$0xff] %v7971
    %8100 = vst [vmem:[#allocation2 + $0x1b8] sm:$0xff] %v7972
    %8101 = vst [vmem:[#allocation2 + $0x1c0] sm:$0xff] %v7973
    %8102 = vst [vmem:[#allocation2 + $0x1c8] sm:$0xff] %v7974
    %8103 = vst [vmem:[#allocation2 + $0x1d0] sm:$0xff] %v7975
    %8104 = vst [vmem:[#allocation2 + $0x1d8] sm:$0xff] %v7976
    %8105 = vst [vmem:[#allocation2 + $0x1e0] sm:$0xff] %v7977
    %8106 = vst [vmem:[#allocation2 + $0x1e8] sm:$0xff] %v7978
    %8107 = vst [vmem:[#allocation2 + $0x1f0] sm:$0xff] %v7979
    %8108 = vst [vmem:[#allocation2 + $0x1f8] sm:$0xff] %v7980
    %8109 = vst [vmem:[#allocation2 + $0x200] sm:$0xff] %v7981
    %8110 = vst [vmem:[#allocation2 + $0x208] sm:$0xff] %v7982
    %8111 = vst [vmem:[#allocation2 + $0x210] sm:$0xff] %v7983
    %8112 = vst [vmem:[#allocation2 + $0x218] sm:$0xff] %v7984
    %8113 = vst [vmem:[#allocation2 + $0x220] sm:$0xff] %v7985
    %8114 = vst [vmem:[#allocation2 + $0x228] sm:$0xff] %v7986
    %8115 = vst [vmem:[#allocation2 + $0x230] sm:$0xff] %v7987
    %8116 = vst [vmem:[#allocation2 + $0x238] sm:$0xff] %v7988
    %8117 = vst [vmem:[#allocation2 + $0x240] sm:$0xff] %v7989
    %8118 = vst [vmem:[#allocation2 + $0x248] sm:$0xff] %v7990
    %8119 = vst [vmem:[#allocation2 + $0x250] sm:$0xff] %v7991
    %8120 = vst [vmem:[#allocation2 + $0x258] sm:$0xff] %v7992
    %8121 = vst [vmem:[#allocation2 + $0x260] sm:$0xff] %v7993
    %8122 = vst [vmem:[#allocation2 + $0x268] sm:$0xff] %v7994
    %8123 = vst [vmem:[#allocation2 + $0x270] sm:$0xff] %v7995
    %8124 = vst [vmem:[#allocation2 + $0x278] sm:$0xff] %v7996
    %8125 = vst [vmem:[#allocation2 + $0x280] sm:$0xff] %v7997
    %8126 = vst [vmem:[#allocation2 + $0x288] sm:$0xff] %v7998
    %8127 = vst [vmem:[#allocation2 + $0x290] sm:$0xff] %v7999
    %8128 = vst [vmem:[#allocation2 + $0x298] sm:$0xff] %v8000
    %8129 = vst [vmem:[#allocation2 + $0x2a0] sm:$0xff] %v8001
    %8130 = vst [vmem:[#allocation2 + $0x2a8] sm:$0xff] %v8002
    %8131 = vst [vmem:[#allocation2 + $0x2b0] sm:$0xff] %v8003
    %8132 = vst [vmem:[#allocation2 + $0x2b8] sm:$0xff] %v8004
    %8133 = vst [vmem:[#allocation2 + $0x2c0] sm:$0xff] %v8005
    %8134 = vst [vmem:[#allocation2 + $0x2c8] sm:$0xff] %v8006
    %8135 = vst [vmem:[#allocation2 + $0x2d0] sm:$0xff] %v8007
    %8136 = vst [vmem:[#allocation2 + $0x2d8] sm:$0xff] %v8008
    %8137 = vst [vmem:[#allocation2 + $0x2e0] sm:$0xff] %v8009
    %8138 = vst [vmem:[#allocation2 + $0x2e8] sm:$0xff] %v8010
    %8139 = vst [vmem:[#allocation2 + $0x2f0] sm:$0xff] %v8011
    %8140 = vst [vmem:[#allocation2 + $0x2f8] sm:$0xff] %v8012
    %8141 = vst [vmem:[#allocation2 + $0x300] sm:$0xff] %v8013
    %8142 = vst [vmem:[#allocation2 + $0x308] sm:$0xff] %v8014
    %8143 = vst [vmem:[#allocation2 + $0x310] sm:$0xff] %v8015
    %8144 = vst [vmem:[#allocation2 + $0x318] sm:$0xff] %v8016
    %8145 = vst [vmem:[#allocation2 + $0x320] sm:$0xff] %v8017
    %8146 = vst [vmem:[#allocation2 + $0x328] sm:$0xff] %v8018
    %8147 = vst [vmem:[#allocation2 + $0x330] sm:$0xff] %v8019
    %8148 = vst [vmem:[#allocation2 + $0x338] sm:$0xff] %v8020
    %8149 = vst [vmem:[#allocation2 + $0x340] sm:$0xff] %v8021
    %8150 = vst [vmem:[#allocation2 + $0x348] sm:$0xff] %v8022
    %8151 = vst [vmem:[#allocation2 + $0x350] sm:$0xff] %v8023
    %8152 = vst [vmem:[#allocation2 + $0x358] sm:$0xff] %v8024
    %8153 = vst [vmem:[#allocation2 + $0x360] sm:$0xff] %v8025
    %8154 = vst [vmem:[#allocation2 + $0x368] sm:$0xff] %v8026
    %8155 = vst [vmem:[#allocation2 + $0x370] sm:$0xff] %v8027
    %8156 = vst [vmem:[#allocation2 + $0x378] sm:$0xff] %v8028
    %8157 = vst [vmem:[#allocation2 + $0x380] sm:$0xff] %v8029
    %8158 = vst [vmem:[#allocation2 + $0x388] sm:$0xff] %v8030
    %8159 = vst [vmem:[#allocation2 + $0x390] sm:$0xff] %v8031
    %8160 = vst [vmem:[#allocation2 + $0x398] sm:$0xff] %v8032
    %8161 = vst [vmem:[#allocation2 + $0x3a0] sm:$0xff] %v8033
    %8162 = vst [vmem:[#allocation2 + $0x3a8] sm:$0xff] %v8034
    %8163 = vst [vmem:[#allocation2 + $0x3b0] sm:$0xff] %v8035
    %8164 = vst [vmem:[#allocation2 + $0x3b8] sm:$0xff] %v8036
    %8165 = vst [vmem:[#allocation2 + $0x3c0] sm:$0xff] %v8037
    %8166 = vst [vmem:[#allocation2 + $0x3c8] sm:$0xff] %v8038
    %8167 = vst [vmem:[#allocation2 + $0x3d0] sm:$0xff] %v8039
    %8168 = vst [vmem:[#allocation2 + $0x3d8] sm:$0xff] %v8040
    %8169 = vst [vmem:[#allocation2 + $0x3e0] sm:$0xff] %v8041
    %8170 = vst [vmem:[#allocation2 + $0x3e8] sm:$0xff] %v8042
    %8171 = vst [vmem:[#allocation2 + $0x3f0] sm:$0xff] %v8043
    %8172 = vst [vmem:[#allocation2 + $0x3f8] sm:$0xff] %v8044
    %v8173 = vld [vmem:[%s7120] sm:$0xf]
    %v8174 = vld [vmem:[%s7120 + $0x4] sm:$0xf]
    %v8175 = vld [vmem:[%s7120 + $0x8] sm:$0x1]
    %v8176 = vld [vmem:[%s7120 + $0xc] sm:$0xf]
    %v8177 = vld [vmem:[%s7120 + $0x10] sm:$0xf]
    %v8178 = vld [vmem:[%s7120 + $0x14] sm:$0x1]
    %v8179 = vld [vmem:[%s7120 + $0x18] sm:$0xf]
    %v8180 = vld [vmem:[%s7120 + $0x1c] sm:$0xf]
    %v8181 = vld [vmem:[%s7120 + $0x20] sm:$0x1]
    %v8182 = vld [vmem:[%s7120 + $0x24] sm:$0xf]
    %v8183 = vld [vmem:[%s7120 + $0x28] sm:$0xf]
    %v8184 = vld [vmem:[%s7120 + $0x2c] sm:$0x1]
    %v8185 = vld [vmem:[%s7120 + $0x30] sm:$0xf]
    %v8186 = vld [vmem:[%s7120 + $0x34] sm:$0xf]
    %v8187 = vld [vmem:[%s7120 + $0x38] sm:$0x1]
    %v8188 = vld [vmem:[%s7120 + $0x3c] sm:$0xf]
    %v8189 = vld [vmem:[%s7120 + $0x40] sm:$0xf]
    %v8190 = vld [vmem:[%s7120 + $0x44] sm:$0x1]
    %v8191 = vld [vmem:[%s7120 + $0x48] sm:$0xf]
    %v8192 = vld [vmem:[%s7120 + $0x4c] sm:$0xf]
    %v8193 = vld [vmem:[%s7120 + $0x50] sm:$0x1]
    %v8194 = vld [vmem:[%s7120 + $0x54] sm:$0xf]
    %v8195 = vld [vmem:[%s7120 + $0x58] sm:$0xf]
    %v8196 = vld [vmem:[%s7120 + $0x5c] sm:$0x1]
    %v8198 = vshrl.u32 %v8173, 16
    %v8200 = vrot.slane %v8198, 4
    %v8201 = vshll.u32 %v8173, 16
    %v8203 = vrot.slane %v8201, 5
    %v8204 = vor.u32 %v8200, %v8203
    %v8205 = vrot.slane %v8204, 4
    %v8207 = vshll.u32 %v8174, 16
    %v8209 = vrot.slane %v8207, 5
    %v8210 = vsel %vm859, %v8205, %v8209
    %v8211 = vshrl.u32 %v8174, 16
    %v8213 = vrot.slane %v8211, 4
    %v8214 = vor.u32 %v8213, %v8209
    %v8215 = vrot.slane %v8214, 4
    %v8217 = vshll.u32 %v8175, 16
    %v8219 = vrot.slane %v8217, 5
    %v8220 = vsel %vm859, %v8215, %v8219
    %v8222 = vshrl.u32 %v8176, 16
    %v8224 = vrot.slane %v8222, 4
    %v8225 = vshll.u32 %v8176, 16
    %v8227 = vrot.slane %v8225, 5
    %v8228 = vor.u32 %v8224, %v8227
    %v8229 = vrot.slane %v8228, 4
    %v8231 = vshll.u32 %v8177, 16
    %v8233 = vrot.slane %v8231, 5
    %v8234 = vsel %vm859, %v8229, %v8233
    %v8235 = vshrl.u32 %v8177, 16
    %v8237 = vrot.slane %v8235, 4
    %v8238 = vor.u32 %v8237, %v8233
    %v8239 = vrot.slane %v8238, 4
    %v8241 = vshll.u32 %v8178, 16
    %v8243 = vrot.slane %v8241, 5
    %v8244 = vsel %vm859, %v8239, %v8243
    %v8246 = vshrl.u32 %v8179, 16
    %v8248 = vrot.slane %v8246, 4
    %v8249 = vshll.u32 %v8179, 16
    %v8251 = vrot.slane %v8249, 5
    %v8252 = vor.u32 %v8248, %v8251
    %v8253 = vrot.slane %v8252, 4
    %v8255 = vshll.u32 %v8180, 16
    %v8257 = vrot.slane %v8255, 5
    %v8258 = vsel %vm859, %v8253, %v8257
    %v8259 = vshrl.u32 %v8180, 16
    %v8261 = vrot.slane %v8259, 4
    %v8262 = vor.u32 %v8261, %v8257
    %v8263 = vrot.slane %v8262, 4
    %v8265 = vshll.u32 %v8181, 16
    %v8267 = vrot.slane %v8265, 5
    %v8268 = vsel %vm859, %v8263, %v8267
    %v8270 = vshrl.u32 %v8182, 16
    %v8272 = vrot.slane %v8270, 4
    %v8273 = vshll.u32 %v8182, 16
    %v8275 = vrot.slane %v8273, 5
    %v8276 = vor.u32 %v8272, %v8275
    %v8277 = vrot.slane %v8276, 4
    %v8279 = vshll.u32 %v8183, 16
    %v8281 = vrot.slane %v8279, 5
    %v8282 = vsel %vm859, %v8277, %v8281
    %v8283 = vshrl.u32 %v8183, 16
    %v8285 = vrot.slane %v8283, 4
    %v8286 = vor.u32 %v8285, %v8281
    %v8287 = vrot.slane %v8286, 4
    %v8289 = vshll.u32 %v8184, 16
    %v8291 = vrot.slane %v8289, 5
    %v8292 = vsel %vm859, %v8287, %v8291
    %v8294 = vshrl.u32 %v8185, 16
    %v8296 = vrot.slane %v8294, 4
    %v8297 = vshll.u32 %v8185, 16
    %v8299 = vrot.slane %v8297, 5
    %v8300 = vor.u32 %v8296, %v8299
    %v8301 = vrot.slane %v8300, 4
    %v8303 = vshll.u32 %v8186, 16
    %v8305 = vrot.slane %v8303, 5
    %v8306 = vsel %vm859, %v8301, %v8305
    %v8307 = vshrl.u32 %v8186, 16
    %v8309 = vrot.slane %v8307, 4
    %v8310 = vor.u32 %v8309, %v8305
    %v8311 = vrot.slane %v8310, 4
    %v8313 = vshll.u32 %v8187, 16
    %v8315 = vrot.slane %v8313, 5
    %v8316 = vsel %vm859, %v8311, %v8315
    %v8318 = vshrl.u32 %v8188, 16
    %v8320 = vrot.slane %v8318, 4
    %v8321 = vshll.u32 %v8188, 16
    %v8323 = vrot.slane %v8321, 5
    %v8324 = vor.u32 %v8320, %v8323
    %v8325 = vrot.slane %v8324, 4
    %v8327 = vshll.u32 %v8189, 16
    %v8329 = vrot.slane %v8327, 5
    %v8330 = vsel %vm859, %v8325, %v8329
    %v8331 = vshrl.u32 %v8189, 16
    %v8333 = vrot.slane %v8331, 4
    %v8334 = vor.u32 %v8333, %v8329
    %v8335 = vrot.slane %v8334, 4
    %v8337 = vshll.u32 %v8190, 16
    %v8339 = vrot.slane %v8337, 5
    %v8340 = vsel %vm859, %v8335, %v8339
    %v8342 = vshrl.u32 %v8191, 16
    %v8344 = vrot.slane %v8342, 4
    %v8345 = vshll.u32 %v8191, 16
    %v8347 = vrot.slane %v8345, 5
    %v8348 = vor.u32 %v8344, %v8347
    %v8349 = vrot.slane %v8348, 4
    %v8351 = vshll.u32 %v8192, 16
    %v8353 = vrot.slane %v8351, 5
    %v8354 = vsel %vm859, %v8349, %v8353
    %v8355 = vshrl.u32 %v8192, 16
    %v8357 = vrot.slane %v8355, 4
    %v8358 = vor.u32 %v8357, %v8353
    %v8359 = vrot.slane %v8358, 4
    %v8361 = vshll.u32 %v8193, 16
    %v8363 = vrot.slane %v8361, 5
    %v8364 = vsel %vm859, %v8359, %v8363
    %v8366 = vshrl.u32 %v8194, 16
    %v8368 = vrot.slane %v8366, 4
    %v8369 = vshll.u32 %v8194, 16
    %v8371 = vrot.slane %v8369, 5
    %v8372 = vor.u32 %v8368, %v8371
    %v8373 = vrot.slane %v8372, 4
    %v8375 = vshll.u32 %v8195, 16
    %v8377 = vrot.slane %v8375, 5
    %v8378 = vsel %vm859, %v8373, %v8377
    %v8379 = vshrl.u32 %v8195, 16
    %v8381 = vrot.slane %v8379, 4
    %v8382 = vor.u32 %v8381, %v8377
    %v8383 = vrot.slane %v8382, 4
    %v8385 = vshll.u32 %v8196, 16
    %v8387 = vrot.slane %v8385, 5
    %v8388 = vsel %vm859, %v8383, %v8387
    %v8389 = vld [vmem:[%s7137] sm:$0xf]
    %v8390 = vld [vmem:[%s7137 + $0x4] sm:$0xf]
    %v8391 = vld [vmem:[%s7137 + $0x8] sm:$0x1]
    %v8392 = vld [vmem:[%s7137 + $0xc] sm:$0xf]
    %v8393 = vld [vmem:[%s7137 + $0x10] sm:$0xf]
    %v8394 = vld [vmem:[%s7137 + $0x14] sm:$0x1]
    %v8395 = vld [vmem:[%s7137 + $0x18] sm:$0xf]
    %v8396 = vld [vmem:[%s7137 + $0x1c] sm:$0xf]
    %v8397 = vld [vmem:[%s7137 + $0x20] sm:$0x1]
    %v8398 = vld [vmem:[%s7137 + $0x24] sm:$0xf]
    %v8399 = vld [vmem:[%s7137 + $0x28] sm:$0xf]
    %v8400 = vld [vmem:[%s7137 + $0x2c] sm:$0x1]
    %v8401 = vld [vmem:[%s7137 + $0x30] sm:$0xf]
    %v8402 = vld [vmem:[%s7137 + $0x34] sm:$0xf]
    %v8403 = vld [vmem:[%s7137 + $0x38] sm:$0x1]
    %v8404 = vld [vmem:[%s7137 + $0x3c] sm:$0xf]
    %v8405 = vld [vmem:[%s7137 + $0x40] sm:$0xf]
    %v8406 = vld [vmem:[%s7137 + $0x44] sm:$0x1]
    %v8407 = vld [vmem:[%s7137 + $0x48] sm:$0xf]
    %v8408 = vld [vmem:[%s7137 + $0x4c] sm:$0xf]
    %v8409 = vld [vmem:[%s7137 + $0x50] sm:$0x1]
    %v8410 = vld [vmem:[%s7137 + $0x54] sm:$0xf]
    %v8411 = vld [vmem:[%s7137 + $0x58] sm:$0xf]
    %v8412 = vld [vmem:[%s7137 + $0x5c] sm:$0x1]
    %v8414 = vshrl.u32 %v8389, 16
    %v8416 = vrot.slane %v8414, 4
    %v8417 = vshll.u32 %v8389, 16
    %v8419 = vrot.slane %v8417, 5
    %v8420 = vor.u32 %v8416, %v8419
    %v8421 = vrot.slane %v8420, 4
    %v8423 = vshll.u32 %v8390, 16
    %v8425 = vrot.slane %v8423, 5
    %v8426 = vsel %vm859, %v8421, %v8425
    %v8427 = vshrl.u32 %v8390, 16
    %v8429 = vrot.slane %v8427, 4
    %v8430 = vor.u32 %v8429, %v8425
    %v8431 = vrot.slane %v8430, 4
    %v8433 = vshll.u32 %v8391, 16
    %v8435 = vrot.slane %v8433, 5
    %v8436 = vsel %vm859, %v8431, %v8435
    %v8438 = vshrl.u32 %v8392, 16
    %v8440 = vrot.slane %v8438, 4
    %v8441 = vshll.u32 %v8392, 16
    %v8443 = vrot.slane %v8441, 5
    %v8444 = vor.u32 %v8440, %v8443
    %v8445 = vrot.slane %v8444, 4
    %v8447 = vshll.u32 %v8393, 16
    %v8449 = vrot.slane %v8447, 5
    %v8450 = vsel %vm859, %v8445, %v8449
    %v8451 = vshrl.u32 %v8393, 16
    %v8453 = vrot.slane %v8451, 4
    %v8454 = vor.u32 %v8453, %v8449
    %v8455 = vrot.slane %v8454, 4
    %v8457 = vshll.u32 %v8394, 16
    %v8459 = vrot.slane %v8457, 5
    %v8460 = vsel %vm859, %v8455, %v8459
    %v8462 = vshrl.u32 %v8395, 16
    %v8464 = vrot.slane %v8462, 4
    %v8465 = vshll.u32 %v8395, 16
    %v8467 = vrot.slane %v8465, 5
    %v8468 = vor.u32 %v8464, %v8467
    %v8469 = vrot.slane %v8468, 4
    %v8471 = vshll.u32 %v8396, 16
    %v8473 = vrot.slane %v8471, 5
    %v8474 = vsel %vm859, %v8469, %v8473
    %v8475 = vshrl.u32 %v8396, 16
    %v8477 = vrot.slane %v8475, 4
    %v8478 = vor.u32 %v8477, %v8473
    %v8479 = vrot.slane %v8478, 4
    %v8481 = vshll.u32 %v8397, 16
    %v8483 = vrot.slane %v8481, 5
    %v8484 = vsel %vm859, %v8479, %v8483
    %v8486 = vshrl.u32 %v8398, 16
    %v8488 = vrot.slane %v8486, 4
    %v8489 = vshll.u32 %v8398, 16
    %v8491 = vrot.slane %v8489, 5
    %v8492 = vor.u32 %v8488, %v8491
    %v8493 = vrot.slane %v8492, 4
    %v8495 = vshll.u32 %v8399, 16
    %v8497 = vrot.slane %v8495, 5
    %v8498 = vsel %vm859, %v8493, %v8497
    %v8499 = vshrl.u32 %v8399, 16
    %v8501 = vrot.slane %v8499, 4
    %v8502 = vor.u32 %v8501, %v8497
    %v8503 = vrot.slane %v8502, 4
    %v8505 = vshll.u32 %v8400, 16
    %v8507 = vrot.slane %v8505, 5
    %v8508 = vsel %vm859, %v8503, %v8507
    %v8510 = vshrl.u32 %v8401, 16
    %v8512 = vrot.slane %v8510, 4
    %v8513 = vshll.u32 %v8401, 16
    %v8515 = vrot.slane %v8513, 5
    %v8516 = vor.u32 %v8512, %v8515
    %v8517 = vrot.slane %v8516, 4
    %v8519 = vshll.u32 %v8402, 16
    %v8521 = vrot.slane %v8519, 5
    %v8522 = vsel %vm859, %v8517, %v8521
    %v8523 = vshrl.u32 %v8402, 16
    %v8525 = vrot.slane %v8523, 4
    %v8526 = vor.u32 %v8525, %v8521
    %v8527 = vrot.slane %v8526, 4
    %v8529 = vshll.u32 %v8403, 16
    %v8531 = vrot.slane %v8529, 5
    %v8532 = vsel %vm859, %v8527, %v8531
    %v8534 = vshrl.u32 %v8404, 16
    %v8536 = vrot.slane %v8534, 4
    %v8537 = vshll.u32 %v8404, 16
    %v8539 = vrot.slane %v8537, 5
    %v8540 = vor.u32 %v8536, %v8539
    %v8541 = vrot.slane %v8540, 4
    %v8543 = vshll.u32 %v8405, 16
    %v8545 = vrot.slane %v8543, 5
    %v8546 = vsel %vm859, %v8541, %v8545
    %v8547 = vshrl.u32 %v8405, 16
    %v8549 = vrot.slane %v8547, 4
    %v8550 = vor.u32 %v8549, %v8545
    %v8551 = vrot.slane %v8550, 4
    %v8553 = vshll.u32 %v8406, 16
    %v8555 = vrot.slane %v8553, 5
    %v8556 = vsel %vm859, %v8551, %v8555
    %v8558 = vshrl.u32 %v8407, 16
    %v8560 = vrot.slane %v8558, 4
    %v8561 = vshll.u32 %v8407, 16
    %v8563 = vrot.slane %v8561, 5
    %v8564 = vor.u32 %v8560, %v8563
    %v8565 = vrot.slane %v8564, 4
    %v8567 = vshll.u32 %v8408, 16
    %v8569 = vrot.slane %v8567, 5
    %v8570 = vsel %vm859, %v8565, %v8569
    %v8571 = vshrl.u32 %v8408, 16
    %v8573 = vrot.slane %v8571, 4
    %v8574 = vor.u32 %v8573, %v8569
    %v8575 = vrot.slane %v8574, 4
    %v8577 = vshll.u32 %v8409, 16
    %v8579 = vrot.slane %v8577, 5
    %v8580 = vsel %vm859, %v8575, %v8579
    %v8582 = vshrl.u32 %v8410, 16
    %v8584 = vrot.slane %v8582, 4
    %v8585 = vshll.u32 %v8410, 16
    %v8587 = vrot.slane %v8585, 5
    %v8588 = vor.u32 %v8584, %v8587
    %v8589 = vrot.slane %v8588, 4
    %v8591 = vshll.u32 %v8411, 16
    %v8593 = vrot.slane %v8591, 5
    %v8594 = vsel %vm859, %v8589, %v8593
    %v8595 = vshrl.u32 %v8411, 16
    %v8597 = vrot.slane %v8595, 4
    %v8598 = vor.u32 %v8597, %v8593
    %v8599 = vrot.slane %v8598, 4
    %v8601 = vshll.u32 %v8412, 16
    %v8603 = vrot.slane %v8601, 5
    %v8604 = vsel %vm859, %v8599, %v8603
    %v8605 = vunpack.c.l.b16 %v8210
    %v8606 = vunpack.c.l.b16 %v8220
    %v8607 = vunpack.c.l.b16 %v8234
    %v8608 = vunpack.c.l.b16 %v8244
    %v8609 = vunpack.c.l.b16 %v8258
    %v8610 = vunpack.c.l.b16 %v8268
    %v8611 = vunpack.c.l.b16 %v8282
    %v8612 = vunpack.c.l.b16 %v8292
    %v8613 = vunpack.c.l.b16 %v8306
    %v8614 = vunpack.c.l.b16 %v8316
    %v8615 = vunpack.c.l.b16 %v8330
    %v8616 = vunpack.c.l.b16 %v8340
    %v8617 = vunpack.c.l.b16 %v8354
    %v8618 = vunpack.c.l.b16 %v8364
    %v8619 = vunpack.c.l.b16 %v8378
    %v8620 = vunpack.c.l.b16 %v8388
    %v8621 = vpack.c.b16 %v8606, %v8605
    %v8622 = vpack.c.b16 %v8608, %v8607
    %v8623 = vpack.c.b16 %v8610, %v8609
    %v8624 = vpack.c.b16 %v8612, %v8611
    %v8625 = vpack.c.b16 %v8614, %v8613
    %v8626 = vpack.c.b16 %v8616, %v8615
    %v8627 = vpack.c.b16 %v8618, %v8617
    %v8628 = vpack.c.b16 %v8620, %v8619
    %v8629 = vunpack.c.l.b16 %v8426
    %v8630 = vunpack.c.l.b16 %v8436
    %v8631 = vunpack.c.l.b16 %v8450
    %v8632 = vunpack.c.l.b16 %v8460
    %v8633 = vunpack.c.l.b16 %v8474
    %v8634 = vunpack.c.l.b16 %v8484
    %v8635 = vunpack.c.l.b16 %v8498
    %v8636 = vunpack.c.l.b16 %v8508
    %v8637 = vunpack.c.l.b16 %v8522
    %v8638 = vunpack.c.l.b16 %v8532
    %v8639 = vunpack.c.l.b16 %v8546
    %v8640 = vunpack.c.l.b16 %v8556
    %v8641 = vunpack.c.l.b16 %v8570
    %v8642 = vunpack.c.l.b16 %v8580
    %v8643 = vunpack.c.l.b16 %v8594
    %v8644 = vunpack.c.l.b16 %v8604
    %v8645 = vpack.c.b16 %v8630, %v8629
    %v8646 = vpack.c.b16 %v8632, %v8631
    %v8647 = vpack.c.b16 %v8634, %v8633
    %v8648 = vpack.c.b16 %v8636, %v8635
    %v8649 = vpack.c.b16 %v8638, %v8637
    %v8650 = vpack.c.b16 %v8640, %v8639
    %v8651 = vpack.c.b16 %v8642, %v8641
    %v8652 = vpack.c.b16 %v8644, %v8643
    %s8653 = scalar_lea.vmem [#allocation3], 1008
    %v8654 = vld [vmem:[%s8653] sm:$0xff]
    %v8655 = vld [vmem:[%s8653 + $0x8] sm:$0xff]
    %v8656 = vld [vmem:[%s8653 + $0x10] sm:$0xff]
    %v8657 = vld [vmem:[%s8653 + $0x18] sm:$0xff]
    %v8658 = vld [vmem:[%s8653 + $0x20] sm:$0xff]
    %v8659 = vld [vmem:[%s8653 + $0x28] sm:$0xff]
    %v8660 = vld [vmem:[%s8653 + $0x30] sm:$0xff]
    %v8661 = vld [vmem:[%s8653 + $0x38] sm:$0xff]
    %v8662 = vld [vmem:[%s8653 + $0x40] sm:$0xff]
    %v8663 = vld [vmem:[%s8653 + $0x48] sm:$0xff]
    %v8664 = vld [vmem:[%s8653 + $0x50] sm:$0xff]
    %v8665 = vld [vmem:[%s8653 + $0x58] sm:$0xff]
    %v8666 = vld [vmem:[%s8653 + $0x60] sm:$0xff]
    %v8667 = vld [vmem:[%s8653 + $0x68] sm:$0xff]
    %v8668 = vld [vmem:[%s8653 + $0x70] sm:$0xff]
    %v8669 = vld [vmem:[%s8653 + $0x78] sm:$0xff]
    %v8670 = vld [vmem:[%s8653 + $0x80] sm:$0xff]
    %v8671 = vld [vmem:[%s8653 + $0x88] sm:$0xff]
    %v8690 = vunpack.c.l.b16 %v8654
    %v8691 = vunpack.c.h.b16 %v8654
    %v8692 = vunpack.c.l.b16 %v8655
    %v8693 = vunpack.c.h.b16 %v8655
    %v8694 = vunpack.c.l.b16 %v8656
    %v8695 = vunpack.c.h.b16 %v8656
    %v8696 = vunpack.c.l.b16 %v8657
    %v8697 = vunpack.c.h.b16 %v8657
    %v8698 = vunpack.c.l.b16 %v8658
    %v8699 = vunpack.c.h.b16 %v8658
    %v8700 = vunpack.c.l.b16 %v8659
    %v8701 = vunpack.c.h.b16 %v8659
    %v8702 = vunpack.c.l.b16 %v8660
    %v8703 = vunpack.c.h.b16 %v8660
    %v8704 = vunpack.c.l.b16 %v8661
    %v8705 = vunpack.c.h.b16 %v8661
    %v8706 = vunpack.c.l.b16 %v8662
    %v8707 = vunpack.c.h.b16 %v8662
    %v8708 = vunpack.c.l.b16 %v8663
    %v8709 = vunpack.c.h.b16 %v8663
    %v8710 = vunpack.c.l.b16 %v8664
    %v8711 = vunpack.c.h.b16 %v8664
    %v8712 = vunpack.c.l.b16 %v8665
    %v8713 = vunpack.c.h.b16 %v8665
    %v8714 = vunpack.c.l.b16 %v8666
    %v8715 = vunpack.c.h.b16 %v8666
    %v8716 = vunpack.c.l.b16 %v8667
    %v8717 = vunpack.c.h.b16 %v8667
    %v8718 = vunpack.c.l.b16 %v8668
    %v8719 = vunpack.c.h.b16 %v8668
    %v8720 = vunpack.c.l.b16 %v8669
    %v8721 = vunpack.c.h.b16 %v8669
    %v8722 = vunpack.c.l.b16 %v8670
    %v8723 = vunpack.c.h.b16 %v8670
    %v8724 = vunpack.c.l.b16 %v8671
    %v8725 = vunpack.c.h.b16 %v8671
    %v8726 = vpack.c.b16 %v8694, %v8690
    %v8727 = vpack.c.b16 %v8695, %v8691
    %v8728 = vpack.c.b16 %v8696, %v8692
    %v8729 = vpack.c.b16 %v8697, %v8693
    %v8730 = vpack.c.b16 %v8702, %v8698
    %v8731 = vpack.c.b16 %v8703, %v8699
    %v8732 = vpack.c.b16 %v8704, %v8700
    %v8733 = vpack.c.b16 %v8705, %v8701
    %v8734 = vpack.c.b16 %v8710, %v8706
    %v8735 = vpack.c.b16 %v8711, %v8707
    %v8736 = vpack.c.b16 %v8712, %v8708
    %v8737 = vpack.c.b16 %v8713, %v8709
    %v8738 = vpack.c.b16 %v8718, %v8714
    %v8739 = vpack.c.b16 %v8719, %v8715
    %v8740 = vpack.c.b16 %v8720, %v8716
    %v8741 = vpack.c.b16 %v8721, %v8717
    %v8742 = vpack.c.b16 %v8722, %v8722
    %v8743 = vpack.c.b16 %v8723, %v8723
    %v8744 = vpack.c.b16 %v8724, %v8724
    %v8745 = vpack.c.b16 %v8725, %v8725
    %v8763 = vsel %vm257, %v8621, 0
    %v8766 = vsel %vm257, %v8622, 0
    %v8769 = vsel %vm257, %v8623, 0
    %v8772 = vsel %vm257, %v8624, 0
    %v8775 = vsel %vm257, %v8625, 0
    %v8778 = vsel %vm257, %v8626, 0
    %v8781 = vsel %vm257, %v8627, 0
    %v8784 = vsel %vm257, %v8628, 0
    %v8787 = vsel %vm257, %v8645, 0
    %v8790 = vsel %vm257, %v8646, 0
    %v8793 = vsel %vm257, %v8647, 0
    %v8796 = vsel %vm257, %v8648, 0
    %v8799 = vsel %vm257, %v8649, 0
    %v8802 = vsel %vm257, %v8650, 0
    %v8805 = vsel %vm257, %v8651, 0
    %v8808 = vsel %vm257, %v8652, 0
    %v8811 = vsel %vm306, %v8742, 0
    %v8814 = vsel %vm306, %v8743, 0
    %v8817 = vsel %vm306, %v8744, 0
    %v8820 = vsel %vm306, %v8745, 0
    %8822 = vmatprep.subr.bf16.mxu0 0
    %8823 = vmatpush1.bf16.msra.mxu0 0
    %8824 = vmatprep.subr.bf16.mxu0 0
    %8825 = vmatpush1.bf16.msra.mxu0 0
    %8826 = vmatprep.subr.bf16.mxu0 0
    %8827 = vmatpush1.bf16.msra.mxu0 0
    %8828 = vmatprep.subr.bf16.mxu0 %v8814
    %8829 = vmatpush1.bf16.msra.mxu0 %v8811
    %8830 = vmatprep.subr.bf16.mxu0 %v8739
    %8831 = vmatpush1.bf16.msra.mxu0 %v8738
    %8832 = vmatprep.subr.bf16.mxu0 %v8735
    %8833 = vmatpush1.bf16.msra.mxu0 %v8734
    %8834 = vmatprep.subr.bf16.mxu0 %v8731
    %8835 = vmatpush1.bf16.msra.mxu0 %v8730
    %8836 = vmatprep.subr.bf16.mxu0 %v8727
    %8837 = vmatpush1.bf16.msra.mxu0 %v8726
    %8838 = vmatprep.subr.bf16.mxu0 0
    %8839 = vmatpush2.bf16.msra.mxu0 0
    %8840 = vmatprep.subr.bf16.mxu0 0
    %8841 = vmatpush2.bf16.msra.mxu0 0
    %8842 = vmatprep.subr.bf16.mxu0 0
    %8843 = vmatpush2.bf16.msra.mxu0 0
    %8844 = vmatprep.subr.bf16.mxu0 0
    %8845 = vmatpush2.bf16.msra.mxu0 0
    %8846 = vmatprep.subr.bf16.mxu0 0
    %8847 = vmatpush2.bf16.msra.mxu0 0
    %8848 = vmatprep.subr.bf16.mxu0 0
    %8849 = vmatpush2.bf16.msra.mxu0 0
    %8850 = vmatprep.subr.bf16.mxu0 0
    %8851 = vmatpush2.bf16.msra.mxu0 0
    %8852 = vmatprep.subr.bf16.mxu0 0
    %8853 = vmatpush2.bf16.msra.mxu0 0
    %8854 = vmatprep.mubr.bf16.mxu0 0
    %8855 = vmatmul.mubr.bf16.gmra.mxu0 %v8763
    %v8856 = vpop.f32.mrf.mxu0
    %v8857 = vadd.f32 0.0, %v8856
    %v8858 = vpop.f32.mrf.mxu0
    %v8859 = vadd.f32 0.0, %v8858
    %v8860 = vpop.f32.mrf.mxu0
    %v8861 = vadd.f32 0.0, %v8860
    %v8862 = vpop.f32.mrf.mxu0
    %v8863 = vadd.f32 0.0, %v8862
    %8864 = vmatprep.mubr.bf16.mxu0 0
    %8865 = vmatmul.mubr.bf16.gmra.mxu0 %v8766
    %v8866 = vpop.f32.mrf.mxu0
    %v8867 = vadd.f32 0.0, %v8866
    %v8868 = vpop.f32.mrf.mxu0
    %v8869 = vadd.f32 0.0, %v8868
    %v8870 = vpop.f32.mrf.mxu0
    %v8871 = vadd.f32 0.0, %v8870
    %v8872 = vpop.f32.mrf.mxu0
    %v8873 = vadd.f32 0.0, %v8872
    %8874 = vmatprep.mubr.bf16.mxu0 0
    %8875 = vmatmul.mubr.bf16.gmra.mxu0 %v8769
    %v8876 = vpop.f32.mrf.mxu0
    %v8877 = vadd.f32 0.0, %v8876
    %v8878 = vpop.f32.mrf.mxu0
    %v8879 = vadd.f32 0.0, %v8878
    %v8880 = vpop.f32.mrf.mxu0
    %v8881 = vadd.f32 0.0, %v8880
    %v8882 = vpop.f32.mrf.mxu0
    %v8883 = vadd.f32 0.0, %v8882
    %8884 = vmatprep.mubr.bf16.mxu0 0
    %8885 = vmatmul.mubr.bf16.gmra.mxu0 %v8772
    %v8886 = vpop.f32.mrf.mxu0
    %v8887 = vadd.f32 0.0, %v8886
    %v8888 = vpop.f32.mrf.mxu0
    %v8889 = vadd.f32 0.0, %v8888
    %v8890 = vpop.f32.mrf.mxu0
    %v8891 = vadd.f32 0.0, %v8890
    %v8892 = vpop.f32.mrf.mxu0
    %v8893 = vadd.f32 0.0, %v8892
    %8894 = vmatprep.mubr.bf16.mxu0 0
    %8895 = vmatmul.mubr.bf16.gmra.mxu0 %v8775
    %v8896 = vpop.f32.mrf.mxu0
    %v8897 = vadd.f32 0.0, %v8896
    %v8898 = vpop.f32.mrf.mxu0
    %v8899 = vadd.f32 0.0, %v8898
    %v8900 = vpop.f32.mrf.mxu0
    %v8901 = vadd.f32 0.0, %v8900
    %v8902 = vpop.f32.mrf.mxu0
    %v8903 = vadd.f32 0.0, %v8902
    %8904 = vmatprep.mubr.bf16.mxu0 0
    %8905 = vmatmul.mubr.bf16.gmra.mxu0 %v8778
    %v8906 = vpop.f32.mrf.mxu0
    %v8907 = vadd.f32 0.0, %v8906
    %v8908 = vpop.f32.mrf.mxu0
    %v8909 = vadd.f32 0.0, %v8908
    %v8910 = vpop.f32.mrf.mxu0
    %v8911 = vadd.f32 0.0, %v8910
    %v8912 = vpop.f32.mrf.mxu0
    %v8913 = vadd.f32 0.0, %v8912
    %8914 = vmatprep.mubr.bf16.mxu0 0
    %8915 = vmatmul.mubr.bf16.gmra.mxu0 %v8781
    %v8916 = vpop.f32.mrf.mxu0
    %v8917 = vadd.f32 0.0, %v8916
    %v8918 = vpop.f32.mrf.mxu0
    %v8919 = vadd.f32 0.0, %v8918
    %v8920 = vpop.f32.mrf.mxu0
    %v8921 = vadd.f32 0.0, %v8920
    %v8922 = vpop.f32.mrf.mxu0
    %v8923 = vadd.f32 0.0, %v8922
    %8924 = vmatprep.mubr.bf16.mxu0 0
    %8925 = vmatmul.mubr.bf16.gmra.mxu0 %v8784
    %v8926 = vpop.f32.mrf.mxu0
    %v8927 = vadd.f32 0.0, %v8926
    %v8928 = vpop.f32.mrf.mxu0
    %v8929 = vadd.f32 0.0, %v8928
    %v8930 = vpop.f32.mrf.mxu0
    %v8931 = vadd.f32 0.0, %v8930
    %v8932 = vpop.f32.mrf.mxu0
    %v8933 = vadd.f32 0.0, %v8932
    %8934 = vmatprep.mubr.bf16.mxu0 0
    %8935 = vmatmul.mubr.bf16.gmra.mxu0 %v8787
    %v8936 = vpop.f32.mrf.mxu0
    %v8937 = vadd.f32 0.0, %v8936
    %v8938 = vpop.f32.mrf.mxu0
    %v8939 = vadd.f32 0.0, %v8938
    %v8940 = vpop.f32.mrf.mxu0
    %v8941 = vadd.f32 0.0, %v8940
    %v8942 = vpop.f32.mrf.mxu0
    %v8943 = vadd.f32 0.0, %v8942
    %8944 = vmatprep.mubr.bf16.mxu0 0
    %8945 = vmatmul.mubr.bf16.gmra.mxu0 %v8790
    %v8946 = vpop.f32.mrf.mxu0
    %v8947 = vadd.f32 0.0, %v8946
    %v8948 = vpop.f32.mrf.mxu0
    %v8949 = vadd.f32 0.0, %v8948
    %v8950 = vpop.f32.mrf.mxu0
    %v8951 = vadd.f32 0.0, %v8950
    %v8952 = vpop.f32.mrf.mxu0
    %v8953 = vadd.f32 0.0, %v8952
    %8954 = vmatprep.mubr.bf16.mxu0 0
    %8955 = vmatmul.mubr.bf16.gmra.mxu0 %v8793
    %v8956 = vpop.f32.mrf.mxu0
    %v8957 = vadd.f32 0.0, %v8956
    %v8958 = vpop.f32.mrf.mxu0
    %v8959 = vadd.f32 0.0, %v8958
    %v8960 = vpop.f32.mrf.mxu0
    %v8961 = vadd.f32 0.0, %v8960
    %v8962 = vpop.f32.mrf.mxu0
    %v8963 = vadd.f32 0.0, %v8962
    %8964 = vmatprep.mubr.bf16.mxu0 0
    %8965 = vmatmul.mubr.bf16.gmra.mxu0 %v8796
    %v8966 = vpop.f32.mrf.mxu0
    %v8967 = vadd.f32 0.0, %v8966
    %v8968 = vpop.f32.mrf.mxu0
    %v8969 = vadd.f32 0.0, %v8968
    %v8970 = vpop.f32.mrf.mxu0
    %v8971 = vadd.f32 0.0, %v8970
    %v8972 = vpop.f32.mrf.mxu0
    %v8973 = vadd.f32 0.0, %v8972
    %8974 = vmatprep.mubr.bf16.mxu0 0
    %8975 = vmatmul.mubr.bf16.gmra.mxu0 %v8799
    %v8976 = vpop.f32.mrf.mxu0
    %v8977 = vadd.f32 0.0, %v8976
    %v8978 = vpop.f32.mrf.mxu0
    %v8979 = vadd.f32 0.0, %v8978
    %v8980 = vpop.f32.mrf.mxu0
    %v8981 = vadd.f32 0.0, %v8980
    %v8982 = vpop.f32.mrf.mxu0
    %v8983 = vadd.f32 0.0, %v8982
    %8984 = vmatprep.mubr.bf16.mxu0 0
    %8985 = vmatmul.mubr.bf16.gmra.mxu0 %v8802
    %v8986 = vpop.f32.mrf.mxu0
    %v8987 = vadd.f32 0.0, %v8986
    %v8988 = vpop.f32.mrf.mxu0
    %v8989 = vadd.f32 0.0, %v8988
    %v8990 = vpop.f32.mrf.mxu0
    %v8991 = vadd.f32 0.0, %v8990
    %v8992 = vpop.f32.mrf.mxu0
    %v8993 = vadd.f32 0.0, %v8992
    %8994 = vmatprep.mubr.bf16.mxu0 0
    %8995 = vmatmul.mubr.bf16.gmra.mxu0 %v8805
    %v8996 = vpop.f32.mrf.mxu0
    %v8997 = vadd.f32 0.0, %v8996
    %v8998 = vpop.f32.mrf.mxu0
    %v8999 = vadd.f32 0.0, %v8998
    %v9000 = vpop.f32.mrf.mxu0
    %v9001 = vadd.f32 0.0, %v9000
    %v9002 = vpop.f32.mrf.mxu0
    %v9003 = vadd.f32 0.0, %v9002
    %9004 = vmatprep.mubr.bf16.mxu0 0
    %9005 = vmatmul.mubr.bf16.gmra.mxu0 %v8808
    %v9006 = vpop.f32.mrf.mxu0
    %v9007 = vadd.f32 0.0, %v9006
    %v9008 = vpop.f32.mrf.mxu0
    %v9009 = vadd.f32 0.0, %v9008
    %v9010 = vpop.f32.mrf.mxu0
    %v9011 = vadd.f32 0.0, %v9010
    %v9012 = vpop.f32.mrf.mxu0
    %v9013 = vadd.f32 0.0, %v9012
    %9014 = vdwg.mxu0
    %9015 = vmatprep.subr.bf16.mxu0 0
    %9016 = vmatpush1.bf16.msra.mxu0 0
    %9017 = vmatprep.subr.bf16.mxu0 0
    %9018 = vmatpush1.bf16.msra.mxu0 0
    %9019 = vmatprep.subr.bf16.mxu0 0
    %9020 = vmatpush1.bf16.msra.mxu0 0
    %9021 = vmatprep.subr.bf16.mxu0 %v8820
    %9022 = vmatpush1.bf16.msra.mxu0 %v8817
    %9023 = vmatprep.subr.bf16.mxu0 %v8741
    %9024 = vmatpush1.bf16.msra.mxu0 %v8740
    %9025 = vmatprep.subr.bf16.mxu0 %v8737
    %9026 = vmatpush1.bf16.msra.mxu0 %v8736
    %9027 = vmatprep.subr.bf16.mxu0 %v8733
    %9028 = vmatpush1.bf16.msra.mxu0 %v8732
    %9029 = vmatprep.subr.bf16.mxu0 %v8729
    %9030 = vmatpush1.bf16.msra.mxu0 %v8728
    %9031 = vmatprep.subr.bf16.mxu0 0
    %9032 = vmatpush2.bf16.msra.mxu0 0
    %9033 = vmatprep.subr.bf16.mxu0 0
    %9034 = vmatpush2.bf16.msra.mxu0 0
    %9035 = vmatprep.subr.bf16.mxu0 0
    %9036 = vmatpush2.bf16.msra.mxu0 0
    %9037 = vmatprep.subr.bf16.mxu0 0
    %9038 = vmatpush2.bf16.msra.mxu0 0
    %9039 = vmatprep.subr.bf16.mxu0 0
    %9040 = vmatpush2.bf16.msra.mxu0 0
    %9041 = vmatprep.subr.bf16.mxu0 0
    %9042 = vmatpush2.bf16.msra.mxu0 0
    %9043 = vmatprep.subr.bf16.mxu0 0
    %9044 = vmatpush2.bf16.msra.mxu0 0
    %9045 = vmatprep.subr.bf16.mxu0 0
    %9046 = vmatpush2.bf16.msra.mxu0 0
    %9047 = vmatprep.mubr.bf16.mxu0 0
    %9048 = vmatmul.mubr.bf16.gmra.mxu0 %v8763
    %v9049 = vpop.f32.mrf.mxu0
    %v9050 = vadd.f32 0.0, %v9049
    %v9051 = vpop.f32.mrf.mxu0
    %v9052 = vadd.f32 0.0, %v9051
    %v9053 = vpop.f32.mrf.mxu0
    %v9054 = vadd.f32 0.0, %v9053
    %v9055 = vpop.f32.mrf.mxu0
    %v9056 = vadd.f32 0.0, %v9055
    %9057 = vmatprep.mubr.bf16.mxu0 0
    %9058 = vmatmul.mubr.bf16.gmra.mxu0 %v8766
    %v9059 = vpop.f32.mrf.mxu0
    %v9060 = vadd.f32 0.0, %v9059
    %v9061 = vpop.f32.mrf.mxu0
    %v9062 = vadd.f32 0.0, %v9061
    %v9063 = vpop.f32.mrf.mxu0
    %v9064 = vadd.f32 0.0, %v9063
    %v9065 = vpop.f32.mrf.mxu0
    %v9066 = vadd.f32 0.0, %v9065
    %9067 = vmatprep.mubr.bf16.mxu0 0
    %9068 = vmatmul.mubr.bf16.gmra.mxu0 %v8769
    %v9069 = vpop.f32.mrf.mxu0
    %v9070 = vadd.f32 0.0, %v9069
    %v9071 = vpop.f32.mrf.mxu0
    %v9072 = vadd.f32 0.0, %v9071
    %v9073 = vpop.f32.mrf.mxu0
    %v9074 = vadd.f32 0.0, %v9073
    %v9075 = vpop.f32.mrf.mxu0
    %v9076 = vadd.f32 0.0, %v9075
    %9077 = vmatprep.mubr.bf16.mxu0 0
    %9078 = vmatmul.mubr.bf16.gmra.mxu0 %v8772
    %v9079 = vpop.f32.mrf.mxu0
    %v9080 = vadd.f32 0.0, %v9079
    %v9081 = vpop.f32.mrf.mxu0
    %v9082 = vadd.f32 0.0, %v9081
    %v9083 = vpop.f32.mrf.mxu0
    %v9084 = vadd.f32 0.0, %v9083
    %v9085 = vpop.f32.mrf.mxu0
    %v9086 = vadd.f32 0.0, %v9085
    %9087 = vmatprep.mubr.bf16.mxu0 0
    %9088 = vmatmul.mubr.bf16.gmra.mxu0 %v8775
    %v9089 = vpop.f32.mrf.mxu0
    %v9090 = vadd.f32 0.0, %v9089
    %v9091 = vpop.f32.mrf.mxu0
    %v9092 = vadd.f32 0.0, %v9091
    %v9093 = vpop.f32.mrf.mxu0
    %v9094 = vadd.f32 0.0, %v9093
    %v9095 = vpop.f32.mrf.mxu0
    %v9096 = vadd.f32 0.0, %v9095
    %9097 = vmatprep.mubr.bf16.mxu0 0
    %9098 = vmatmul.mubr.bf16.gmra.mxu0 %v8778
    %v9099 = vpop.f32.mrf.mxu0
    %v9100 = vadd.f32 0.0, %v9099
    %v9101 = vpop.f32.mrf.mxu0
    %v9102 = vadd.f32 0.0, %v9101
    %v9103 = vpop.f32.mrf.mxu0
    %v9104 = vadd.f32 0.0, %v9103
    %v9105 = vpop.f32.mrf.mxu0
    %v9106 = vadd.f32 0.0, %v9105
    %9107 = vmatprep.mubr.bf16.mxu0 0
    %9108 = vmatmul.mubr.bf16.gmra.mxu0 %v8781
    %v9109 = vpop.f32.mrf.mxu0
    %v9110 = vadd.f32 0.0, %v9109
    %v9111 = vpop.f32.mrf.mxu0
    %v9112 = vadd.f32 0.0, %v9111
    %v9113 = vpop.f32.mrf.mxu0
    %v9114 = vadd.f32 0.0, %v9113
    %v9115 = vpop.f32.mrf.mxu0
    %v9116 = vadd.f32 0.0, %v9115
    %9117 = vmatprep.mubr.bf16.mxu0 0
    %9118 = vmatmul.mubr.bf16.gmra.mxu0 %v8784
    %v9119 = vpop.f32.mrf.mxu0
    %v9120 = vadd.f32 0.0, %v9119
    %v9121 = vpop.f32.mrf.mxu0
    %v9122 = vadd.f32 0.0, %v9121
    %v9123 = vpop.f32.mrf.mxu0
    %v9124 = vadd.f32 0.0, %v9123
    %v9125 = vpop.f32.mrf.mxu0
    %v9126 = vadd.f32 0.0, %v9125
    %9127 = vmatprep.mubr.bf16.mxu0 0
    %9128 = vmatmul.mubr.bf16.gmra.mxu0 %v8787
    %v9129 = vpop.f32.mrf.mxu0
    %v9130 = vadd.f32 0.0, %v9129
    %v9131 = vpop.f32.mrf.mxu0
    %v9132 = vadd.f32 0.0, %v9131
    %v9133 = vpop.f32.mrf.mxu0
    %v9134 = vadd.f32 0.0, %v9133
    %v9135 = vpop.f32.mrf.mxu0
    %v9136 = vadd.f32 0.0, %v9135
    %9137 = vmatprep.mubr.bf16.mxu0 0
    %9138 = vmatmul.mubr.bf16.gmra.mxu0 %v8790
    %v9139 = vpop.f32.mrf.mxu0
    %v9140 = vadd.f32 0.0, %v9139
    %v9141 = vpop.f32.mrf.mxu0
    %v9142 = vadd.f32 0.0, %v9141
    %v9143 = vpop.f32.mrf.mxu0
    %v9144 = vadd.f32 0.0, %v9143
    %v9145 = vpop.f32.mrf.mxu0
    %v9146 = vadd.f32 0.0, %v9145
    %9147 = vmatprep.mubr.bf16.mxu0 0
    %9148 = vmatmul.mubr.bf16.gmra.mxu0 %v8793
    %v9149 = vpop.f32.mrf.mxu0
    %v9150 = vadd.f32 0.0, %v9149
    %v9151 = vpop.f32.mrf.mxu0
    %v9152 = vadd.f32 0.0, %v9151
    %v9153 = vpop.f32.mrf.mxu0
    %v9154 = vadd.f32 0.0, %v9153
    %v9155 = vpop.f32.mrf.mxu0
    %v9156 = vadd.f32 0.0, %v9155
    %9157 = vmatprep.mubr.bf16.mxu0 0
    %9158 = vmatmul.mubr.bf16.gmra.mxu0 %v8796
    %v9159 = vpop.f32.mrf.mxu0
    %v9160 = vadd.f32 0.0, %v9159
    %v9161 = vpop.f32.mrf.mxu0
    %v9162 = vadd.f32 0.0, %v9161
    %v9163 = vpop.f32.mrf.mxu0
    %v9164 = vadd.f32 0.0, %v9163
    %v9165 = vpop.f32.mrf.mxu0
    %v9166 = vadd.f32 0.0, %v9165
    %9167 = vmatprep.mubr.bf16.mxu0 0
    %9168 = vmatmul.mubr.bf16.gmra.mxu0 %v8799
    %v9169 = vpop.f32.mrf.mxu0
    %v9170 = vadd.f32 0.0, %v9169
    %v9171 = vpop.f32.mrf.mxu0
    %v9172 = vadd.f32 0.0, %v9171
    %v9173 = vpop.f32.mrf.mxu0
    %v9174 = vadd.f32 0.0, %v9173
    %v9175 = vpop.f32.mrf.mxu0
    %v9176 = vadd.f32 0.0, %v9175
    %9177 = vmatprep.mubr.bf16.mxu0 0
    %9178 = vmatmul.mubr.bf16.gmra.mxu0 %v8802
    %v9179 = vpop.f32.mrf.mxu0
    %v9180 = vadd.f32 0.0, %v9179
    %v9181 = vpop.f32.mrf.mxu0
    %v9182 = vadd.f32 0.0, %v9181
    %v9183 = vpop.f32.mrf.mxu0
    %v9184 = vadd.f32 0.0, %v9183
    %v9185 = vpop.f32.mrf.mxu0
    %v9186 = vadd.f32 0.0, %v9185
    %9187 = vmatprep.mubr.bf16.mxu0 0
    %9188 = vmatmul.mubr.bf16.gmra.mxu0 %v8805
    %v9189 = vpop.f32.mrf.mxu0
    %v9190 = vadd.f32 0.0, %v9189
    %v9191 = vpop.f32.mrf.mxu0
    %v9192 = vadd.f32 0.0, %v9191
    %v9193 = vpop.f32.mrf.mxu0
    %v9194 = vadd.f32 0.0, %v9193
    %v9195 = vpop.f32.mrf.mxu0
    %v9196 = vadd.f32 0.0, %v9195
    %9197 = vmatprep.mubr.bf16.mxu0 0
    %9198 = vmatmul.mubr.bf16.gmra.mxu0 %v8808
    %v9199 = vpop.f32.mrf.mxu0
    %v9200 = vadd.f32 0.0, %v9199
    %v9201 = vpop.f32.mrf.mxu0
    %v9202 = vadd.f32 0.0, %v9201
    %v9203 = vpop.f32.mrf.mxu0
    %v9204 = vadd.f32 0.0, %v9203
    %v9205 = vpop.f32.mrf.mxu0
    %v9206 = vadd.f32 0.0, %v9205
    %9207 = vdwg.mxu0
    %v9208 = vld [vmem:[#allocation2] sm:$0xff]
    %v9209 = vld [vmem:[#allocation2 + $0x8] sm:$0xff]
    %v9210 = vld [vmem:[#allocation2 + $0x10] sm:$0xff]
    %v9211 = vld [vmem:[#allocation2 + $0x18] sm:$0xff]
    %v9212 = vld [vmem:[#allocation2 + $0x20] sm:$0xff]
    %v9213 = vld [vmem:[#allocation2 + $0x28] sm:$0xff]
    %v9214 = vld [vmem:[#allocation2 + $0x30] sm:$0xff]
    %v9215 = vld [vmem:[#allocation2 + $0x38] sm:$0xff]
    %v9216 = vld [vmem:[#allocation2 + $0x40] sm:$0xff]
    %v9217 = vld [vmem:[#allocation2 + $0x48] sm:$0xff]
    %v9218 = vld [vmem:[#allocation2 + $0x50] sm:$0xff]
    %v9219 = vld [vmem:[#allocation2 + $0x58] sm:$0xff]
    %v9220 = vld [vmem:[#allocation2 + $0x60] sm:$0xff]
    %v9221 = vld [vmem:[#allocation2 + $0x68] sm:$0xff]
    %v9222 = vld [vmem:[#allocation2 + $0x70] sm:$0xff]
    %v9223 = vld [vmem:[#allocation2 + $0x78] sm:$0xff]
    %v9224 = vld [vmem:[#allocation2 + $0x80] sm:$0xff]
    %v9225 = vld [vmem:[#allocation2 + $0x88] sm:$0xff]
    %v9226 = vld [vmem:[#allocation2 + $0x90] sm:$0xff]
    %v9227 = vld [vmem:[#allocation2 + $0x98] sm:$0xff]
    %v9228 = vld [vmem:[#allocation2 + $0xa0] sm:$0xff]
    %v9229 = vld [vmem:[#allocation2 + $0xa8] sm:$0xff]
    %v9230 = vld [vmem:[#allocation2 + $0xb0] sm:$0xff]
    %v9231 = vld [vmem:[#allocation2 + $0xb8] sm:$0xff]
    %v9232 = vld [vmem:[#allocation2 + $0xc0] sm:$0xff]
    %v9233 = vld [vmem:[#allocation2 + $0xc8] sm:$0xff]
    %v9234 = vld [vmem:[#allocation2 + $0xd0] sm:$0xff]
    %v9235 = vld [vmem:[#allocation2 + $0xd8] sm:$0xff]
    %v9236 = vld [vmem:[#allocation2 + $0xe0] sm:$0xff]
    %v9237 = vld [vmem:[#allocation2 + $0xe8] sm:$0xff]
    %v9238 = vld [vmem:[#allocation2 + $0xf0] sm:$0xff]
    %v9239 = vld [vmem:[#allocation2 + $0xf8] sm:$0xff]
    %v9240 = vld [vmem:[#allocation2 + $0x100] sm:$0xff]
    %v9241 = vld [vmem:[#allocation2 + $0x108] sm:$0xff]
    %v9242 = vld [vmem:[#allocation2 + $0x110] sm:$0xff]
    %v9243 = vld [vmem:[#allocation2 + $0x118] sm:$0xff]
    %v9244 = vld [vmem:[#allocation2 + $0x120] sm:$0xff]
    %v9245 = vld [vmem:[#allocation2 + $0x128] sm:$0xff]
    %v9246 = vld [vmem:[#allocation2 + $0x130] sm:$0xff]
    %v9247 = vld [vmem:[#allocation2 + $0x138] sm:$0xff]
    %v9248 = vld [vmem:[#allocation2 + $0x140] sm:$0xff]
    %v9249 = vld [vmem:[#allocation2 + $0x148] sm:$0xff]
    %v9250 = vld [vmem:[#allocation2 + $0x150] sm:$0xff]
    %v9251 = vld [vmem:[#allocation2 + $0x158] sm:$0xff]
    %v9252 = vld [vmem:[#allocation2 + $0x160] sm:$0xff]
    %v9253 = vld [vmem:[#allocation2 + $0x168] sm:$0xff]
    %v9254 = vld [vmem:[#allocation2 + $0x170] sm:$0xff]
    %v9255 = vld [vmem:[#allocation2 + $0x178] sm:$0xff]
    %v9256 = vld [vmem:[#allocation2 + $0x180] sm:$0xff]
    %v9257 = vld [vmem:[#allocation2 + $0x188] sm:$0xff]
    %v9258 = vld [vmem:[#allocation2 + $0x190] sm:$0xff]
    %v9259 = vld [vmem:[#allocation2 + $0x198] sm:$0xff]
    %v9260 = vld [vmem:[#allocation2 + $0x1a0] sm:$0xff]
    %v9261 = vld [vmem:[#allocation2 + $0x1a8] sm:$0xff]
    %v9262 = vld [vmem:[#allocation2 + $0x1b0] sm:$0xff]
    %v9263 = vld [vmem:[#allocation2 + $0x1b8] sm:$0xff]
    %v9264 = vld [vmem:[#allocation2 + $0x1c0] sm:$0xff]
    %v9265 = vld [vmem:[#allocation2 + $0x1c8] sm:$0xff]
    %v9266 = vld [vmem:[#allocation2 + $0x1d0] sm:$0xff]
    %v9267 = vld [vmem:[#allocation2 + $0x1d8] sm:$0xff]
    %v9268 = vld [vmem:[#allocation2 + $0x1e0] sm:$0xff]
    %v9269 = vld [vmem:[#allocation2 + $0x1e8] sm:$0xff]
    %v9270 = vld [vmem:[#allocation2 + $0x1f0] sm:$0xff]
    %v9271 = vld [vmem:[#allocation2 + $0x1f8] sm:$0xff]
    %v9272 = vld [vmem:[#allocation2 + $0x200] sm:$0xff]
    %v9273 = vld [vmem:[#allocation2 + $0x208] sm:$0xff]
    %v9274 = vld [vmem:[#allocation2 + $0x210] sm:$0xff]
    %v9275 = vld [vmem:[#allocation2 + $0x218] sm:$0xff]
    %v9276 = vld [vmem:[#allocation2 + $0x220] sm:$0xff]
    %v9277 = vld [vmem:[#allocation2 + $0x228] sm:$0xff]
    %v9278 = vld [vmem:[#allocation2 + $0x230] sm:$0xff]
    %v9279 = vld [vmem:[#allocation2 + $0x238] sm:$0xff]
    %v9280 = vld [vmem:[#allocation2 + $0x240] sm:$0xff]
    %v9281 = vld [vmem:[#allocation2 + $0x248] sm:$0xff]
    %v9282 = vld [vmem:[#allocation2 + $0x250] sm:$0xff]
    %v9283 = vld [vmem:[#allocation2 + $0x258] sm:$0xff]
    %v9284 = vld [vmem:[#allocation2 + $0x260] sm:$0xff]
    %v9285 = vld [vmem:[#allocation2 + $0x268] sm:$0xff]
    %v9286 = vld [vmem:[#allocation2 + $0x270] sm:$0xff]
    %v9287 = vld [vmem:[#allocation2 + $0x278] sm:$0xff]
    %v9288 = vld [vmem:[#allocation2 + $0x280] sm:$0xff]
    %v9289 = vld [vmem:[#allocation2 + $0x288] sm:$0xff]
    %v9290 = vld [vmem:[#allocation2 + $0x290] sm:$0xff]
    %v9291 = vld [vmem:[#allocation2 + $0x298] sm:$0xff]
    %v9292 = vld [vmem:[#allocation2 + $0x2a0] sm:$0xff]
    %v9293 = vld [vmem:[#allocation2 + $0x2a8] sm:$0xff]
    %v9294 = vld [vmem:[#allocation2 + $0x2b0] sm:$0xff]
    %v9295 = vld [vmem:[#allocation2 + $0x2b8] sm:$0xff]
    %v9296 = vld [vmem:[#allocation2 + $0x2c0] sm:$0xff]
    %v9297 = vld [vmem:[#allocation2 + $0x2c8] sm:$0xff]
    %v9298 = vld [vmem:[#allocation2 + $0x2d0] sm:$0xff]
    %v9299 = vld [vmem:[#allocation2 + $0x2d8] sm:$0xff]
    %v9300 = vld [vmem:[#allocation2 + $0x2e0] sm:$0xff]
    %v9301 = vld [vmem:[#allocation2 + $0x2e8] sm:$0xff]
    %v9302 = vld [vmem:[#allocation2 + $0x2f0] sm:$0xff]
    %v9303 = vld [vmem:[#allocation2 + $0x2f8] sm:$0xff]
    %v9304 = vld [vmem:[#allocation2 + $0x300] sm:$0xff]
    %v9305 = vld [vmem:[#allocation2 + $0x308] sm:$0xff]
    %v9306 = vld [vmem:[#allocation2 + $0x310] sm:$0xff]
    %v9307 = vld [vmem:[#allocation2 + $0x318] sm:$0xff]
    %v9308 = vld [vmem:[#allocation2 + $0x320] sm:$0xff]
    %v9309 = vld [vmem:[#allocation2 + $0x328] sm:$0xff]
    %v9310 = vld [vmem:[#allocation2 + $0x330] sm:$0xff]
    %v9311 = vld [vmem:[#allocation2 + $0x338] sm:$0xff]
    %v9312 = vld [vmem:[#allocation2 + $0x340] sm:$0xff]
    %v9313 = vld [vmem:[#allocation2 + $0x348] sm:$0xff]
    %v9314 = vld [vmem:[#allocation2 + $0x350] sm:$0xff]
    %v9315 = vld [vmem:[#allocation2 + $0x358] sm:$0xff]
    %v9316 = vld [vmem:[#allocation2 + $0x360] sm:$0xff]
    %v9317 = vld [vmem:[#allocation2 + $0x368] sm:$0xff]
    %v9318 = vld [vmem:[#allocation2 + $0x370] sm:$0xff]
    %v9319 = vld [vmem:[#allocation2 + $0x378] sm:$0xff]
    %v9320 = vld [vmem:[#allocation2 + $0x380] sm:$0xff]
    %v9321 = vld [vmem:[#allocation2 + $0x388] sm:$0xff]
    %v9322 = vld [vmem:[#allocation2 + $0x390] sm:$0xff]
    %v9323 = vld [vmem:[#allocation2 + $0x398] sm:$0xff]
    %v9324 = vld [vmem:[#allocation2 + $0x3a0] sm:$0xff]
    %v9325 = vld [vmem:[#allocation2 + $0x3a8] sm:$0xff]
    %v9326 = vld [vmem:[#allocation2 + $0x3b0] sm:$0xff]
    %v9327 = vld [vmem:[#allocation2 + $0x3b8] sm:$0xff]
    %v9328 = vld [vmem:[#allocation2 + $0x3c0] sm:$0xff]
    %v9329 = vld [vmem:[#allocation2 + $0x3c8] sm:$0xff]
    %v9330 = vld [vmem:[#allocation2 + $0x3d0] sm:$0xff]
    %v9331 = vld [vmem:[#allocation2 + $0x3d8] sm:$0xff]
    %v9332 = vld [vmem:[#allocation2 + $0x3e0] sm:$0xff]
    %v9333 = vld [vmem:[#allocation2 + $0x3e8] sm:$0xff]
    %v9334 = vld [vmem:[#allocation2 + $0x3f0] sm:$0xff]
    %v9335 = vld [vmem:[#allocation2 + $0x3f8] sm:$0xff]
    %v9336 = vadd.f32 %v9208, %v8857
    %v9337 = vadd.f32 %v9209, %v8859
    %v9338 = vadd.f32 %v9210, %v9050
    %v9339 = vadd.f32 %v9211, %v9052
    %v9340 = vadd.f32 %v9212, %v8861
    %v9341 = vadd.f32 %v9213, %v8863
    %v9342 = vadd.f32 %v9214, %v9054
    %v9343 = vadd.f32 %v9215, %v9056
    %v9344 = vadd.f32 %v9216, %v8867
    %v9345 = vadd.f32 %v9217, %v8869
    %v9346 = vadd.f32 %v9218, %v9060
    %v9347 = vadd.f32 %v9219, %v9062
    %v9348 = vadd.f32 %v9220, %v8871
    %v9349 = vadd.f32 %v9221, %v8873
    %v9350 = vadd.f32 %v9222, %v9064
    %v9351 = vadd.f32 %v9223, %v9066
    %v9352 = vadd.f32 %v9224, %v8877
    %v9353 = vadd.f32 %v9225, %v8879
    %v9354 = vadd.f32 %v9226, %v9070
    %v9355 = vadd.f32 %v9227, %v9072
    %v9356 = vadd.f32 %v9228, %v8881
    %v9357 = vadd.f32 %v9229, %v8883
    %v9358 = vadd.f32 %v9230, %v9074
    %v9359 = vadd.f32 %v9231, %v9076
    %v9360 = vadd.f32 %v9232, %v8887
    %v9361 = vadd.f32 %v9233, %v8889
    %v9362 = vadd.f32 %v9234, %v9080
    %v9363 = vadd.f32 %v9235, %v9082
    %v9364 = vadd.f32 %v9236, %v8891
    %v9365 = vadd.f32 %v9237, %v8893
    %v9366 = vadd.f32 %v9238, %v9084
    %v9367 = vadd.f32 %v9239, %v9086
    %v9368 = vadd.f32 %v9240, %v8897
    %v9369 = vadd.f32 %v9241, %v8899
    %v9370 = vadd.f32 %v9242, %v9090
    %v9371 = vadd.f32 %v9243, %v9092
    %v9372 = vadd.f32 %v9244, %v8901
    %v9373 = vadd.f32 %v9245, %v8903
    %v9374 = vadd.f32 %v9246, %v9094
    %v9375 = vadd.f32 %v9247, %v9096
    %v9376 = vadd.f32 %v9248, %v8907
    %v9377 = vadd.f32 %v9249, %v8909
    %v9378 = vadd.f32 %v9250, %v9100
    %v9379 = vadd.f32 %v9251, %v9102
    %v9380 = vadd.f32 %v9252, %v8911
    %v9381 = vadd.f32 %v9253, %v8913
    %v9382 = vadd.f32 %v9254, %v9104
    %v9383 = vadd.f32 %v9255, %v9106
    %v9384 = vadd.f32 %v9256, %v8917
    %v9385 = vadd.f32 %v9257, %v8919
    %v9386 = vadd.f32 %v9258, %v9110
    %v9387 = vadd.f32 %v9259, %v9112
    %v9388 = vadd.f32 %v9260, %v8921
    %v9389 = vadd.f32 %v9261, %v8923
    %v9390 = vadd.f32 %v9262, %v9114
    %v9391 = vadd.f32 %v9263, %v9116
    %v9392 = vadd.f32 %v9264, %v8927
    %v9393 = vadd.f32 %v9265, %v8929
    %v9394 = vadd.f32 %v9266, %v9120
    %v9395 = vadd.f32 %v9267, %v9122
    %v9396 = vadd.f32 %v9268, %v8931
    %v9397 = vadd.f32 %v9269, %v8933
    %v9398 = vadd.f32 %v9270, %v9124
    %v9399 = vadd.f32 %v9271, %v9126
    %v9400 = vadd.f32 %v9272, %v8937
    %v9401 = vadd.f32 %v9273, %v8939
    %v9402 = vadd.f32 %v9274, %v9130
    %v9403 = vadd.f32 %v9275, %v9132
    %v9404 = vadd.f32 %v9276, %v8941
    %v9405 = vadd.f32 %v9277, %v8943
    %v9406 = vadd.f32 %v9278, %v9134
    %v9407 = vadd.f32 %v9279, %v9136
    %v9408 = vadd.f32 %v9280, %v8947
    %v9409 = vadd.f32 %v9281, %v8949
    %v9410 = vadd.f32 %v9282, %v9140
    %v9411 = vadd.f32 %v9283, %v9142
    %v9412 = vadd.f32 %v9284, %v8951
    %v9413 = vadd.f32 %v9285, %v8953
    %v9414 = vadd.f32 %v9286, %v9144
    %v9415 = vadd.f32 %v9287, %v9146
    %v9416 = vadd.f32 %v9288, %v8957
    %v9417 = vadd.f32 %v9289, %v8959
    %v9418 = vadd.f32 %v9290, %v9150
    %v9419 = vadd.f32 %v9291, %v9152
    %v9420 = vadd.f32 %v9292, %v8961
    %v9421 = vadd.f32 %v9293, %v8963
    %v9422 = vadd.f32 %v9294, %v9154
    %v9423 = vadd.f32 %v9295, %v9156
    %v9424 = vadd.f32 %v9296, %v8967
    %v9425 = vadd.f32 %v9297, %v8969
    %v9426 = vadd.f32 %v9298, %v9160
    %v9427 = vadd.f32 %v9299, %v9162
    %v9428 = vadd.f32 %v9300, %v8971
    %v9429 = vadd.f32 %v9301, %v8973
    %v9430 = vadd.f32 %v9302, %v9164
    %v9431 = vadd.f32 %v9303, %v9166
    %v9432 = vadd.f32 %v9304, %v8977
    %v9433 = vadd.f32 %v9305, %v8979
    %v9434 = vadd.f32 %v9306, %v9170
    %v9435 = vadd.f32 %v9307, %v9172
    %v9436 = vadd.f32 %v9308, %v8981
    %v9437 = vadd.f32 %v9309, %v8983
    %v9438 = vadd.f32 %v9310, %v9174
    %v9439 = vadd.f32 %v9311, %v9176
    %v9440 = vadd.f32 %v9312, %v8987
    %v9441 = vadd.f32 %v9313, %v8989
    %v9442 = vadd.f32 %v9314, %v9180
    %v9443 = vadd.f32 %v9315, %v9182
    %v9444 = vadd.f32 %v9316, %v8991
    %v9445 = vadd.f32 %v9317, %v8993
    %v9446 = vadd.f32 %v9318, %v9184
    %v9447 = vadd.f32 %v9319, %v9186
    %v9448 = vadd.f32 %v9320, %v8997
    %v9449 = vadd.f32 %v9321, %v8999
    %v9450 = vadd.f32 %v9322, %v9190
    %v9451 = vadd.f32 %v9323, %v9192
    %v9452 = vadd.f32 %v9324, %v9001
    %v9453 = vadd.f32 %v9325, %v9003
    %v9454 = vadd.f32 %v9326, %v9194
    %v9455 = vadd.f32 %v9327, %v9196
    %v9456 = vadd.f32 %v9328, %v9007
    %v9457 = vadd.f32 %v9329, %v9009
    %v9458 = vadd.f32 %v9330, %v9200
    %v9459 = vadd.f32 %v9331, %v9202
    %v9460 = vadd.f32 %v9332, %v9011
    %v9461 = vadd.f32 %v9333, %v9013
    %v9462 = vadd.f32 %v9334, %v9204
    %v9463 = vadd.f32 %v9335, %v9206
    %9464 = vst [vmem:[#allocation2] sm:$0xff] %v9336
    %9465 = vst [vmem:[#allocation2 + $0x8] sm:$0xff] %v9337
    %9466 = vst [vmem:[#allocation2 + $0x10] sm:$0xff] %v9338
    %9467 = vst [vmem:[#allocation2 + $0x18] sm:$0xff] %v9339
    %9468 = vst [vmem:[#allocation2 + $0x20] sm:$0xff] %v9340
    %9469 = vst [vmem:[#allocation2 + $0x28] sm:$0xff] %v9341
    %9470 = vst [vmem:[#allocation2 + $0x30] sm:$0xff] %v9342
    %9471 = vst [vmem:[#allocation2 + $0x38] sm:$0xff] %v9343
    %9472 = vst [vmem:[#allocation2 + $0x40] sm:$0xff] %v9344
    %9473 = vst [vmem:[#allocation2 + $0x48] sm:$0xff] %v9345
    %9474 = vst [vmem:[#allocation2 + $0x50] sm:$0xff] %v9346
    %9475 = vst [vmem:[#allocation2 + $0x58] sm:$0xff] %v9347
    %9476 = vst [vmem:[#allocation2 + $0x60] sm:$0xff] %v9348
    %9477 = vst [vmem:[#allocation2 + $0x68] sm:$0xff] %v9349
    %9478 = vst [vmem:[#allocation2 + $0x70] sm:$0xff] %v9350
    %9479 = vst [vmem:[#allocation2 + $0x78] sm:$0xff] %v9351
    %9480 = vst [vmem:[#allocation2 + $0x80] sm:$0xff] %v9352
    %9481 = vst [vmem:[#allocation2 + $0x88] sm:$0xff] %v9353
    %9482 = vst [vmem:[#allocation2 + $0x90] sm:$0xff] %v9354
    %9483 = vst [vmem:[#allocation2 + $0x98] sm:$0xff] %v9355
    %9484 = vst [vmem:[#allocation2 + $0xa0] sm:$0xff] %v9356
    %9485 = vst [vmem:[#allocation2 + $0xa8] sm:$0xff] %v9357
    %9486 = vst [vmem:[#allocation2 + $0xb0] sm:$0xff] %v9358
    %9487 = vst [vmem:[#allocation2 + $0xb8] sm:$0xff] %v9359
    %9488 = vst [vmem:[#allocation2 + $0xc0] sm:$0xff] %v9360
    %9489 = vst [vmem:[#allocation2 + $0xc8] sm:$0xff] %v9361
    %9490 = vst [vmem:[#allocation2 + $0xd0] sm:$0xff] %v9362
    %9491 = vst [vmem:[#allocation2 + $0xd8] sm:$0xff] %v9363
    %9492 = vst [vmem:[#allocation2 + $0xe0] sm:$0xff] %v9364
    %9493 = vst [vmem:[#allocation2 + $0xe8] sm:$0xff] %v9365
    %9494 = vst [vmem:[#allocation2 + $0xf0] sm:$0xff] %v9366
    %9495 = vst [vmem:[#allocation2 + $0xf8] sm:$0xff] %v9367
    %9496 = vst [vmem:[#allocation2 + $0x100] sm:$0xff] %v9368
    %9497 = vst [vmem:[#allocation2 + $0x108] sm:$0xff] %v9369
    %9498 = vst [vmem:[#allocation2 + $0x110] sm:$0xff] %v9370
    %9499 = vst [vmem:[#allocation2 + $0x118] sm:$0xff] %v9371
    %9500 = vst [vmem:[#allocation2 + $0x120] sm:$0xff] %v9372
    %9501 = vst [vmem:[#allocation2 + $0x128] sm:$0xff] %v9373
    %9502 = vst [vmem:[#allocation2 + $0x130] sm:$0xff] %v9374
    %9503 = vst [vmem:[#allocation2 + $0x138] sm:$0xff] %v9375
    %9504 = vst [vmem:[#allocation2 + $0x140] sm:$0xff] %v9376
    %9505 = vst [vmem:[#allocation2 + $0x148] sm:$0xff] %v9377
    %9506 = vst [vmem:[#allocation2 + $0x150] sm:$0xff] %v9378
    %9507 = vst [vmem:[#allocation2 + $0x158] sm:$0xff] %v9379
    %9508 = vst [vmem:[#allocation2 + $0x160] sm:$0xff] %v9380
    %9509 = vst [vmem:[#allocation2 + $0x168] sm:$0xff] %v9381
    %9510 = vst [vmem:[#allocation2 + $0x170] sm:$0xff] %v9382
    %9511 = vst [vmem:[#allocation2 + $0x178] sm:$0xff] %v9383
    %9512 = vst [vmem:[#allocation2 + $0x180] sm:$0xff] %v9384
    %9513 = vst [vmem:[#allocation2 + $0x188] sm:$0xff] %v9385
    %9514 = vst [vmem:[#allocation2 + $0x190] sm:$0xff] %v9386
    %9515 = vst [vmem:[#allocation2 + $0x198] sm:$0xff] %v9387
    %9516 = vst [vmem:[#allocation2 + $0x1a0] sm:$0xff] %v9388
    %9517 = vst [vmem:[#allocation2 + $0x1a8] sm:$0xff] %v9389
    %9518 = vst [vmem:[#allocation2 + $0x1b0] sm:$0xff] %v9390
    %9519 = vst [vmem:[#allocation2 + $0x1b8] sm:$0xff] %v9391
    %9520 = vst [vmem:[#allocation2 + $0x1c0] sm:$0xff] %v9392
    %9521 = vst [vmem:[#allocation2 + $0x1c8] sm:$0xff] %v9393
    %9522 = vst [vmem:[#allocation2 + $0x1d0] sm:$0xff] %v9394
    %9523 = vst [vmem:[#allocation2 + $0x1d8] sm:$0xff] %v9395
    %9524 = vst [vmem:[#allocation2 + $0x1e0] sm:$0xff] %v9396
    %9525 = vst [vmem:[#allocation2 + $0x1e8] sm:$0xff] %v9397
    %9526 = vst [vmem:[#allocation2 + $0x1f0] sm:$0xff] %v9398
    %9527 = vst [vmem:[#allocation2 + $0x1f8] sm:$0xff] %v9399
    %9528 = vst [vmem:[#allocation2 + $0x200] sm:$0xff] %v9400
    %9529 = vst [vmem:[#allocation2 + $0x208] sm:$0xff] %v9401
    %9530 = vst [vmem:[#allocation2 + $0x210] sm:$0xff] %v9402
    %9531 = vst [vmem:[#allocation2 + $0x218] sm:$0xff] %v9403
    %9532 = vst [vmem:[#allocation2 + $0x220] sm:$0xff] %v9404
    %9533 = vst [vmem:[#allocation2 + $0x228] sm:$0xff] %v9405
    %9534 = vst [vmem:[#allocation2 + $0x230] sm:$0xff] %v9406
    %9535 = vst [vmem:[#allocation2 + $0x238] sm:$0xff] %v9407
    %9536 = vst [vmem:[#allocation2 + $0x240] sm:$0xff] %v9408
    %9537 = vst [vmem:[#allocation2 + $0x248] sm:$0xff] %v9409
    %9538 = vst [vmem:[#allocation2 + $0x250] sm:$0xff] %v9410
    %9539 = vst [vmem:[#allocation2 + $0x258] sm:$0xff] %v9411
    %9540 = vst [vmem:[#allocation2 + $0x260] sm:$0xff] %v9412
    %9541 = vst [vmem:[#allocation2 + $0x268] sm:$0xff] %v9413
    %9542 = vst [vmem:[#allocation2 + $0x270] sm:$0xff] %v9414
    %9543 = vst [vmem:[#allocation2 + $0x278] sm:$0xff] %v9415
    %9544 = vst [vmem:[#allocation2 + $0x280] sm:$0xff] %v9416
    %9545 = vst [vmem:[#allocation2 + $0x288] sm:$0xff] %v9417
    %9546 = vst [vmem:[#allocation2 + $0x290] sm:$0xff] %v9418
    %9547 = vst [vmem:[#allocation2 + $0x298] sm:$0xff] %v9419
    %9548 = vst [vmem:[#allocation2 + $0x2a0] sm:$0xff] %v9420
    %9549 = vst [vmem:[#allocation2 + $0x2a8] sm:$0xff] %v9421
    %9550 = vst [vmem:[#allocation2 + $0x2b0] sm:$0xff] %v9422
    %9551 = vst [vmem:[#allocation2 + $0x2b8] sm:$0xff] %v9423
    %9552 = vst [vmem:[#allocation2 + $0x2c0] sm:$0xff] %v9424
    %9553 = vst [vmem:[#allocation2 + $0x2c8] sm:$0xff] %v9425
    %9554 = vst [vmem:[#allocation2 + $0x2d0] sm:$0xff] %v9426
    %9555 = vst [vmem:[#allocation2 + $0x2d8] sm:$0xff] %v9427
    %9556 = vst [vmem:[#allocation2 + $0x2e0] sm:$0xff] %v9428
    %9557 = vst [vmem:[#allocation2 + $0x2e8] sm:$0xff] %v9429
    %9558 = vst [vmem:[#allocation2 + $0x2f0] sm:$0xff] %v9430
    %9559 = vst [vmem:[#allocation2 + $0x2f8] sm:$0xff] %v9431
    %9560 = vst [vmem:[#allocation2 + $0x300] sm:$0xff] %v9432
    %9561 = vst [vmem:[#allocation2 + $0x308] sm:$0xff] %v9433
    %9562 = vst [vmem:[#allocation2 + $0x310] sm:$0xff] %v9434
    %9563 = vst [vmem:[#allocation2 + $0x318] sm:$0xff] %v9435
    %9564 = vst [vmem:[#allocation2 + $0x320] sm:$0xff] %v9436
    %9565 = vst [vmem:[#allocation2 + $0x328] sm:$0xff] %v9437
    %9566 = vst [vmem:[#allocation2 + $0x330] sm:$0xff] %v9438
    %9567 = vst [vmem:[#allocation2 + $0x338] sm:$0xff] %v9439
    %9568 = vst [vmem:[#allocation2 + $0x340] sm:$0xff] %v9440
    %9569 = vst [vmem:[#allocation2 + $0x348] sm:$0xff] %v9441
    %9570 = vst [vmem:[#allocation2 + $0x350] sm:$0xff] %v9442
    %9571 = vst [vmem:[#allocation2 + $0x358] sm:$0xff] %v9443
    %9572 = vst [vmem:[#allocation2 + $0x360] sm:$0xff] %v9444
    %9573 = vst [vmem:[#allocation2 + $0x368] sm:$0xff] %v9445
    %9574 = vst [vmem:[#allocation2 + $0x370] sm:$0xff] %v9446
    %9575 = vst [vmem:[#allocation2 + $0x378] sm:$0xff] %v9447
    %9576 = vst [vmem:[#allocation2 + $0x380] sm:$0xff] %v9448
    %9577 = vst [vmem:[#allocation2 + $0x388] sm:$0xff] %v9449
    %9578 = vst [vmem:[#allocation2 + $0x390] sm:$0xff] %v9450
    %9579 = vst [vmem:[#allocation2 + $0x398] sm:$0xff] %v9451
    %9580 = vst [vmem:[#allocation2 + $0x3a0] sm:$0xff] %v9452
    %9581 = vst [vmem:[#allocation2 + $0x3a8] sm:$0xff] %v9453
    %9582 = vst [vmem:[#allocation2 + $0x3b0] sm:$0xff] %v9454
    %9583 = vst [vmem:[#allocation2 + $0x3b8] sm:$0xff] %v9455
    %9584 = vst [vmem:[#allocation2 + $0x3c0] sm:$0xff] %v9456
    %9585 = vst [vmem:[#allocation2 + $0x3c8] sm:$0xff] %v9457
    %9586 = vst [vmem:[#allocation2 + $0x3d0] sm:$0xff] %v9458
    %9587 = vst [vmem:[#allocation2 + $0x3d8] sm:$0xff] %v9459
    %9588 = vst [vmem:[#allocation2 + $0x3e0] sm:$0xff] %v9460
    %9589 = vst [vmem:[#allocation2 + $0x3e8] sm:$0xff] %v9461
    %9590 = vst [vmem:[#allocation2 + $0x3f0] sm:$0xff] %v9462
    %9591 = vst [vmem:[#allocation2 + $0x3f8] sm:$0xff] %v9463
    %v9592 = vld [vmem:[%s7120] sm:$0xe]
    %v9593 = vld [vmem:[%s7120 + $0x4] sm:$0xf]
    %v9594 = vld [vmem:[%s7120 + $0x8] sm:$0x1]
    %v9595 = vld [vmem:[%s7120 + $0xc] sm:$0xe]
    %v9596 = vld [vmem:[%s7120 + $0x10] sm:$0xf]
    %v9597 = vld [vmem:[%s7120 + $0x14] sm:$0x1]
    %v9598 = vld [vmem:[%s7120 + $0x18] sm:$0xe]
    %v9599 = vld [vmem:[%s7120 + $0x1c] sm:$0xf]
    %v9600 = vld [vmem:[%s7120 + $0x20] sm:$0x1]
    %v9601 = vld [vmem:[%s7120 + $0x24] sm:$0xe]
    %v9602 = vld [vmem:[%s7120 + $0x28] sm:$0xf]
    %v9603 = vld [vmem:[%s7120 + $0x2c] sm:$0x1]
    %v9604 = vld [vmem:[%s7120 + $0x30] sm:$0xe]
    %v9605 = vld [vmem:[%s7120 + $0x34] sm:$0xf]
    %v9606 = vld [vmem:[%s7120 + $0x38] sm:$0x1]
    %v9607 = vld [vmem:[%s7120 + $0x3c] sm:$0xe]
    %v9608 = vld [vmem:[%s7120 + $0x40] sm:$0xf]
    %v9609 = vld [vmem:[%s7120 + $0x44] sm:$0x1]
    %v9610 = vld [vmem:[%s7120 + $0x48] sm:$0xe]
    %v9611 = vld [vmem:[%s7120 + $0x4c] sm:$0xf]
    %v9612 = vld [vmem:[%s7120 + $0x50] sm:$0x1]
    %v9613 = vld [vmem:[%s7120 + $0x54] sm:$0xe]
    %v9614 = vld [vmem:[%s7120 + $0x58] sm:$0xf]
    %v9615 = vld [vmem:[%s7120 + $0x5c] sm:$0x1]
    %v9640 = vrot.slane %v9592, 5
    %v9641 = vrot.slane %v9640, 4
    %v9642 = vrot.slane %v9593, 5
    %v9643 = vsel %vm2305, %v9641, %v9642
    %v9644 = vrot.slane %v9642, 4
    %v9645 = vrot.slane %v9594, 5
    %v9646 = vsel %vm2305, %v9644, %v9645
    %v9647 = vrot.slane %v9595, 5
    %v9648 = vrot.slane %v9647, 4
    %v9649 = vrot.slane %v9596, 5
    %v9650 = vsel %vm2305, %v9648, %v9649
    %v9651 = vrot.slane %v9649, 4
    %v9652 = vrot.slane %v9597, 5
    %v9653 = vsel %vm2305, %v9651, %v9652
    %v9654 = vrot.slane %v9598, 5
    %v9655 = vrot.slane %v9654, 4
    %v9656 = vrot.slane %v9599, 5
    %v9657 = vsel %vm2305, %v9655, %v9656
    %v9658 = vrot.slane %v9656, 4
    %v9659 = vrot.slane %v9600, 5
    %v9660 = vsel %vm2305, %v9658, %v9659
    %v9661 = vrot.slane %v9601, 5
    %v9662 = vrot.slane %v9661, 4
    %v9663 = vrot.slane %v9602, 5
    %v9664 = vsel %vm2305, %v9662, %v9663
    %v9665 = vrot.slane %v9663, 4
    %v9666 = vrot.slane %v9603, 5
    %v9667 = vsel %vm2305, %v9665, %v9666
    %v9668 = vrot.slane %v9604, 5
    %v9669 = vrot.slane %v9668, 4
    %v9670 = vrot.slane %v9605, 5
    %v9671 = vsel %vm2305, %v9669, %v9670
    %v9672 = vrot.slane %v9670, 4
    %v9673 = vrot.slane %v9606, 5
    %v9674 = vsel %vm2305, %v9672, %v9673
    %v9675 = vrot.slane %v9607, 5
    %v9676 = vrot.slane %v9675, 4
    %v9677 = vrot.slane %v9608, 5
    %v9678 = vsel %vm2305, %v9676, %v9677
    %v9679 = vrot.slane %v9677, 4
    %v9680 = vrot.slane %v9609, 5
    %v9681 = vsel %vm2305, %v9679, %v9680
    %v9682 = vrot.slane %v9610, 5
    %v9683 = vrot.slane %v9682, 4
    %v9684 = vrot.slane %v9611, 5
    %v9685 = vsel %vm2305, %v9683, %v9684
    %v9686 = vrot.slane %v9684, 4
    %v9687 = vrot.slane %v9612, 5
    %v9688 = vsel %vm2305, %v9686, %v9687
    %v9689 = vrot.slane %v9613, 5
    %v9690 = vrot.slane %v9689, 4
    %v9691 = vrot.slane %v9614, 5
    %v9692 = vsel %vm2305, %v9690, %v9691
    %v9693 = vrot.slane %v9691, 4
    %v9694 = vrot.slane %v9615, 5
    %v9695 = vsel %vm2305, %v9693, %v9694
    %v9696 = vld [vmem:[%s7137] sm:$0xe]
    %v9697 = vld [vmem:[%s7137 + $0x4] sm:$0xf]
    %v9698 = vld [vmem:[%s7137 + $0x8] sm:$0x1]
    %v9699 = vld [vmem:[%s7137 + $0xc] sm:$0xe]
    %v9700 = vld [vmem:[%s7137 + $0x10] sm:$0xf]
    %v9701 = vld [vmem:[%s7137 + $0x14] sm:$0x1]
    %v9702 = vld [vmem:[%s7137 + $0x18] sm:$0xe]
    %v9703 = vld [vmem:[%s7137 + $0x1c] sm:$0xf]
    %v9704 = vld [vmem:[%s7137 + $0x20] sm:$0x1]
    %v9705 = vld [vmem:[%s7137 + $0x24] sm:$0xe]
    %v9706 = vld [vmem:[%s7137 + $0x28] sm:$0xf]
    %v9707 = vld [vmem:[%s7137 + $0x2c] sm:$0x1]
    %v9708 = vld [vmem:[%s7137 + $0x30] sm:$0xe]
    %v9709 = vld [vmem:[%s7137 + $0x34] sm:$0xf]
    %v9710 = vld [vmem:[%s7137 + $0x38] sm:$0x1]
    %v9711 = vld [vmem:[%s7137 + $0x3c] sm:$0xe]
    %v9712 = vld [vmem:[%s7137 + $0x40] sm:$0xf]
    %v9713 = vld [vmem:[%s7137 + $0x44] sm:$0x1]
    %v9714 = vld [vmem:[%s7137 + $0x48] sm:$0xe]
    %v9715 = vld [vmem:[%s7137 + $0x4c] sm:$0xf]
    %v9716 = vld [vmem:[%s7137 + $0x50] sm:$0x1]
    %v9717 = vld [vmem:[%s7137 + $0x54] sm:$0xe]
    %v9718 = vld [vmem:[%s7137 + $0x58] sm:$0xf]
    %v9719 = vld [vmem:[%s7137 + $0x5c] sm:$0x1]
    %v9744 = vrot.slane %v9696, 5
    %v9745 = vrot.slane %v9744, 4
    %v9746 = vrot.slane %v9697, 5
    %v9747 = vsel %vm2305, %v9745, %v9746
    %v9748 = vrot.slane %v9746, 4
    %v9749 = vrot.slane %v9698, 5
    %v9750 = vsel %vm2305, %v9748, %v9749
    %v9751 = vrot.slane %v9699, 5
    %v9752 = vrot.slane %v9751, 4
    %v9753 = vrot.slane %v9700, 5
    %v9754 = vsel %vm2305, %v9752, %v9753
    %v9755 = vrot.slane %v9753, 4
    %v9756 = vrot.slane %v9701, 5
    %v9757 = vsel %vm2305, %v9755, %v9756
    %v9758 = vrot.slane %v9702, 5
    %v9759 = vrot.slane %v9758, 4
    %v9760 = vrot.slane %v9703, 5
    %v9761 = vsel %vm2305, %v9759, %v9760
    %v9762 = vrot.slane %v9760, 4
    %v9763 = vrot.slane %v9704, 5
    %v9764 = vsel %vm2305, %v9762, %v9763
    %v9765 = vrot.slane %v9705, 5
    %v9766 = vrot.slane %v9765, 4
    %v9767 = vrot.slane %v9706, 5
    %v9768 = vsel %vm2305, %v9766, %v9767
    %v9769 = vrot.slane %v9767, 4
    %v9770 = vrot.slane %v9707, 5
    %v9771 = vsel %vm2305, %v9769, %v9770
    %v9772 = vrot.slane %v9708, 5
    %v9773 = vrot.slane %v9772, 4
    %v9774 = vrot.slane %v9709, 5
    %v9775 = vsel %vm2305, %v9773, %v9774
    %v9776 = vrot.slane %v9774, 4
    %v9777 = vrot.slane %v9710, 5
    %v9778 = vsel %vm2305, %v9776, %v9777
    %v9779 = vrot.slane %v9711, 5
    %v9780 = vrot.slane %v9779, 4
    %v9781 = vrot.slane %v9712, 5
    %v9782 = vsel %vm2305, %v9780, %v9781
    %v9783 = vrot.slane %v9781, 4
    %v9784 = vrot.slane %v9713, 5
    %v9785 = vsel %vm2305, %v9783, %v9784
    %v9786 = vrot.slane %v9714, 5
    %v9787 = vrot.slane %v9786, 4
    %v9788 = vrot.slane %v9715, 5
    %v9789 = vsel %vm2305, %v9787, %v9788
    %v9790 = vrot.slane %v9788, 4
    %v9791 = vrot.slane %v9716, 5
    %v9792 = vsel %vm2305, %v9790, %v9791
    %v9793 = vrot.slane %v9717, 5
    %v9794 = vrot.slane %v9793, 4
    %v9795 = vrot.slane %v9718, 5
    %v9796 = vsel %vm2305, %v9794, %v9795
    %v9797 = vrot.slane %v9795, 4
    %v9798 = vrot.slane %v9719, 5
    %v9799 = vsel %vm2305, %v9797, %v9798
    %v9800 = vunpack.c.l.b16 %v9643
    %v9801 = vunpack.c.l.b16 %v9646
    %v9802 = vunpack.c.l.b16 %v9650
    %v9803 = vunpack.c.l.b16 %v9653
    %v9804 = vunpack.c.l.b16 %v9657
    %v9805 = vunpack.c.l.b16 %v9660
    %v9806 = vunpack.c.l.b16 %v9664
    %v9807 = vunpack.c.l.b16 %v9667
    %v9808 = vunpack.c.l.b16 %v9671
    %v9809 = vunpack.c.l.b16 %v9674
    %v9810 = vunpack.c.l.b16 %v9678
    %v9811 = vunpack.c.l.b16 %v9681
    %v9812 = vunpack.c.l.b16 %v9685
    %v9813 = vunpack.c.l.b16 %v9688
    %v9814 = vunpack.c.l.b16 %v9692
    %v9815 = vunpack.c.l.b16 %v9695
    %v9816 = vpack.c.b16 %v9801, %v9800
    %v9817 = vpack.c.b16 %v9803, %v9802
    %v9818 = vpack.c.b16 %v9805, %v9804
    %v9819 = vpack.c.b16 %v9807, %v9806
    %v9820 = vpack.c.b16 %v9809, %v9808
    %v9821 = vpack.c.b16 %v9811, %v9810
    %v9822 = vpack.c.b16 %v9813, %v9812
    %v9823 = vpack.c.b16 %v9815, %v9814
    %v9824 = vunpack.c.l.b16 %v9747
    %v9825 = vunpack.c.l.b16 %v9750
    %v9826 = vunpack.c.l.b16 %v9754
    %v9827 = vunpack.c.l.b16 %v9757
    %v9828 = vunpack.c.l.b16 %v9761
    %v9829 = vunpack.c.l.b16 %v9764
    %v9830 = vunpack.c.l.b16 %v9768
    %v9831 = vunpack.c.l.b16 %v9771
    %v9832 = vunpack.c.l.b16 %v9775
    %v9833 = vunpack.c.l.b16 %v9778
    %v9834 = vunpack.c.l.b16 %v9782
    %v9835 = vunpack.c.l.b16 %v9785
    %v9836 = vunpack.c.l.b16 %v9789
    %v9837 = vunpack.c.l.b16 %v9792
    %v9838 = vunpack.c.l.b16 %v9796
    %v9839 = vunpack.c.l.b16 %v9799
    %v9840 = vpack.c.b16 %v9825, %v9824
    %v9841 = vpack.c.b16 %v9827, %v9826
    %v9842 = vpack.c.b16 %v9829, %v9828
    %v9843 = vpack.c.b16 %v9831, %v9830
    %v9844 = vpack.c.b16 %v9833, %v9832
    %v9845 = vpack.c.b16 %v9835, %v9834
    %v9846 = vpack.c.b16 %v9837, %v9836
    %v9847 = vpack.c.b16 %v9839, %v9838
    %s9848 = scalar_lea.vmem [#allocation3], 1152
    %v9849 = vld [vmem:[%s9848] sm:$0xff]
    %v9850 = vld [vmem:[%s9848 + $0x8] sm:$0xff]
    %v9851 = vld [vmem:[%s9848 + $0x10] sm:$0xff]
    %v9852 = vld [vmem:[%s9848 + $0x18] sm:$0xff]
    %v9853 = vld [vmem:[%s9848 + $0x20] sm:$0xff]
    %v9854 = vld [vmem:[%s9848 + $0x28] sm:$0xff]
    %v9855 = vld [vmem:[%s9848 + $0x30] sm:$0xff]
    %v9856 = vld [vmem:[%s9848 + $0x38] sm:$0xff]
    %v9857 = vld [vmem:[%s9848 + $0x40] sm:$0xff]
    %v9858 = vld [vmem:[%s9848 + $0x48] sm:$0xff]
    %v9859 = vld [vmem:[%s9848 + $0x50] sm:$0xff]
    %v9860 = vld [vmem:[%s9848 + $0x58] sm:$0xff]
    %v9861 = vld [vmem:[%s9848 + $0x60] sm:$0xff]
    %v9862 = vld [vmem:[%s9848 + $0x68] sm:$0xff]
    %v9863 = vld [vmem:[%s9848 + $0x70] sm:$0xff]
    %v9864 = vld [vmem:[%s9848 + $0x78] sm:$0xff]
    %v9865 = vld [vmem:[%s9848 + $0x80] sm:$0xff]
    %v9866 = vld [vmem:[%s9848 + $0x88] sm:$0xff]
    %v9885 = vunpack.c.l.b16 %v9849
    %v9886 = vunpack.c.h.b16 %v9849
    %v9887 = vunpack.c.l.b16 %v9850
    %v9888 = vunpack.c.h.b16 %v9850
    %v9889 = vunpack.c.l.b16 %v9851
    %v9890 = vunpack.c.h.b16 %v9851
    %v9891 = vunpack.c.l.b16 %v9852
    %v9892 = vunpack.c.h.b16 %v9852
    %v9893 = vunpack.c.l.b16 %v9853
    %v9894 = vunpack.c.h.b16 %v9853
    %v9895 = vunpack.c.l.b16 %v9854
    %v9896 = vunpack.c.h.b16 %v9854
    %v9897 = vunpack.c.l.b16 %v9855
    %v9898 = vunpack.c.h.b16 %v9855
    %v9899 = vunpack.c.l.b16 %v9856
    %v9900 = vunpack.c.h.b16 %v9856
    %v9901 = vunpack.c.l.b16 %v9857
    %v9902 = vunpack.c.h.b16 %v9857
    %v9903 = vunpack.c.l.b16 %v9858
    %v9904 = vunpack.c.h.b16 %v9858
    %v9905 = vunpack.c.l.b16 %v9859
    %v9906 = vunpack.c.h.b16 %v9859
    %v9907 = vunpack.c.l.b16 %v9860
    %v9908 = vunpack.c.h.b16 %v9860
    %v9909 = vunpack.c.l.b16 %v9861
    %v9910 = vunpack.c.h.b16 %v9861
    %v9911 = vunpack.c.l.b16 %v9862
    %v9912 = vunpack.c.h.b16 %v9862
    %v9913 = vunpack.c.l.b16 %v9863
    %v9914 = vunpack.c.h.b16 %v9863
    %v9915 = vunpack.c.l.b16 %v9864
    %v9916 = vunpack.c.h.b16 %v9864
    %v9917 = vunpack.c.l.b16 %v9865
    %v9918 = vunpack.c.h.b16 %v9865
    %v9919 = vunpack.c.l.b16 %v9866
    %v9920 = vunpack.c.h.b16 %v9866
    %v9921 = vpack.c.b16 %v9889, %v9885
    %v9922 = vpack.c.b16 %v9890, %v9886
    %v9923 = vpack.c.b16 %v9891, %v9887
    %v9924 = vpack.c.b16 %v9892, %v9888
    %v9925 = vpack.c.b16 %v9897, %v9893
    %v9926 = vpack.c.b16 %v9898, %v9894
    %v9927 = vpack.c.b16 %v9899, %v9895
    %v9928 = vpack.c.b16 %v9900, %v9896
    %v9929 = vpack.c.b16 %v9905, %v9901
    %v9930 = vpack.c.b16 %v9906, %v9902
    %v9931 = vpack.c.b16 %v9907, %v9903
    %v9932 = vpack.c.b16 %v9908, %v9904
    %v9933 = vpack.c.b16 %v9913, %v9909
    %v9934 = vpack.c.b16 %v9914, %v9910
    %v9935 = vpack.c.b16 %v9915, %v9911
    %v9936 = vpack.c.b16 %v9916, %v9912
    %v9937 = vpack.c.b16 %v9917, %v9917
    %v9938 = vpack.c.b16 %v9918, %v9918
    %v9939 = vpack.c.b16 %v9919, %v9919
    %v9940 = vpack.c.b16 %v9920, %v9920
    %v9958 = vsel %vm257, %v9816, 0
    %v9961 = vsel %vm257, %v9817, 0
    %v9964 = vsel %vm257, %v9818, 0
    %v9967 = vsel %vm257, %v9819, 0
    %v9970 = vsel %vm257, %v9820, 0
    %v9973 = vsel %vm257, %v9821, 0
    %v9976 = vsel %vm257, %v9822, 0
    %v9979 = vsel %vm257, %v9823, 0
    %v9982 = vsel %vm257, %v9840, 0
    %v9985 = vsel %vm257, %v9841, 0
    %v9988 = vsel %vm257, %v9842, 0
    %v9991 = vsel %vm257, %v9843, 0
    %v9994 = vsel %vm257, %v9844, 0
    %v9997 = vsel %vm257, %v9845, 0
    %v10000 = vsel %vm257, %v9846, 0
    %v10003 = vsel %vm257, %v9847, 0
    %v10006 = vsel %vm306, %v9937, 0
    %v10009 = vsel %vm306, %v9938, 0
    %v10012 = vsel %vm306, %v9939, 0
    %v10015 = vsel %vm306, %v9940, 0
    %10017 = vmatprep.subr.bf16.mxu0 0
    %10018 = vmatpush1.bf16.msra.mxu0 0
    %10019 = vmatprep.subr.bf16.mxu0 0
    %10020 = vmatpush1.bf16.msra.mxu0 0
    %10021 = vmatprep.subr.bf16.mxu0 0
    %10022 = vmatpush1.bf16.msra.mxu0 0
    %10023 = vmatprep.subr.bf16.mxu0 %v10009
    %10024 = vmatpush1.bf16.msra.mxu0 %v10006
    %10025 = vmatprep.subr.bf16.mxu0 %v9934
    %10026 = vmatpush1.bf16.msra.mxu0 %v9933
    %10027 = vmatprep.subr.bf16.mxu0 %v9930
    %10028 = vmatpush1.bf16.msra.mxu0 %v9929
    %10029 = vmatprep.subr.bf16.mxu0 %v9926
    %10030 = vmatpush1.bf16.msra.mxu0 %v9925
    %10031 = vmatprep.subr.bf16.mxu0 %v9922
    %10032 = vmatpush1.bf16.msra.mxu0 %v9921
    %10033 = vmatprep.subr.bf16.mxu0 0
    %10034 = vmatpush2.bf16.msra.mxu0 0
    %10035 = vmatprep.subr.bf16.mxu0 0
    %10036 = vmatpush2.bf16.msra.mxu0 0
    %10037 = vmatprep.subr.bf16.mxu0 0
    %10038 = vmatpush2.bf16.msra.mxu0 0
    %10039 = vmatprep.subr.bf16.mxu0 0
    %10040 = vmatpush2.bf16.msra.mxu0 0
    %10041 = vmatprep.subr.bf16.mxu0 0
    %10042 = vmatpush2.bf16.msra.mxu0 0
    %10043 = vmatprep.subr.bf16.mxu0 0
    %10044 = vmatpush2.bf16.msra.mxu0 0
    %10045 = vmatprep.subr.bf16.mxu0 0
    %10046 = vmatpush2.bf16.msra.mxu0 0
    %10047 = vmatprep.subr.bf16.mxu0 0
    %10048 = vmatpush2.bf16.msra.mxu0 0
    %10049 = vmatprep.mubr.bf16.mxu0 0
    %10050 = vmatmul.mubr.bf16.gmra.mxu0 %v9958
    %v10051 = vpop.f32.mrf.mxu0
    %v10052 = vadd.f32 0.0, %v10051
    %v10053 = vpop.f32.mrf.mxu0
    %v10054 = vadd.f32 0.0, %v10053
    %v10055 = vpop.f32.mrf.mxu0
    %v10056 = vadd.f32 0.0, %v10055
    %v10057 = vpop.f32.mrf.mxu0
    %v10058 = vadd.f32 0.0, %v10057
    %10059 = vmatprep.mubr.bf16.mxu0 0
    %10060 = vmatmul.mubr.bf16.gmra.mxu0 %v9961
    %v10061 = vpop.f32.mrf.mxu0
    %v10062 = vadd.f32 0.0, %v10061
    %v10063 = vpop.f32.mrf.mxu0
    %v10064 = vadd.f32 0.0, %v10063
    %v10065 = vpop.f32.mrf.mxu0
    %v10066 = vadd.f32 0.0, %v10065
    %v10067 = vpop.f32.mrf.mxu0
    %v10068 = vadd.f32 0.0, %v10067
    %10069 = vmatprep.mubr.bf16.mxu0 0
    %10070 = vmatmul.mubr.bf16.gmra.mxu0 %v9964
    %v10071 = vpop.f32.mrf.mxu0
    %v10072 = vadd.f32 0.0, %v10071
    %v10073 = vpop.f32.mrf.mxu0
    %v10074 = vadd.f32 0.0, %v10073
    %v10075 = vpop.f32.mrf.mxu0
    %v10076 = vadd.f32 0.0, %v10075
    %v10077 = vpop.f32.mrf.mxu0
    %v10078 = vadd.f32 0.0, %v10077
    %10079 = vmatprep.mubr.bf16.mxu0 0
    %10080 = vmatmul.mubr.bf16.gmra.mxu0 %v9967
    %v10081 = vpop.f32.mrf.mxu0
    %v10082 = vadd.f32 0.0, %v10081
    %v10083 = vpop.f32.mrf.mxu0
    %v10084 = vadd.f32 0.0, %v10083
    %v10085 = vpop.f32.mrf.mxu0
    %v10086 = vadd.f32 0.0, %v10085
    %v10087 = vpop.f32.mrf.mxu0
    %v10088 = vadd.f32 0.0, %v10087
    %10089 = vmatprep.mubr.bf16.mxu0 0
    %10090 = vmatmul.mubr.bf16.gmra.mxu0 %v9970
    %v10091 = vpop.f32.mrf.mxu0
    %v10092 = vadd.f32 0.0, %v10091
    %v10093 = vpop.f32.mrf.mxu0
    %v10094 = vadd.f32 0.0, %v10093
    %v10095 = vpop.f32.mrf.mxu0
    %v10096 = vadd.f32 0.0, %v10095
    %v10097 = vpop.f32.mrf.mxu0
    %v10098 = vadd.f32 0.0, %v10097
    %10099 = vmatprep.mubr.bf16.mxu0 0
    %10100 = vmatmul.mubr.bf16.gmra.mxu0 %v9973
    %v10101 = vpop.f32.mrf.mxu0
    %v10102 = vadd.f32 0.0, %v10101
    %v10103 = vpop.f32.mrf.mxu0
    %v10104 = vadd.f32 0.0, %v10103
    %v10105 = vpop.f32.mrf.mxu0
    %v10106 = vadd.f32 0.0, %v10105
    %v10107 = vpop.f32.mrf.mxu0
    %v10108 = vadd.f32 0.0, %v10107
    %10109 = vmatprep.mubr.bf16.mxu0 0
    %10110 = vmatmul.mubr.bf16.gmra.mxu0 %v9976
    %v10111 = vpop.f32.mrf.mxu0
    %v10112 = vadd.f32 0.0, %v10111
    %v10113 = vpop.f32.mrf.mxu0
    %v10114 = vadd.f32 0.0, %v10113
    %v10115 = vpop.f32.mrf.mxu0
    %v10116 = vadd.f32 0.0, %v10115
    %v10117 = vpop.f32.mrf.mxu0
    %v10118 = vadd.f32 0.0, %v10117
    %10119 = vmatprep.mubr.bf16.mxu0 0
    %10120 = vmatmul.mubr.bf16.gmra.mxu0 %v9979
    %v10121 = vpop.f32.mrf.mxu0
    %v10122 = vadd.f32 0.0, %v10121
    %v10123 = vpop.f32.mrf.mxu0
    %v10124 = vadd.f32 0.0, %v10123
    %v10125 = vpop.f32.mrf.mxu0
    %v10126 = vadd.f32 0.0, %v10125
    %v10127 = vpop.f32.mrf.mxu0
    %v10128 = vadd.f32 0.0, %v10127
    %10129 = vmatprep.mubr.bf16.mxu0 0
    %10130 = vmatmul.mubr.bf16.gmra.mxu0 %v9982
    %v10131 = vpop.f32.mrf.mxu0
    %v10132 = vadd.f32 0.0, %v10131
    %v10133 = vpop.f32.mrf.mxu0
    %v10134 = vadd.f32 0.0, %v10133
    %v10135 = vpop.f32.mrf.mxu0
    %v10136 = vadd.f32 0.0, %v10135
    %v10137 = vpop.f32.mrf.mxu0
    %v10138 = vadd.f32 0.0, %v10137
    %10139 = vmatprep.mubr.bf16.mxu0 0
    %10140 = vmatmul.mubr.bf16.gmra.mxu0 %v9985
    %v10141 = vpop.f32.mrf.mxu0
    %v10142 = vadd.f32 0.0, %v10141
    %v10143 = vpop.f32.mrf.mxu0
    %v10144 = vadd.f32 0.0, %v10143
    %v10145 = vpop.f32.mrf.mxu0
    %v10146 = vadd.f32 0.0, %v10145
    %v10147 = vpop.f32.mrf.mxu0
    %v10148 = vadd.f32 0.0, %v10147
    %10149 = vmatprep.mubr.bf16.mxu0 0
    %10150 = vmatmul.mubr.bf16.gmra.mxu0 %v9988
    %v10151 = vpop.f32.mrf.mxu0
    %v10152 = vadd.f32 0.0, %v10151
    %v10153 = vpop.f32.mrf.mxu0
    %v10154 = vadd.f32 0.0, %v10153
    %v10155 = vpop.f32.mrf.mxu0
    %v10156 = vadd.f32 0.0, %v10155
    %v10157 = vpop.f32.mrf.mxu0
    %v10158 = vadd.f32 0.0, %v10157
    %10159 = vmatprep.mubr.bf16.mxu0 0
    %10160 = vmatmul.mubr.bf16.gmra.mxu0 %v9991
    %v10161 = vpop.f32.mrf.mxu0
    %v10162 = vadd.f32 0.0, %v10161
    %v10163 = vpop.f32.mrf.mxu0
    %v10164 = vadd.f32 0.0, %v10163
    %v10165 = vpop.f32.mrf.mxu0
    %v10166 = vadd.f32 0.0, %v10165
    %v10167 = vpop.f32.mrf.mxu0
    %v10168 = vadd.f32 0.0, %v10167
    %10169 = vmatprep.mubr.bf16.mxu0 0
    %10170 = vmatmul.mubr.bf16.gmra.mxu0 %v9994
    %v10171 = vpop.f32.mrf.mxu0
    %v10172 = vadd.f32 0.0, %v10171
    %v10173 = vpop.f32.mrf.mxu0
    %v10174 = vadd.f32 0.0, %v10173
    %v10175 = vpop.f32.mrf.mxu0
    %v10176 = vadd.f32 0.0, %v10175
    %v10177 = vpop.f32.mrf.mxu0
    %v10178 = vadd.f32 0.0, %v10177
    %10179 = vmatprep.mubr.bf16.mxu0 0
    %10180 = vmatmul.mubr.bf16.gmra.mxu0 %v9997
    %v10181 = vpop.f32.mrf.mxu0
    %v10182 = vadd.f32 0.0, %v10181
    %v10183 = vpop.f32.mrf.mxu0
    %v10184 = vadd.f32 0.0, %v10183
    %v10185 = vpop.f32.mrf.mxu0
    %v10186 = vadd.f32 0.0, %v10185
    %v10187 = vpop.f32.mrf.mxu0
    %v10188 = vadd.f32 0.0, %v10187
    %10189 = vmatprep.mubr.bf16.mxu0 0
    %10190 = vmatmul.mubr.bf16.gmra.mxu0 %v10000
    %v10191 = vpop.f32.mrf.mxu0
    %v10192 = vadd.f32 0.0, %v10191
    %v10193 = vpop.f32.mrf.mxu0
    %v10194 = vadd.f32 0.0, %v10193
    %v10195 = vpop.f32.mrf.mxu0
    %v10196 = vadd.f32 0.0, %v10195
    %v10197 = vpop.f32.mrf.mxu0
    %v10198 = vadd.f32 0.0, %v10197
    %10199 = vmatprep.mubr.bf16.mxu0 0
    %10200 = vmatmul.mubr.bf16.gmra.mxu0 %v10003
    %v10201 = vpop.f32.mrf.mxu0
    %v10202 = vadd.f32 0.0, %v10201
    %v10203 = vpop.f32.mrf.mxu0
    %v10204 = vadd.f32 0.0, %v10203
    %v10205 = vpop.f32.mrf.mxu0
    %v10206 = vadd.f32 0.0, %v10205
    %v10207 = vpop.f32.mrf.mxu0
    %v10208 = vadd.f32 0.0, %v10207
    %10209 = vdwg.mxu0
    %10210 = vmatprep.subr.bf16.mxu0 0
    %10211 = vmatpush1.bf16.msra.mxu0 0
    %10212 = vmatprep.subr.bf16.mxu0 0
    %10213 = vmatpush1.bf16.msra.mxu0 0
    %10214 = vmatprep.subr.bf16.mxu0 0
    %10215 = vmatpush1.bf16.msra.mxu0 0
    %10216 = vmatprep.subr.bf16.mxu0 %v10015
    %10217 = vmatpush1.bf16.msra.mxu0 %v10012
    %10218 = vmatprep.subr.bf16.mxu0 %v9936
    %10219 = vmatpush1.bf16.msra.mxu0 %v9935
    %10220 = vmatprep.subr.bf16.mxu0 %v9932
    %10221 = vmatpush1.bf16.msra.mxu0 %v9931
    %10222 = vmatprep.subr.bf16.mxu0 %v9928
    %10223 = vmatpush1.bf16.msra.mxu0 %v9927
    %10224 = vmatprep.subr.bf16.mxu0 %v9924
    %10225 = vmatpush1.bf16.msra.mxu0 %v9923
    %10226 = vmatprep.subr.bf16.mxu0 0
    %10227 = vmatpush2.bf16.msra.mxu0 0
    %10228 = vmatprep.subr.bf16.mxu0 0
    %10229 = vmatpush2.bf16.msra.mxu0 0
    %10230 = vmatprep.subr.bf16.mxu0 0
    %10231 = vmatpush2.bf16.msra.mxu0 0
    %10232 = vmatprep.subr.bf16.mxu0 0
    %10233 = vmatpush2.bf16.msra.mxu0 0
    %10234 = vmatprep.subr.bf16.mxu0 0
    %10235 = vmatpush2.bf16.msra.mxu0 0
    %10236 = vmatprep.subr.bf16.mxu0 0
    %10237 = vmatpush2.bf16.msra.mxu0 0
    %10238 = vmatprep.subr.bf16.mxu0 0
    %10239 = vmatpush2.bf16.msra.mxu0 0
    %10240 = vmatprep.subr.bf16.mxu0 0
    %10241 = vmatpush2.bf16.msra.mxu0 0
    %10242 = vmatprep.mubr.bf16.mxu0 0
    %10243 = vmatmul.mubr.bf16.gmra.mxu0 %v9958
    %v10244 = vpop.f32.mrf.mxu0
    %v10245 = vadd.f32 0.0, %v10244
    %v10246 = vpop.f32.mrf.mxu0
    %v10247 = vadd.f32 0.0, %v10246
    %v10248 = vpop.f32.mrf.mxu0
    %v10249 = vadd.f32 0.0, %v10248
    %v10250 = vpop.f32.mrf.mxu0
    %v10251 = vadd.f32 0.0, %v10250
    %10252 = vmatprep.mubr.bf16.mxu0 0
    %10253 = vmatmul.mubr.bf16.gmra.mxu0 %v9961
    %v10254 = vpop.f32.mrf.mxu0
    %v10255 = vadd.f32 0.0, %v10254
    %v10256 = vpop.f32.mrf.mxu0
    %v10257 = vadd.f32 0.0, %v10256
    %v10258 = vpop.f32.mrf.mxu0
    %v10259 = vadd.f32 0.0, %v10258
    %v10260 = vpop.f32.mrf.mxu0
    %v10261 = vadd.f32 0.0, %v10260
    %10262 = vmatprep.mubr.bf16.mxu0 0
    %10263 = vmatmul.mubr.bf16.gmra.mxu0 %v9964
    %v10264 = vpop.f32.mrf.mxu0
    %v10265 = vadd.f32 0.0, %v10264
    %v10266 = vpop.f32.mrf.mxu0
    %v10267 = vadd.f32 0.0, %v10266
    %v10268 = vpop.f32.mrf.mxu0
    %v10269 = vadd.f32 0.0, %v10268
    %v10270 = vpop.f32.mrf.mxu0
    %v10271 = vadd.f32 0.0, %v10270
    %10272 = vmatprep.mubr.bf16.mxu0 0
    %10273 = vmatmul.mubr.bf16.gmra.mxu0 %v9967
    %v10274 = vpop.f32.mrf.mxu0
    %v10275 = vadd.f32 0.0, %v10274
    %v10276 = vpop.f32.mrf.mxu0
    %v10277 = vadd.f32 0.0, %v10276
    %v10278 = vpop.f32.mrf.mxu0
    %v10279 = vadd.f32 0.0, %v10278
    %v10280 = vpop.f32.mrf.mxu0
    %v10281 = vadd.f32 0.0, %v10280
    %10282 = vmatprep.mubr.bf16.mxu0 0
    %10283 = vmatmul.mubr.bf16.gmra.mxu0 %v9970
    %v10284 = vpop.f32.mrf.mxu0
    %v10285 = vadd.f32 0.0, %v10284
    %v10286 = vpop.f32.mrf.mxu0
    %v10287 = vadd.f32 0.0, %v10286
    %v10288 = vpop.f32.mrf.mxu0
    %v10289 = vadd.f32 0.0, %v10288
    %v10290 = vpop.f32.mrf.mxu0
    %v10291 = vadd.f32 0.0, %v10290
    %10292 = vmatprep.mubr.bf16.mxu0 0
    %10293 = vmatmul.mubr.bf16.gmra.mxu0 %v9973
    %v10294 = vpop.f32.mrf.mxu0
    %v10295 = vadd.f32 0.0, %v10294
    %v10296 = vpop.f32.mrf.mxu0
    %v10297 = vadd.f32 0.0, %v10296
    %v10298 = vpop.f32.mrf.mxu0
    %v10299 = vadd.f32 0.0, %v10298
    %v10300 = vpop.f32.mrf.mxu0
    %v10301 = vadd.f32 0.0, %v10300
    %10302 = vmatprep.mubr.bf16.mxu0 0
    %10303 = vmatmul.mubr.bf16.gmra.mxu0 %v9976
    %v10304 = vpop.f32.mrf.mxu0
    %v10305 = vadd.f32 0.0, %v10304
    %v10306 = vpop.f32.mrf.mxu0
    %v10307 = vadd.f32 0.0, %v10306
    %v10308 = vpop.f32.mrf.mxu0
    %v10309 = vadd.f32 0.0, %v10308
    %v10310 = vpop.f32.mrf.mxu0
    %v10311 = vadd.f32 0.0, %v10310
    %10312 = vmatprep.mubr.bf16.mxu0 0
    %10313 = vmatmul.mubr.bf16.gmra.mxu0 %v9979
    %v10314 = vpop.f32.mrf.mxu0
    %v10315 = vadd.f32 0.0, %v10314
    %v10316 = vpop.f32.mrf.mxu0
    %v10317 = vadd.f32 0.0, %v10316
    %v10318 = vpop.f32.mrf.mxu0
    %v10319 = vadd.f32 0.0, %v10318
    %v10320 = vpop.f32.mrf.mxu0
    %v10321 = vadd.f32 0.0, %v10320
    %10322 = vmatprep.mubr.bf16.mxu0 0
    %10323 = vmatmul.mubr.bf16.gmra.mxu0 %v9982
    %v10324 = vpop.f32.mrf.mxu0
    %v10325 = vadd.f32 0.0, %v10324
    %v10326 = vpop.f32.mrf.mxu0
    %v10327 = vadd.f32 0.0, %v10326
    %v10328 = vpop.f32.mrf.mxu0
    %v10329 = vadd.f32 0.0, %v10328
    %v10330 = vpop.f32.mrf.mxu0
    %v10331 = vadd.f32 0.0, %v10330
    %10332 = vmatprep.mubr.bf16.mxu0 0
    %10333 = vmatmul.mubr.bf16.gmra.mxu0 %v9985
    %v10334 = vpop.f32.mrf.mxu0
    %v10335 = vadd.f32 0.0, %v10334
    %v10336 = vpop.f32.mrf.mxu0
    %v10337 = vadd.f32 0.0, %v10336
    %v10338 = vpop.f32.mrf.mxu0
    %v10339 = vadd.f32 0.0, %v10338
    %v10340 = vpop.f32.mrf.mxu0
    %v10341 = vadd.f32 0.0, %v10340
    %10342 = vmatprep.mubr.bf16.mxu0 0
    %10343 = vmatmul.mubr.bf16.gmra.mxu0 %v9988
    %v10344 = vpop.f32.mrf.mxu0
    %v10345 = vadd.f32 0.0, %v10344
    %v10346 = vpop.f32.mrf.mxu0
    %v10347 = vadd.f32 0.0, %v10346
    %v10348 = vpop.f32.mrf.mxu0
    %v10349 = vadd.f32 0.0, %v10348
    %v10350 = vpop.f32.mrf.mxu0
    %v10351 = vadd.f32 0.0, %v10350
    %10352 = vmatprep.mubr.bf16.mxu0 0
    %10353 = vmatmul.mubr.bf16.gmra.mxu0 %v9991
    %v10354 = vpop.f32.mrf.mxu0
    %v10355 = vadd.f32 0.0, %v10354
    %v10356 = vpop.f32.mrf.mxu0
    %v10357 = vadd.f32 0.0, %v10356
    %v10358 = vpop.f32.mrf.mxu0
    %v10359 = vadd.f32 0.0, %v10358
    %v10360 = vpop.f32.mrf.mxu0
    %v10361 = vadd.f32 0.0, %v10360
    %10362 = vmatprep.mubr.bf16.mxu0 0
    %10363 = vmatmul.mubr.bf16.gmra.mxu0 %v9994
    %v10364 = vpop.f32.mrf.mxu0
    %v10365 = vadd.f32 0.0, %v10364
    %v10366 = vpop.f32.mrf.mxu0
    %v10367 = vadd.f32 0.0, %v10366
    %v10368 = vpop.f32.mrf.mxu0
    %v10369 = vadd.f32 0.0, %v10368
    %v10370 = vpop.f32.mrf.mxu0
    %v10371 = vadd.f32 0.0, %v10370
    %10372 = vmatprep.mubr.bf16.mxu0 0
    %10373 = vmatmul.mubr.bf16.gmra.mxu0 %v9997
    %v10374 = vpop.f32.mrf.mxu0
    %v10375 = vadd.f32 0.0, %v10374
    %v10376 = vpop.f32.mrf.mxu0
    %v10377 = vadd.f32 0.0, %v10376
    %v10378 = vpop.f32.mrf.mxu0
    %v10379 = vadd.f32 0.0, %v10378
    %v10380 = vpop.f32.mrf.mxu0
    %v10381 = vadd.f32 0.0, %v10380
    %10382 = vmatprep.mubr.bf16.mxu0 0
    %10383 = vmatmul.mubr.bf16.gmra.mxu0 %v10000
    %v10384 = vpop.f32.mrf.mxu0
    %v10385 = vadd.f32 0.0, %v10384
    %v10386 = vpop.f32.mrf.mxu0
    %v10387 = vadd.f32 0.0, %v10386
    %v10388 = vpop.f32.mrf.mxu0
    %v10389 = vadd.f32 0.0, %v10388
    %v10390 = vpop.f32.mrf.mxu0
    %v10391 = vadd.f32 0.0, %v10390
    %10392 = vmatprep.mubr.bf16.mxu0 0
    %10393 = vmatmul.mubr.bf16.gmra.mxu0 %v10003
    %v10394 = vpop.f32.mrf.mxu0
    %v10395 = vadd.f32 0.0, %v10394
    %v10396 = vpop.f32.mrf.mxu0
    %v10397 = vadd.f32 0.0, %v10396
    %v10398 = vpop.f32.mrf.mxu0
    %v10399 = vadd.f32 0.0, %v10398
    %v10400 = vpop.f32.mrf.mxu0
    %v10401 = vadd.f32 0.0, %v10400
    %10402 = vdwg.mxu0
    %v10403 = vld [vmem:[#allocation2] sm:$0xff]
    %v10404 = vld [vmem:[#allocation2 + $0x8] sm:$0xff]
    %v10405 = vld [vmem:[#allocation2 + $0x10] sm:$0xff]
    %v10406 = vld [vmem:[#allocation2 + $0x18] sm:$0xff]
    %v10407 = vld [vmem:[#allocation2 + $0x20] sm:$0xff]
    %v10408 = vld [vmem:[#allocation2 + $0x28] sm:$0xff]
    %v10409 = vld [vmem:[#allocation2 + $0x30] sm:$0xff]
    %v10410 = vld [vmem:[#allocation2 + $0x38] sm:$0xff]
    %v10411 = vld [vmem:[#allocation2 + $0x40] sm:$0xff]
    %v10412 = vld [vmem:[#allocation2 + $0x48] sm:$0xff]
    %v10413 = vld [vmem:[#allocation2 + $0x50] sm:$0xff]
    %v10414 = vld [vmem:[#allocation2 + $0x58] sm:$0xff]
    %v10415 = vld [vmem:[#allocation2 + $0x60] sm:$0xff]
    %v10416 = vld [vmem:[#allocation2 + $0x68] sm:$0xff]
    %v10417 = vld [vmem:[#allocation2 + $0x70] sm:$0xff]
    %v10418 = vld [vmem:[#allocation2 + $0x78] sm:$0xff]
    %v10419 = vld [vmem:[#allocation2 + $0x80] sm:$0xff]
    %v10420 = vld [vmem:[#allocation2 + $0x88] sm:$0xff]
    %v10421 = vld [vmem:[#allocation2 + $0x90] sm:$0xff]
    %v10422 = vld [vmem:[#allocation2 + $0x98] sm:$0xff]
    %v10423 = vld [vmem:[#allocation2 + $0xa0] sm:$0xff]
    %v10424 = vld [vmem:[#allocation2 + $0xa8] sm:$0xff]
    %v10425 = vld [vmem:[#allocation2 + $0xb0] sm:$0xff]
    %v10426 = vld [vmem:[#allocation2 + $0xb8] sm:$0xff]
    %v10427 = vld [vmem:[#allocation2 + $0xc0] sm:$0xff]
    %v10428 = vld [vmem:[#allocation2 + $0xc8] sm:$0xff]
    %v10429 = vld [vmem:[#allocation2 + $0xd0] sm:$0xff]
    %v10430 = vld [vmem:[#allocation2 + $0xd8] sm:$0xff]
    %v10431 = vld [vmem:[#allocation2 + $0xe0] sm:$0xff]
    %v10432 = vld [vmem:[#allocation2 + $0xe8] sm:$0xff]
    %v10433 = vld [vmem:[#allocation2 + $0xf0] sm:$0xff]
    %v10434 = vld [vmem:[#allocation2 + $0xf8] sm:$0xff]
    %v10435 = vld [vmem:[#allocation2 + $0x100] sm:$0xff]
    %v10436 = vld [vmem:[#allocation2 + $0x108] sm:$0xff]
    %v10437 = vld [vmem:[#allocation2 + $0x110] sm:$0xff]
    %v10438 = vld [vmem:[#allocation2 + $0x118] sm:$0xff]
    %v10439 = vld [vmem:[#allocation2 + $0x120] sm:$0xff]
    %v10440 = vld [vmem:[#allocation2 + $0x128] sm:$0xff]
    %v10441 = vld [vmem:[#allocation2 + $0x130] sm:$0xff]
    %v10442 = vld [vmem:[#allocation2 + $0x138] sm:$0xff]
    %v10443 = vld [vmem:[#allocation2 + $0x140] sm:$0xff]
    %v10444 = vld [vmem:[#allocation2 + $0x148] sm:$0xff]
    %v10445 = vld [vmem:[#allocation2 + $0x150] sm:$0xff]
    %v10446 = vld [vmem:[#allocation2 + $0x158] sm:$0xff]
    %v10447 = vld [vmem:[#allocation2 + $0x160] sm:$0xff]
    %v10448 = vld [vmem:[#allocation2 + $0x168] sm:$0xff]
    %v10449 = vld [vmem:[#allocation2 + $0x170] sm:$0xff]
    %v10450 = vld [vmem:[#allocation2 + $0x178] sm:$0xff]
    %v10451 = vld [vmem:[#allocation2 + $0x180] sm:$0xff]
    %v10452 = vld [vmem:[#allocation2 + $0x188] sm:$0xff]
    %v10453 = vld [vmem:[#allocation2 + $0x190] sm:$0xff]
    %v10454 = vld [vmem:[#allocation2 + $0x198] sm:$0xff]
    %v10455 = vld [vmem:[#allocation2 + $0x1a0] sm:$0xff]
    %v10456 = vld [vmem:[#allocation2 + $0x1a8] sm:$0xff]
    %v10457 = vld [vmem:[#allocation2 + $0x1b0] sm:$0xff]
    %v10458 = vld [vmem:[#allocation2 + $0x1b8] sm:$0xff]
    %v10459 = vld [vmem:[#allocation2 + $0x1c0] sm:$0xff]
    %v10460 = vld [vmem:[#allocation2 + $0x1c8] sm:$0xff]
    %v10461 = vld [vmem:[#allocation2 + $0x1d0] sm:$0xff]
    %v10462 = vld [vmem:[#allocation2 + $0x1d8] sm:$0xff]
    %v10463 = vld [vmem:[#allocation2 + $0x1e0] sm:$0xff]
    %v10464 = vld [vmem:[#allocation2 + $0x1e8] sm:$0xff]
    %v10465 = vld [vmem:[#allocation2 + $0x1f0] sm:$0xff]
    %v10466 = vld [vmem:[#allocation2 + $0x1f8] sm:$0xff]
    %v10467 = vld [vmem:[#allocation2 + $0x200] sm:$0xff]
    %v10468 = vld [vmem:[#allocation2 + $0x208] sm:$0xff]
    %v10469 = vld [vmem:[#allocation2 + $0x210] sm:$0xff]
    %v10470 = vld [vmem:[#allocation2 + $0x218] sm:$0xff]
    %v10471 = vld [vmem:[#allocation2 + $0x220] sm:$0xff]
    %v10472 = vld [vmem:[#allocation2 + $0x228] sm:$0xff]
    %v10473 = vld [vmem:[#allocation2 + $0x230] sm:$0xff]
    %v10474 = vld [vmem:[#allocation2 + $0x238] sm:$0xff]
    %v10475 = vld [vmem:[#allocation2 + $0x240] sm:$0xff]
    %v10476 = vld [vmem:[#allocation2 + $0x248] sm:$0xff]
    %v10477 = vld [vmem:[#allocation2 + $0x250] sm:$0xff]
    %v10478 = vld [vmem:[#allocation2 + $0x258] sm:$0xff]
    %v10479 = vld [vmem:[#allocation2 + $0x260] sm:$0xff]
    %v10480 = vld [vmem:[#allocation2 + $0x268] sm:$0xff]
    %v10481 = vld [vmem:[#allocation2 + $0x270] sm:$0xff]
    %v10482 = vld [vmem:[#allocation2 + $0x278] sm:$0xff]
    %v10483 = vld [vmem:[#allocation2 + $0x280] sm:$0xff]
    %v10484 = vld [vmem:[#allocation2 + $0x288] sm:$0xff]
    %v10485 = vld [vmem:[#allocation2 + $0x290] sm:$0xff]
    %v10486 = vld [vmem:[#allocation2 + $0x298] sm:$0xff]
    %v10487 = vld [vmem:[#allocation2 + $0x2a0] sm:$0xff]
    %v10488 = vld [vmem:[#allocation2 + $0x2a8] sm:$0xff]
    %v10489 = vld [vmem:[#allocation2 + $0x2b0] sm:$0xff]
    %v10490 = vld [vmem:[#allocation2 + $0x2b8] sm:$0xff]
    %v10491 = vld [vmem:[#allocation2 + $0x2c0] sm:$0xff]
    %v10492 = vld [vmem:[#allocation2 + $0x2c8] sm:$0xff]
    %v10493 = vld [vmem:[#allocation2 + $0x2d0] sm:$0xff]
    %v10494 = vld [vmem:[#allocation2 + $0x2d8] sm:$0xff]
    %v10495 = vld [vmem:[#allocation2 + $0x2e0] sm:$0xff]
    %v10496 = vld [vmem:[#allocation2 + $0x2e8] sm:$0xff]
    %v10497 = vld [vmem:[#allocation2 + $0x2f0] sm:$0xff]
    %v10498 = vld [vmem:[#allocation2 + $0x2f8] sm:$0xff]
    %v10499 = vld [vmem:[#allocation2 + $0x300] sm:$0xff]
    %v10500 = vld [vmem:[#allocation2 + $0x308] sm:$0xff]
    %v10501 = vld [vmem:[#allocation2 + $0x310] sm:$0xff]
    %v10502 = vld [vmem:[#allocation2 + $0x318] sm:$0xff]
    %v10503 = vld [vmem:[#allocation2 + $0x320] sm:$0xff]
    %v10504 = vld [vmem:[#allocation2 + $0x328] sm:$0xff]
    %v10505 = vld [vmem:[#allocation2 + $0x330] sm:$0xff]
    %v10506 = vld [vmem:[#allocation2 + $0x338] sm:$0xff]
    %v10507 = vld [vmem:[#allocation2 + $0x340] sm:$0xff]
    %v10508 = vld [vmem:[#allocation2 + $0x348] sm:$0xff]
    %v10509 = vld [vmem:[#allocation2 + $0x350] sm:$0xff]
    %v10510 = vld [vmem:[#allocation2 + $0x358] sm:$0xff]
    %v10511 = vld [vmem:[#allocation2 + $0x360] sm:$0xff]
    %v10512 = vld [vmem:[#allocation2 + $0x368] sm:$0xff]
    %v10513 = vld [vmem:[#allocation2 + $0x370] sm:$0xff]
    %v10514 = vld [vmem:[#allocation2 + $0x378] sm:$0xff]
    %v10515 = vld [vmem:[#allocation2 + $0x380] sm:$0xff]
    %v10516 = vld [vmem:[#allocation2 + $0x388] sm:$0xff]
    %v10517 = vld [vmem:[#allocation2 + $0x390] sm:$0xff]
    %v10518 = vld [vmem:[#allocation2 + $0x398] sm:$0xff]
    %v10519 = vld [vmem:[#allocation2 + $0x3a0] sm:$0xff]
    %v10520 = vld [vmem:[#allocation2 + $0x3a8] sm:$0xff]
    %v10521 = vld [vmem:[#allocation2 + $0x3b0] sm:$0xff]
    %v10522 = vld [vmem:[#allocation2 + $0x3b8] sm:$0xff]
    %v10523 = vld [vmem:[#allocation2 + $0x3c0] sm:$0xff]
    %v10524 = vld [vmem:[#allocation2 + $0x3c8] sm:$0xff]
    %v10525 = vld [vmem:[#allocation2 + $0x3d0] sm:$0xff]
    %v10526 = vld [vmem:[#allocation2 + $0x3d8] sm:$0xff]
    %v10527 = vld [vmem:[#allocation2 + $0x3e0] sm:$0xff]
    %v10528 = vld [vmem:[#allocation2 + $0x3e8] sm:$0xff]
    %v10529 = vld [vmem:[#allocation2 + $0x3f0] sm:$0xff]
    %v10530 = vld [vmem:[#allocation2 + $0x3f8] sm:$0xff]
    %v10531 = vadd.f32 %v10403, %v10052
    %v10532 = vadd.f32 %v10404, %v10054
    %v10533 = vadd.f32 %v10405, %v10245
    %v10534 = vadd.f32 %v10406, %v10247
    %v10535 = vadd.f32 %v10407, %v10056
    %v10536 = vadd.f32 %v10408, %v10058
    %v10537 = vadd.f32 %v10409, %v10249
    %v10538 = vadd.f32 %v10410, %v10251
    %v10539 = vadd.f32 %v10411, %v10062
    %v10540 = vadd.f32 %v10412, %v10064
    %v10541 = vadd.f32 %v10413, %v10255
    %v10542 = vadd.f32 %v10414, %v10257
    %v10543 = vadd.f32 %v10415, %v10066
    %v10544 = vadd.f32 %v10416, %v10068
    %v10545 = vadd.f32 %v10417, %v10259
    %v10546 = vadd.f32 %v10418, %v10261
    %v10547 = vadd.f32 %v10419, %v10072
    %v10548 = vadd.f32 %v10420, %v10074
    %v10549 = vadd.f32 %v10421, %v10265
    %v10550 = vadd.f32 %v10422, %v10267
    %v10551 = vadd.f32 %v10423, %v10076
    %v10552 = vadd.f32 %v10424, %v10078
    %v10553 = vadd.f32 %v10425, %v10269
    %v10554 = vadd.f32 %v10426, %v10271
    %v10555 = vadd.f32 %v10427, %v10082
    %v10556 = vadd.f32 %v10428, %v10084
    %v10557 = vadd.f32 %v10429, %v10275
    %v10558 = vadd.f32 %v10430, %v10277
    %v10559 = vadd.f32 %v10431, %v10086
    %v10560 = vadd.f32 %v10432, %v10088
    %v10561 = vadd.f32 %v10433, %v10279
    %v10562 = vadd.f32 %v10434, %v10281
    %v10563 = vadd.f32 %v10435, %v10092
    %v10564 = vadd.f32 %v10436, %v10094
    %v10565 = vadd.f32 %v10437, %v10285
    %v10566 = vadd.f32 %v10438, %v10287
    %v10567 = vadd.f32 %v10439, %v10096
    %v10568 = vadd.f32 %v10440, %v10098
    %v10569 = vadd.f32 %v10441, %v10289
    %v10570 = vadd.f32 %v10442, %v10291
    %v10571 = vadd.f32 %v10443, %v10102
    %v10572 = vadd.f32 %v10444, %v10104
    %v10573 = vadd.f32 %v10445, %v10295
    %v10574 = vadd.f32 %v10446, %v10297
    %v10575 = vadd.f32 %v10447, %v10106
    %v10576 = vadd.f32 %v10448, %v10108
    %v10577 = vadd.f32 %v10449, %v10299
    %v10578 = vadd.f32 %v10450, %v10301
    %v10579 = vadd.f32 %v10451, %v10112
    %v10580 = vadd.f32 %v10452, %v10114
    %v10581 = vadd.f32 %v10453, %v10305
    %v10582 = vadd.f32 %v10454, %v10307
    %v10583 = vadd.f32 %v10455, %v10116
    %v10584 = vadd.f32 %v10456, %v10118
    %v10585 = vadd.f32 %v10457, %v10309
    %v10586 = vadd.f32 %v10458, %v10311
    %v10587 = vadd.f32 %v10459, %v10122
    %v10588 = vadd.f32 %v10460, %v10124
    %v10589 = vadd.f32 %v10461, %v10315
    %v10590 = vadd.f32 %v10462, %v10317
    %v10591 = vadd.f32 %v10463, %v10126
    %v10592 = vadd.f32 %v10464, %v10128
    %v10593 = vadd.f32 %v10465, %v10319
    %v10594 = vadd.f32 %v10466, %v10321
    %v10595 = vadd.f32 %v10467, %v10132
    %v10596 = vadd.f32 %v10468, %v10134
    %v10597 = vadd.f32 %v10469, %v10325
    %v10598 = vadd.f32 %v10470, %v10327
    %v10599 = vadd.f32 %v10471, %v10136
    %v10600 = vadd.f32 %v10472, %v10138
    %v10601 = vadd.f32 %v10473, %v10329
    %v10602 = vadd.f32 %v10474, %v10331
    %v10603 = vadd.f32 %v10475, %v10142
    %v10604 = vadd.f32 %v10476, %v10144
    %v10605 = vadd.f32 %v10477, %v10335
    %v10606 = vadd.f32 %v10478, %v10337
    %v10607 = vadd.f32 %v10479, %v10146
    %v10608 = vadd.f32 %v10480, %v10148
    %v10609 = vadd.f32 %v10481, %v10339
    %v10610 = vadd.f32 %v10482, %v10341
    %v10611 = vadd.f32 %v10483, %v10152
    %v10612 = vadd.f32 %v10484, %v10154
    %v10613 = vadd.f32 %v10485, %v10345
    %v10614 = vadd.f32 %v10486, %v10347
    %v10615 = vadd.f32 %v10487, %v10156
    %v10616 = vadd.f32 %v10488, %v10158
    %v10617 = vadd.f32 %v10489, %v10349
    %v10618 = vadd.f32 %v10490, %v10351
    %v10619 = vadd.f32 %v10491, %v10162
    %v10620 = vadd.f32 %v10492, %v10164
    %v10621 = vadd.f32 %v10493, %v10355
    %v10622 = vadd.f32 %v10494, %v10357
    %v10623 = vadd.f32 %v10495, %v10166
    %v10624 = vadd.f32 %v10496, %v10168
    %v10625 = vadd.f32 %v10497, %v10359
    %v10626 = vadd.f32 %v10498, %v10361
    %v10627 = vadd.f32 %v10499, %v10172
    %v10628 = vadd.f32 %v10500, %v10174
    %v10629 = vadd.f32 %v10501, %v10365
    %v10630 = vadd.f32 %v10502, %v10367
    %v10631 = vadd.f32 %v10503, %v10176
    %v10632 = vadd.f32 %v10504, %v10178
    %v10633 = vadd.f32 %v10505, %v10369
    %v10634 = vadd.f32 %v10506, %v10371
    %v10635 = vadd.f32 %v10507, %v10182
    %v10636 = vadd.f32 %v10508, %v10184
    %v10637 = vadd.f32 %v10509, %v10375
    %v10638 = vadd.f32 %v10510, %v10377
    %v10639 = vadd.f32 %v10511, %v10186
    %v10640 = vadd.f32 %v10512, %v10188
    %v10641 = vadd.f32 %v10513, %v10379
    %v10642 = vadd.f32 %v10514, %v10381
    %v10643 = vadd.f32 %v10515, %v10192
    %v10644 = vadd.f32 %v10516, %v10194
    %v10645 = vadd.f32 %v10517, %v10385
    %v10646 = vadd.f32 %v10518, %v10387
    %v10647 = vadd.f32 %v10519, %v10196
    %v10648 = vadd.f32 %v10520, %v10198
    %v10649 = vadd.f32 %v10521, %v10389
    %v10650 = vadd.f32 %v10522, %v10391
    %v10651 = vadd.f32 %v10523, %v10202
    %v10652 = vadd.f32 %v10524, %v10204
    %v10653 = vadd.f32 %v10525, %v10395
    %v10654 = vadd.f32 %v10526, %v10397
    %v10655 = vadd.f32 %v10527, %v10206
    %v10656 = vadd.f32 %v10528, %v10208
    %v10657 = vadd.f32 %v10529, %v10399
    %v10658 = vadd.f32 %v10530, %v10401
    %10659 = vst [vmem:[#allocation2] sm:$0xff] %v10531
    %10660 = vst [vmem:[#allocation2 + $0x8] sm:$0xff] %v10532
    %10661 = vst [vmem:[#allocation2 + $0x10] sm:$0xff] %v10533
    %10662 = vst [vmem:[#allocation2 + $0x18] sm:$0xff] %v10534
    %10663 = vst [vmem:[#allocation2 + $0x20] sm:$0xff] %v10535
    %10664 = vst [vmem:[#allocation2 + $0x28] sm:$0xff] %v10536
    %10665 = vst [vmem:[#allocation2 + $0x30] sm:$0xff] %v10537
    %10666 = vst [vmem:[#allocation2 + $0x38] sm:$0xff] %v10538
    %10667 = vst [vmem:[#allocation2 + $0x40] sm:$0xff] %v10539
    %10668 = vst [vmem:[#allocation2 + $0x48] sm:$0xff] %v10540
    %10669 = vst [vmem:[#allocation2 + $0x50] sm:$0xff] %v10541
    %10670 = vst [vmem:[#allocation2 + $0x58] sm:$0xff] %v10542
    %10671 = vst [vmem:[#allocation2 + $0x60] sm:$0xff] %v10543
    %10672 = vst [vmem:[#allocation2 + $0x68] sm:$0xff] %v10544
    %10673 = vst [vmem:[#allocation2 + $0x70] sm:$0xff] %v10545
    %10674 = vst [vmem:[#allocation2 + $0x78] sm:$0xff] %v10546
    %10675 = vst [vmem:[#allocation2 + $0x80] sm:$0xff] %v10547
    %10676 = vst [vmem:[#allocation2 + $0x88] sm:$0xff] %v10548
    %10677 = vst [vmem:[#allocation2 + $0x90] sm:$0xff] %v10549
    %10678 = vst [vmem:[#allocation2 + $0x98] sm:$0xff] %v10550
    %10679 = vst [vmem:[#allocation2 + $0xa0] sm:$0xff] %v10551
    %10680 = vst [vmem:[#allocation2 + $0xa8] sm:$0xff] %v10552
    %10681 = vst [vmem:[#allocation2 + $0xb0] sm:$0xff] %v10553
    %10682 = vst [vmem:[#allocation2 + $0xb8] sm:$0xff] %v10554
    %10683 = vst [vmem:[#allocation2 + $0xc0] sm:$0xff] %v10555
    %10684 = vst [vmem:[#allocation2 + $0xc8] sm:$0xff] %v10556
    %10685 = vst [vmem:[#allocation2 + $0xd0] sm:$0xff] %v10557
    %10686 = vst [vmem:[#allocation2 + $0xd8] sm:$0xff] %v10558
    %10687 = vst [vmem:[#allocation2 + $0xe0] sm:$0xff] %v10559
    %10688 = vst [vmem:[#allocation2 + $0xe8] sm:$0xff] %v10560
    %10689 = vst [vmem:[#allocation2 + $0xf0] sm:$0xff] %v10561
    %10690 = vst [vmem:[#allocation2 + $0xf8] sm:$0xff] %v10562
    %10691 = vst [vmem:[#allocation2 + $0x100] sm:$0xff] %v10563
    %10692 = vst [vmem:[#allocation2 + $0x108] sm:$0xff] %v10564
    %10693 = vst [vmem:[#allocation2 + $0x110] sm:$0xff] %v10565
    %10694 = vst [vmem:[#allocation2 + $0x118] sm:$0xff] %v10566
    %10695 = vst [vmem:[#allocation2 + $0x120] sm:$0xff] %v10567
    %10696 = vst [vmem:[#allocation2 + $0x128] sm:$0xff] %v10568
    %10697 = vst [vmem:[#allocation2 + $0x130] sm:$0xff] %v10569
    %10698 = vst [vmem:[#allocation2 + $0x138] sm:$0xff] %v10570
    %10699 = vst [vmem:[#allocation2 + $0x140] sm:$0xff] %v10571
    %10700 = vst [vmem:[#allocation2 + $0x148] sm:$0xff] %v10572
    %10701 = vst [vmem:[#allocation2 + $0x150] sm:$0xff] %v10573
    %10702 = vst [vmem:[#allocation2 + $0x158] sm:$0xff] %v10574
    %10703 = vst [vmem:[#allocation2 + $0x160] sm:$0xff] %v10575
    %10704 = vst [vmem:[#allocation2 + $0x168] sm:$0xff] %v10576
    %10705 = vst [vmem:[#allocation2 + $0x170] sm:$0xff] %v10577
    %10706 = vst [vmem:[#allocation2 + $0x178] sm:$0xff] %v10578
    %10707 = vst [vmem:[#allocation2 + $0x180] sm:$0xff] %v10579
    %10708 = vst [vmem:[#allocation2 + $0x188] sm:$0xff] %v10580
    %10709 = vst [vmem:[#allocation2 + $0x190] sm:$0xff] %v10581
    %10710 = vst [vmem:[#allocation2 + $0x198] sm:$0xff] %v10582
    %10711 = vst [vmem:[#allocation2 + $0x1a0] sm:$0xff] %v10583
    %10712 = vst [vmem:[#allocation2 + $0x1a8] sm:$0xff] %v10584
    %10713 = vst [vmem:[#allocation2 + $0x1b0] sm:$0xff] %v10585
    %10714 = vst [vmem:[#allocation2 + $0x1b8] sm:$0xff] %v10586
    %10715 = vst [vmem:[#allocation2 + $0x1c0] sm:$0xff] %v10587
    %10716 = vst [vmem:[#allocation2 + $0x1c8] sm:$0xff] %v10588
    %10717 = vst [vmem:[#allocation2 + $0x1d0] sm:$0xff] %v10589
    %10718 = vst [vmem:[#allocation2 + $0x1d8] sm:$0xff] %v10590
    %10719 = vst [vmem:[#allocation2 + $0x1e0] sm:$0xff] %v10591
    %10720 = vst [vmem:[#allocation2 + $0x1e8] sm:$0xff] %v10592
    %10721 = vst [vmem:[#allocation2 + $0x1f0] sm:$0xff] %v10593
    %10722 = vst [vmem:[#allocation2 + $0x1f8] sm:$0xff] %v10594
    %10723 = vst [vmem:[#allocation2 + $0x200] sm:$0xff] %v10595
    %10724 = vst [vmem:[#allocation2 + $0x208] sm:$0xff] %v10596
    %10725 = vst [vmem:[#allocation2 + $0x210] sm:$0xff] %v10597
    %10726 = vst [vmem:[#allocation2 + $0x218] sm:$0xff] %v10598
    %10727 = vst [vmem:[#allocation2 + $0x220] sm:$0xff] %v10599
    %10728 = vst [vmem:[#allocation2 + $0x228] sm:$0xff] %v10600
    %10729 = vst [vmem:[#allocation2 + $0x230] sm:$0xff] %v10601
    %10730 = vst [vmem:[#allocation2 + $0x238] sm:$0xff] %v10602
    %10731 = vst [vmem:[#allocation2 + $0x240] sm:$0xff] %v10603
    %10732 = vst [vmem:[#allocation2 + $0x248] sm:$0xff] %v10604
    %10733 = vst [vmem:[#allocation2 + $0x250] sm:$0xff] %v10605
    %10734 = vst [vmem:[#allocation2 + $0x258] sm:$0xff] %v10606
    %10735 = vst [vmem:[#allocation2 + $0x260] sm:$0xff] %v10607
    %10736 = vst [vmem:[#allocation2 + $0x268] sm:$0xff] %v10608
    %10737 = vst [vmem:[#allocation2 + $0x270] sm:$0xff] %v10609
    %10738 = vst [vmem:[#allocation2 + $0x278] sm:$0xff] %v10610
    %10739 = vst [vmem:[#allocation2 + $0x280] sm:$0xff] %v10611
    %10740 = vst [vmem:[#allocation2 + $0x288] sm:$0xff] %v10612
    %10741 = vst [vmem:[#allocation2 + $0x290] sm:$0xff] %v10613
    %10742 = vst [vmem:[#allocation2 + $0x298] sm:$0xff] %v10614
    %10743 = vst [vmem:[#allocation2 + $0x2a0] sm:$0xff] %v10615
    %10744 = vst [vmem:[#allocation2 + $0x2a8] sm:$0xff] %v10616
    %10745 = vst [vmem:[#allocation2 + $0x2b0] sm:$0xff] %v10617
    %10746 = vst [vmem:[#allocation2 + $0x2b8] sm:$0xff] %v10618
    %10747 = vst [vmem:[#allocation2 + $0x2c0] sm:$0xff] %v10619
    %10748 = vst [vmem:[#allocation2 + $0x2c8] sm:$0xff] %v10620
    %10749 = vst [vmem:[#allocation2 + $0x2d0] sm:$0xff] %v10621
    %10750 = vst [vmem:[#allocation2 + $0x2d8] sm:$0xff] %v10622
    %10751 = vst [vmem:[#allocation2 + $0x2e0] sm:$0xff] %v10623
    %10752 = vst [vmem:[#allocation2 + $0x2e8] sm:$0xff] %v10624
    %10753 = vst [vmem:[#allocation2 + $0x2f0] sm:$0xff] %v10625
    %10754 = vst [vmem:[#allocation2 + $0x2f8] sm:$0xff] %v10626
    %10755 = vst [vmem:[#allocation2 + $0x300] sm:$0xff] %v10627
    %10756 = vst [vmem:[#allocation2 + $0x308] sm:$0xff] %v10628
    %10757 = vst [vmem:[#allocation2 + $0x310] sm:$0xff] %v10629
    %10758 = vst [vmem:[#allocation2 + $0x318] sm:$0xff] %v10630
    %10759 = vst [vmem:[#allocation2 + $0x320] sm:$0xff] %v10631
    %10760 = vst [vmem:[#allocation2 + $0x328] sm:$0xff] %v10632
    %10761 = vst [vmem:[#allocation2 + $0x330] sm:$0xff] %v10633
    %10762 = vst [vmem:[#allocation2 + $0x338] sm:$0xff] %v10634
    %10763 = vst [vmem:[#allocation2 + $0x340] sm:$0xff] %v10635
    %10764 = vst [vmem:[#allocation2 + $0x348] sm:$0xff] %v10636
    %10765 = vst [vmem:[#allocation2 + $0x350] sm:$0xff] %v10637
    %10766 = vst [vmem:[#allocation2 + $0x358] sm:$0xff] %v10638
    %10767 = vst [vmem:[#allocation2 + $0x360] sm:$0xff] %v10639
    %10768 = vst [vmem:[#allocation2 + $0x368] sm:$0xff] %v10640
    %10769 = vst [vmem:[#allocation2 + $0x370] sm:$0xff] %v10641
    %10770 = vst [vmem:[#allocation2 + $0x378] sm:$0xff] %v10642
    %10771 = vst [vmem:[#allocation2 + $0x380] sm:$0xff] %v10643
    %10772 = vst [vmem:[#allocation2 + $0x388] sm:$0xff] %v10644
    %10773 = vst [vmem:[#allocation2 + $0x390] sm:$0xff] %v10645
    %10774 = vst [vmem:[#allocation2 + $0x398] sm:$0xff] %v10646
    %10775 = vst [vmem:[#allocation2 + $0x3a0] sm:$0xff] %v10647
    %10776 = vst [vmem:[#allocation2 + $0x3a8] sm:$0xff] %v10648
    %10777 = vst [vmem:[#allocation2 + $0x3b0] sm:$0xff] %v10649
    %10778 = vst [vmem:[#allocation2 + $0x3b8] sm:$0xff] %v10650
    %10779 = vst [vmem:[#allocation2 + $0x3c0] sm:$0xff] %v10651
    %10780 = vst [vmem:[#allocation2 + $0x3c8] sm:$0xff] %v10652
    %10781 = vst [vmem:[#allocation2 + $0x3d0] sm:$0xff] %v10653
    %10782 = vst [vmem:[#allocation2 + $0x3d8] sm:$0xff] %v10654
    %10783 = vst [vmem:[#allocation2 + $0x3e0] sm:$0xff] %v10655
    %10784 = vst [vmem:[#allocation2 + $0x3e8] sm:$0xff] %v10656
    %10785 = vst [vmem:[#allocation2 + $0x3f0] sm:$0xff] %v10657
    %10786 = vst [vmem:[#allocation2 + $0x3f8] sm:$0xff] %v10658
    %v10787 = vld [vmem:[#allocation2] sm:$0xff]
    %v10788 = vld [vmem:[#allocation2 + $0x8] sm:$0xff]
    %v10789 = vld [vmem:[#allocation2 + $0x10] sm:$0xff]
    %v10790 = vld [vmem:[#allocation2 + $0x18] sm:$0xff]
    %v10791 = vld [vmem:[#allocation2 + $0x20] sm:$0xff]
    %v10792 = vld [vmem:[#allocation2 + $0x28] sm:$0xff]
    %v10793 = vld [vmem:[#allocation2 + $0x30] sm:$0xff]
    %v10794 = vld [vmem:[#allocation2 + $0x38] sm:$0xff]
    %v10795 = vld [vmem:[#allocation2 + $0x40] sm:$0xff]
    %v10796 = vld [vmem:[#allocation2 + $0x48] sm:$0xff]
    %v10797 = vld [vmem:[#allocation2 + $0x50] sm:$0xff]
    %v10798 = vld [vmem:[#allocation2 + $0x58] sm:$0xff]
    %v10799 = vld [vmem:[#allocation2 + $0x60] sm:$0xff]
    %v10800 = vld [vmem:[#allocation2 + $0x68] sm:$0xff]
    %v10801 = vld [vmem:[#allocation2 + $0x70] sm:$0xff]
    %v10802 = vld [vmem:[#allocation2 + $0x78] sm:$0xff]
    %v10803 = vld [vmem:[#allocation2 + $0x80] sm:$0xff]
    %v10804 = vld [vmem:[#allocation2 + $0x88] sm:$0xff]
    %v10805 = vld [vmem:[#allocation2 + $0x90] sm:$0xff]
    %v10806 = vld [vmem:[#allocation2 + $0x98] sm:$0xff]
    %v10807 = vld [vmem:[#allocation2 + $0xa0] sm:$0xff]
    %v10808 = vld [vmem:[#allocation2 + $0xa8] sm:$0xff]
    %v10809 = vld [vmem:[#allocation2 + $0xb0] sm:$0xff]
    %v10810 = vld [vmem:[#allocation2 + $0xb8] sm:$0xff]
    %v10811 = vld [vmem:[#allocation2 + $0xc0] sm:$0xff]
    %v10812 = vld [vmem:[#allocation2 + $0xc8] sm:$0xff]
    %v10813 = vld [vmem:[#allocation2 + $0xd0] sm:$0xff]
    %v10814 = vld [vmem:[#allocation2 + $0xd8] sm:$0xff]
    %v10815 = vld [vmem:[#allocation2 + $0xe0] sm:$0xff]
    %v10816 = vld [vmem:[#allocation2 + $0xe8] sm:$0xff]
    %v10817 = vld [vmem:[#allocation2 + $0xf0] sm:$0xff]
    %v10818 = vld [vmem:[#allocation2 + $0xf8] sm:$0xff]
    %v10819 = vld [vmem:[#allocation2 + $0x100] sm:$0xff]
    %v10820 = vld [vmem:[#allocation2 + $0x108] sm:$0xff]
    %v10821 = vld [vmem:[#allocation2 + $0x110] sm:$0xff]
    %v10822 = vld [vmem:[#allocation2 + $0x118] sm:$0xff]
    %v10823 = vld [vmem:[#allocation2 + $0x120] sm:$0xff]
    %v10824 = vld [vmem:[#allocation2 + $0x128] sm:$0xff]
    %v10825 = vld [vmem:[#allocation2 + $0x130] sm:$0xff]
    %v10826 = vld [vmem:[#allocation2 + $0x138] sm:$0xff]
    %v10827 = vld [vmem:[#allocation2 + $0x140] sm:$0xff]
    %v10828 = vld [vmem:[#allocation2 + $0x148] sm:$0xff]
    %v10829 = vld [vmem:[#allocation2 + $0x150] sm:$0xff]
    %v10830 = vld [vmem:[#allocation2 + $0x158] sm:$0xff]
    %v10831 = vld [vmem:[#allocation2 + $0x160] sm:$0xff]
    %v10832 = vld [vmem:[#allocation2 + $0x168] sm:$0xff]
    %v10833 = vld [vmem:[#allocation2 + $0x170] sm:$0xff]
    %v10834 = vld [vmem:[#allocation2 + $0x178] sm:$0xff]
    %v10835 = vld [vmem:[#allocation2 + $0x180] sm:$0xff]
    %v10836 = vld [vmem:[#allocation2 + $0x188] sm:$0xff]
    %v10837 = vld [vmem:[#allocation2 + $0x190] sm:$0xff]
    %v10838 = vld [vmem:[#allocation2 + $0x198] sm:$0xff]
    %v10839 = vld [vmem:[#allocation2 + $0x1a0] sm:$0xff]
    %v10840 = vld [vmem:[#allocation2 + $0x1a8] sm:$0xff]
    %v10841 = vld [vmem:[#allocation2 + $0x1b0] sm:$0xff]
    %v10842 = vld [vmem:[#allocation2 + $0x1b8] sm:$0xff]
    %v10843 = vld [vmem:[#allocation2 + $0x1c0] sm:$0xff]
    %v10844 = vld [vmem:[#allocation2 + $0x1c8] sm:$0xff]
    %v10845 = vld [vmem:[#allocation2 + $0x1d0] sm:$0xff]
    %v10846 = vld [vmem:[#allocation2 + $0x1d8] sm:$0xff]
    %v10847 = vld [vmem:[#allocation2 + $0x1e0] sm:$0xff]
    %v10848 = vld [vmem:[#allocation2 + $0x1e8] sm:$0xff]
    %v10849 = vld [vmem:[#allocation2 + $0x1f0] sm:$0xff]
    %v10850 = vld [vmem:[#allocation2 + $0x1f8] sm:$0xff]
    %v10851 = vld [vmem:[#allocation2 + $0x200] sm:$0xff]
    %v10852 = vld [vmem:[#allocation2 + $0x208] sm:$0xff]
    %v10853 = vld [vmem:[#allocation2 + $0x210] sm:$0xff]
    %v10854 = vld [vmem:[#allocation2 + $0x218] sm:$0xff]
    %v10855 = vld [vmem:[#allocation2 + $0x220] sm:$0xff]
    %v10856 = vld [vmem:[#allocation2 + $0x228] sm:$0xff]
    %v10857 = vld [vmem:[#allocation2 + $0x230] sm:$0xff]
    %v10858 = vld [vmem:[#allocation2 + $0x238] sm:$0xff]
    %v10859 = vld [vmem:[#allocation2 + $0x240] sm:$0xff]
    %v10860 = vld [vmem:[#allocation2 + $0x248] sm:$0xff]
    %v10861 = vld [vmem:[#allocation2 + $0x250] sm:$0xff]
    %v10862 = vld [vmem:[#allocation2 + $0x258] sm:$0xff]
    %v10863 = vld [vmem:[#allocation2 + $0x260] sm:$0xff]
    %v10864 = vld [vmem:[#allocation2 + $0x268] sm:$0xff]
    %v10865 = vld [vmem:[#allocation2 + $0x270] sm:$0xff]
    %v10866 = vld [vmem:[#allocation2 + $0x278] sm:$0xff]
    %v10867 = vld [vmem:[#allocation2 + $0x280] sm:$0xff]
    %v10868 = vld [vmem:[#allocation2 + $0x288] sm:$0xff]
    %v10869 = vld [vmem:[#allocation2 + $0x290] sm:$0xff]
    %v10870 = vld [vmem:[#allocation2 + $0x298] sm:$0xff]
    %v10871 = vld [vmem:[#allocation2 + $0x2a0] sm:$0xff]
    %v10872 = vld [vmem:[#allocation2 + $0x2a8] sm:$0xff]
    %v10873 = vld [vmem:[#allocation2 + $0x2b0] sm:$0xff]
    %v10874 = vld [vmem:[#allocation2 + $0x2b8] sm:$0xff]
    %v10875 = vld [vmem:[#allocation2 + $0x2c0] sm:$0xff]
    %v10876 = vld [vmem:[#allocation2 + $0x2c8] sm:$0xff]
    %v10877 = vld [vmem:[#allocation2 + $0x2d0] sm:$0xff]
    %v10878 = vld [vmem:[#allocation2 + $0x2d8] sm:$0xff]
    %v10879 = vld [vmem:[#allocation2 + $0x2e0] sm:$0xff]
    %v10880 = vld [vmem:[#allocation2 + $0x2e8] sm:$0xff]
    %v10881 = vld [vmem:[#allocation2 + $0x2f0] sm:$0xff]
    %v10882 = vld [vmem:[#allocation2 + $0x2f8] sm:$0xff]
    %v10883 = vld [vmem:[#allocation2 + $0x300] sm:$0xff]
    %v10884 = vld [vmem:[#allocation2 + $0x308] sm:$0xff]
    %v10885 = vld [vmem:[#allocation2 + $0x310] sm:$0xff]
    %v10886 = vld [vmem:[#allocation2 + $0x318] sm:$0xff]
    %v10887 = vld [vmem:[#allocation2 + $0x320] sm:$0xff]
    %v10888 = vld [vmem:[#allocation2 + $0x328] sm:$0xff]
    %v10889 = vld [vmem:[#allocation2 + $0x330] sm:$0xff]
    %v10890 = vld [vmem:[#allocation2 + $0x338] sm:$0xff]
    %v10891 = vld [vmem:[#allocation2 + $0x340] sm:$0xff]
    %v10892 = vld [vmem:[#allocation2 + $0x348] sm:$0xff]
    %v10893 = vld [vmem:[#allocation2 + $0x350] sm:$0xff]
    %v10894 = vld [vmem:[#allocation2 + $0x358] sm:$0xff]
    %v10895 = vld [vmem:[#allocation2 + $0x360] sm:$0xff]
    %v10896 = vld [vmem:[#allocation2 + $0x368] sm:$0xff]
    %v10897 = vld [vmem:[#allocation2 + $0x370] sm:$0xff]
    %v10898 = vld [vmem:[#allocation2 + $0x378] sm:$0xff]
    %v10899 = vld [vmem:[#allocation2 + $0x380] sm:$0xff]
    %v10900 = vld [vmem:[#allocation2 + $0x388] sm:$0xff]
    %v10901 = vld [vmem:[#allocation2 + $0x390] sm:$0xff]
    %v10902 = vld [vmem:[#allocation2 + $0x398] sm:$0xff]
    %v10903 = vld [vmem:[#allocation2 + $0x3a0] sm:$0xff]
    %v10904 = vld [vmem:[#allocation2 + $0x3a8] sm:$0xff]
    %v10905 = vld [vmem:[#allocation2 + $0x3b0] sm:$0xff]
    %v10906 = vld [vmem:[#allocation2 + $0x3b8] sm:$0xff]
    %v10907 = vld [vmem:[#allocation2 + $0x3c0] sm:$0xff]
    %v10908 = vld [vmem:[#allocation2 + $0x3c8] sm:$0xff]
    %v10909 = vld [vmem:[#allocation2 + $0x3d0] sm:$0xff]
    %v10910 = vld [vmem:[#allocation2 + $0x3d8] sm:$0xff]
    %v10911 = vld [vmem:[#allocation2 + $0x3e0] sm:$0xff]
    %v10912 = vld [vmem:[#allocation2 + $0x3e8] sm:$0xff]
    %v10913 = vld [vmem:[#allocation2 + $0x3f0] sm:$0xff]
    %v10914 = vld [vmem:[#allocation2 + $0x3f8] sm:$0xff]
    %v10915 = vld [vmem:[%s2] sm:$0xf]
    %v10917 = vlaneseq
    %v10918 = vshrl.u32 %v10917, 7
    %v10919 = vsub.s32 0, %v10918
    %v10920 = vrot.slane %v10915, %v10919
    %v10921 = vlaneseq
    %v10922 = vshrl.u32 %v10921, 7
    %v10923 = vsub.s32 1, %v10922
    %v10924 = vrot.slane %v10915, %v10923
    %v10925 = vlaneseq
    %v10926 = vshrl.u32 %v10925, 7
    %v10927 = vsub.s32 2, %v10926
    %v10928 = vrot.slane %v10915, %v10927
    %v10929 = vlaneseq
    %v10930 = vshrl.u32 %v10929, 7
    %v10931 = vsub.s32 3, %v10930
    %v10932 = vrot.slane %v10915, %v10931
    %v10937 = vadd.f32 %v10787, %v10920
    %v10938 = vadd.f32 %v10788, %v10924
    %v10939 = vadd.f32 %v10789, %v10928
    %v10940 = vadd.f32 %v10790, %v10932
    %v10941 = vadd.f32 %v10791, %v10920
    %v10942 = vadd.f32 %v10792, %v10924
    %v10943 = vadd.f32 %v10793, %v10928
    %v10944 = vadd.f32 %v10794, %v10932
    %v10945 = vadd.f32 %v10795, %v10920
    %v10946 = vadd.f32 %v10796, %v10924
    %v10947 = vadd.f32 %v10797, %v10928
    %v10948 = vadd.f32 %v10798, %v10932
    %v10949 = vadd.f32 %v10799, %v10920
    %v10950 = vadd.f32 %v10800, %v10924
    %v10951 = vadd.f32 %v10801, %v10928
    %v10952 = vadd.f32 %v10802, %v10932
    %v10953 = vadd.f32 %v10803, %v10920
    %v10954 = vadd.f32 %v10804, %v10924
    %v10955 = vadd.f32 %v10805, %v10928
    %v10956 = vadd.f32 %v10806, %v10932
    %v10957 = vadd.f32 %v10807, %v10920
    %v10958 = vadd.f32 %v10808, %v10924
    %v10959 = vadd.f32 %v10809, %v10928
    %v10960 = vadd.f32 %v10810, %v10932
    %v10961 = vadd.f32 %v10811, %v10920
    %v10962 = vadd.f32 %v10812, %v10924
    %v10963 = vadd.f32 %v10813, %v10928
    %v10964 = vadd.f32 %v10814, %v10932
    %v10965 = vadd.f32 %v10815, %v10920
    %v10966 = vadd.f32 %v10816, %v10924
    %v10967 = vadd.f32 %v10817, %v10928
    %v10968 = vadd.f32 %v10818, %v10932
    %v10969 = vadd.f32 %v10819, %v10920
    %v10970 = vadd.f32 %v10820, %v10924
    %v10971 = vadd.f32 %v10821, %v10928
    %v10972 = vadd.f32 %v10822, %v10932
    %v10973 = vadd.f32 %v10823, %v10920
    %v10974 = vadd.f32 %v10824, %v10924
    %v10975 = vadd.f32 %v10825, %v10928
    %v10976 = vadd.f32 %v10826, %v10932
    %v10977 = vadd.f32 %v10827, %v10920
    %v10978 = vadd.f32 %v10828, %v10924
    %v10979 = vadd.f32 %v10829, %v10928
    %v10980 = vadd.f32 %v10830, %v10932
    %v10981 = vadd.f32 %v10831, %v10920
    %v10982 = vadd.f32 %v10832, %v10924
    %v10983 = vadd.f32 %v10833, %v10928
    %v10984 = vadd.f32 %v10834, %v10932
    %v10985 = vadd.f32 %v10835, %v10920
    %v10986 = vadd.f32 %v10836, %v10924
    %v10987 = vadd.f32 %v10837, %v10928
    %v10988 = vadd.f32 %v10838, %v10932
    %v10989 = vadd.f32 %v10839, %v10920
    %v10990 = vadd.f32 %v10840, %v10924
    %v10991 = vadd.f32 %v10841, %v10928
    %v10992 = vadd.f32 %v10842, %v10932
    %v10993 = vadd.f32 %v10843, %v10920
    %v10994 = vadd.f32 %v10844, %v10924
    %v10995 = vadd.f32 %v10845, %v10928
    %v10996 = vadd.f32 %v10846, %v10932
    %v10997 = vadd.f32 %v10847, %v10920
    %v10998 = vadd.f32 %v10848, %v10924
    %v10999 = vadd.f32 %v10849, %v10928
    %v11000 = vadd.f32 %v10850, %v10932
    %v11001 = vadd.f32 %v10851, %v10920
    %v11002 = vadd.f32 %v10852, %v10924
    %v11003 = vadd.f32 %v10853, %v10928
    %v11004 = vadd.f32 %v10854, %v10932
    %v11005 = vadd.f32 %v10855, %v10920
    %v11006 = vadd.f32 %v10856, %v10924
    %v11007 = vadd.f32 %v10857, %v10928
    %v11008 = vadd.f32 %v10858, %v10932
    %v11009 = vadd.f32 %v10859, %v10920
    %v11010 = vadd.f32 %v10860, %v10924
    %v11011 = vadd.f32 %v10861, %v10928
    %v11012 = vadd.f32 %v10862, %v10932
    %v11013 = vadd.f32 %v10863, %v10920
    %v11014 = vadd.f32 %v10864, %v10924
    %v11015 = vadd.f32 %v10865, %v10928
    %v11016 = vadd.f32 %v10866, %v10932
    %v11017 = vadd.f32 %v10867, %v10920
    %v11018 = vadd.f32 %v10868, %v10924
    %v11019 = vadd.f32 %v10869, %v10928
    %v11020 = vadd.f32 %v10870, %v10932
    %v11021 = vadd.f32 %v10871, %v10920
    %v11022 = vadd.f32 %v10872, %v10924
    %v11023 = vadd.f32 %v10873, %v10928
    %v11024 = vadd.f32 %v10874, %v10932
    %v11025 = vadd.f32 %v10875, %v10920
    %v11026 = vadd.f32 %v10876, %v10924
    %v11027 = vadd.f32 %v10877, %v10928
    %v11028 = vadd.f32 %v10878, %v10932
    %v11029 = vadd.f32 %v10879, %v10920
    %v11030 = vadd.f32 %v10880, %v10924
    %v11031 = vadd.f32 %v10881, %v10928
    %v11032 = vadd.f32 %v10882, %v10932
    %v11033 = vadd.f32 %v10883, %v10920
    %v11034 = vadd.f32 %v10884, %v10924
    %v11035 = vadd.f32 %v10885, %v10928
    %v11036 = vadd.f32 %v10886, %v10932
    %v11037 = vadd.f32 %v10887, %v10920
    %v11038 = vadd.f32 %v10888, %v10924
    %v11039 = vadd.f32 %v10889, %v10928
    %v11040 = vadd.f32 %v10890, %v10932
    %v11041 = vadd.f32 %v10891, %v10920
    %v11042 = vadd.f32 %v10892, %v10924
    %v11043 = vadd.f32 %v10893, %v10928
    %v11044 = vadd.f32 %v10894, %v10932
    %v11045 = vadd.f32 %v10895, %v10920
    %v11046 = vadd.f32 %v10896, %v10924
    %v11047 = vadd.f32 %v10897, %v10928
    %v11048 = vadd.f32 %v10898, %v10932
    %v11049 = vadd.f32 %v10899, %v10920
    %v11050 = vadd.f32 %v10900, %v10924
    %v11051 = vadd.f32 %v10901, %v10928
    %v11052 = vadd.f32 %v10902, %v10932
    %v11053 = vadd.f32 %v10903, %v10920
    %v11054 = vadd.f32 %v10904, %v10924
    %v11055 = vadd.f32 %v10905, %v10928
    %v11056 = vadd.f32 %v10906, %v10932
    %v11057 = vadd.f32 %v10907, %v10920
    %v11058 = vadd.f32 %v10908, %v10924
    %v11059 = vadd.f32 %v10909, %v10928
    %v11060 = vadd.f32 %v10910, %v10932
    %v11061 = vadd.f32 %v10911, %v10920
    %v11062 = vadd.f32 %v10912, %v10924
    %v11063 = vadd.f32 %v10913, %v10928
    %v11064 = vadd.f32 %v10914, %v10932
    %v11065 = vmax.f32 %v10937, 0.0
    %v11066 = vmax.f32 %v10938, 0.0
    %v11067 = vmax.f32 %v10939, 0.0
    %v11068 = vmax.f32 %v10940, 0.0
    %v11069 = vmax.f32 %v10941, 0.0
    %v11070 = vmax.f32 %v10942, 0.0
    %v11071 = vmax.f32 %v10943, 0.0
    %v11072 = vmax.f32 %v10944, 0.0
    %v11073 = vmax.f32 %v10945, 0.0
    %v11074 = vmax.f32 %v10946, 0.0
    %v11075 = vmax.f32 %v10947, 0.0
    %v11076 = vmax.f32 %v10948, 0.0
    %v11077 = vmax.f32 %v10949, 0.0
    %v11078 = vmax.f32 %v10950, 0.0
    %v11079 = vmax.f32 %v10951, 0.0
    %v11080 = vmax.f32 %v10952, 0.0
    %v11081 = vmax.f32 %v10953, 0.0
    %v11082 = vmax.f32 %v10954, 0.0
    %v11083 = vmax.f32 %v10955, 0.0
    %v11084 = vmax.f32 %v10956, 0.0
    %v11085 = vmax.f32 %v10957, 0.0
    %v11086 = vmax.f32 %v10958, 0.0
    %v11087 = vmax.f32 %v10959, 0.0
    %v11088 = vmax.f32 %v10960, 0.0
    %v11089 = vmax.f32 %v10961, 0.0
    %v11090 = vmax.f32 %v10962, 0.0
    %v11091 = vmax.f32 %v10963, 0.0
    %v11092 = vmax.f32 %v10964, 0.0
    %v11093 = vmax.f32 %v10965, 0.0
    %v11094 = vmax.f32 %v10966, 0.0
    %v11095 = vmax.f32 %v10967, 0.0
    %v11096 = vmax.f32 %v10968, 0.0
    %v11097 = vmax.f32 %v10969, 0.0
    %v11098 = vmax.f32 %v10970, 0.0
    %v11099 = vmax.f32 %v10971, 0.0
    %v11100 = vmax.f32 %v10972, 0.0
    %v11101 = vmax.f32 %v10973, 0.0
    %v11102 = vmax.f32 %v10974, 0.0
    %v11103 = vmax.f32 %v10975, 0.0
    %v11104 = vmax.f32 %v10976, 0.0
    %v11105 = vmax.f32 %v10977, 0.0
    %v11106 = vmax.f32 %v10978, 0.0
    %v11107 = vmax.f32 %v10979, 0.0
    %v11108 = vmax.f32 %v10980, 0.0
    %v11109 = vmax.f32 %v10981, 0.0
    %v11110 = vmax.f32 %v10982, 0.0
    %v11111 = vmax.f32 %v10983, 0.0
    %v11112 = vmax.f32 %v10984, 0.0
    %v11113 = vmax.f32 %v10985, 0.0
    %v11114 = vmax.f32 %v10986, 0.0
    %v11115 = vmax.f32 %v10987, 0.0
    %v11116 = vmax.f32 %v10988, 0.0
    %v11117 = vmax.f32 %v10989, 0.0
    %v11118 = vmax.f32 %v10990, 0.0
    %v11119 = vmax.f32 %v10991, 0.0
    %v11120 = vmax.f32 %v10992, 0.0
    %v11121 = vmax.f32 %v10993, 0.0
    %v11122 = vmax.f32 %v10994, 0.0
    %v11123 = vmax.f32 %v10995, 0.0
    %v11124 = vmax.f32 %v10996, 0.0
    %v11125 = vmax.f32 %v10997, 0.0
    %v11126 = vmax.f32 %v10998, 0.0
    %v11127 = vmax.f32 %v10999, 0.0
    %v11128 = vmax.f32 %v11000, 0.0
    %v11129 = vmax.f32 %v11001, 0.0
    %v11130 = vmax.f32 %v11002, 0.0
    %v11131 = vmax.f32 %v11003, 0.0
    %v11132 = vmax.f32 %v11004, 0.0
    %v11133 = vmax.f32 %v11005, 0.0
    %v11134 = vmax.f32 %v11006, 0.0
    %v11135 = vmax.f32 %v11007, 0.0
    %v11136 = vmax.f32 %v11008, 0.0
    %v11137 = vmax.f32 %v11009, 0.0
    %v11138 = vmax.f32 %v11010, 0.0
    %v11139 = vmax.f32 %v11011, 0.0
    %v11140 = vmax.f32 %v11012, 0.0
    %v11141 = vmax.f32 %v11013, 0.0
    %v11142 = vmax.f32 %v11014, 0.0
    %v11143 = vmax.f32 %v11015, 0.0
    %v11144 = vmax.f32 %v11016, 0.0
    %v11145 = vmax.f32 %v11017, 0.0
    %v11146 = vmax.f32 %v11018, 0.0
    %v11147 = vmax.f32 %v11019, 0.0
    %v11148 = vmax.f32 %v11020, 0.0
    %v11149 = vmax.f32 %v11021, 0.0
    %v11150 = vmax.f32 %v11022, 0.0
    %v11151 = vmax.f32 %v11023, 0.0
    %v11152 = vmax.f32 %v11024, 0.0
    %v11153 = vmax.f32 %v11025, 0.0
    %v11154 = vmax.f32 %v11026, 0.0
    %v11155 = vmax.f32 %v11027, 0.0
    %v11156 = vmax.f32 %v11028, 0.0
    %v11157 = vmax.f32 %v11029, 0.0
    %v11158 = vmax.f32 %v11030, 0.0
    %v11159 = vmax.f32 %v11031, 0.0
    %v11160 = vmax.f32 %v11032, 0.0
    %v11161 = vmax.f32 %v11033, 0.0
    %v11162 = vmax.f32 %v11034, 0.0
    %v11163 = vmax.f32 %v11035, 0.0
    %v11164 = vmax.f32 %v11036, 0.0
    %v11165 = vmax.f32 %v11037, 0.0
    %v11166 = vmax.f32 %v11038, 0.0
    %v11167 = vmax.f32 %v11039, 0.0
    %v11168 = vmax.f32 %v11040, 0.0
    %v11169 = vmax.f32 %v11041, 0.0
    %v11170 = vmax.f32 %v11042, 0.0
    %v11171 = vmax.f32 %v11043, 0.0
    %v11172 = vmax.f32 %v11044, 0.0
    %v11173 = vmax.f32 %v11045, 0.0
    %v11174 = vmax.f32 %v11046, 0.0
    %v11175 = vmax.f32 %v11047, 0.0
    %v11176 = vmax.f32 %v11048, 0.0
    %v11177 = vmax.f32 %v11049, 0.0
    %v11178 = vmax.f32 %v11050, 0.0
    %v11179 = vmax.f32 %v11051, 0.0
    %v11180 = vmax.f32 %v11052, 0.0
    %v11181 = vmax.f32 %v11053, 0.0
    %v11182 = vmax.f32 %v11054, 0.0
    %v11183 = vmax.f32 %v11055, 0.0
    %v11184 = vmax.f32 %v11056, 0.0
    %v11185 = vmax.f32 %v11057, 0.0
    %v11186 = vmax.f32 %v11058, 0.0
    %v11187 = vmax.f32 %v11059, 0.0
    %v11188 = vmax.f32 %v11060, 0.0
    %v11189 = vmax.f32 %v11061, 0.0
    %v11190 = vmax.f32 %v11062, 0.0
    %v11191 = vmax.f32 %v11063, 0.0
    %v11192 = vmax.f32 %v11064, 0.0
    %11193 = vst [vmem:[#allocation2] sm:$0xff] %v11065
    %11194 = vst [vmem:[#allocation2 + $0x8] sm:$0xff] %v11066
    %11195 = vst [vmem:[#allocation2 + $0x10] sm:$0xff] %v11067
    %11196 = vst [vmem:[#allocation2 + $0x18] sm:$0xff] %v11068
    %11197 = vst [vmem:[#allocation2 + $0x20] sm:$0xff] %v11069
    %11198 = vst [vmem:[#allocation2 + $0x28] sm:$0xff] %v11070
    %11199 = vst [vmem:[#allocation2 + $0x30] sm:$0xff] %v11071
    %11200 = vst [vmem:[#allocation2 + $0x38] sm:$0xff] %v11072
    %11201 = vst [vmem:[#allocation2 + $0x40] sm:$0xff] %v11073
    %11202 = vst [vmem:[#allocation2 + $0x48] sm:$0xff] %v11074
    %11203 = vst [vmem:[#allocation2 + $0x50] sm:$0xff] %v11075
    %11204 = vst [vmem:[#allocation2 + $0x58] sm:$0xff] %v11076
    %11205 = vst [vmem:[#allocation2 + $0x60] sm:$0xff] %v11077
    %11206 = vst [vmem:[#allocation2 + $0x68] sm:$0xff] %v11078
    %11207 = vst [vmem:[#allocation2 + $0x70] sm:$0xff] %v11079
    %11208 = vst [vmem:[#allocation2 + $0x78] sm:$0xff] %v11080
    %11209 = vst [vmem:[#allocation2 + $0x80] sm:$0xff] %v11081
    %11210 = vst [vmem:[#allocation2 + $0x88] sm:$0xff] %v11082
    %11211 = vst [vmem:[#allocation2 + $0x90] sm:$0xff] %v11083
    %11212 = vst [vmem:[#allocation2 + $0x98] sm:$0xff] %v11084
    %11213 = vst [vmem:[#allocation2 + $0xa0] sm:$0xff] %v11085
    %11214 = vst [vmem:[#allocation2 + $0xa8] sm:$0xff] %v11086
    %11215 = vst [vmem:[#allocation2 + $0xb0] sm:$0xff] %v11087
    %11216 = vst [vmem:[#allocation2 + $0xb8] sm:$0xff] %v11088
    %11217 = vst [vmem:[#allocation2 + $0xc0] sm:$0xff] %v11089
    %11218 = vst [vmem:[#allocation2 + $0xc8] sm:$0xff] %v11090
    %11219 = vst [vmem:[#allocation2 + $0xd0] sm:$0xff] %v11091
    %11220 = vst [vmem:[#allocation2 + $0xd8] sm:$0xff] %v11092
    %11221 = vst [vmem:[#allocation2 + $0xe0] sm:$0xff] %v11093
    %11222 = vst [vmem:[#allocation2 + $0xe8] sm:$0xff] %v11094
    %11223 = vst [vmem:[#allocation2 + $0xf0] sm:$0xff] %v11095
    %11224 = vst [vmem:[#allocation2 + $0xf8] sm:$0xff] %v11096
    %11225 = vst [vmem:[#allocation2 + $0x100] sm:$0xff] %v11097
    %11226 = vst [vmem:[#allocation2 + $0x108] sm:$0xff] %v11098
    %11227 = vst [vmem:[#allocation2 + $0x110] sm:$0xff] %v11099
    %11228 = vst [vmem:[#allocation2 + $0x118] sm:$0xff] %v11100
    %11229 = vst [vmem:[#allocation2 + $0x120] sm:$0xff] %v11101
    %11230 = vst [vmem:[#allocation2 + $0x128] sm:$0xff] %v11102
    %11231 = vst [vmem:[#allocation2 + $0x130] sm:$0xff] %v11103
    %11232 = vst [vmem:[#allocation2 + $0x138] sm:$0xff] %v11104
    %11233 = vst [vmem:[#allocation2 + $0x140] sm:$0xff] %v11105
    %11234 = vst [vmem:[#allocation2 + $0x148] sm:$0xff] %v11106
    %11235 = vst [vmem:[#allocation2 + $0x150] sm:$0xff] %v11107
    %11236 = vst [vmem:[#allocation2 + $0x158] sm:$0xff] %v11108
    %11237 = vst [vmem:[#allocation2 + $0x160] sm:$0xff] %v11109
    %11238 = vst [vmem:[#allocation2 + $0x168] sm:$0xff] %v11110
    %11239 = vst [vmem:[#allocation2 + $0x170] sm:$0xff] %v11111
    %11240 = vst [vmem:[#allocation2 + $0x178] sm:$0xff] %v11112
    %11241 = vst [vmem:[#allocation2 + $0x180] sm:$0xff] %v11113
    %11242 = vst [vmem:[#allocation2 + $0x188] sm:$0xff] %v11114
    %11243 = vst [vmem:[#allocation2 + $0x190] sm:$0xff] %v11115
    %11244 = vst [vmem:[#allocation2 + $0x198] sm:$0xff] %v11116
    %11245 = vst [vmem:[#allocation2 + $0x1a0] sm:$0xff] %v11117
    %11246 = vst [vmem:[#allocation2 + $0x1a8] sm:$0xff] %v11118
    %11247 = vst [vmem:[#allocation2 + $0x1b0] sm:$0xff] %v11119
    %11248 = vst [vmem:[#allocation2 + $0x1b8] sm:$0xff] %v11120
    %11249 = vst [vmem:[#allocation2 + $0x1c0] sm:$0xff] %v11121
    %11250 = vst [vmem:[#allocation2 + $0x1c8] sm:$0xff] %v11122
    %11251 = vst [vmem:[#allocation2 + $0x1d0] sm:$0xff] %v11123
    %11252 = vst [vmem:[#allocation2 + $0x1d8] sm:$0xff] %v11124
    %11253 = vst [vmem:[#allocation2 + $0x1e0] sm:$0xff] %v11125
    %11254 = vst [vmem:[#allocation2 + $0x1e8] sm:$0xff] %v11126
    %11255 = vst [vmem:[#allocation2 + $0x1f0] sm:$0xff] %v11127
    %11256 = vst [vmem:[#allocation2 + $0x1f8] sm:$0xff] %v11128
    %11257 = vst [vmem:[#allocation2 + $0x200] sm:$0xff] %v11129
    %11258 = vst [vmem:[#allocation2 + $0x208] sm:$0xff] %v11130
    %11259 = vst [vmem:[#allocation2 + $0x210] sm:$0xff] %v11131
    %11260 = vst [vmem:[#allocation2 + $0x218] sm:$0xff] %v11132
    %11261 = vst [vmem:[#allocation2 + $0x220] sm:$0xff] %v11133
    %11262 = vst [vmem:[#allocation2 + $0x228] sm:$0xff] %v11134
    %11263 = vst [vmem:[#allocation2 + $0x230] sm:$0xff] %v11135
    %11264 = vst [vmem:[#allocation2 + $0x238] sm:$0xff] %v11136
    %11265 = vst [vmem:[#allocation2 + $0x240] sm:$0xff] %v11137
    %11266 = vst [vmem:[#allocation2 + $0x248] sm:$0xff] %v11138
    %11267 = vst [vmem:[#allocation2 + $0x250] sm:$0xff] %v11139
    %11268 = vst [vmem:[#allocation2 + $0x258] sm:$0xff] %v11140
    %11269 = vst [vmem:[#allocation2 + $0x260] sm:$0xff] %v11141
    %11270 = vst [vmem:[#allocation2 + $0x268] sm:$0xff] %v11142
    %11271 = vst [vmem:[#allocation2 + $0x270] sm:$0xff] %v11143
    %11272 = vst [vmem:[#allocation2 + $0x278] sm:$0xff] %v11144
    %11273 = vst [vmem:[#allocation2 + $0x280] sm:$0xff] %v11145
    %11274 = vst [vmem:[#allocation2 + $0x288] sm:$0xff] %v11146
    %11275 = vst [vmem:[#allocation2 + $0x290] sm:$0xff] %v11147
    %11276 = vst [vmem:[#allocation2 + $0x298] sm:$0xff] %v11148
    %11277 = vst [vmem:[#allocation2 + $0x2a0] sm:$0xff] %v11149
    %11278 = vst [vmem:[#allocation2 + $0x2a8] sm:$0xff] %v11150
    %11279 = vst [vmem:[#allocation2 + $0x2b0] sm:$0xff] %v11151
    %11280 = vst [vmem:[#allocation2 + $0x2b8] sm:$0xff] %v11152
    %11281 = vst [vmem:[#allocation2 + $0x2c0] sm:$0xff] %v11153
    %11282 = vst [vmem:[#allocation2 + $0x2c8] sm:$0xff] %v11154
    %11283 = vst [vmem:[#allocation2 + $0x2d0] sm:$0xff] %v11155
    %11284 = vst [vmem:[#allocation2 + $0x2d8] sm:$0xff] %v11156
    %11285 = vst [vmem:[#allocation2 + $0x2e0] sm:$0xff] %v11157
    %11286 = vst [vmem:[#allocation2 + $0x2e8] sm:$0xff] %v11158
    %11287 = vst [vmem:[#allocation2 + $0x2f0] sm:$0xff] %v11159
    %11288 = vst [vmem:[#allocation2 + $0x2f8] sm:$0xff] %v11160
    %11289 = vst [vmem:[#allocation2 + $0x300] sm:$0xff] %v11161
    %11290 = vst [vmem:[#allocation2 + $0x308] sm:$0xff] %v11162
    %11291 = vst [vmem:[#allocation2 + $0x310] sm:$0xff] %v11163
    %11292 = vst [vmem:[#allocation2 + $0x318] sm:$0xff] %v11164
    %11293 = vst [vmem:[#allocation2 + $0x320] sm:$0xff] %v11165
    %11294 = vst [vmem:[#allocation2 + $0x328] sm:$0xff] %v11166
    %11295 = vst [vmem:[#allocation2 + $0x330] sm:$0xff] %v11167
    %11296 = vst [vmem:[#allocation2 + $0x338] sm:$0xff] %v11168
    %11297 = vst [vmem:[#allocation2 + $0x340] sm:$0xff] %v11169
    %11298 = vst [vmem:[#allocation2 + $0x348] sm:$0xff] %v11170
    %11299 = vst [vmem:[#allocation2 + $0x350] sm:$0xff] %v11171
    %11300 = vst [vmem:[#allocation2 + $0x358] sm:$0xff] %v11172
    %11301 = vst [vmem:[#allocation2 + $0x360] sm:$0xff] %v11173
    %11302 = vst [vmem:[#allocation2 + $0x368] sm:$0xff] %v11174
    %11303 = vst [vmem:[#allocation2 + $0x370] sm:$0xff] %v11175
    %11304 = vst [vmem:[#allocation2 + $0x378] sm:$0xff] %v11176
    %11305 = vst [vmem:[#allocation2 + $0x380] sm:$0xff] %v11177
    %11306 = vst [vmem:[#allocation2 + $0x388] sm:$0xff] %v11178
    %11307 = vst [vmem:[#allocation2 + $0x390] sm:$0xff] %v11179
    %11308 = vst [vmem:[#allocation2 + $0x398] sm:$0xff] %v11180
    %11309 = vst [vmem:[#allocation2 + $0x3a0] sm:$0xff] %v11181
    %11310 = vst [vmem:[#allocation2 + $0x3a8] sm:$0xff] %v11182
    %11311 = vst [vmem:[#allocation2 + $0x3b0] sm:$0xff] %v11183
    %11312 = vst [vmem:[#allocation2 + $0x3b8] sm:$0xff] %v11184
    %11313 = vst [vmem:[#allocation2 + $0x3c0] sm:$0xff] %v11185
    %11314 = vst [vmem:[#allocation2 + $0x3c8] sm:$0xff] %v11186
    %11315 = vst [vmem:[#allocation2 + $0x3d0] sm:$0xff] %v11187
    %11316 = vst [vmem:[#allocation2 + $0x3d8] sm:$0xff] %v11188
    %11317 = vst [vmem:[#allocation2 + $0x3e0] sm:$0xff] %v11189
    %11318 = vst [vmem:[#allocation2 + $0x3e8] sm:$0xff] %v11190
    %11319 = vst [vmem:[#allocation2 + $0x3f0] sm:$0xff] %v11191
    %11320 = vst [vmem:[#allocation2 + $0x3f8] sm:$0xff] %v11192
    %v11321 = vld [vmem:[#allocation2] sm:$0xff]
    %v11322 = vld [vmem:[#allocation2 + $0x8] sm:$0xff]
    %v11323 = vld [vmem:[#allocation2 + $0x10] sm:$0xff]
    %v11324 = vld [vmem:[#allocation2 + $0x18] sm:$0xff]
    %v11325 = vld [vmem:[#allocation2 + $0x20] sm:$0xff]
    %v11326 = vld [vmem:[#allocation2 + $0x28] sm:$0xff]
    %v11327 = vld [vmem:[#allocation2 + $0x30] sm:$0xff]
    %v11328 = vld [vmem:[#allocation2 + $0x38] sm:$0xff]
    %v11329 = vld [vmem:[#allocation2 + $0x40] sm:$0xff]
    %v11330 = vld [vmem:[#allocation2 + $0x48] sm:$0xff]
    %v11331 = vld [vmem:[#allocation2 + $0x50] sm:$0xff]
    %v11332 = vld [vmem:[#allocation2 + $0x58] sm:$0xff]
    %v11333 = vld [vmem:[#allocation2 + $0x60] sm:$0xff]
    %v11334 = vld [vmem:[#allocation2 + $0x68] sm:$0xff]
    %v11335 = vld [vmem:[#allocation2 + $0x70] sm:$0xff]
    %v11336 = vld [vmem:[#allocation2 + $0x78] sm:$0xff]
    %v11337 = vld [vmem:[#allocation2 + $0x80] sm:$0xff]
    %v11338 = vld [vmem:[#allocation2 + $0x88] sm:$0xff]
    %v11339 = vld [vmem:[#allocation2 + $0x90] sm:$0xff]
    %v11340 = vld [vmem:[#allocation2 + $0x98] sm:$0xff]
    %v11341 = vld [vmem:[#allocation2 + $0xa0] sm:$0xff]
    %v11342 = vld [vmem:[#allocation2 + $0xa8] sm:$0xff]
    %v11343 = vld [vmem:[#allocation2 + $0xb0] sm:$0xff]
    %v11344 = vld [vmem:[#allocation2 + $0xb8] sm:$0xff]
    %v11345 = vld [vmem:[#allocation2 + $0xc0] sm:$0xff]
    %v11346 = vld [vmem:[#allocation2 + $0xc8] sm:$0xff]
    %v11347 = vld [vmem:[#allocation2 + $0xd0] sm:$0xff]
    %v11348 = vld [vmem:[#allocation2 + $0xd8] sm:$0xff]
    %v11349 = vld [vmem:[#allocation2 + $0xe0] sm:$0xff]
    %v11350 = vld [vmem:[#allocation2 + $0xe8] sm:$0xff]
    %v11351 = vld [vmem:[#allocation2 + $0xf0] sm:$0xff]
    %v11352 = vld [vmem:[#allocation2 + $0xf8] sm:$0xff]
    %v11353 = vld [vmem:[#allocation2 + $0x100] sm:$0xff]
    %v11354 = vld [vmem:[#allocation2 + $0x108] sm:$0xff]
    %v11355 = vld [vmem:[#allocation2 + $0x110] sm:$0xff]
    %v11356 = vld [vmem:[#allocation2 + $0x118] sm:$0xff]
    %v11357 = vld [vmem:[#allocation2 + $0x120] sm:$0xff]
    %v11358 = vld [vmem:[#allocation2 + $0x128] sm:$0xff]
    %v11359 = vld [vmem:[#allocation2 + $0x130] sm:$0xff]
    %v11360 = vld [vmem:[#allocation2 + $0x138] sm:$0xff]
    %v11361 = vld [vmem:[#allocation2 + $0x140] sm:$0xff]
    %v11362 = vld [vmem:[#allocation2 + $0x148] sm:$0xff]
    %v11363 = vld [vmem:[#allocation2 + $0x150] sm:$0xff]
    %v11364 = vld [vmem:[#allocation2 + $0x158] sm:$0xff]
    %v11365 = vld [vmem:[#allocation2 + $0x160] sm:$0xff]
    %v11366 = vld [vmem:[#allocation2 + $0x168] sm:$0xff]
    %v11367 = vld [vmem:[#allocation2 + $0x170] sm:$0xff]
    %v11368 = vld [vmem:[#allocation2 + $0x178] sm:$0xff]
    %v11369 = vld [vmem:[#allocation2 + $0x180] sm:$0xff]
    %v11370 = vld [vmem:[#allocation2 + $0x188] sm:$0xff]
    %v11371 = vld [vmem:[#allocation2 + $0x190] sm:$0xff]
    %v11372 = vld [vmem:[#allocation2 + $0x198] sm:$0xff]
    %v11373 = vld [vmem:[#allocation2 + $0x1a0] sm:$0xff]
    %v11374 = vld [vmem:[#allocation2 + $0x1a8] sm:$0xff]
    %v11375 = vld [vmem:[#allocation2 + $0x1b0] sm:$0xff]
    %v11376 = vld [vmem:[#allocation2 + $0x1b8] sm:$0xff]
    %v11377 = vld [vmem:[#allocation2 + $0x1c0] sm:$0xff]
    %v11378 = vld [vmem:[#allocation2 + $0x1c8] sm:$0xff]
    %v11379 = vld [vmem:[#allocation2 + $0x1d0] sm:$0xff]
    %v11380 = vld [vmem:[#allocation2 + $0x1d8] sm:$0xff]
    %v11381 = vld [vmem:[#allocation2 + $0x1e0] sm:$0xff]
    %v11382 = vld [vmem:[#allocation2 + $0x1e8] sm:$0xff]
    %v11383 = vld [vmem:[#allocation2 + $0x1f0] sm:$0xff]
    %v11384 = vld [vmem:[#allocation2 + $0x1f8] sm:$0xff]
    %v11385 = vadd.f32 %v11321, %v11325
    %v11386 = vadd.f32 %v11385, %v11329
    %v11387 = vadd.f32 %v11386, %v11333
    %v11388 = vadd.f32 %v11387, %v11337
    %v11389 = vadd.f32 %v11388, %v11341
    %v11390 = vadd.f32 %v11389, %v11345
    %v11391 = vadd.f32 %v11390, %v11349
    %v11392 = vadd.f32 %v11391, %v11353
    %v11393 = vadd.f32 %v11392, %v11357
    %v11394 = vadd.f32 %v11393, %v11361
    %v11395 = vadd.f32 %v11394, %v11365
    %v11396 = vadd.f32 %v11395, %v11369
    %v11397 = vadd.f32 %v11396, %v11373
    %v11398 = vadd.f32 %v11397, %v11377
    %v11399 = vadd.f32 %v11398, %v11381
    %v11400 = vrot.slane %v11399, 4
    %v11401 = vadd.f32 %v11399, %v11400
    %v11402 = vrot.slane %v11401, 2
    %v11403 = vadd.f32 %v11401, %v11402
    %v11404 = vrot.slane %v11403, 1
    %v11405 = vadd.f32 %v11403, %v11404
    %v11406 = vadd.f32 %v11322, %v11326
    %v11407 = vadd.f32 %v11406, %v11330
    %v11408 = vadd.f32 %v11407, %v11334
    %v11409 = vadd.f32 %v11408, %v11338
    %v11410 = vadd.f32 %v11409, %v11342
    %v11411 = vadd.f32 %v11410, %v11346
    %v11412 = vadd.f32 %v11411, %v11350
    %v11413 = vadd.f32 %v11412, %v11354
    %v11414 = vadd.f32 %v11413, %v11358
    %v11415 = vadd.f32 %v11414, %v11362
    %v11416 = vadd.f32 %v11415, %v11366
    %v11417 = vadd.f32 %v11416, %v11370
    %v11418 = vadd.f32 %v11417, %v11374
    %v11419 = vadd.f32 %v11418, %v11378
    %v11420 = vadd.f32 %v11419, %v11382
    %v11421 = vrot.slane %v11420, 4
    %v11422 = vadd.f32 %v11420, %v11421
    %v11423 = vrot.slane %v11422, 2
    %v11424 = vadd.f32 %v11422, %v11423
    %v11425 = vrot.slane %v11424, 1
    %v11426 = vadd.f32 %v11424, %v11425
    %v11427 = vadd.f32 %v11323, %v11327
    %v11428 = vadd.f32 %v11427, %v11331
    %v11429 = vadd.f32 %v11428, %v11335
    %v11430 = vadd.f32 %v11429, %v11339
    %v11431 = vadd.f32 %v11430, %v11343
    %v11432 = vadd.f32 %v11431, %v11347
    %v11433 = vadd.f32 %v11432, %v11351
    %v11434 = vadd.f32 %v11433, %v11355
    %v11435 = vadd.f32 %v11434, %v11359
    %v11436 = vadd.f32 %v11435, %v11363
    %v11437 = vadd.f32 %v11436, %v11367
    %v11438 = vadd.f32 %v11437, %v11371
    %v11439 = vadd.f32 %v11438, %v11375
    %v11440 = vadd.f32 %v11439, %v11379
    %v11441 = vadd.f32 %v11440, %v11383
    %v11442 = vrot.slane %v11441, 4
    %v11443 = vadd.f32 %v11441, %v11442
    %v11444 = vrot.slane %v11443, 2
    %v11445 = vadd.f32 %v11443, %v11444
    %v11446 = vrot.slane %v11445, 1
    %v11447 = vadd.f32 %v11445, %v11446
    %v11448 = vadd.f32 %v11324, %v11328
    %v11449 = vadd.f32 %v11448, %v11332
    %v11450 = vadd.f32 %v11449, %v11336
    %v11451 = vadd.f32 %v11450, %v11340
    %v11452 = vadd.f32 %v11451, %v11344
    %v11453 = vadd.f32 %v11452, %v11348
    %v11454 = vadd.f32 %v11453, %v11352
    %v11455 = vadd.f32 %v11454, %v11356
    %v11456 = vadd.f32 %v11455, %v11360
    %v11457 = vadd.f32 %v11456, %v11364
    %v11458 = vadd.f32 %v11457, %v11368
    %v11459 = vadd.f32 %v11458, %v11372
    %v11460 = vadd.f32 %v11459, %v11376
    %v11461 = vadd.f32 %v11460, %v11380
    %v11462 = vadd.f32 %v11461, %v11384
    %v11463 = vrot.slane %v11462, 4
    %v11464 = vadd.f32 %v11462, %v11463
    %v11465 = vrot.slane %v11464, 2
    %v11466 = vadd.f32 %v11464, %v11465
    %v11467 = vrot.slane %v11466, 1
    %v11468 = vadd.f32 %v11466, %v11467
    %v11469 = vld [vmem:[%s3] ss:$2 sm:$0xf]
    %v11471 = vlaneseq
    %v11472 = vshrl.u32 %v11471, 7
    %v11473 = vsub.s32 0, %v11472
    %v11474 = vrot.slane %v11469, %v11473
    %v11475 = vlaneseq
    %v11476 = vshrl.u32 %v11475, 7
    %v11477 = vsub.s32 1, %v11476
    %v11478 = vrot.slane %v11469, %v11477
    %v11479 = vlaneseq
    %v11480 = vshrl.u32 %v11479, 7
    %v11481 = vsub.s32 2, %v11480
    %v11482 = vrot.slane %v11469, %v11481
    %v11483 = vlaneseq
    %v11484 = vshrl.u32 %v11483, 7
    %v11485 = vsub.s32 3, %v11484
    %v11486 = vrot.slane %v11469, %v11485
    %v11491 = vmul.f32 %v11405, %v11474
    %v11492 = vmul.f32 %v11426, %v11478
    %v11493 = vmul.f32 %v11447, %v11482
    %v11494 = vmul.f32 %v11468, %v11486
    %vm11495 = vcmask 1040384
    %v11496 = vsel %vm11495, %v11491, 0.0
    %v11497 = vsel %vm11495, %v11492, 0.0
    %v11498 = vadd.f32 %v11496, %v11497
    %v11499 = vsel %vm11495, %v11493, 0.0
    %v11500 = vadd.f32 %v11498, %v11499
    %v11501 = vsel %vm11495, %v11494, 0.0
    %v11502 = vadd.f32 %v11500, %v11501
    %11503 = vadd.xlane.f32.xlu0 %v11502
    %v11504 = vpop.xlane.xlu0 %11503
    %v11505 = vld [vmem:[%s4] sm:$0x1]
    %v11506 = vadd.f32 %v11504, %v11505
    %vm11507 = vcmask 0
    %11508 = vst.msk [vmem:[#allocation6] sm:$0x1] %vm11507, %v11506
    %s11509 = scalar_lea.vmem %s3, 1
    %v11510 = vld [vmem:[%s11509] ss:$2 sm:$0xf]
    %v11512 = vlaneseq
    %v11513 = vshrl.u32 %v11512, 7
    %v11514 = vsub.s32 0, %v11513
    %v11515 = vrot.slane %v11510, %v11514
    %v11516 = vlaneseq
    %v11517 = vshrl.u32 %v11516, 7
    %v11518 = vsub.s32 1, %v11517
    %v11519 = vrot.slane %v11510, %v11518
    %v11520 = vlaneseq
    %v11521 = vshrl.u32 %v11520, 7
    %v11522 = vsub.s32 2, %v11521
    %v11523 = vrot.slane %v11510, %v11522
    %v11524 = vlaneseq
    %v11525 = vshrl.u32 %v11524, 7
    %v11526 = vsub.s32 3, %v11525
    %v11527 = vrot.slane %v11510, %v11526
    %v11532 = vmul.f32 %v11405, %v11515
    %v11533 = vmul.f32 %v11426, %v11519
    %v11534 = vmul.f32 %v11447, %v11523
    %v11535 = vmul.f32 %v11468, %v11527
    %v11536 = vsel %vm11495, %v11532, 0.0
    %v11537 = vsel %vm11495, %v11533, 0.0
    %v11538 = vadd.f32 %v11536, %v11537
    %v11539 = vsel %vm11495, %v11534, 0.0
    %v11540 = vadd.f32 %v11538, %v11539
    %v11541 = vsel %vm11495, %v11535, 0.0
    %v11542 = vadd.f32 %v11540, %v11541
    %11543 = vadd.xlane.f32.xlu0 %v11542
    %v11544 = vpop.xlane.xlu0 %11543
    %v11545 = vld [vmem:[%s4] sm:$0x1]
    %v11547 = vlaneseq
    %v11548 = vshrl.u32 %v11547, 7
    %v11549 = vsub.s32 0, %v11548
    %v11550 = vrot.slane %v11545, %v11549
    %11551 = vrot.lane.b32.xlu0 %v11550, 127
    %v11552 = vpop.permute.xlu0 %11551
    %v11554 = vadd.f32 %v11544, %v11552
    %11556 = vrot.lane.b32.xlu0 %v11554, 1
    %v11557 = vpop.permute.xlu0 %11556
    %vm11559 = vcmask 8200
    %11560 = vst.msk [vmem:[#allocation6] sm:$0x1] %vm11559, %v11557
    %v11561 = vld [vmem:[#allocation2 + $0x200] sm:$0xff]
    %v11562 = vld [vmem:[#allocation2 + $0x208] sm:$0xff]
    %v11563 = vld [vmem:[#allocation2 + $0x210] sm:$0xff]
    %v11564 = vld [vmem:[#allocation2 + $0x218] sm:$0xff]
    %v11565 = vld [vmem:[#allocation2 + $0x220] sm:$0xff]
    %v11566 = vld [vmem:[#allocation2 + $0x228] sm:$0xff]
    %v11567 = vld [vmem:[#allocation2 + $0x230] sm:$0xff]
    %v11568 = vld [vmem:[#allocation2 + $0x238] sm:$0xff]
    %v11569 = vld [vmem:[#allocation2 + $0x240] sm:$0xff]
    %v11570 = vld [vmem:[#allocation2 + $0x248] sm:$0xff]
    %v11571 = vld [vmem:[#allocation2 + $0x250] sm:$0xff]
    %v11572 = vld [vmem:[#allocation2 + $0x258] sm:$0xff]
    %v11573 = vld [vmem:[#allocation2 + $0x260] sm:$0xff]
    %v11574 = vld [vmem:[#allocation2 + $0x268] sm:$0xff]
    %v11575 = vld [vmem:[#allocation2 + $0x270] sm:$0xff]
    %v11576 = vld [vmem:[#allocation2 + $0x278] sm:$0xff]
    %v11577 = vld [vmem:[#allocation2 + $0x280] sm:$0xff]
    %v11578 = vld [vmem:[#allocation2 + $0x288] sm:$0xff]
    %v11579 = vld [vmem:[#allocation2 + $0x290] sm:$0xff]
    %v11580 = vld [vmem:[#allocation2 + $0x298] sm:$0xff]
    %v11581 = vld [vmem:[#allocation2 + $0x2a0] sm:$0xff]
    %v11582 = vld [vmem:[#allocation2 + $0x2a8] sm:$0xff]
    %v11583 = vld [vmem:[#allocation2 + $0x2b0] sm:$0xff]
    %v11584 = vld [vmem:[#allocation2 + $0x2b8] sm:$0xff]
    %v11585 = vld [vmem:[#allocation2 + $0x2c0] sm:$0xff]
    %v11586 = vld [vmem:[#allocation2 + $0x2c8] sm:$0xff]
    %v11587 = vld [vmem:[#allocation2 + $0x2d0] sm:$0xff]
    %v11588 = vld [vmem:[#allocation2 + $0x2d8] sm:$0xff]
    %v11589 = vld [vmem:[#allocation2 + $0x2e0] sm:$0xff]
    %v11590 = vld [vmem:[#allocation2 + $0x2e8] sm:$0xff]
    %v11591 = vld [vmem:[#allocation2 + $0x2f0] sm:$0xff]
    %v11592 = vld [vmem:[#allocation2 + $0x2f8] sm:$0xff]
    %v11593 = vld [vmem:[#allocation2 + $0x300] sm:$0xff]
    %v11594 = vld [vmem:[#allocation2 + $0x308] sm:$0xff]
    %v11595 = vld [vmem:[#allocation2 + $0x310] sm:$0xff]
    %v11596 = vld [vmem:[#allocation2 + $0x318] sm:$0xff]
    %v11597 = vld [vmem:[#allocation2 + $0x320] sm:$0xff]
    %v11598 = vld [vmem:[#allocation2 + $0x328] sm:$0xff]
    %v11599 = vld [vmem:[#allocation2 + $0x330] sm:$0xff]
    %v11600 = vld [vmem:[#allocation2 + $0x338] sm:$0xff]
    %v11601 = vld [vmem:[#allocation2 + $0x340] sm:$0xff]
    %v11602 = vld [vmem:[#allocation2 + $0x348] sm:$0xff]
    %v11603 = vld [vmem:[#allocation2 + $0x350] sm:$0xff]
    %v11604 = vld [vmem:[#allocation2 + $0x358] sm:$0xff]
    %v11605 = vld [vmem:[#allocation2 + $0x360] sm:$0xff]
    %v11606 = vld [vmem:[#allocation2 + $0x368] sm:$0xff]
    %v11607 = vld [vmem:[#allocation2 + $0x370] sm:$0xff]
    %v11608 = vld [vmem:[#allocation2 + $0x378] sm:$0xff]
    %v11609 = vld [vmem:[#allocation2 + $0x380] sm:$0xff]
    %v11610 = vld [vmem:[#allocation2 + $0x388] sm:$0xff]
    %v11611 = vld [vmem:[#allocation2 + $0x390] sm:$0xff]
    %v11612 = vld [vmem:[#allocation2 + $0x398] sm:$0xff]
    %v11613 = vld [vmem:[#allocation2 + $0x3a0] sm:$0xff]
    %v11614 = vld [vmem:[#allocation2 + $0x3a8] sm:$0xff]
    %v11615 = vld [vmem:[#allocation2 + $0x3b0] sm:$0xff]
    %v11616 = vld [vmem:[#allocation2 + $0x3b8] sm:$0xff]
    %v11617 = vld [vmem:[#allocation2 + $0x3c0] sm:$0xff]
    %v11618 = vld [vmem:[#allocation2 + $0x3c8] sm:$0xff]
    %v11619 = vld [vmem:[#allocation2 + $0x3d0] sm:$0xff]
    %v11620 = vld [vmem:[#allocation2 + $0x3d8] sm:$0xff]
    %v11621 = vld [vmem:[#allocation2 + $0x3e0] sm:$0xff]
    %v11622 = vld [vmem:[#allocation2 + $0x3e8] sm:$0xff]
    %v11623 = vld [vmem:[#allocation2 + $0x3f0] sm:$0xff]
    %v11624 = vld [vmem:[#allocation2 + $0x3f8] sm:$0xff]
    %v11625 = vadd.f32 %v11561, %v11565
    %v11626 = vadd.f32 %v11625, %v11569
    %v11627 = vadd.f32 %v11626, %v11573
    %v11628 = vadd.f32 %v11627, %v11577
    %v11629 = vadd.f32 %v11628, %v11581
    %v11630 = vadd.f32 %v11629, %v11585
    %v11631 = vadd.f32 %v11630, %v11589
    %v11632 = vadd.f32 %v11631, %v11593
    %v11633 = vadd.f32 %v11632, %v11597
    %v11634 = vadd.f32 %v11633, %v11601
    %v11635 = vadd.f32 %v11634, %v11605
    %v11636 = vadd.f32 %v11635, %v11609
    %v11637 = vadd.f32 %v11636, %v11613
    %v11638 = vadd.f32 %v11637, %v11617
    %v11639 = vadd.f32 %v11638, %v11621
    %v11640 = vrot.slane %v11639, 4
    %v11641 = vadd.f32 %v11639, %v11640
    %v11642 = vrot.slane %v11641, 2
    %v11643 = vadd.f32 %v11641, %v11642
    %v11644 = vrot.slane %v11643, 1
    %v11645 = vadd.f32 %v11643, %v11644
    %v11646 = vadd.f32 %v11562, %v11566
    %v11647 = vadd.f32 %v11646, %v11570
    %v11648 = vadd.f32 %v11647, %v11574
    %v11649 = vadd.f32 %v11648, %v11578
    %v11650 = vadd.f32 %v11649, %v11582
    %v11651 = vadd.f32 %v11650, %v11586
    %v11652 = vadd.f32 %v11651, %v11590
    %v11653 = vadd.f32 %v11652, %v11594
    %v11654 = vadd.f32 %v11653, %v11598
    %v11655 = vadd.f32 %v11654, %v11602
    %v11656 = vadd.f32 %v11655, %v11606
    %v11657 = vadd.f32 %v11656, %v11610
    %v11658 = vadd.f32 %v11657, %v11614
    %v11659 = vadd.f32 %v11658, %v11618
    %v11660 = vadd.f32 %v11659, %v11622
    %v11661 = vrot.slane %v11660, 4
    %v11662 = vadd.f32 %v11660, %v11661
    %v11663 = vrot.slane %v11662, 2
    %v11664 = vadd.f32 %v11662, %v11663
    %v11665 = vrot.slane %v11664, 1
    %v11666 = vadd.f32 %v11664, %v11665
    %v11667 = vadd.f32 %v11563, %v11567
    %v11668 = vadd.f32 %v11667, %v11571
    %v11669 = vadd.f32 %v11668, %v11575
    %v11670 = vadd.f32 %v11669, %v11579
    %v11671 = vadd.f32 %v11670, %v11583
    %v11672 = vadd.f32 %v11671, %v11587
    %v11673 = vadd.f32 %v11672, %v11591
    %v11674 = vadd.f32 %v11673, %v11595
    %v11675 = vadd.f32 %v11674, %v11599
    %v11676 = vadd.f32 %v11675, %v11603
    %v11677 = vadd.f32 %v11676, %v11607
    %v11678 = vadd.f32 %v11677, %v11611
    %v11679 = vadd.f32 %v11678, %v11615
    %v11680 = vadd.f32 %v11679, %v11619
    %v11681 = vadd.f32 %v11680, %v11623
    %v11682 = vrot.slane %v11681, 4
    %v11683 = vadd.f32 %v11681, %v11682
    %v11684 = vrot.slane %v11683, 2
    %v11685 = vadd.f32 %v11683, %v11684
    %v11686 = vrot.slane %v11685, 1
    %v11687 = vadd.f32 %v11685, %v11686
    %v11688 = vadd.f32 %v11564, %v11568
    %v11689 = vadd.f32 %v11688, %v11572
    %v11690 = vadd.f32 %v11689, %v11576
    %v11691 = vadd.f32 %v11690, %v11580
    %v11692 = vadd.f32 %v11691, %v11584
    %v11693 = vadd.f32 %v11692, %v11588
    %v11694 = vadd.f32 %v11693, %v11592
    %v11695 = vadd.f32 %v11694, %v11596
    %v11696 = vadd.f32 %v11695, %v11600
    %v11697 = vadd.f32 %v11696, %v11604
    %v11698 = vadd.f32 %v11697, %v11608
    %v11699 = vadd.f32 %v11698, %v11612
    %v11700 = vadd.f32 %v11699, %v11616
    %v11701 = vadd.f32 %v11700, %v11620
    %v11702 = vadd.f32 %v11701, %v11624
    %v11703 = vrot.slane %v11702, 4
    %v11704 = vadd.f32 %v11702, %v11703
    %v11705 = vrot.slane %v11704, 2
    %v11706 = vadd.f32 %v11704, %v11705
    %v11707 = vrot.slane %v11706, 1
    %v11708 = vadd.f32 %v11706, %v11707
    %v11709 = vld [vmem:[%s3] ss:$2 sm:$0xf]
    %v11711 = vlaneseq
    %v11712 = vshrl.u32 %v11711, 7
    %v11713 = vsub.s32 0, %v11712
    %v11714 = vrot.slane %v11709, %v11713
    %v11715 = vlaneseq
    %v11716 = vshrl.u32 %v11715, 7
    %v11717 = vsub.s32 1, %v11716
    %v11718 = vrot.slane %v11709, %v11717
    %v11719 = vlaneseq
    %v11720 = vshrl.u32 %v11719, 7
    %v11721 = vsub.s32 2, %v11720
    %v11722 = vrot.slane %v11709, %v11721
    %v11723 = vlaneseq
    %v11724 = vshrl.u32 %v11723, 7
    %v11725 = vsub.s32 3, %v11724
    %v11726 = vrot.slane %v11709, %v11725
    %v11731 = vmul.f32 %v11645, %v11714
    %v11732 = vmul.f32 %v11666, %v11718
    %v11733 = vmul.f32 %v11687, %v11722
    %v11734 = vmul.f32 %v11708, %v11726
    %v11735 = vsel %vm11495, %v11731, 0.0
    %v11736 = vsel %vm11495, %v11732, 0.0
    %v11737 = vadd.f32 %v11735, %v11736
    %v11738 = vsel %vm11495, %v11733, 0.0
    %v11739 = vadd.f32 %v11737, %v11738
    %v11740 = vsel %vm11495, %v11734, 0.0
    %v11741 = vadd.f32 %v11739, %v11740
    %11742 = vadd.xlane.f32.xlu0 %v11741
    %v11743 = vpop.xlane.xlu0 %11742
    %v11744 = vld [vmem:[%s4] sm:$0x1]
    %v11745 = vadd.f32 %v11743, %v11744
    %11746 = vst.msk [vmem:[#allocation6 + $0x1] sm:$0x1] %vm11507, %v11745
    %v11747 = vld [vmem:[%s11509] ss:$2 sm:$0xf]
    %v11749 = vlaneseq
    %v11750 = vshrl.u32 %v11749, 7
    %v11751 = vsub.s32 0, %v11750
    %v11752 = vrot.slane %v11747, %v11751
    %v11753 = vlaneseq
    %v11754 = vshrl.u32 %v11753, 7
    %v11755 = vsub.s32 1, %v11754
    %v11756 = vrot.slane %v11747, %v11755
    %v11757 = vlaneseq
    %v11758 = vshrl.u32 %v11757, 7
    %v11759 = vsub.s32 2, %v11758
    %v11760 = vrot.slane %v11747, %v11759
    %v11761 = vlaneseq
    %v11762 = vshrl.u32 %v11761, 7
    %v11763 = vsub.s32 3, %v11762
    %v11764 = vrot.slane %v11747, %v11763
    %v11769 = vmul.f32 %v11645, %v11752
    %v11770 = vmul.f32 %v11666, %v11756
    %v11771 = vmul.f32 %v11687, %v11760
    %v11772 = vmul.f32 %v11708, %v11764
    %v11773 = vsel %vm11495, %v11769, 0.0
    %v11774 = vsel %vm11495, %v11770, 0.0
    %v11775 = vadd.f32 %v11773, %v11774
    %v11776 = vsel %vm11495, %v11771, 0.0
    %v11777 = vadd.f32 %v11775, %v11776
    %v11778 = vsel %vm11495, %v11772, 0.0
    %v11779 = vadd.f32 %v11777, %v11778
    %11780 = vadd.xlane.f32.xlu0 %v11779
    %v11781 = vpop.xlane.xlu0 %11780
    %v11782 = vld [vmem:[%s4] sm:$0x1]
    %v11784 = vlaneseq
    %v11785 = vshrl.u32 %v11784, 7
    %v11786 = vsub.s32 0, %v11785
    %v11787 = vrot.slane %v11782, %v11786
    %11788 = vrot.lane.b32.xlu0 %v11787, 127
    %v11789 = vpop.permute.xlu0 %11788
    %v11791 = vadd.f32 %v11781, %v11789
    %11793 = vrot.lane.b32.xlu0 %v11791, 1
    %v11794 = vpop.permute.xlu0 %11793
    %11796 = vst.msk [vmem:[#allocation6 + $0x1] sm:$0x1] %vm11559, %v11794
    // Predicated region
    $region26: #{tpu_custom_call.1} parent=1 // pred_check
      _
    $region27: #{tpu_custom_call.1} parent=1 // pred_check_branch
      %11798 = sbr.rel (0) target = $region29
    $region28: #{tpu_custom_call.1} parent=1 // pred_region
      %s11800 = ssub.s32 32, 32
      %11801 = vsyncadd [#allocation5], %s11800
      %s11803 = sshll.u32 [#allocation6], 4
      %s11804 = int_to_ptr.vmem [resolvable:$true] %s11803
      %11806 = dma.vmem_to_hbm [thread:$0]  %s11804, 32, %s5, [#allocation5]
    $region29: #{tpu_custom_call.1} parent=1 // pred_fallthru
      _
    // Predicated region
    $region30: #{tpu_custom_call.1} parent=1 // pred_check
      _
    $region31: #{tpu_custom_call.1} parent=1 // pred_check_branch
      %11808 = sbr.rel (0) target = $region33
    $region32: #{tpu_custom_call.1} parent=1 // pred_region
      %11809 = dma.done [#allocation5], 32
    $region33: #{tpu_custom_call.1} parent=1 // pred_fallthru
      _
    %11810 = vsyncpa [#allocation4], 1
    %11811 = vsyncpa [#allocation5], 1

</llo_original>
